<compile_context>
chip_gen: v7x
topology: tpu7x:2x2x1
jax: 0.10.0
libtpu: 0.0.40
codegen_flags: <defaults>
</compile_context>

<pallas_src>
import jax
import jax.numpy as jnp
from jax.experimental import pallas as pl
from jax.experimental.pallas import tpu as pltpu

CIN_PAD = 8  # sublane-align the conv1 contraction dim (3 -> 8)


# ----------------------------------------------------------------------------
# Fused forward-pass kernel: everything VMEM-resident, single grid point.
# ----------------------------------------------------------------------------
def _fused_net_kernel(x_ref, p_ref, r_ref,
                      w1_ref, b1_ref, w2_ref, b2_ref,
                      wp_ref, bp_ref, wpf_ref, bpf_ref,
                      wv_ref, bv_ref, wvf1_ref, bvf1_ref, wvf2_ref, bvf2_ref,
                      policy_ref, value_ref):
    f32 = jnp.float32
    x = x_ref[...]                                   # (M, CIN_PAD), M = N*H*W
    M = x.shape[0]
    C_mid = b1_ref.shape[1]                          # 64

    # --- shared conv1: 3x3 same conv + ReLU as 9 shift-matmuls ---------------
    h = jnp.zeros((M, C_mid), f32)
    for k in range(9):
        shifted = jnp.dot(p_ref[k], x, preferred_element_type=f32)        # (M, CIN_PAD)
        h = h + jnp.dot(shifted, w1_ref[k], preferred_element_type=f32)   # (M, 64)
    h = jnp.maximum(h + b1_ref[...], 0.0)

    # --- shared conv2: 3x3 same conv + ReLU ----------------------------------
    h2 = jnp.zeros((M, C_mid), f32)
    for k in range(9):
        shifted = jnp.dot(p_ref[k], h, preferred_element_type=f32)        # (M, 64)
        h2 = h2 + jnp.dot(shifted, w2_ref[k], preferred_element_type=f32)
    h2 = jnp.maximum(h2 + b2_ref[...], 0.0)

    # --- policy head: 1x1 conv (64->2) + ReLU, then FC with NCHW flatten -----
    ph = jnp.maximum(jnp.dot(h2, wp_ref[...], preferred_element_type=f32)
                     + bp_ref[...], 0.0)                                  # (M, 2)
    # NCHW flatten order is folded into the pre-tiled per-channel FC weights:
    s = ph[:, 0:1] * wpf_ref[0] + ph[:, 1:2] * wpf_ref[1]                 # (M, A)
    policy = jnp.dot(r_ref[...], s, preferred_element_type=f32) + bpf_ref[...]
    policy_ref[...] = policy                                              # (N, A)

    # --- value head: 1x1 conv (64->1)+ReLU -> FC(HW,64)+ReLU -> FC(64,1)+tanh
    vh = jnp.maximum(jnp.dot(h2, wv_ref[...], preferred_element_type=f32)
                     + bv_ref[...], 0.0)                                  # (M, 1)
    sv = vh * wvf1_ref[...]                                               # (M, 64)
    v1 = jnp.maximum(jnp.dot(r_ref[...], sv, preferred_element_type=f32)
                     + bvf1_ref[...], 0.0)                                # (N, 64)
    value_ref[...] = jnp.tanh(jnp.dot(v1, wvf2_ref[...],
                                      preferred_element_type=f32) + bvf2_ref[...])


def _vmem_spec():
    return pl.BlockSpec(memory_space=pltpu.MemorySpace.VMEM)


# ----------------------------------------------------------------------------
# One-time constant preparation (outside jit): shift matrices, pooling matrix,
# and all pre-transposed / pre-tiled weight layouts.
# ----------------------------------------------------------------------------
def _shift_matrices(batch, H, W):
    """9 zero-padded spatial-shift matrices P_k of shape (N*H*W, N*H*W)."""
    HW = H * W
    M = batch * HW
    r = jnp.arange(M)
    n, s = r // HW, r % HW
    i, j = s // W, s % W
    mats = []
    for ki in range(3):
        for kj in range(3):
            ii, jj = i + (ki - 1), j + (kj - 1)
            valid = (ii >= 0) & (ii < H) & (jj >= 0) & (jj < W)
            src = jnp.where(valid, n * HW + ii * W + jj, 0)
            P = ((jnp.arange(M)[None, :] == src[:, None])
                 & valid[:, None]).astype(jnp.float32)
            mats.append(P)
    return jnp.stack(mats)                                   # (9, M, M)


def prepare_constants(params, batch, H, W, in_ch):
    HW = H * W
    A = HW
    c = {}
    c["P"] = _shift_matrices(batch, H, W)                    # (9, M, M)
    c["R"] = jnp.repeat(jnp.eye(batch, dtype=jnp.float32), HW, axis=1)   # (N, M)
    # conv weights -> (9, Cin, Cout) with the (ki,kj) slice on the leading axis
    w1 = jnp.transpose(params["conv1_w"], (2, 3, 1, 0)).reshape(9, in_ch, 64)
    c["w1"] = jnp.pad(w1, ((0, 0), (0, CIN_PAD - in_ch), (0, 0)))
    c["b1"] = params["conv1_b"].reshape(1, 64)
    c["w2"] = jnp.transpose(params["conv2_w"], (2, 3, 1, 0)).reshape(9, 64, 64)
    c["b2"] = params["conv2_b"].reshape(1, 64)
    # policy head
    c["wp"] = params["pconv_w"].reshape(2, 64).T             # (64, 2)
    c["bp"] = params["pconv_b"].reshape(1, 2)
    pfc = params["pfc_w"]                                    # (A, 2*HW)
    c["wpf"] = jnp.stack([jnp.tile(pfc[:, 0:HW].T, (batch, 1)),
                          jnp.tile(pfc[:, HW:2 * HW].T, (batch, 1))])  # (2, M, A)
    c["bpf"] = params["pfc_b"].reshape(1, A)
    # value head
    c["wv"] = params["vconv_w"].reshape(1, 64).T             # (64, 1)
    c["bv"] = params["vconv_b"].reshape(1, 1)
    c["wvf1"] = jnp.tile(params["vfc1_w"].T, (batch, 1))     # (M, 64)
    c["bvf1"] = params["vfc1_b"].reshape(1, 64)
    c["wvf2"] = params["vfc2_w"].T                           # (64, 1)
    c["bvf2"] = params["vfc2_b"].reshape(1, 1)
    return jax.device_put({k: v.astype(jnp.float32) for k, v in c.items()})


# ----------------------------------------------------------------------------
# Parameter init: xavier_uniform_ weights, zero biases (matches
# NeuralNetwork.initialize_weights), deterministic from PRNGKey.
# ----------------------------------------------------------------------------
def _xavier_uniform(key, shape, fan_in, fan_out):
    bound = (6.0 / (fan_in + fan_out)) ** 0.5
    return jax.random.uniform(key, shape, jnp.float32, -bound, bound)


def init_params(key, in_ch, H, W):
    num_actions = H * W
    keys = jax.random.split(key, 6)
    p = {}
    p["conv1_w"] = _xavier_uniform(keys[0], (64, in_ch, 3, 3), in_ch * 9, 64 * 9)
    p["conv1_b"] = jnp.zeros((64,), jnp.float32)
    p["conv2_w"] = _xavier_uniform(keys[1], (64, 64, 3, 3), 64 * 9, 64 * 9)
    p["conv2_b"] = jnp.zeros((64,), jnp.float32)
    p["pconv_w"] = _xavier_uniform(keys[2], (2, 64, 1, 1), 64, 2)
    p["pconv_b"] = jnp.zeros((2,), jnp.float32)
    p["pfc_w"] = _xavier_uniform(keys[3], (num_actions, 2 * H * W), 2 * H * W, num_actions)
    p["pfc_b"] = jnp.zeros((num_actions,), jnp.float32)
    p["vconv_w"] = _xavier_uniform(keys[4], (1, 64, 1, 1), 64, 1)
    p["vconv_b"] = jnp.zeros((1,), jnp.float32)
    p["vfc1_w"] = _xavier_uniform(keys[5], (64, H * W), H * W, 64)
    p["vfc1_b"] = jnp.zeros((64,), jnp.float32)
    p["vfc2_w"] = _xavier_uniform(jax.random.fold_in(key, 99), (1, 64), 64, 1)
    p["vfc2_b"] = jnp.zeros((1,), jnp.float32)
    return p


# ----------------------------------------------------------------------------
# Forward pass (mirrors NeuralNetwork.forward -> (policy_logits, value))
# ----------------------------------------------------------------------------
@jax.jit
def neural_network_forward(consts, x_nchw):
    N, C, H, W = x_nchw.shape
    M = N * H * W
    # NCHW -> row-major (n, i, j) rows x channel columns, pad channels to 8.
    x2d = jnp.transpose(x_nchw, (0, 2, 3, 1)).reshape(M, C).astype(jnp.float32)
    x2d = jnp.pad(x2d, ((0, 0), (0, CIN_PAD - C)))
    policy, value = pl.pallas_call(
        _fused_net_kernel,
        out_shape=(jax.ShapeDtypeStruct((N, H * W), jnp.float32),
                   jax.ShapeDtypeStruct((N, 1), jnp.float32)),
        in_specs=[_vmem_spec() for _ in range(17)],
        out_specs=(_vmem_spec(), _vmem_spec()),
    )(x2d, consts["P"], consts["R"],
      consts["w1"], consts["b1"], consts["w2"], consts["b2"],
      consts["wp"], consts["bp"], consts["wpf"], consts["bpf"],
      consts["wv"], consts["bv"], consts["wvf1"], consts["bvf1"],
      consts["wvf2"], consts["bvf2"])
    return policy, value


# ----------------------------------------------------------------------------
# Pure-JAX reference (for correctness validation of the fused kernel)
# ----------------------------------------------------------------------------
def reference_forward(params, x):
    dn = ("NCHW", "OIHW", "NCHW")
    conv = lambda a, w: jax.lax.conv_general_dilated(a, w, (1, 1), "SAME",
                                                     dimension_numbers=dn)
    h = jax.nn.relu(conv(x, params["conv1_w"]) + params["conv1_b"][None, :, None, None])
    h = jax.nn.relu(conv(h, params["conv2_w"]) + params["conv2_b"][None, :, None, None])
    ph = jax.nn.relu(conv(h, params["pconv_w"]) + params["pconv_b"][None, :, None, None])
    N = x.shape[0]
    policy = ph.reshape(N, -1) @ params["pfc_w"].T + params["pfc_b"]
    vh = jax.nn.relu(conv(h, params["vconv_w"]) + params["vconv_b"][None, :, None, None])
    v1 = jax.nn.relu(vh.reshape(N, -1) @ params["vfc1_w"].T + params["vfc1_b"])
    value = jnp.tanh(v1 @ params["vfc2_w"].T + params["vfc2_b"])
    return policy, value


if __name__ == "__main__":
    batch, in_ch, H, W = 2, 3, 8, 8                          # small 8x8 board, 3 planes
    key = jax.random.PRNGKey(0)
    kp, kx = jax.random.split(key)
    params = init_params(kp, in_ch, H, W)
    consts = prepare_constants(params, batch, H, W, in_ch)   # one-time, outside jit
    x = jax.random.normal(kx, (batch, in_ch, H, W), jnp.float32)   # NCHW like PyTorch

    policy_out, value_out = neural_network_forward(consts, x)
    jax.block_until_ready((policy_out, value_out))
    assert policy_out.shape == (batch, H * W)
    assert value_out.shape == (batch, 1)

    # validate fused kernel against the pure-JAX reference
    policy_ref, value_ref = reference_forward(params, x)
    assert jnp.allclose(policy_out, policy_ref, atol=2e-2, rtol=2e-2), \
        float(jnp.max(jnp.abs(policy_out - policy_ref)))
    assert jnp.allclose(value_out, value_ref, atol=2e-2, rtol=2e-2), \
        float(jnp.max(jnp.abs(value_out - value_ref)))
    print("KERNEL_OK")
</pallas_src>

<mosaic_0001>
module attributes {stable_mosaic.version = 11 : i64} {
  func.func @_fused_net_kernel(%arg0: memref<128x8xf32, #tpu.memory_space<vmem>>, %arg1: memref<9x128x128xf32, #tpu.memory_space<vmem>>, %arg2: memref<2x128xf32, #tpu.memory_space<vmem>>, %arg3: memref<9x8x64xf32, #tpu.memory_space<vmem>>, %arg4: memref<1x64xf32, #tpu.memory_space<vmem>>, %arg5: memref<9x64x64xf32, #tpu.memory_space<vmem>>, %arg6: memref<1x64xf32, #tpu.memory_space<vmem>>, %arg7: memref<64x2xf32, #tpu.memory_space<vmem>>, %arg8: memref<1x2xf32, #tpu.memory_space<vmem>>, %arg9: memref<2x128x64xf32, #tpu.memory_space<vmem>>, %arg10: memref<1x64xf32, #tpu.memory_space<vmem>>, %arg11: memref<64x1xf32, #tpu.memory_space<vmem>>, %arg12: memref<1x1xf32, #tpu.memory_space<vmem>>, %arg13: memref<128x64xf32, #tpu.memory_space<vmem>>, %arg14: memref<1x64xf32, #tpu.memory_space<vmem>>, %arg15: memref<64x1xf32, #tpu.memory_space<vmem>>, %arg16: memref<1x1xf32, #tpu.memory_space<vmem>>, %arg17: memref<2x64xf32, #tpu.memory_space<vmem>>, %arg18: memref<2x1xf32, #tpu.memory_space<vmem>>) attributes {dimension_semantics = [], scalar_prefetch = 0 : i64, scratch_operands = 0 : i64, tpu.core_type = #tpu.core_type<tc>} {
    %c0 = arith.constant 0 : index
    %c0_0 = arith.constant 0 : index
    %0 = vector.load %arg0[%c0, %c0_0] : memref<128x8xf32, #tpu.memory_space<vmem>>, vector<128x8xf32>
    %cst = arith.constant 0.000000e+00 : f32
    %1 = vector.broadcast %cst : f32 to vector<128x64xf32>
    %c0_1 = arith.constant 0 : index
    %c0_2 = arith.constant 0 : index
    %c0_3 = arith.constant 0 : index
    %2 = vector.load %arg1[%c0_1, %c0_2, %c0_3] : memref<9x128x128xf32, #tpu.memory_space<vmem>>, vector<1x128x128xf32>
    %3 = vector.shape_cast %2 : vector<1x128x128xf32> to vector<128x128xf32>
    %cst_4 = arith.constant dense<0.000000e+00> : vector<128x8xf32>
    %4 = tpu.matmul %3, %0, %cst_4 {dimension_numbers = #tpu.dot_dimension_numbers<[1], [0], [0], [1], [0, 0, 1, 1], [], []>} : vector<128x128xf32>, vector<128x8xf32>, vector<128x8xf32> -> vector<128x8xf32>
    %c0_5 = arith.constant 0 : index
    %c0_6 = arith.constant 0 : index
    %c0_7 = arith.constant 0 : index
    %5 = vector.load %arg3[%c0_5, %c0_6, %c0_7] : memref<9x8x64xf32, #tpu.memory_space<vmem>>, vector<1x8x64xf32>
    %6 = vector.shape_cast %5 : vector<1x8x64xf32> to vector<8x64xf32>
    %cst_8 = arith.constant dense<0.000000e+00> : vector<128x64xf32>
    %7 = tpu.matmul %4, %6, %cst_8 {dimension_numbers = #tpu.dot_dimension_numbers<[1], [0], [0], [1], [0, 0, 1, 1], [], []>} : vector<128x8xf32>, vector<8x64xf32>, vector<128x64xf32> -> vector<128x64xf32>
    %8 = arith.addf %1, %7 : vector<128x64xf32>
    %c1 = arith.constant 1 : index
    %c0_9 = arith.constant 0 : index
    %c0_10 = arith.constant 0 : index
    %9 = vector.load %arg1[%c1, %c0_9, %c0_10] : memref<9x128x128xf32, #tpu.memory_space<vmem>>, vector<1x128x128xf32>
    %10 = vector.shape_cast %9 : vector<1x128x128xf32> to vector<128x128xf32>
    %cst_11 = arith.constant dense<0.000000e+00> : vector<128x8xf32>
    %11 = tpu.matmul %10, %0, %cst_11 {dimension_numbers = #tpu.dot_dimension_numbers<[1], [0], [0], [1], [0, 0, 1, 1], [], []>} : vector<128x128xf32>, vector<128x8xf32>, vector<128x8xf32> -> vector<128x8xf32>
    %c1_12 = arith.constant 1 : index
    %c0_13 = arith.constant 0 : index
    %c0_14 = arith.constant 0 : index
    %12 = vector.load %arg3[%c1_12, %c0_13, %c0_14] : memref<9x8x64xf32, #tpu.memory_space<vmem>>, vector<1x8x64xf32>
    %13 = vector.shape_cast %12 : vector<1x8x64xf32> to vector<8x64xf32>
    %cst_15 = arith.constant dense<0.000000e+00> : vector<128x64xf32>
    %14 = tpu.matmul %11, %13, %cst_15 {dimension_numbers = #tpu.dot_dimension_numbers<[1], [0], [0], [1], [0, 0, 1, 1], [], []>} : vector<128x8xf32>, vector<8x64xf32>, vector<128x64xf32> -> vector<128x64xf32>
    %15 = arith.addf %8, %14 : vector<128x64xf32>
    %c2 = arith.constant 2 : index
    %c0_16 = arith.constant 0 : index
    %c0_17 = arith.constant 0 : index
    %16 = vector.load %arg1[%c2, %c0_16, %c0_17] : memref<9x128x128xf32, #tpu.memory_space<vmem>>, vector<1x128x128xf32>
    %17 = vector.shape_cast %16 : vector<1x128x128xf32> to vector<128x128xf32>
    %cst_18 = arith.constant dense<0.000000e+00> : vector<128x8xf32>
    %18 = tpu.matmul %17, %0, %cst_18 {dimension_numbers = #tpu.dot_dimension_numbers<[1], [0], [0], [1], [0, 0, 1, 1], [], []>} : vector<128x128xf32>, vector<128x8xf32>, vector<128x8xf32> -> vector<128x8xf32>
    %c2_19 = arith.constant 2 : index
    %c0_20 = arith.constant 0 : index
    %c0_21 = arith.constant 0 : index
    %19 = vector.load %arg3[%c2_19, %c0_20, %c0_21] : memref<9x8x64xf32, #tpu.memory_space<vmem>>, vector<1x8x64xf32>
    %20 = vector.shape_cast %19 : vector<1x8x64xf32> to vector<8x64xf32>
    %cst_22 = arith.constant dense<0.000000e+00> : vector<128x64xf32>
    %21 = tpu.matmul %18, %20, %cst_22 {dimension_numbers = #tpu.dot_dimension_numbers<[1], [0], [0], [1], [0, 0, 1, 1], [], []>} : vector<128x8xf32>, vector<8x64xf32>, vector<128x64xf32> -> vector<128x64xf32>
    %22 = arith.addf %15, %21 : vector<128x64xf32>
    %c3 = arith.constant 3 : index
    %c0_23 = arith.constant 0 : index
    %c0_24 = arith.constant 0 : index
    %23 = vector.load %arg1[%c3, %c0_23, %c0_24] : memref<9x128x128xf32, #tpu.memory_space<vmem>>, vector<1x128x128xf32>
    %24 = vector.shape_cast %23 : vector<1x128x128xf32> to vector<128x128xf32>
    %cst_25 = arith.constant dense<0.000000e+00> : vector<128x8xf32>
    %25 = tpu.matmul %24, %0, %cst_25 {dimension_numbers = #tpu.dot_dimension_numbers<[1], [0], [0], [1], [0, 0, 1, 1], [], []>} : vector<128x128xf32>, vector<128x8xf32>, vector<128x8xf32> -> vector<128x8xf32>
    %c3_26 = arith.constant 3 : index
    %c0_27 = arith.constant 0 : index
    %c0_28 = arith.constant 0 : index
    %26 = vector.load %arg3[%c3_26, %c0_27, %c0_28] : memref<9x8x64xf32, #tpu.memory_space<vmem>>, vector<1x8x64xf32>
    %27 = vector.shape_cast %26 : vector<1x8x64xf32> to vector<8x64xf32>
    %cst_29 = arith.constant dense<0.000000e+00> : vector<128x64xf32>
    %28 = tpu.matmul %25, %27, %cst_29 {dimension_numbers = #tpu.dot_dimension_numbers<[1], [0], [0], [1], [0, 0, 1, 1], [], []>} : vector<128x8xf32>, vector<8x64xf32>, vector<128x64xf32> -> vector<128x64xf32>
    %29 = arith.addf %22, %28 : vector<128x64xf32>
    %c4 = arith.constant 4 : index
    %c0_30 = arith.constant 0 : index
    %c0_31 = arith.constant 0 : index
    %30 = vector.load %arg1[%c4, %c0_30, %c0_31] : memref<9x128x128xf32, #tpu.memory_space<vmem>>, vector<1x128x128xf32>
    %31 = vector.shape_cast %30 : vector<1x128x128xf32> to vector<128x128xf32>
    %cst_32 = arith.constant dense<0.000000e+00> : vector<128x8xf32>
    %32 = tpu.matmul %31, %0, %cst_32 {dimension_numbers = #tpu.dot_dimension_numbers<[1], [0], [0], [1], [0, 0, 1, 1], [], []>} : vector<128x128xf32>, vector<128x8xf32>, vector<128x8xf32> -> vector<128x8xf32>
    %c4_33 = arith.constant 4 : index
    %c0_34 = arith.constant 0 : index
    %c0_35 = arith.constant 0 : index
    %33 = vector.load %arg3[%c4_33, %c0_34, %c0_35] : memref<9x8x64xf32, #tpu.memory_space<vmem>>, vector<1x8x64xf32>
    %34 = vector.shape_cast %33 : vector<1x8x64xf32> to vector<8x64xf32>
    %cst_36 = arith.constant dense<0.000000e+00> : vector<128x64xf32>
    %35 = tpu.matmul %32, %34, %cst_36 {dimension_numbers = #tpu.dot_dimension_numbers<[1], [0], [0], [1], [0, 0, 1, 1], [], []>} : vector<128x8xf32>, vector<8x64xf32>, vector<128x64xf32> -> vector<128x64xf32>
    %36 = arith.addf %29, %35 : vector<128x64xf32>
    %c5 = arith.constant 5 : index
    %c0_37 = arith.constant 0 : index
    %c0_38 = arith.constant 0 : index
    %37 = vector.load %arg1[%c5, %c0_37, %c0_38] : memref<9x128x128xf32, #tpu.memory_space<vmem>>, vector<1x128x128xf32>
    %38 = vector.shape_cast %37 : vector<1x128x128xf32> to vector<128x128xf32>
    %cst_39 = arith.constant dense<0.000000e+00> : vector<128x8xf32>
    %39 = tpu.matmul %38, %0, %cst_39 {dimension_numbers = #tpu.dot_dimension_numbers<[1], [0], [0], [1], [0, 0, 1, 1], [], []>} : vector<128x128xf32>, vector<128x8xf32>, vector<128x8xf32> -> vector<128x8xf32>
    %c5_40 = arith.constant 5 : index
    %c0_41 = arith.constant 0 : index
    %c0_42 = arith.constant 0 : index
    %40 = vector.load %arg3[%c5_40, %c0_41, %c0_42] : memref<9x8x64xf32, #tpu.memory_space<vmem>>, vector<1x8x64xf32>
    %41 = vector.shape_cast %40 : vector<1x8x64xf32> to vector<8x64xf32>
    %cst_43 = arith.constant dense<0.000000e+00> : vector<128x64xf32>
    %42 = tpu.matmul %39, %41, %cst_43 {dimension_numbers = #tpu.dot_dimension_numbers<[1], [0], [0], [1], [0, 0, 1, 1], [], []>} : vector<128x8xf32>, vector<8x64xf32>, vector<128x64xf32> -> vector<128x64xf32>
    %43 = arith.addf %36, %42 : vector<128x64xf32>
    %c6 = arith.constant 6 : index
    %c0_44 = arith.constant 0 : index
    %c0_45 = arith.constant 0 : index
    %44 = vector.load %arg1[%c6, %c0_44, %c0_45] : memref<9x128x128xf32, #tpu.memory_space<vmem>>, vector<1x128x128xf32>
    %45 = vector.shape_cast %44 : vector<1x128x128xf32> to vector<128x128xf32>
    %cst_46 = arith.constant dense<0.000000e+00> : vector<128x8xf32>
    %46 = tpu.matmul %45, %0, %cst_46 {dimension_numbers = #tpu.dot_dimension_numbers<[1], [0], [0], [1], [0, 0, 1, 1], [], []>} : vector<128x128xf32>, vector<128x8xf32>, vector<128x8xf32> -> vector<128x8xf32>
    %c6_47 = arith.constant 6 : index
    %c0_48 = arith.constant 0 : index
    %c0_49 = arith.constant 0 : index
    %47 = vector.load %arg3[%c6_47, %c0_48, %c0_49] : memref<9x8x64xf32, #tpu.memory_space<vmem>>, vector<1x8x64xf32>
    %48 = vector.shape_cast %47 : vector<1x8x64xf32> to vector<8x64xf32>
    %cst_50 = arith.constant dense<0.000000e+00> : vector<128x64xf32>
    %49 = tpu.matmul %46, %48, %cst_50 {dimension_numbers = #tpu.dot_dimension_numbers<[1], [0], [0], [1], [0, 0, 1, 1], [], []>} : vector<128x8xf32>, vector<8x64xf32>, vector<128x64xf32> -> vector<128x64xf32>
    %50 = arith.addf %43, %49 : vector<128x64xf32>
    %c7 = arith.constant 7 : index
    %c0_51 = arith.constant 0 : index
    %c0_52 = arith.constant 0 : index
    %51 = vector.load %arg1[%c7, %c0_51, %c0_52] : memref<9x128x128xf32, #tpu.memory_space<vmem>>, vector<1x128x128xf32>
    %52 = vector.shape_cast %51 : vector<1x128x128xf32> to vector<128x128xf32>
    %cst_53 = arith.constant dense<0.000000e+00> : vector<128x8xf32>
    %53 = tpu.matmul %52, %0, %cst_53 {dimension_numbers = #tpu.dot_dimension_numbers<[1], [0], [0], [1], [0, 0, 1, 1], [], []>} : vector<128x128xf32>, vector<128x8xf32>, vector<128x8xf32> -> vector<128x8xf32>
    %c7_54 = arith.constant 7 : index
    %c0_55 = arith.constant 0 : index
    %c0_56 = arith.constant 0 : index
    %54 = vector.load %arg3[%c7_54, %c0_55, %c0_56] : memref<9x8x64xf32, #tpu.memory_space<vmem>>, vector<1x8x64xf32>
    %55 = vector.shape_cast %54 : vector<1x8x64xf32> to vector<8x64xf32>
    %cst_57 = arith.constant dense<0.000000e+00> : vector<128x64xf32>
    %56 = tpu.matmul %53, %55, %cst_57 {dimension_numbers = #tpu.dot_dimension_numbers<[1], [0], [0], [1], [0, 0, 1, 1], [], []>} : vector<128x8xf32>, vector<8x64xf32>, vector<128x64xf32> -> vector<128x64xf32>
    %57 = arith.addf %50, %56 : vector<128x64xf32>
    %c8 = arith.constant 8 : index
    %c0_58 = arith.constant 0 : index
    %c0_59 = arith.constant 0 : index
    %58 = vector.load %arg1[%c8, %c0_58, %c0_59] : memref<9x128x128xf32, #tpu.memory_space<vmem>>, vector<1x128x128xf32>
    %59 = vector.shape_cast %58 : vector<1x128x128xf32> to vector<128x128xf32>
    %cst_60 = arith.constant dense<0.000000e+00> : vector<128x8xf32>
    %60 = tpu.matmul %59, %0, %cst_60 {dimension_numbers = #tpu.dot_dimension_numbers<[1], [0], [0], [1], [0, 0, 1, 1], [], []>} : vector<128x128xf32>, vector<128x8xf32>, vector<128x8xf32> -> vector<128x8xf32>
    %c8_61 = arith.constant 8 : index
    %c0_62 = arith.constant 0 : index
    %c0_63 = arith.constant 0 : index
    %61 = vector.load %arg3[%c8_61, %c0_62, %c0_63] : memref<9x8x64xf32, #tpu.memory_space<vmem>>, vector<1x8x64xf32>
    %62 = vector.shape_cast %61 : vector<1x8x64xf32> to vector<8x64xf32>
    %cst_64 = arith.constant dense<0.000000e+00> : vector<128x64xf32>
    %63 = tpu.matmul %60, %62, %cst_64 {dimension_numbers = #tpu.dot_dimension_numbers<[1], [0], [0], [1], [0, 0, 1, 1], [], []>} : vector<128x8xf32>, vector<8x64xf32>, vector<128x64xf32> -> vector<128x64xf32>
    %64 = arith.addf %57, %63 : vector<128x64xf32>
    %c0_65 = arith.constant 0 : index
    %c0_66 = arith.constant 0 : index
    %65 = vector.load %arg4[%c0_65, %c0_66] : memref<1x64xf32, #tpu.memory_space<vmem>>, vector<1x64xf32>
    %66 = vector.broadcast %65 : vector<1x64xf32> to vector<128x64xf32>
    %67 = arith.addf %64, %66 : vector<128x64xf32>
    %cst_67 = arith.constant 0.000000e+00 : f32
    %68 = vector.broadcast %cst_67 : f32 to vector<128x64xf32>
    %69 = arith.maximumf %67, %68 : vector<128x64xf32>
    %cst_68 = arith.constant 0.000000e+00 : f32
    %70 = vector.broadcast %cst_68 : f32 to vector<128x64xf32>
    %c0_69 = arith.constant 0 : index
    %c0_70 = arith.constant 0 : index
    %c0_71 = arith.constant 0 : index
    %71 = vector.load %arg1[%c0_69, %c0_70, %c0_71] : memref<9x128x128xf32, #tpu.memory_space<vmem>>, vector<1x128x128xf32>
    %72 = vector.shape_cast %71 : vector<1x128x128xf32> to vector<128x128xf32>
    %cst_72 = arith.constant dense<0.000000e+00> : vector<128x64xf32>
    %73 = tpu.matmul %72, %69, %cst_72 {dimension_numbers = #tpu.dot_dimension_numbers<[1], [0], [0], [1], [0, 0, 1, 1], [], []>} : vector<128x128xf32>, vector<128x64xf32>, vector<128x64xf32> -> vector<128x64xf32>
    %c0_73 = arith.constant 0 : index
    %c0_74 = arith.constant 0 : index
    %c0_75 = arith.constant 0 : index
    %74 = vector.load %arg5[%c0_73, %c0_74, %c0_75] : memref<9x64x64xf32, #tpu.memory_space<vmem>>, vector<1x64x64xf32>
    %75 = vector.shape_cast %74 : vector<1x64x64xf32> to vector<64x64xf32>
    %cst_76 = arith.constant dense<0.000000e+00> : vector<128x64xf32>
    %76 = tpu.matmul %73, %75, %cst_76 {dimension_numbers = #tpu.dot_dimension_numbers<[1], [0], [0], [1], [0, 0, 1, 1], [], []>} : vector<128x64xf32>, vector<64x64xf32>, vector<128x64xf32> -> vector<128x64xf32>
    %77 = arith.addf %70, %76 : vector<128x64xf32>
    %c1_77 = arith.constant 1 : index
    %c0_78 = arith.constant 0 : index
    %c0_79 = arith.constant 0 : index
    %78 = vector.load %arg1[%c1_77, %c0_78, %c0_79] : memref<9x128x128xf32, #tpu.memory_space<vmem>>, vector<1x128x128xf32>
    %79 = vector.shape_cast %78 : vector<1x128x128xf32> to vector<128x128xf32>
    %cst_80 = arith.constant dense<0.000000e+00> : vector<128x64xf32>
    %80 = tpu.matmul %79, %69, %cst_80 {dimension_numbers = #tpu.dot_dimension_numbers<[1], [0], [0], [1], [0, 0, 1, 1], [], []>} : vector<128x128xf32>, vector<128x64xf32>, vector<128x64xf32> -> vector<128x64xf32>
    %c1_81 = arith.constant 1 : index
    %c0_82 = arith.constant 0 : index
    %c0_83 = arith.constant 0 : index
    %81 = vector.load %arg5[%c1_81, %c0_82, %c0_83] : memref<9x64x64xf32, #tpu.memory_space<vmem>>, vector<1x64x64xf32>
    %82 = vector.shape_cast %81 : vector<1x64x64xf32> to vector<64x64xf32>
    %cst_84 = arith.constant dense<0.000000e+00> : vector<128x64xf32>
    %83 = tpu.matmul %80, %82, %cst_84 {dimension_numbers = #tpu.dot_dimension_numbers<[1], [0], [0], [1], [0, 0, 1, 1], [], []>} : vector<128x64xf32>, vector<64x64xf32>, vector<128x64xf32> -> vector<128x64xf32>
    %84 = arith.addf %77, %83 : vector<128x64xf32>
    %c2_85 = arith.constant 2 : index
    %c0_86 = arith.constant 0 : index
    %c0_87 = arith.constant 0 : index
    %85 = vector.load %arg1[%c2_85, %c0_86, %c0_87] : memref<9x128x128xf32, #tpu.memory_space<vmem>>, vector<1x128x128xf32>
    %86 = vector.shape_cast %85 : vector<1x128x128xf32> to vector<128x128xf32>
    %cst_88 = arith.constant dense<0.000000e+00> : vector<128x64xf32>
    %87 = tpu.matmul %86, %69, %cst_88 {dimension_numbers = #tpu.dot_dimension_numbers<[1], [0], [0], [1], [0, 0, 1, 1], [], []>} : vector<128x128xf32>, vector<128x64xf32>, vector<128x64xf32> -> vector<128x64xf32>
    %c2_89 = arith.constant 2 : index
    %c0_90 = arith.constant 0 : index
    %c0_91 = arith.constant 0 : index
    %88 = vector.load %arg5[%c2_89, %c0_90, %c0_91] : memref<9x64x64xf32, #tpu.memory_space<vmem>>, vector<1x64x64xf32>
    %89 = vector.shape_cast %88 : vector<1x64x64xf32> to vector<64x64xf32>
    %cst_92 = arith.constant dense<0.000000e+00> : vector<128x64xf32>
    %90 = tpu.matmul %87, %89, %cst_92 {dimension_numbers = #tpu.dot_dimension_numbers<[1], [0], [0], [1], [0, 0, 1, 1], [], []>} : vector<128x64xf32>, vector<64x64xf32>, vector<128x64xf32> -> vector<128x64xf32>
    %91 = arith.addf %84, %90 : vector<128x64xf32>
    %c3_93 = arith.constant 3 : index
    %c0_94 = arith.constant 0 : index
    %c0_95 = arith.constant 0 : index
    %92 = vector.load %arg1[%c3_93, %c0_94, %c0_95] : memref<9x128x128xf32, #tpu.memory_space<vmem>>, vector<1x128x128xf32>
    %93 = vector.shape_cast %92 : vector<1x128x128xf32> to vector<128x128xf32>
    %cst_96 = arith.constant dense<0.000000e+00> : vector<128x64xf32>
    %94 = tpu.matmul %93, %69, %cst_96 {dimension_numbers = #tpu.dot_dimension_numbers<[1], [0], [0], [1], [0, 0, 1, 1], [], []>} : vector<128x128xf32>, vector<128x64xf32>, vector<128x64xf32> -> vector<128x64xf32>
    %c3_97 = arith.constant 3 : index
    %c0_98 = arith.constant 0 : index
    %c0_99 = arith.constant 0 : index
    %95 = vector.load %arg5[%c3_97, %c0_98, %c0_99] : memref<9x64x64xf32, #tpu.memory_space<vmem>>, vector<1x64x64xf32>
    %96 = vector.shape_cast %95 : vector<1x64x64xf32> to vector<64x64xf32>
    %cst_100 = arith.constant dense<0.000000e+00> : vector<128x64xf32>
    %97 = tpu.matmul %94, %96, %cst_100 {dimension_numbers = #tpu.dot_dimension_numbers<[1], [0], [0], [1], [0, 0, 1, 1], [], []>} : vector<128x64xf32>, vector<64x64xf32>, vector<128x64xf32> -> vector<128x64xf32>
    %98 = arith.addf %91, %97 : vector<128x64xf32>
    %c4_101 = arith.constant 4 : index
    %c0_102 = arith.constant 0 : index
    %c0_103 = arith.constant 0 : index
    %99 = vector.load %arg1[%c4_101, %c0_102, %c0_103] : memref<9x128x128xf32, #tpu.memory_space<vmem>>, vector<1x128x128xf32>
    %100 = vector.shape_cast %99 : vector<1x128x128xf32> to vector<128x128xf32>
    %cst_104 = arith.constant dense<0.000000e+00> : vector<128x64xf32>
    %101 = tpu.matmul %100, %69, %cst_104 {dimension_numbers = #tpu.dot_dimension_numbers<[1], [0], [0], [1], [0, 0, 1, 1], [], []>} : vector<128x128xf32>, vector<128x64xf32>, vector<128x64xf32> -> vector<128x64xf32>
    %c4_105 = arith.constant 4 : index
    %c0_106 = arith.constant 0 : index
    %c0_107 = arith.constant 0 : index
    %102 = vector.load %arg5[%c4_105, %c0_106, %c0_107] : memref<9x64x64xf32, #tpu.memory_space<vmem>>, vector<1x64x64xf32>
    %103 = vector.shape_cast %102 : vector<1x64x64xf32> to vector<64x64xf32>
    %cst_108 = arith.constant dense<0.000000e+00> : vector<128x64xf32>
    %104 = tpu.matmul %101, %103, %cst_108 {dimension_numbers = #tpu.dot_dimension_numbers<[1], [0], [0], [1], [0, 0, 1, 1], [], []>} : vector<128x64xf32>, vector<64x64xf32>, vector<128x64xf32> -> vector<128x64xf32>
    %105 = arith.addf %98, %104 : vector<128x64xf32>
    %c5_109 = arith.constant 5 : index
    %c0_110 = arith.constant 0 : index
    %c0_111 = arith.constant 0 : index
    %106 = vector.load %arg1[%c5_109, %c0_110, %c0_111] : memref<9x128x128xf32, #tpu.memory_space<vmem>>, vector<1x128x128xf32>
    %107 = vector.shape_cast %106 : vector<1x128x128xf32> to vector<128x128xf32>
    %cst_112 = arith.constant dense<0.000000e+00> : vector<128x64xf32>
    %108 = tpu.matmul %107, %69, %cst_112 {dimension_numbers = #tpu.dot_dimension_numbers<[1], [0], [0], [1], [0, 0, 1, 1], [], []>} : vector<128x128xf32>, vector<128x64xf32>, vector<128x64xf32> -> vector<128x64xf32>
    %c5_113 = arith.constant 5 : index
    %c0_114 = arith.constant 0 : index
    %c0_115 = arith.constant 0 : index
    %109 = vector.load %arg5[%c5_113, %c0_114, %c0_115] : memref<9x64x64xf32, #tpu.memory_space<vmem>>, vector<1x64x64xf32>
    %110 = vector.shape_cast %109 : vector<1x64x64xf32> to vector<64x64xf32>
    %cst_116 = arith.constant dense<0.000000e+00> : vector<128x64xf32>
    %111 = tpu.matmul %108, %110, %cst_116 {dimension_numbers = #tpu.dot_dimension_numbers<[1], [0], [0], [1], [0, 0, 1, 1], [], []>} : vector<128x64xf32>, vector<64x64xf32>, vector<128x64xf32> -> vector<128x64xf32>
    %112 = arith.addf %105, %111 : vector<128x64xf32>
    %c6_117 = arith.constant 6 : index
    %c0_118 = arith.constant 0 : index
    %c0_119 = arith.constant 0 : index
    %113 = vector.load %arg1[%c6_117, %c0_118, %c0_119] : memref<9x128x128xf32, #tpu.memory_space<vmem>>, vector<1x128x128xf32>
    %114 = vector.shape_cast %113 : vector<1x128x128xf32> to vector<128x128xf32>
    %cst_120 = arith.constant dense<0.000000e+00> : vector<128x64xf32>
    %115 = tpu.matmul %114, %69, %cst_120 {dimension_numbers = #tpu.dot_dimension_numbers<[1], [0], [0], [1], [0, 0, 1, 1], [], []>} : vector<128x128xf32>, vector<128x64xf32>, vector<128x64xf32> -> vector<128x64xf32>
    %c6_121 = arith.constant 6 : index
    %c0_122 = arith.constant 0 : index
    %c0_123 = arith.constant 0 : index
    %116 = vector.load %arg5[%c6_121, %c0_122, %c0_123] : memref<9x64x64xf32, #tpu.memory_space<vmem>>, vector<1x64x64xf32>
    %117 = vector.shape_cast %116 : vector<1x64x64xf32> to vector<64x64xf32>
    %cst_124 = arith.constant dense<0.000000e+00> : vector<128x64xf32>
    %118 = tpu.matmul %115, %117, %cst_124 {dimension_numbers = #tpu.dot_dimension_numbers<[1], [0], [0], [1], [0, 0, 1, 1], [], []>} : vector<128x64xf32>, vector<64x64xf32>, vector<128x64xf32> -> vector<128x64xf32>
    %119 = arith.addf %112, %118 : vector<128x64xf32>
    %c7_125 = arith.constant 7 : index
    %c0_126 = arith.constant 0 : index
    %c0_127 = arith.constant 0 : index
    %120 = vector.load %arg1[%c7_125, %c0_126, %c0_127] : memref<9x128x128xf32, #tpu.memory_space<vmem>>, vector<1x128x128xf32>
    %121 = vector.shape_cast %120 : vector<1x128x128xf32> to vector<128x128xf32>
    %cst_128 = arith.constant dense<0.000000e+00> : vector<128x64xf32>
    %122 = tpu.matmul %121, %69, %cst_128 {dimension_numbers = #tpu.dot_dimension_numbers<[1], [0], [0], [1], [0, 0, 1, 1], [], []>} : vector<128x128xf32>, vector<128x64xf32>, vector<128x64xf32> -> vector<128x64xf32>
    %c7_129 = arith.constant 7 : index
    %c0_130 = arith.constant 0 : index
    %c0_131 = arith.constant 0 : index
    %123 = vector.load %arg5[%c7_129, %c0_130, %c0_131] : memref<9x64x64xf32, #tpu.memory_space<vmem>>, vector<1x64x64xf32>
    %124 = vector.shape_cast %123 : vector<1x64x64xf32> to vector<64x64xf32>
    %cst_132 = arith.constant dense<0.000000e+00> : vector<128x64xf32>
    %125 = tpu.matmul %122, %124, %cst_132 {dimension_numbers = #tpu.dot_dimension_numbers<[1], [0], [0], [1], [0, 0, 1, 1], [], []>} : vector<128x64xf32>, vector<64x64xf32>, vector<128x64xf32> -> vector<128x64xf32>
    %126 = arith.addf %119, %125 : vector<128x64xf32>
    %c8_133 = arith.constant 8 : index
    %c0_134 = arith.constant 0 : index
    %c0_135 = arith.constant 0 : index
    %127 = vector.load %arg1[%c8_133, %c0_134, %c0_135] : memref<9x128x128xf32, #tpu.memory_space<vmem>>, vector<1x128x128xf32>
    %128 = vector.shape_cast %127 : vector<1x128x128xf32> to vector<128x128xf32>
    %cst_136 = arith.constant dense<0.000000e+00> : vector<128x64xf32>
    %129 = tpu.matmul %128, %69, %cst_136 {dimension_numbers = #tpu.dot_dimension_numbers<[1], [0], [0], [1], [0, 0, 1, 1], [], []>} : vector<128x128xf32>, vector<128x64xf32>, vector<128x64xf32> -> vector<128x64xf32>
    %c8_137 = arith.constant 8 : index
    %c0_138 = arith.constant 0 : index
    %c0_139 = arith.constant 0 : index
    %130 = vector.load %arg5[%c8_137, %c0_138, %c0_139] : memref<9x64x64xf32, #tpu.memory_space<vmem>>, vector<1x64x64xf32>
    %131 = vector.shape_cast %130 : vector<1x64x64xf32> to vector<64x64xf32>
    %cst_140 = arith.constant dense<0.000000e+00> : vector<128x64xf32>
    %132 = tpu.matmul %129, %131, %cst_140 {dimension_numbers = #tpu.dot_dimension_numbers<[1], [0], [0], [1], [0, 0, 1, 1], [], []>} : vector<128x64xf32>, vector<64x64xf32>, vector<128x64xf32> -> vector<128x64xf32>
    %133 = arith.addf %126, %132 : vector<128x64xf32>
    %c0_141 = arith.constant 0 : index
    %c0_142 = arith.constant 0 : index
    %134 = vector.load %arg6[%c0_141, %c0_142] : memref<1x64xf32, #tpu.memory_space<vmem>>, vector<1x64xf32>
    %135 = vector.broadcast %134 : vector<1x64xf32> to vector<128x64xf32>
    %136 = arith.addf %133, %135 : vector<128x64xf32>
    %cst_143 = arith.constant 0.000000e+00 : f32
    %137 = vector.broadcast %cst_143 : f32 to vector<128x64xf32>
    %138 = arith.maximumf %136, %137 : vector<128x64xf32>
    %c0_144 = arith.constant 0 : index
    %c0_145 = arith.constant 0 : index
    %139 = vector.load %arg7[%c0_144, %c0_145] : memref<64x2xf32, #tpu.memory_space<vmem>>, vector<64x2xf32>
    %cst_146 = arith.constant dense<0.000000e+00> : vector<128x2xf32>
    %140 = tpu.matmul %138, %139, %cst_146 {dimension_numbers = #tpu.dot_dimension_numbers<[1], [0], [0], [1], [0, 0, 1, 1], [], []>} : vector<128x64xf32>, vector<64x2xf32>, vector<128x2xf32> -> vector<128x2xf32>
    %c0_147 = arith.constant 0 : index
    %c0_148 = arith.constant 0 : index
    %141 = vector.load %arg8[%c0_147, %c0_148] : memref<1x2xf32, #tpu.memory_space<vmem>>, vector<1x2xf32>
    %142 = vector.broadcast %141 : vector<1x2xf32> to vector<128x2xf32>
    %143 = arith.addf %140, %142 : vector<128x2xf32>
    %cst_149 = arith.constant 0.000000e+00 : f32
    %144 = vector.broadcast %cst_149 : f32 to vector<128x2xf32>
    %145 = arith.maximumf %143, %144 : vector<128x2xf32>
    %146 = vector.extract_strided_slice %145 {offsets = [0, 0], sizes = [128, 1], strides = [1, 1]} : vector<128x2xf32> to vector<128x1xf32>
    %c0_150 = arith.constant 0 : index
    %c0_151 = arith.constant 0 : index
    %c0_152 = arith.constant 0 : index
    %147 = vector.load %arg9[%c0_150, %c0_151, %c0_152] : memref<2x128x64xf32, #tpu.memory_space<vmem>>, vector<1x128x64xf32>
    %148 = vector.shape_cast %147 : vector<1x128x64xf32> to vector<128x64xf32>
    %149 = vector.broadcast %146 : vector<128x1xf32> to vector<128x64xf32>
    %150 = arith.mulf %149, %148 : vector<128x64xf32>
    %151 = vector.extract_strided_slice %145 {offsets = [0, 1], sizes = [128, 1], strides = [1, 1]} : vector<128x2xf32> to vector<128x1xf32>
    %c1_153 = arith.constant 1 : index
    %c0_154 = arith.constant 0 : index
    %c0_155 = arith.constant 0 : index
    %152 = vector.load %arg9[%c1_153, %c0_154, %c0_155] : memref<2x128x64xf32, #tpu.memory_space<vmem>>, vector<1x128x64xf32>
    %153 = vector.shape_cast %152 : vector<1x128x64xf32> to vector<128x64xf32>
    %154 = vector.broadcast %151 : vector<128x1xf32> to vector<128x64xf32>
    %155 = arith.mulf %154, %153 : vector<128x64xf32>
    %156 = arith.addf %150, %155 : vector<128x64xf32>
    %c0_156 = arith.constant 0 : index
    %c0_157 = arith.constant 0 : index
    %157 = vector.load %arg2[%c0_156, %c0_157] : memref<2x128xf32, #tpu.memory_space<vmem>>, vector<2x128xf32>
    %cst_158 = arith.constant dense<0.000000e+00> : vector<2x64xf32>
    %158 = tpu.matmul %157, %156, %cst_158 {dimension_numbers = #tpu.dot_dimension_numbers<[1], [0], [0], [1], [0, 0, 1, 1], [], []>} : vector<2x128xf32>, vector<128x64xf32>, vector<2x64xf32> -> vector<2x64xf32>
    %c0_159 = arith.constant 0 : index
    %c0_160 = arith.constant 0 : index
    %159 = vector.load %arg10[%c0_159, %c0_160] : memref<1x64xf32, #tpu.memory_space<vmem>>, vector<1x64xf32>
    %160 = vector.broadcast %159 : vector<1x64xf32> to vector<2x64xf32>
    %161 = arith.addf %158, %160 : vector<2x64xf32>
    %c0_161 = arith.constant 0 : index
    %c0_162 = arith.constant 0 : index
    %162 = vector.load %arg17[%c0_161, %c0_162] : memref<2x64xf32, #tpu.memory_space<vmem>>, vector<2x64xf32>
    tpu.vector_store %arg17[%c0_161, %c0_162], %161 {strides = array<i32>} : memref<2x64xf32, #tpu.memory_space<vmem>>, vector<2x64xf32>,
    %c0_163 = arith.constant 0 : index
    %c0_164 = arith.constant 0 : index
    %163 = vector.load %arg11[%c0_163, %c0_164] : memref<64x1xf32, #tpu.memory_space<vmem>>, vector<64x1xf32>
    %cst_165 = arith.constant dense<0.000000e+00> : vector<128x1xf32>
    %164 = tpu.matmul %138, %163, %cst_165 {dimension_numbers = #tpu.dot_dimension_numbers<[1], [0], [0], [1], [0, 0, 1, 1], [], []>} : vector<128x64xf32>, vector<64x1xf32>, vector<128x1xf32> -> vector<128x1xf32>
    %c0_166 = arith.constant 0 : index
    %c0_167 = arith.constant 0 : index
    %165 = vector.load %arg12[%c0_166, %c0_167] : memref<1x1xf32, #tpu.memory_space<vmem>>, vector<1x1xf32>
    %166 = vector.broadcast %165 : vector<1x1xf32> to vector<128x1xf32>
    %167 = arith.addf %164, %166 : vector<128x1xf32>
    %cst_168 = arith.constant 0.000000e+00 : f32
    %168 = vector.broadcast %cst_168 : f32 to vector<128x1xf32>
    %169 = arith.maximumf %167, %168 : vector<128x1xf32>
    %c0_169 = arith.constant 0 : index
    %c0_170 = arith.constant 0 : index
    %170 = vector.load %arg13[%c0_169, %c0_170] : memref<128x64xf32, #tpu.memory_space<vmem>>, vector<128x64xf32>
    %171 = vector.broadcast %169 : vector<128x1xf32> to vector<128x64xf32>
    %172 = arith.mulf %171, %170 : vector<128x64xf32>
    %c0_171 = arith.constant 0 : index
    %c0_172 = arith.constant 0 : index
    %173 = vector.load %arg2[%c0_171, %c0_172] : memref<2x128xf32, #tpu.memory_space<vmem>>, vector<2x128xf32>
    %cst_173 = arith.constant dense<0.000000e+00> : vector<2x64xf32>
    %174 = tpu.matmul %173, %172, %cst_173 {dimension_numbers = #tpu.dot_dimension_numbers<[1], [0], [0], [1], [0, 0, 1, 1], [], []>} : vector<2x128xf32>, vector<128x64xf32>, vector<2x64xf32> -> vector<2x64xf32>
    %c0_174 = arith.constant 0 : index
    %c0_175 = arith.constant 0 : index
    %175 = vector.load %arg14[%c0_174, %c0_175] : memref<1x64xf32, #tpu.memory_space<vmem>>, vector<1x64xf32>
    %176 = vector.broadcast %175 : vector<1x64xf32> to vector<2x64xf32>
    %177 = arith.addf %174, %176 : vector<2x64xf32>
    %cst_176 = arith.constant 0.000000e+00 : f32
    %178 = vector.broadcast %cst_176 : f32 to vector<2x64xf32>
    %179 = arith.maximumf %177, %178 : vector<2x64xf32>
    %c0_177 = arith.constant 0 : index
    %c0_178 = arith.constant 0 : index
    %180 = vector.load %arg15[%c0_177, %c0_178] : memref<64x1xf32, #tpu.memory_space<vmem>>, vector<64x1xf32>
    %cst_179 = arith.constant dense<0.000000e+00> : vector<2x1xf32>
    %181 = tpu.matmul %179, %180, %cst_179 {dimension_numbers = #tpu.dot_dimension_numbers<[1], [0], [0], [1], [0, 0, 1, 1], [], []>} : vector<2x64xf32>, vector<64x1xf32>, vector<2x1xf32> -> vector<2x1xf32>
    %c0_180 = arith.constant 0 : index
    %c0_181 = arith.constant 0 : index
    %182 = vector.load %arg16[%c0_180, %c0_181] : memref<1x1xf32, #tpu.memory_space<vmem>>, vector<1x1xf32>
    %183 = vector.broadcast %182 : vector<1x1xf32> to vector<2x1xf32>
    %184 = arith.addf %181, %183 : vector<2x1xf32>
    %185 = math.tanh %184 : vector<2x1xf32>
    %c0_182 = arith.constant 0 : index
    %c0_183 = arith.constant 0 : index
    %186 = vector.load %arg18[%c0_182, %c0_183] : memref<2x1xf32, #tpu.memory_space<vmem>>, vector<2x1xf32>
    tpu.vector_store %arg18[%c0_182, %c0_183], %185 {strides = array<i32>} : memref<2x1xf32, #tpu.memory_space<vmem>>, vector<2x1xf32>,
    return
  }
}

</mosaic_0001>

<llo_original>
// kernel: neural_network_forward.1
$region0: #{neural_network_forward.1}
  #allocation0 [shape = 'u32[]', space=smem, size = 0x4, offset = 0x4, fixed_abs, tag = 'smem constant byte address 0x4 - core index']
  #allocation1 [shape = 'u32[144,128]{1,0:T(1,128)}', space=vmem, size = 0x12000, scoped, tag = 'internal scratch']
  #allocation2 [shape = 'f32[1,1]{1,0:T(1,128)S(1)}', space=vmem, size = 0x200, scoped, tag = 'scoped memory for neural_network_forward.1']
  #allocation3 [shape = 'f32[1,1]{1,0:T(1,128)S(1)}', space=vmem, size = 0x200, scoped, tag = 'scoped memory for neural_network_forward.1']
  %s0 = inlined_call_operand.vmem [shape: f32[128,8], index: 0, kind: input, shape index: {}]
  %s1 = inlined_call_operand.vmem [shape: f32[9,128,128], index: 1, kind: input, shape index: {}]
  %s2 = inlined_call_operand.vmem [shape: f32[2,128], index: 2, kind: input, shape index: {}]
  %s3 = inlined_call_operand.vmem [shape: f32[9,8,64], index: 3, kind: input, shape index: {}]
  %s4 = inlined_call_operand.vmem [shape: f32[1,64], index: 4, kind: input, shape index: {}]
  %s5 = inlined_call_operand.hbm [shape: f32[9,64,64], index: 5, kind: input, shape index: {}]
  %s6 = inlined_call_operand.vmem [shape: f32[1,64], index: 6, kind: input, shape index: {}]
  %s7 = inlined_call_operand.vmem [shape: f32[64,2], index: 7, kind: input, shape index: {}]
  %s8 = inlined_call_operand.vmem [shape: f32[1,2], index: 8, kind: input, shape index: {}]
  %s9 = inlined_call_operand.vmem [shape: f32[2,128,64], index: 9, kind: input, shape index: {}]
  %s10 = inlined_call_operand.vmem [shape: f32[1,64], index: 10, kind: input, shape index: {}]
  %s11 = inlined_call_operand.vmem [shape: f32[64,1], index: 11, kind: input, shape index: {}]
  %s12 = inlined_call_operand.<no memory space> [shape: f32[1,1], index: 12, kind: input, shape index: {}]
  %s13 = inlined_call_operand.vmem [shape: f32[128,64], index: 13, kind: input, shape index: {}]
  %s14 = inlined_call_operand.vmem [shape: f32[1,64], index: 14, kind: input, shape index: {}]
  %s15 = inlined_call_operand.vmem [shape: f32[64,1], index: 15, kind: input, shape index: {}]
  %s16 = inlined_call_operand.<no memory space> [shape: f32[1,1], index: 16, kind: input, shape index: {}]
  %s17 = inlined_call_operand.hbm [shape: f32[2,64], index: 17, kind: output, shape index: {0}]
  %s18 = inlined_call_operand.vmem [shape: f32[2,1], index: 18, kind: output, shape index: {1}]
  %19 = xla_tuple %s17, %s18
  %s20 = sld [smem:[#allocation0]]
  $region90: #{neural_network_forward.1} parent=0
    _
  %s22 = ssub.s32 1, %s20
  %s23 = scalar_select 0, %s22, %s20
  %v24 = vstv %s12
  %25 = vst [vmem:[#allocation2] sm:$0x1] %v24
  %v26 = vstv %s16
  %27 = vst [vmem:[#allocation3] sm:$0x1] %v26
  $region1: #{neural_network_forward.1} parent=0
    #allocation4 [shape = 'u8[294912]{0}', space=vmem, size = 0x48000, scoped, tag = 'input window, operand 5, single buffered']
    #allocation5 [shape = 's32[1]{0}', space=sflag, size = 0x4, scoped, tag = 'scoped memory for neural_network_forward.1']
    #allocation6 [shape = 's32[1]{0}', space=sflag, size = 0x4, scoped, tag = 'scoped memory for neural_network_forward.1']
    #allocation7 [shape = 'u8[1024]{0}', space=vmem, size = 0x400, scoped, tag = 'output window, operand 0, single buffered']
    %28 = vsyncpa [#allocation5], 0
    %29 = vsyncpa [#allocation6], 0
    // Predicated region
    $region2: #{neural_network_forward.1} parent=1 // pred_check
      _
    $region3: #{neural_network_forward.1} parent=1 // pred_check_branch
      %31 = sbr.rel (0) target = $region5
    $region4: #{neural_network_forward.1} parent=1 // pred_region
      _
    $region5: #{neural_network_forward.1} parent=1 // pred_fallthru
      _
    // Predicated region
    $region6: #{neural_network_forward.1} parent=1 // pred_check
      _
    $region7: #{neural_network_forward.1} parent=1 // pred_check_branch
      %33 = sbr.rel (0) target = $region9
    $region8: #{neural_network_forward.1} parent=1 // pred_region
      _
    $region9: #{neural_network_forward.1} parent=1 // pred_fallthru
      _
    // Predicated region
    $region10: #{neural_network_forward.1} parent=1 // pred_check
      _
    $region11: #{neural_network_forward.1} parent=1 // pred_check_branch
      %35 = sbr.rel (0) target = $region13
    $region12: #{neural_network_forward.1} parent=1 // pred_region
      _
    $region13: #{neural_network_forward.1} parent=1 // pred_fallthru
      _
    // Predicated region
    $region14: #{neural_network_forward.1} parent=1 // pred_check
      _
    $region15: #{neural_network_forward.1} parent=1 // pred_check_branch
      %37 = sbr.rel (0) target = $region17
    $region16: #{neural_network_forward.1} parent=1 // pred_region
      _
    $region17: #{neural_network_forward.1} parent=1 // pred_fallthru
      _
    // Predicated region
    $region18: #{neural_network_forward.1} parent=1 // pred_check
      _
    $region19: #{neural_network_forward.1} parent=1 // pred_check_branch
      %39 = sbr.rel (0) target = $region21
    $region20: #{neural_network_forward.1} parent=1 // pred_region
      _
    $region21: #{neural_network_forward.1} parent=1 // pred_fallthru
      _
    // Predicated region
    $region22: #{neural_network_forward.1} parent=1 // pred_check
      _
    $region23: #{neural_network_forward.1} parent=1 // pred_check_branch
      %41 = sbr.rel (0) target = $region25
    $region24: #{neural_network_forward.1} parent=1 // pred_region
      %s43 = ssub.s32 9216, 9216
      %44 = vsyncadd [#allocation5], %s43
      %s45 = sshll.u32 [#allocation4], 4
      %s46 = int_to_ptr.vmem [resolvable:$true] %s45
      %51 = dma.hbm_to_vmem [thread:$0]  %s5, 9216, %s46, [#allocation5], 128, 128, 8
    $region25: #{neural_network_forward.1} parent=1 // pred_fallthru
      _
    // Predicated region
    $region26: #{neural_network_forward.1} parent=1 // pred_check
      _
    $region27: #{neural_network_forward.1} parent=1 // pred_check_branch
      %53 = sbr.rel (0) target = $region29
    $region28: #{neural_network_forward.1} parent=1 // pred_region
      _
    $region29: #{neural_network_forward.1} parent=1 // pred_fallthru
      _
    // Predicated region
    $region30: #{neural_network_forward.1} parent=1 // pred_check
      _
    $region31: #{neural_network_forward.1} parent=1 // pred_check_branch
      %55 = sbr.rel (0) target = $region33
    $region32: #{neural_network_forward.1} parent=1 // pred_region
      _
    $region33: #{neural_network_forward.1} parent=1 // pred_fallthru
      _
    // Predicated region
    $region34: #{neural_network_forward.1} parent=1 // pred_check
      _
    $region35: #{neural_network_forward.1} parent=1 // pred_check_branch
      %57 = sbr.rel (0) target = $region37
    $region36: #{neural_network_forward.1} parent=1 // pred_region
      _
    $region37: #{neural_network_forward.1} parent=1 // pred_fallthru
      _
    // Predicated region
    $region38: #{neural_network_forward.1} parent=1 // pred_check
      _
    $region39: #{neural_network_forward.1} parent=1 // pred_check_branch
      %59 = sbr.rel (0) target = $region41
    $region40: #{neural_network_forward.1} parent=1 // pred_region
      _
    $region41: #{neural_network_forward.1} parent=1 // pred_fallthru
      _
    // Predicated region
    $region42: #{neural_network_forward.1} parent=1 // pred_check
      _
    $region43: #{neural_network_forward.1} parent=1 // pred_check_branch
      %61 = sbr.rel (0) target = $region45
    $region44: #{neural_network_forward.1} parent=1 // pred_region
      _
    $region45: #{neural_network_forward.1} parent=1 // pred_fallthru
      _
    // Predicated region
    $region46: #{neural_network_forward.1} parent=1 // pred_check
      _
    $region47: #{neural_network_forward.1} parent=1 // pred_check_branch
      %63 = sbr.rel (0) target = $region49
    $region48: #{neural_network_forward.1} parent=1 // pred_region
      _
    $region49: #{neural_network_forward.1} parent=1 // pred_fallthru
      _
    // Predicated region
    $region50: #{neural_network_forward.1} parent=1 // pred_check
      _
    $region51: #{neural_network_forward.1} parent=1 // pred_check_branch
      %65 = sbr.rel (0) target = $region53
    $region52: #{neural_network_forward.1} parent=1 // pred_region
      _
    $region53: #{neural_network_forward.1} parent=1 // pred_fallthru
      _
    // Predicated region
    $region54: #{neural_network_forward.1} parent=1 // pred_check
      _
    $region55: #{neural_network_forward.1} parent=1 // pred_check_branch
      %67 = sbr.rel (0) target = $region57
    $region56: #{neural_network_forward.1} parent=1 // pred_region
      _
    $region57: #{neural_network_forward.1} parent=1 // pred_fallthru
      _
    // Predicated region
    $region58: #{neural_network_forward.1} parent=1 // pred_check
      _
    $region59: #{neural_network_forward.1} parent=1 // pred_check_branch
      %69 = sbr.rel (0) target = $region61
    $region60: #{neural_network_forward.1} parent=1 // pred_region
      _
    $region61: #{neural_network_forward.1} parent=1 // pred_fallthru
      _
    // Predicated region
    $region62: #{neural_network_forward.1} parent=1 // pred_check
      _
    $region63: #{neural_network_forward.1} parent=1 // pred_check_branch
      %71 = sbr.rel (0) target = $region65
    $region64: #{neural_network_forward.1} parent=1 // pred_region
      _
    $region65: #{neural_network_forward.1} parent=1 // pred_fallthru
      _
    // Predicated region
    $region66: #{neural_network_forward.1} parent=1 // pred_check
      _
    $region67: #{neural_network_forward.1} parent=1 // pred_check_branch
      %73 = sbr.rel (0) target = $region69
    $region68: #{neural_network_forward.1} parent=1 // pred_region
      _
    $region69: #{neural_network_forward.1} parent=1 // pred_fallthru
      _
    // Predicated region
    $region70: #{neural_network_forward.1} parent=1 // pred_check
      _
    $region71: #{neural_network_forward.1} parent=1 // pred_check_branch
      %75 = sbr.rel (0) target = $region73
    $region72: #{neural_network_forward.1} parent=1 // pred_region
      %76 = dma.done [#allocation5], 9216
    $region73: #{neural_network_forward.1} parent=1 // pred_fallthru
      _
    %v77 = vld [vmem:[%s0] sm:$0xff]
    %v78 = vld [vmem:[%s0 + $0x8] sm:$0xff]
    %v79 = vld [vmem:[%s0 + $0x10] sm:$0xff]
    %v80 = vld [vmem:[%s0 + $0x18] sm:$0xff]
    %v81 = vld [vmem:[%s0 + $0x20] sm:$0xff]
    %v82 = vld [vmem:[%s0 + $0x28] sm:$0xff]
    %v83 = vld [vmem:[%s0 + $0x30] sm:$0xff]
    %v84 = vld [vmem:[%s0 + $0x38] sm:$0xff]
    %v85 = vld [vmem:[%s0 + $0x40] sm:$0xff]
    %v86 = vld [vmem:[%s0 + $0x48] sm:$0xff]
    %v87 = vld [vmem:[%s0 + $0x50] sm:$0xff]
    %v88 = vld [vmem:[%s0 + $0x58] sm:$0xff]
    %v89 = vld [vmem:[%s0 + $0x60] sm:$0xff]
    %v90 = vld [vmem:[%s0 + $0x68] sm:$0xff]
    %v91 = vld [vmem:[%s0 + $0x70] sm:$0xff]
    %v92 = vld [vmem:[%s0 + $0x78] sm:$0xff]
    %v93 = vld [vmem:[%s1] sm:$0xff]
    %v94 = vld [vmem:[%s1 + $0x8] sm:$0xff]
    %v95 = vld [vmem:[%s1 + $0x10] sm:$0xff]
    %v96 = vld [vmem:[%s1 + $0x18] sm:$0xff]
    %v97 = vld [vmem:[%s1 + $0x20] sm:$0xff]
    %v98 = vld [vmem:[%s1 + $0x28] sm:$0xff]
    %v99 = vld [vmem:[%s1 + $0x30] sm:$0xff]
    %v100 = vld [vmem:[%s1 + $0x38] sm:$0xff]
    %v101 = vld [vmem:[%s1 + $0x40] sm:$0xff]
    %v102 = vld [vmem:[%s1 + $0x48] sm:$0xff]
    %v103 = vld [vmem:[%s1 + $0x50] sm:$0xff]
    %v104 = vld [vmem:[%s1 + $0x58] sm:$0xff]
    %v105 = vld [vmem:[%s1 + $0x60] sm:$0xff]
    %v106 = vld [vmem:[%s1 + $0x68] sm:$0xff]
    %v107 = vld [vmem:[%s1 + $0x70] sm:$0xff]
    %v108 = vld [vmem:[%s1 + $0x78] sm:$0xff]
    %109 = vmatprep.subr.mxu0 0.0
    %110 = vmatpush1.msra.mxu0 %v77
    %111 = vmatprep.subr.mxu0 0.0
    %112 = vmatpush1.msra.mxu0 %v78
    %113 = vmatprep.subr.mxu0 0.0
    %114 = vmatpush1.msra.mxu0 %v79
    %115 = vmatprep.subr.mxu0 0.0
    %116 = vmatpush1.msra.mxu0 %v80
    %117 = vmatprep.subr.mxu0 0.0
    %118 = vmatpush1.msra.mxu0 %v81
    %119 = vmatprep.subr.mxu0 0.0
    %120 = vmatpush1.msra.mxu0 %v82
    %121 = vmatprep.subr.mxu0 0.0
    %122 = vmatpush1.msra.mxu0 %v83
    %123 = vmatprep.subr.mxu0 0.0
    %124 = vmatpush1.msra.mxu0 %v84
    %125 = vmatprep.subr.mxu0 0.0
    %126 = vmatpush1.msra.mxu0 %v85
    %127 = vmatprep.subr.mxu0 0.0
    %128 = vmatpush1.msra.mxu0 %v86
    %129 = vmatprep.subr.mxu0 0.0
    %130 = vmatpush1.msra.mxu0 %v87
    %131 = vmatprep.subr.mxu0 0.0
    %132 = vmatpush1.msra.mxu0 %v88
    %133 = vmatprep.subr.mxu0 0.0
    %134 = vmatpush1.msra.mxu0 %v89
    %135 = vmatprep.subr.mxu0 0.0
    %136 = vmatpush1.msra.mxu0 %v90
    %137 = vmatprep.subr.mxu0 0.0
    %138 = vmatpush1.msra.mxu0 %v91
    %139 = vmatprep.subr.mxu0 0.0
    %140 = vmatpush1.msra.mxu0 %v92
    %141 = vmatprep.subr.mxu0 0.0
    %142 = vmatpush1.msra.mxu0 0.0
    %143 = vmatprep.subr.mxu0 0.0
    %144 = vmatpush1.msra.mxu0 0.0
    %145 = vmatprep.subr.mxu0 0.0
    %146 = vmatpush1.msra.mxu0 0.0
    %147 = vmatprep.subr.mxu0 0.0
    %148 = vmatpush1.msra.mxu0 0.0
    %149 = vmatprep.subr.mxu0 0.0
    %150 = vmatpush1.msra.mxu0 0.0
    %151 = vmatprep.subr.mxu0 0.0
    %152 = vmatpush1.msra.mxu0 0.0
    %153 = vmatprep.subr.mxu0 0.0
    %154 = vmatpush1.msra.mxu0 0.0
    %155 = vmatprep.subr.mxu0 0.0
    %156 = vmatpush1.msra.mxu0 0.0
    %157 = vmatprep.subr.mxu0 0.0
    %158 = vmatpush1.msra.mxu0 0.0
    %159 = vmatprep.subr.mxu0 0.0
    %160 = vmatpush1.msra.mxu0 0.0
    %161 = vmatprep.subr.mxu0 0.0
    %162 = vmatpush1.msra.mxu0 0.0
    %163 = vmatprep.subr.mxu0 0.0
    %164 = vmatpush1.msra.mxu0 0.0
    %165 = vmatprep.subr.mxu0 0.0
    %166 = vmatpush1.msra.mxu0 0.0
    %167 = vmatprep.subr.mxu0 0.0
    %168 = vmatpush1.msra.mxu0 0.0
    %169 = vmatprep.subr.mxu0 0.0
    %170 = vmatpush1.msra.mxu0 0.0
    %171 = vmatprep.subr.mxu0 0.0
    %172 = vmatpush1.msra.mxu0 0.0
    %173 = vmatprep.mubr.f32.mxu0 0.0
    %174 = vmatmul.mubr.f32.gmra.mrb[0].mxu0 %v93
    %v175 = vpop.f32.mrb[0].mxu0
    %v176 = vadd.f32 0.0, %v175
    %v177 = vpop.f32.mrb[0].mxu0
    %178 = vmatprep.mubr.f32.mxu0 0.0
    %179 = vmatmul.mubr.f32.gmra.mrb[0].mxu0 %v94
    %v180 = vpop.f32.mrb[0].mxu0
    %v181 = vadd.f32 0.0, %v180
    %v182 = vpop.f32.mrb[0].mxu0
    %183 = vmatprep.mubr.f32.mxu0 0.0
    %184 = vmatmul.mubr.f32.gmra.mrb[0].mxu0 %v95
    %v185 = vpop.f32.mrb[0].mxu0
    %v186 = vadd.f32 0.0, %v185
    %v187 = vpop.f32.mrb[0].mxu0
    %188 = vmatprep.mubr.f32.mxu0 0.0
    %189 = vmatmul.mubr.f32.gmra.mrb[0].mxu0 %v96
    %v190 = vpop.f32.mrb[0].mxu0
    %v191 = vadd.f32 0.0, %v190
    %v192 = vpop.f32.mrb[0].mxu0
    %193 = vmatprep.mubr.f32.mxu0 0.0
    %194 = vmatmul.mubr.f32.gmra.mrb[0].mxu0 %v97
    %v195 = vpop.f32.mrb[0].mxu0
    %v196 = vadd.f32 0.0, %v195
    %v197 = vpop.f32.mrb[0].mxu0
    %198 = vmatprep.mubr.f32.mxu0 0.0
    %199 = vmatmul.mubr.f32.gmra.mrb[0].mxu0 %v98
    %v200 = vpop.f32.mrb[0].mxu0
    %v201 = vadd.f32 0.0, %v200
    %v202 = vpop.f32.mrb[0].mxu0
    %203 = vmatprep.mubr.f32.mxu0 0.0
    %204 = vmatmul.mubr.f32.gmra.mrb[0].mxu0 %v99
    %v205 = vpop.f32.mrb[0].mxu0
    %v206 = vadd.f32 0.0, %v205
    %v207 = vpop.f32.mrb[0].mxu0
    %208 = vmatprep.mubr.f32.mxu0 0.0
    %209 = vmatmul.mubr.f32.gmra.mrb[0].mxu0 %v100
    %v210 = vpop.f32.mrb[0].mxu0
    %v211 = vadd.f32 0.0, %v210
    %v212 = vpop.f32.mrb[0].mxu0
    %213 = vmatprep.mubr.f32.mxu0 0.0
    %214 = vmatmul.mubr.f32.gmra.mrb[0].mxu0 %v101
    %v215 = vpop.f32.mrb[0].mxu0
    %v216 = vadd.f32 0.0, %v215
    %v217 = vpop.f32.mrb[0].mxu0
    %218 = vmatprep.mubr.f32.mxu0 0.0
    %219 = vmatmul.mubr.f32.gmra.mrb[0].mxu0 %v102
    %v220 = vpop.f32.mrb[0].mxu0
    %v221 = vadd.f32 0.0, %v220
    %v222 = vpop.f32.mrb[0].mxu0
    %223 = vmatprep.mubr.f32.mxu0 0.0
    %224 = vmatmul.mubr.f32.gmra.mrb[0].mxu0 %v103
    %v225 = vpop.f32.mrb[0].mxu0
    %v226 = vadd.f32 0.0, %v225
    %v227 = vpop.f32.mrb[0].mxu0
    %228 = vmatprep.mubr.f32.mxu0 0.0
    %229 = vmatmul.mubr.f32.gmra.mrb[0].mxu0 %v104
    %v230 = vpop.f32.mrb[0].mxu0
    %v231 = vadd.f32 0.0, %v230
    %v232 = vpop.f32.mrb[0].mxu0
    %233 = vmatprep.mubr.f32.mxu0 0.0
    %234 = vmatmul.mubr.f32.gmra.mrb[0].mxu0 %v105
    %v235 = vpop.f32.mrb[0].mxu0
    %v236 = vadd.f32 0.0, %v235
    %v237 = vpop.f32.mrb[0].mxu0
    %238 = vmatprep.mubr.f32.mxu0 0.0
    %239 = vmatmul.mubr.f32.gmra.mrb[0].mxu0 %v106
    %v240 = vpop.f32.mrb[0].mxu0
    %v241 = vadd.f32 0.0, %v240
    %v242 = vpop.f32.mrb[0].mxu0
    %243 = vmatprep.mubr.f32.mxu0 0.0
    %244 = vmatmul.mubr.f32.gmra.mrb[0].mxu0 %v107
    %v245 = vpop.f32.mrb[0].mxu0
    %v246 = vadd.f32 0.0, %v245
    %v247 = vpop.f32.mrb[0].mxu0
    %248 = vmatprep.mubr.f32.mxu0 0.0
    %249 = vmatmul.mubr.f32.gmra.mrb[0].mxu0 %v108
    %v250 = vpop.f32.mrb[0].mxu0
    %v251 = vadd.f32 0.0, %v250
    %v252 = vpop.f32.mrb[0].mxu0
    %253 = vdwg.mxu0
    %v254 = vld [vmem:[%s3] sm:$0xff]
    %s255 = scalar_lea.vmem %s1, 128
    %v256 = vld [vmem:[%s255] sm:$0xff]
    %v257 = vld [vmem:[%s255 + $0x8] sm:$0xff]
    %v258 = vld [vmem:[%s255 + $0x10] sm:$0xff]
    %v259 = vld [vmem:[%s255 + $0x18] sm:$0xff]
    %v260 = vld [vmem:[%s255 + $0x20] sm:$0xff]
    %v261 = vld [vmem:[%s255 + $0x28] sm:$0xff]
    %v262 = vld [vmem:[%s255 + $0x30] sm:$0xff]
    %v263 = vld [vmem:[%s255 + $0x38] sm:$0xff]
    %v264 = vld [vmem:[%s255 + $0x40] sm:$0xff]
    %v265 = vld [vmem:[%s255 + $0x48] sm:$0xff]
    %v266 = vld [vmem:[%s255 + $0x50] sm:$0xff]
    %v267 = vld [vmem:[%s255 + $0x58] sm:$0xff]
    %v268 = vld [vmem:[%s255 + $0x60] sm:$0xff]
    %v269 = vld [vmem:[%s255 + $0x68] sm:$0xff]
    %v270 = vld [vmem:[%s255 + $0x70] sm:$0xff]
    %v271 = vld [vmem:[%s255 + $0x78] sm:$0xff]
    %272 = vmatprep.subr.mxu0 0.0
    %273 = vmatpush1.msra.mxu0 %v77
    %274 = vmatprep.subr.mxu0 0.0
    %275 = vmatpush1.msra.mxu0 %v78
    %276 = vmatprep.subr.mxu0 0.0
    %277 = vmatpush1.msra.mxu0 %v79
    %278 = vmatprep.subr.mxu0 0.0
    %279 = vmatpush1.msra.mxu0 %v80
    %280 = vmatprep.subr.mxu0 0.0
    %281 = vmatpush1.msra.mxu0 %v81
    %282 = vmatprep.subr.mxu0 0.0
    %283 = vmatpush1.msra.mxu0 %v82
    %284 = vmatprep.subr.mxu0 0.0
    %285 = vmatpush1.msra.mxu0 %v83
    %286 = vmatprep.subr.mxu0 0.0
    %287 = vmatpush1.msra.mxu0 %v84
    %288 = vmatprep.subr.mxu0 0.0
    %289 = vmatpush1.msra.mxu0 %v85
    %290 = vmatprep.subr.mxu0 0.0
    %291 = vmatpush1.msra.mxu0 %v86
    %292 = vmatprep.subr.mxu0 0.0
    %293 = vmatpush1.msra.mxu0 %v87
    %294 = vmatprep.subr.mxu0 0.0
    %295 = vmatpush1.msra.mxu0 %v88
    %296 = vmatprep.subr.mxu0 0.0
    %297 = vmatpush1.msra.mxu0 %v89
    %298 = vmatprep.subr.mxu0 0.0
    %299 = vmatpush1.msra.mxu0 %v90
    %300 = vmatprep.subr.mxu0 0.0
    %301 = vmatpush1.msra.mxu0 %v91
    %302 = vmatprep.subr.mxu0 0.0
    %303 = vmatpush1.msra.mxu0 %v92
    %304 = vmatprep.subr.mxu0 0.0
    %305 = vmatpush1.msra.mxu0 0.0
    %306 = vmatprep.subr.mxu0 0.0
    %307 = vmatpush1.msra.mxu0 0.0
    %308 = vmatprep.subr.mxu0 0.0
    %309 = vmatpush1.msra.mxu0 0.0
    %310 = vmatprep.subr.mxu0 0.0
    %311 = vmatpush1.msra.mxu0 0.0
    %312 = vmatprep.subr.mxu0 0.0
    %313 = vmatpush1.msra.mxu0 0.0
    %314 = vmatprep.subr.mxu0 0.0
    %315 = vmatpush1.msra.mxu0 0.0
    %316 = vmatprep.subr.mxu0 0.0
    %317 = vmatpush1.msra.mxu0 0.0
    %318 = vmatprep.subr.mxu0 0.0
    %319 = vmatpush1.msra.mxu0 0.0
    %320 = vmatprep.subr.mxu0 0.0
    %321 = vmatpush1.msra.mxu0 0.0
    %322 = vmatprep.subr.mxu0 0.0
    %323 = vmatpush1.msra.mxu0 0.0
    %324 = vmatprep.subr.mxu0 0.0
    %325 = vmatpush1.msra.mxu0 0.0
    %326 = vmatprep.subr.mxu0 0.0
    %327 = vmatpush1.msra.mxu0 0.0
    %328 = vmatprep.subr.mxu0 0.0
    %329 = vmatpush1.msra.mxu0 0.0
    %330 = vmatprep.subr.mxu0 0.0
    %331 = vmatpush1.msra.mxu0 0.0
    %332 = vmatprep.subr.mxu0 0.0
    %333 = vmatpush1.msra.mxu0 0.0
    %334 = vmatprep.subr.mxu0 0.0
    %335 = vmatpush1.msra.mxu0 0.0
    %336 = vmatprep.mubr.f32.mxu0 0.0
    %337 = vmatmul.mubr.f32.gmra.mrb[0].mxu0 %v256
    %v338 = vpop.f32.mrb[0].mxu0
    %v339 = vadd.f32 0.0, %v338
    %v340 = vpop.f32.mrb[0].mxu0
    %341 = vmatprep.mubr.f32.mxu0 0.0
    %342 = vmatmul.mubr.f32.gmra.mrb[0].mxu0 %v257
    %v343 = vpop.f32.mrb[0].mxu0
    %v344 = vadd.f32 0.0, %v343
    %v345 = vpop.f32.mrb[0].mxu0
    %346 = vmatprep.mubr.f32.mxu0 0.0
    %347 = vmatmul.mubr.f32.gmra.mrb[0].mxu0 %v258
    %v348 = vpop.f32.mrb[0].mxu0
    %v349 = vadd.f32 0.0, %v348
    %v350 = vpop.f32.mrb[0].mxu0
    %351 = vmatprep.mubr.f32.mxu0 0.0
    %352 = vmatmul.mubr.f32.gmra.mrb[0].mxu0 %v259
    %v353 = vpop.f32.mrb[0].mxu0
    %v354 = vadd.f32 0.0, %v353
    %v355 = vpop.f32.mrb[0].mxu0
    %356 = vmatprep.mubr.f32.mxu0 0.0
    %357 = vmatmul.mubr.f32.gmra.mrb[0].mxu0 %v260
    %v358 = vpop.f32.mrb[0].mxu0
    %v359 = vadd.f32 0.0, %v358
    %v360 = vpop.f32.mrb[0].mxu0
    %361 = vmatprep.mubr.f32.mxu0 0.0
    %362 = vmatmul.mubr.f32.gmra.mrb[0].mxu0 %v261
    %v363 = vpop.f32.mrb[0].mxu0
    %v364 = vadd.f32 0.0, %v363
    %v365 = vpop.f32.mrb[0].mxu0
    %366 = vmatprep.mubr.f32.mxu0 0.0
    %367 = vmatmul.mubr.f32.gmra.mrb[0].mxu0 %v262
    %v368 = vpop.f32.mrb[0].mxu0
    %v369 = vadd.f32 0.0, %v368
    %v370 = vpop.f32.mrb[0].mxu0
    %371 = vmatprep.mubr.f32.mxu0 0.0
    %372 = vmatmul.mubr.f32.gmra.mrb[0].mxu0 %v263
    %v373 = vpop.f32.mrb[0].mxu0
    %v374 = vadd.f32 0.0, %v373
    %v375 = vpop.f32.mrb[0].mxu0
    %376 = vmatprep.mubr.f32.mxu0 0.0
    %377 = vmatmul.mubr.f32.gmra.mrb[0].mxu0 %v264
    %v378 = vpop.f32.mrb[0].mxu0
    %v379 = vadd.f32 0.0, %v378
    %v380 = vpop.f32.mrb[0].mxu0
    %381 = vmatprep.mubr.f32.mxu0 0.0
    %382 = vmatmul.mubr.f32.gmra.mrb[0].mxu0 %v265
    %v383 = vpop.f32.mrb[0].mxu0
    %v384 = vadd.f32 0.0, %v383
    %v385 = vpop.f32.mrb[0].mxu0
    %386 = vmatprep.mubr.f32.mxu0 0.0
    %387 = vmatmul.mubr.f32.gmra.mrb[0].mxu0 %v266
    %v388 = vpop.f32.mrb[0].mxu0
    %v389 = vadd.f32 0.0, %v388
    %v390 = vpop.f32.mrb[0].mxu0
    %391 = vmatprep.mubr.f32.mxu0 0.0
    %392 = vmatmul.mubr.f32.gmra.mrb[0].mxu0 %v267
    %v393 = vpop.f32.mrb[0].mxu0
    %v394 = vadd.f32 0.0, %v393
    %v395 = vpop.f32.mrb[0].mxu0
    %396 = vmatprep.mubr.f32.mxu0 0.0
    %397 = vmatmul.mubr.f32.gmra.mrb[0].mxu0 %v268
    %v398 = vpop.f32.mrb[0].mxu0
    %v399 = vadd.f32 0.0, %v398
    %v400 = vpop.f32.mrb[0].mxu0
    %401 = vmatprep.mubr.f32.mxu0 0.0
    %402 = vmatmul.mubr.f32.gmra.mrb[0].mxu0 %v269
    %v403 = vpop.f32.mrb[0].mxu0
    %v404 = vadd.f32 0.0, %v403
    %v405 = vpop.f32.mrb[0].mxu0
    %406 = vmatprep.mubr.f32.mxu0 0.0
    %407 = vmatmul.mubr.f32.gmra.mrb[0].mxu0 %v270
    %v408 = vpop.f32.mrb[0].mxu0
    %v409 = vadd.f32 0.0, %v408
    %v410 = vpop.f32.mrb[0].mxu0
    %411 = vmatprep.mubr.f32.mxu0 0.0
    %412 = vmatmul.mubr.f32.gmra.mrb[0].mxu0 %v271
    %v413 = vpop.f32.mrb[0].mxu0
    %v414 = vadd.f32 0.0, %v413
    %v415 = vpop.f32.mrb[0].mxu0
    %416 = vdwg.mxu0
    %s417 = scalar_lea.vmem %s3, 8
    %v418 = vld [vmem:[%s417] sm:$0xff]
    %vm419 = vcmask 64512
    %v421 = vsel %vm419, %v339, 0
    %v424 = vsel %vm419, %v344, 0
    %v427 = vsel %vm419, %v349, 0
    %v430 = vsel %vm419, %v354, 0
    %v433 = vsel %vm419, %v359, 0
    %v436 = vsel %vm419, %v364, 0
    %v439 = vsel %vm419, %v369, 0
    %v442 = vsel %vm419, %v374, 0
    %v445 = vsel %vm419, %v379, 0
    %v448 = vsel %vm419, %v384, 0
    %v451 = vsel %vm419, %v389, 0
    %v454 = vsel %vm419, %v394, 0
    %v457 = vsel %vm419, %v399, 0
    %v460 = vsel %vm419, %v404, 0
    %v463 = vsel %vm419, %v409, 0
    %v466 = vsel %vm419, %v414, 0
    %468 = vmatprep.subr.mxu0 0.0
    %469 = vmatpush1.msra.mxu0 %v418
    %470 = vmatprep.subr.mxu0 0.0
    %471 = vmatpush1.msra.mxu0 0.0
    %472 = vmatprep.subr.mxu0 0.0
    %473 = vmatpush1.msra.mxu0 0.0
    %474 = vmatprep.subr.mxu0 0.0
    %475 = vmatpush1.msra.mxu0 0.0
    %476 = vmatprep.subr.mxu0 0.0
    %477 = vmatpush1.msra.mxu0 0.0
    %478 = vmatprep.subr.mxu0 0.0
    %479 = vmatpush1.msra.mxu0 0.0
    %480 = vmatprep.subr.mxu0 0.0
    %481 = vmatpush1.msra.mxu0 0.0
    %482 = vmatprep.subr.mxu0 0.0
    %483 = vmatpush1.msra.mxu0 0.0
    %484 = vmatprep.subr.mxu0 0.0
    %485 = vmatpush1.msra.mxu0 0.0
    %486 = vmatprep.subr.mxu0 0.0
    %487 = vmatpush1.msra.mxu0 0.0
    %488 = vmatprep.subr.mxu0 0.0
    %489 = vmatpush1.msra.mxu0 0.0
    %490 = vmatprep.subr.mxu0 0.0
    %491 = vmatpush1.msra.mxu0 0.0
    %492 = vmatprep.subr.mxu0 0.0
    %493 = vmatpush1.msra.mxu0 0.0
    %494 = vmatprep.subr.mxu0 0.0
    %495 = vmatpush1.msra.mxu0 0.0
    %496 = vmatprep.subr.mxu0 0.0
    %497 = vmatpush1.msra.mxu0 0.0
    %498 = vmatprep.subr.mxu0 0.0
    %499 = vmatpush1.msra.mxu0 0.0
    %500 = vmatprep.subr.mxu0 0.0
    %501 = vmatpush1.msra.mxu0 0.0
    %502 = vmatprep.subr.mxu0 0.0
    %503 = vmatpush1.msra.mxu0 0.0
    %504 = vmatprep.subr.mxu0 0.0
    %505 = vmatpush1.msra.mxu0 0.0
    %506 = vmatprep.subr.mxu0 0.0
    %507 = vmatpush1.msra.mxu0 0.0
    %508 = vmatprep.subr.mxu0 0.0
    %509 = vmatpush1.msra.mxu0 0.0
    %510 = vmatprep.subr.mxu0 0.0
    %511 = vmatpush1.msra.mxu0 0.0
    %512 = vmatprep.subr.mxu0 0.0
    %513 = vmatpush1.msra.mxu0 0.0
    %514 = vmatprep.subr.mxu0 0.0
    %515 = vmatpush1.msra.mxu0 0.0
    %516 = vmatprep.subr.mxu0 0.0
    %517 = vmatpush1.msra.mxu0 0.0
    %518 = vmatprep.subr.mxu0 0.0
    %519 = vmatpush1.msra.mxu0 0.0
    %520 = vmatprep.subr.mxu0 0.0
    %521 = vmatpush1.msra.mxu0 0.0
    %522 = vmatprep.subr.mxu0 0.0
    %523 = vmatpush1.msra.mxu0 0.0
    %524 = vmatprep.subr.mxu0 0.0
    %525 = vmatpush1.msra.mxu0 0.0
    %526 = vmatprep.subr.mxu0 0.0
    %527 = vmatpush1.msra.mxu0 0.0
    %528 = vmatprep.subr.mxu0 0.0
    %529 = vmatpush1.msra.mxu0 0.0
    %530 = vmatprep.subr.mxu0 0.0
    %531 = vmatpush1.msra.mxu0 0.0
    %532 = vmatprep.mubr.f32.mxu0 0.0
    %533 = vmatmul.mubr.f32.gmra.mrb[0].mxu0 %v421
    %v534 = vpop.f32.mrb[0].mxu0
    %v535 = vadd.f32 0.0, %v534
    %v536 = vpop.f32.mrb[0].mxu0
    %537 = vmatprep.mubr.f32.mxu0 0.0
    %538 = vmatmul.mubr.f32.gmra.mrb[0].mxu0 %v424
    %v539 = vpop.f32.mrb[0].mxu0
    %v540 = vadd.f32 0.0, %v539
    %v541 = vpop.f32.mrb[0].mxu0
    %542 = vmatprep.mubr.f32.mxu0 0.0
    %543 = vmatmul.mubr.f32.gmra.mrb[0].mxu0 %v427
    %v544 = vpop.f32.mrb[0].mxu0
    %v545 = vadd.f32 0.0, %v544
    %v546 = vpop.f32.mrb[0].mxu0
    %547 = vmatprep.mubr.f32.mxu0 0.0
    %548 = vmatmul.mubr.f32.gmra.mrb[0].mxu0 %v430
    %v549 = vpop.f32.mrb[0].mxu0
    %v550 = vadd.f32 0.0, %v549
    %v551 = vpop.f32.mrb[0].mxu0
    %552 = vmatprep.mubr.f32.mxu0 0.0
    %553 = vmatmul.mubr.f32.gmra.mrb[0].mxu0 %v433
    %v554 = vpop.f32.mrb[0].mxu0
    %v555 = vadd.f32 0.0, %v554
    %v556 = vpop.f32.mrb[0].mxu0
    %557 = vmatprep.mubr.f32.mxu0 0.0
    %558 = vmatmul.mubr.f32.gmra.mrb[0].mxu0 %v436
    %v559 = vpop.f32.mrb[0].mxu0
    %v560 = vadd.f32 0.0, %v559
    %v561 = vpop.f32.mrb[0].mxu0
    %562 = vmatprep.mubr.f32.mxu0 0.0
    %563 = vmatmul.mubr.f32.gmra.mrb[0].mxu0 %v439
    %v564 = vpop.f32.mrb[0].mxu0
    %v565 = vadd.f32 0.0, %v564
    %v566 = vpop.f32.mrb[0].mxu0
    %567 = vmatprep.mubr.f32.mxu0 0.0
    %568 = vmatmul.mubr.f32.gmra.mrb[0].mxu0 %v442
    %v569 = vpop.f32.mrb[0].mxu0
    %v570 = vadd.f32 0.0, %v569
    %v571 = vpop.f32.mrb[0].mxu0
    %572 = vmatprep.mubr.f32.mxu0 0.0
    %573 = vmatmul.mubr.f32.gmra.mrb[0].mxu0 %v445
    %v574 = vpop.f32.mrb[0].mxu0
    %v575 = vadd.f32 0.0, %v574
    %v576 = vpop.f32.mrb[0].mxu0
    %577 = vmatprep.mubr.f32.mxu0 0.0
    %578 = vmatmul.mubr.f32.gmra.mrb[0].mxu0 %v448
    %v579 = vpop.f32.mrb[0].mxu0
    %v580 = vadd.f32 0.0, %v579
    %v581 = vpop.f32.mrb[0].mxu0
    %582 = vmatprep.mubr.f32.mxu0 0.0
    %583 = vmatmul.mubr.f32.gmra.mrb[0].mxu0 %v451
    %v584 = vpop.f32.mrb[0].mxu0
    %v585 = vadd.f32 0.0, %v584
    %v586 = vpop.f32.mrb[0].mxu0
    %587 = vmatprep.mubr.f32.mxu0 0.0
    %588 = vmatmul.mubr.f32.gmra.mrb[0].mxu0 %v454
    %v589 = vpop.f32.mrb[0].mxu0
    %v590 = vadd.f32 0.0, %v589
    %v591 = vpop.f32.mrb[0].mxu0
    %592 = vmatprep.mubr.f32.mxu0 0.0
    %593 = vmatmul.mubr.f32.gmra.mrb[0].mxu0 %v457
    %v594 = vpop.f32.mrb[0].mxu0
    %v595 = vadd.f32 0.0, %v594
    %v596 = vpop.f32.mrb[0].mxu0
    %597 = vmatprep.mubr.f32.mxu0 0.0
    %598 = vmatmul.mubr.f32.gmra.mrb[0].mxu0 %v460
    %v599 = vpop.f32.mrb[0].mxu0
    %v600 = vadd.f32 0.0, %v599
    %v601 = vpop.f32.mrb[0].mxu0
    %602 = vmatprep.mubr.f32.mxu0 0.0
    %603 = vmatmul.mubr.f32.gmra.mrb[0].mxu0 %v463
    %v604 = vpop.f32.mrb[0].mxu0
    %v605 = vadd.f32 0.0, %v604
    %v606 = vpop.f32.mrb[0].mxu0
    %607 = vmatprep.mubr.f32.mxu0 0.0
    %608 = vmatmul.mubr.f32.gmra.mrb[0].mxu0 %v466
    %v609 = vpop.f32.mrb[0].mxu0
    %v610 = vadd.f32 0.0, %v609
    %v611 = vpop.f32.mrb[0].mxu0
    %612 = vdwg.mxu0
    %v614 = vsel %vm419, %v176, 0
    %v617 = vsel %vm419, %v181, 0
    %v620 = vsel %vm419, %v186, 0
    %v623 = vsel %vm419, %v191, 0
    %v626 = vsel %vm419, %v196, 0
    %v629 = vsel %vm419, %v201, 0
    %v632 = vsel %vm419, %v206, 0
    %v635 = vsel %vm419, %v211, 0
    %v638 = vsel %vm419, %v216, 0
    %v641 = vsel %vm419, %v221, 0
    %v644 = vsel %vm419, %v226, 0
    %v647 = vsel %vm419, %v231, 0
    %v650 = vsel %vm419, %v236, 0
    %v653 = vsel %vm419, %v241, 0
    %v656 = vsel %vm419, %v246, 0
    %v659 = vsel %vm419, %v251, 0
    %661 = vmatprep.subr.mxu0 0.0
    %662 = vmatpush1.msra.mxu0 %v254
    %663 = vmatprep.subr.mxu0 0.0
    %664 = vmatpush1.msra.mxu0 0.0
    %665 = vmatprep.subr.mxu0 0.0
    %666 = vmatpush1.msra.mxu0 0.0
    %667 = vmatprep.subr.mxu0 0.0
    %668 = vmatpush1.msra.mxu0 0.0
    %669 = vmatprep.subr.mxu0 0.0
    %670 = vmatpush1.msra.mxu0 0.0
    %671 = vmatprep.subr.mxu0 0.0
    %672 = vmatpush1.msra.mxu0 0.0
    %673 = vmatprep.subr.mxu0 0.0
    %674 = vmatpush1.msra.mxu0 0.0
    %675 = vmatprep.subr.mxu0 0.0
    %676 = vmatpush1.msra.mxu0 0.0
    %677 = vmatprep.subr.mxu0 0.0
    %678 = vmatpush1.msra.mxu0 0.0
    %679 = vmatprep.subr.mxu0 0.0
    %680 = vmatpush1.msra.mxu0 0.0
    %681 = vmatprep.subr.mxu0 0.0
    %682 = vmatpush1.msra.mxu0 0.0
    %683 = vmatprep.subr.mxu0 0.0
    %684 = vmatpush1.msra.mxu0 0.0
    %685 = vmatprep.subr.mxu0 0.0
    %686 = vmatpush1.msra.mxu0 0.0
    %687 = vmatprep.subr.mxu0 0.0
    %688 = vmatpush1.msra.mxu0 0.0
    %689 = vmatprep.subr.mxu0 0.0
    %690 = vmatpush1.msra.mxu0 0.0
    %691 = vmatprep.subr.mxu0 0.0
    %692 = vmatpush1.msra.mxu0 0.0
    %693 = vmatprep.subr.mxu0 0.0
    %694 = vmatpush1.msra.mxu0 0.0
    %695 = vmatprep.subr.mxu0 0.0
    %696 = vmatpush1.msra.mxu0 0.0
    %697 = vmatprep.subr.mxu0 0.0
    %698 = vmatpush1.msra.mxu0 0.0
    %699 = vmatprep.subr.mxu0 0.0
    %700 = vmatpush1.msra.mxu0 0.0
    %701 = vmatprep.subr.mxu0 0.0
    %702 = vmatpush1.msra.mxu0 0.0
    %703 = vmatprep.subr.mxu0 0.0
    %704 = vmatpush1.msra.mxu0 0.0
    %705 = vmatprep.subr.mxu0 0.0
    %706 = vmatpush1.msra.mxu0 0.0
    %707 = vmatprep.subr.mxu0 0.0
    %708 = vmatpush1.msra.mxu0 0.0
    %709 = vmatprep.subr.mxu0 0.0
    %710 = vmatpush1.msra.mxu0 0.0
    %711 = vmatprep.subr.mxu0 0.0
    %712 = vmatpush1.msra.mxu0 0.0
    %713 = vmatprep.subr.mxu0 0.0
    %714 = vmatpush1.msra.mxu0 0.0
    %715 = vmatprep.subr.mxu0 0.0
    %716 = vmatpush1.msra.mxu0 0.0
    %717 = vmatprep.subr.mxu0 0.0
    %718 = vmatpush1.msra.mxu0 0.0
    %719 = vmatprep.subr.mxu0 0.0
    %720 = vmatpush1.msra.mxu0 0.0
    %721 = vmatprep.subr.mxu0 0.0
    %722 = vmatpush1.msra.mxu0 0.0
    %723 = vmatprep.subr.mxu0 0.0
    %724 = vmatpush1.msra.mxu0 0.0
    %725 = vmatprep.mubr.f32.mxu0 0.0
    %726 = vmatmul.mubr.f32.gmra.mrb[0].mxu0 %v614
    %v727 = vpop.f32.mrb[0].mxu0
    %v728 = vadd.f32 %v535, %v727
    %v729 = vpop.f32.mrb[0].mxu0
    %730 = vmatprep.mubr.f32.mxu0 0.0
    %731 = vmatmul.mubr.f32.gmra.mrb[0].mxu0 %v617
    %v732 = vpop.f32.mrb[0].mxu0
    %v733 = vadd.f32 %v540, %v732
    %v734 = vpop.f32.mrb[0].mxu0
    %735 = vmatprep.mubr.f32.mxu0 0.0
    %736 = vmatmul.mubr.f32.gmra.mrb[0].mxu0 %v620
    %v737 = vpop.f32.mrb[0].mxu0
    %v738 = vadd.f32 %v545, %v737
    %v739 = vpop.f32.mrb[0].mxu0
    %740 = vmatprep.mubr.f32.mxu0 0.0
    %741 = vmatmul.mubr.f32.gmra.mrb[0].mxu0 %v623
    %v742 = vpop.f32.mrb[0].mxu0
    %v743 = vadd.f32 %v550, %v742
    %v744 = vpop.f32.mrb[0].mxu0
    %745 = vmatprep.mubr.f32.mxu0 0.0
    %746 = vmatmul.mubr.f32.gmra.mrb[0].mxu0 %v626
    %v747 = vpop.f32.mrb[0].mxu0
    %v748 = vadd.f32 %v555, %v747
    %v749 = vpop.f32.mrb[0].mxu0
    %750 = vmatprep.mubr.f32.mxu0 0.0
    %751 = vmatmul.mubr.f32.gmra.mrb[0].mxu0 %v629
    %v752 = vpop.f32.mrb[0].mxu0
    %v753 = vadd.f32 %v560, %v752
    %v754 = vpop.f32.mrb[0].mxu0
    %755 = vmatprep.mubr.f32.mxu0 0.0
    %756 = vmatmul.mubr.f32.gmra.mrb[0].mxu0 %v632
    %v757 = vpop.f32.mrb[0].mxu0
    %v758 = vadd.f32 %v565, %v757
    %v759 = vpop.f32.mrb[0].mxu0
    %760 = vmatprep.mubr.f32.mxu0 0.0
    %761 = vmatmul.mubr.f32.gmra.mrb[0].mxu0 %v635
    %v762 = vpop.f32.mrb[0].mxu0
    %v763 = vadd.f32 %v570, %v762
    %v764 = vpop.f32.mrb[0].mxu0
    %765 = vmatprep.mubr.f32.mxu0 0.0
    %766 = vmatmul.mubr.f32.gmra.mrb[0].mxu0 %v638
    %v767 = vpop.f32.mrb[0].mxu0
    %v768 = vadd.f32 %v575, %v767
    %v769 = vpop.f32.mrb[0].mxu0
    %770 = vmatprep.mubr.f32.mxu0 0.0
    %771 = vmatmul.mubr.f32.gmra.mrb[0].mxu0 %v641
    %v772 = vpop.f32.mrb[0].mxu0
    %v773 = vadd.f32 %v580, %v772
    %v774 = vpop.f32.mrb[0].mxu0
    %775 = vmatprep.mubr.f32.mxu0 0.0
    %776 = vmatmul.mubr.f32.gmra.mrb[0].mxu0 %v644
    %v777 = vpop.f32.mrb[0].mxu0
    %v778 = vadd.f32 %v585, %v777
    %v779 = vpop.f32.mrb[0].mxu0
    %780 = vmatprep.mubr.f32.mxu0 0.0
    %781 = vmatmul.mubr.f32.gmra.mrb[0].mxu0 %v647
    %v782 = vpop.f32.mrb[0].mxu0
    %v783 = vadd.f32 %v590, %v782
    %v784 = vpop.f32.mrb[0].mxu0
    %785 = vmatprep.mubr.f32.mxu0 0.0
    %786 = vmatmul.mubr.f32.gmra.mrb[0].mxu0 %v650
    %v787 = vpop.f32.mrb[0].mxu0
    %v788 = vadd.f32 %v595, %v787
    %v789 = vpop.f32.mrb[0].mxu0
    %790 = vmatprep.mubr.f32.mxu0 0.0
    %791 = vmatmul.mubr.f32.gmra.mrb[0].mxu0 %v653
    %v792 = vpop.f32.mrb[0].mxu0
    %v793 = vadd.f32 %v600, %v792
    %v794 = vpop.f32.mrb[0].mxu0
    %795 = vmatprep.mubr.f32.mxu0 0.0
    %796 = vmatmul.mubr.f32.gmra.mrb[0].mxu0 %v656
    %v797 = vpop.f32.mrb[0].mxu0
    %v798 = vadd.f32 %v605, %v797
    %v799 = vpop.f32.mrb[0].mxu0
    %800 = vmatprep.mubr.f32.mxu0 0.0
    %801 = vmatmul.mubr.f32.gmra.mrb[0].mxu0 %v659
    %v802 = vpop.f32.mrb[0].mxu0
    %v803 = vadd.f32 %v610, %v802
    %v804 = vpop.f32.mrb[0].mxu0
    %805 = vdwg.mxu0
    %s806 = scalar_lea.vmem %s1, 256
    %v807 = vld [vmem:[%s806] sm:$0xff]
    %v808 = vld [vmem:[%s806 + $0x8] sm:$0xff]
    %v809 = vld [vmem:[%s806 + $0x10] sm:$0xff]
    %v810 = vld [vmem:[%s806 + $0x18] sm:$0xff]
    %v811 = vld [vmem:[%s806 + $0x20] sm:$0xff]
    %v812 = vld [vmem:[%s806 + $0x28] sm:$0xff]
    %v813 = vld [vmem:[%s806 + $0x30] sm:$0xff]
    %v814 = vld [vmem:[%s806 + $0x38] sm:$0xff]
    %v815 = vld [vmem:[%s806 + $0x40] sm:$0xff]
    %v816 = vld [vmem:[%s806 + $0x48] sm:$0xff]
    %v817 = vld [vmem:[%s806 + $0x50] sm:$0xff]
    %v818 = vld [vmem:[%s806 + $0x58] sm:$0xff]
    %v819 = vld [vmem:[%s806 + $0x60] sm:$0xff]
    %v820 = vld [vmem:[%s806 + $0x68] sm:$0xff]
    %v821 = vld [vmem:[%s806 + $0x70] sm:$0xff]
    %v822 = vld [vmem:[%s806 + $0x78] sm:$0xff]
    %823 = vmatprep.subr.mxu0 0.0
    %824 = vmatpush1.msra.mxu0 %v77
    %825 = vmatprep.subr.mxu0 0.0
    %826 = vmatpush1.msra.mxu0 %v78
    %827 = vmatprep.subr.mxu0 0.0
    %828 = vmatpush1.msra.mxu0 %v79
    %829 = vmatprep.subr.mxu0 0.0
    %830 = vmatpush1.msra.mxu0 %v80
    %831 = vmatprep.subr.mxu0 0.0
    %832 = vmatpush1.msra.mxu0 %v81
    %833 = vmatprep.subr.mxu0 0.0
    %834 = vmatpush1.msra.mxu0 %v82
    %835 = vmatprep.subr.mxu0 0.0
    %836 = vmatpush1.msra.mxu0 %v83
    %837 = vmatprep.subr.mxu0 0.0
    %838 = vmatpush1.msra.mxu0 %v84
    %839 = vmatprep.subr.mxu0 0.0
    %840 = vmatpush1.msra.mxu0 %v85
    %841 = vmatprep.subr.mxu0 0.0
    %842 = vmatpush1.msra.mxu0 %v86
    %843 = vmatprep.subr.mxu0 0.0
    %844 = vmatpush1.msra.mxu0 %v87
    %845 = vmatprep.subr.mxu0 0.0
    %846 = vmatpush1.msra.mxu0 %v88
    %847 = vmatprep.subr.mxu0 0.0
    %848 = vmatpush1.msra.mxu0 %v89
    %849 = vmatprep.subr.mxu0 0.0
    %850 = vmatpush1.msra.mxu0 %v90
    %851 = vmatprep.subr.mxu0 0.0
    %852 = vmatpush1.msra.mxu0 %v91
    %853 = vmatprep.subr.mxu0 0.0
    %854 = vmatpush1.msra.mxu0 %v92
    %855 = vmatprep.subr.mxu0 0.0
    %856 = vmatpush1.msra.mxu0 0.0
    %857 = vmatprep.subr.mxu0 0.0
    %858 = vmatpush1.msra.mxu0 0.0
    %859 = vmatprep.subr.mxu0 0.0
    %860 = vmatpush1.msra.mxu0 0.0
    %861 = vmatprep.subr.mxu0 0.0
    %862 = vmatpush1.msra.mxu0 0.0
    %863 = vmatprep.subr.mxu0 0.0
    %864 = vmatpush1.msra.mxu0 0.0
    %865 = vmatprep.subr.mxu0 0.0
    %866 = vmatpush1.msra.mxu0 0.0
    %867 = vmatprep.subr.mxu0 0.0
    %868 = vmatpush1.msra.mxu0 0.0
    %869 = vmatprep.subr.mxu0 0.0
    %870 = vmatpush1.msra.mxu0 0.0
    %871 = vmatprep.subr.mxu0 0.0
    %872 = vmatpush1.msra.mxu0 0.0
    %873 = vmatprep.subr.mxu0 0.0
    %874 = vmatpush1.msra.mxu0 0.0
    %875 = vmatprep.subr.mxu0 0.0
    %876 = vmatpush1.msra.mxu0 0.0
    %877 = vmatprep.subr.mxu0 0.0
    %878 = vmatpush1.msra.mxu0 0.0
    %879 = vmatprep.subr.mxu0 0.0
    %880 = vmatpush1.msra.mxu0 0.0
    %881 = vmatprep.subr.mxu0 0.0
    %882 = vmatpush1.msra.mxu0 0.0
    %883 = vmatprep.subr.mxu0 0.0
    %884 = vmatpush1.msra.mxu0 0.0
    %885 = vmatprep.subr.mxu0 0.0
    %886 = vmatpush1.msra.mxu0 0.0
    %887 = vmatprep.mubr.f32.mxu0 0.0
    %888 = vmatmul.mubr.f32.gmra.mrb[0].mxu0 %v807
    %v889 = vpop.f32.mrb[0].mxu0
    %v890 = vadd.f32 0.0, %v889
    %v891 = vpop.f32.mrb[0].mxu0
    %892 = vmatprep.mubr.f32.mxu0 0.0
    %893 = vmatmul.mubr.f32.gmra.mrb[0].mxu0 %v808
    %v894 = vpop.f32.mrb[0].mxu0
    %v895 = vadd.f32 0.0, %v894
    %v896 = vpop.f32.mrb[0].mxu0
    %897 = vmatprep.mubr.f32.mxu0 0.0
    %898 = vmatmul.mubr.f32.gmra.mrb[0].mxu0 %v809
    %v899 = vpop.f32.mrb[0].mxu0
    %v900 = vadd.f32 0.0, %v899
    %v901 = vpop.f32.mrb[0].mxu0
    %902 = vmatprep.mubr.f32.mxu0 0.0
    %903 = vmatmul.mubr.f32.gmra.mrb[0].mxu0 %v810
    %v904 = vpop.f32.mrb[0].mxu0
    %v905 = vadd.f32 0.0, %v904
    %v906 = vpop.f32.mrb[0].mxu0
    %907 = vmatprep.mubr.f32.mxu0 0.0
    %908 = vmatmul.mubr.f32.gmra.mrb[0].mxu0 %v811
    %v909 = vpop.f32.mrb[0].mxu0
    %v910 = vadd.f32 0.0, %v909
    %v911 = vpop.f32.mrb[0].mxu0
    %912 = vmatprep.mubr.f32.mxu0 0.0
    %913 = vmatmul.mubr.f32.gmra.mrb[0].mxu0 %v812
    %v914 = vpop.f32.mrb[0].mxu0
    %v915 = vadd.f32 0.0, %v914
    %v916 = vpop.f32.mrb[0].mxu0
    %917 = vmatprep.mubr.f32.mxu0 0.0
    %918 = vmatmul.mubr.f32.gmra.mrb[0].mxu0 %v813
    %v919 = vpop.f32.mrb[0].mxu0
    %v920 = vadd.f32 0.0, %v919
    %v921 = vpop.f32.mrb[0].mxu0
    %922 = vmatprep.mubr.f32.mxu0 0.0
    %923 = vmatmul.mubr.f32.gmra.mrb[0].mxu0 %v814
    %v924 = vpop.f32.mrb[0].mxu0
    %v925 = vadd.f32 0.0, %v924
    %v926 = vpop.f32.mrb[0].mxu0
    %927 = vmatprep.mubr.f32.mxu0 0.0
    %928 = vmatmul.mubr.f32.gmra.mrb[0].mxu0 %v815
    %v929 = vpop.f32.mrb[0].mxu0
    %v930 = vadd.f32 0.0, %v929
    %v931 = vpop.f32.mrb[0].mxu0
    %932 = vmatprep.mubr.f32.mxu0 0.0
    %933 = vmatmul.mubr.f32.gmra.mrb[0].mxu0 %v816
    %v934 = vpop.f32.mrb[0].mxu0
    %v935 = vadd.f32 0.0, %v934
    %v936 = vpop.f32.mrb[0].mxu0
    %937 = vmatprep.mubr.f32.mxu0 0.0
    %938 = vmatmul.mubr.f32.gmra.mrb[0].mxu0 %v817
    %v939 = vpop.f32.mrb[0].mxu0
    %v940 = vadd.f32 0.0, %v939
    %v941 = vpop.f32.mrb[0].mxu0
    %942 = vmatprep.mubr.f32.mxu0 0.0
    %943 = vmatmul.mubr.f32.gmra.mrb[0].mxu0 %v818
    %v944 = vpop.f32.mrb[0].mxu0
    %v945 = vadd.f32 0.0, %v944
    %v946 = vpop.f32.mrb[0].mxu0
    %947 = vmatprep.mubr.f32.mxu0 0.0
    %948 = vmatmul.mubr.f32.gmra.mrb[0].mxu0 %v819
    %v949 = vpop.f32.mrb[0].mxu0
    %v950 = vadd.f32 0.0, %v949
    %v951 = vpop.f32.mrb[0].mxu0
    %952 = vmatprep.mubr.f32.mxu0 0.0
    %953 = vmatmul.mubr.f32.gmra.mrb[0].mxu0 %v820
    %v954 = vpop.f32.mrb[0].mxu0
    %v955 = vadd.f32 0.0, %v954
    %v956 = vpop.f32.mrb[0].mxu0
    %957 = vmatprep.mubr.f32.mxu0 0.0
    %958 = vmatmul.mubr.f32.gmra.mrb[0].mxu0 %v821
    %v959 = vpop.f32.mrb[0].mxu0
    %v960 = vadd.f32 0.0, %v959
    %v961 = vpop.f32.mrb[0].mxu0
    %962 = vmatprep.mubr.f32.mxu0 0.0
    %963 = vmatmul.mubr.f32.gmra.mrb[0].mxu0 %v822
    %v964 = vpop.f32.mrb[0].mxu0
    %v965 = vadd.f32 0.0, %v964
    %v966 = vpop.f32.mrb[0].mxu0
    %967 = vdwg.mxu0
    %s968 = scalar_lea.vmem %s3, 16
    %v969 = vld [vmem:[%s968] sm:$0xff]
    %v971 = vsel %vm419, %v890, 0
    %v974 = vsel %vm419, %v895, 0
    %v977 = vsel %vm419, %v900, 0
    %v980 = vsel %vm419, %v905, 0
    %v983 = vsel %vm419, %v910, 0
    %v986 = vsel %vm419, %v915, 0
    %v989 = vsel %vm419, %v920, 0
    %v992 = vsel %vm419, %v925, 0
    %v995 = vsel %vm419, %v930, 0
    %v998 = vsel %vm419, %v935, 0
    %v1001 = vsel %vm419, %v940, 0
    %v1004 = vsel %vm419, %v945, 0
    %v1007 = vsel %vm419, %v950, 0
    %v1010 = vsel %vm419, %v955, 0
    %v1013 = vsel %vm419, %v960, 0
    %v1016 = vsel %vm419, %v965, 0
    %1018 = vmatprep.subr.mxu0 0.0
    %1019 = vmatpush1.msra.mxu0 %v969
    %1020 = vmatprep.subr.mxu0 0.0
    %1021 = vmatpush1.msra.mxu0 0.0
    %1022 = vmatprep.subr.mxu0 0.0
    %1023 = vmatpush1.msra.mxu0 0.0
    %1024 = vmatprep.subr.mxu0 0.0
    %1025 = vmatpush1.msra.mxu0 0.0
    %1026 = vmatprep.subr.mxu0 0.0
    %1027 = vmatpush1.msra.mxu0 0.0
    %1028 = vmatprep.subr.mxu0 0.0
    %1029 = vmatpush1.msra.mxu0 0.0
    %1030 = vmatprep.subr.mxu0 0.0
    %1031 = vmatpush1.msra.mxu0 0.0
    %1032 = vmatprep.subr.mxu0 0.0
    %1033 = vmatpush1.msra.mxu0 0.0
    %1034 = vmatprep.subr.mxu0 0.0
    %1035 = vmatpush1.msra.mxu0 0.0
    %1036 = vmatprep.subr.mxu0 0.0
    %1037 = vmatpush1.msra.mxu0 0.0
    %1038 = vmatprep.subr.mxu0 0.0
    %1039 = vmatpush1.msra.mxu0 0.0
    %1040 = vmatprep.subr.mxu0 0.0
    %1041 = vmatpush1.msra.mxu0 0.0
    %1042 = vmatprep.subr.mxu0 0.0
    %1043 = vmatpush1.msra.mxu0 0.0
    %1044 = vmatprep.subr.mxu0 0.0
    %1045 = vmatpush1.msra.mxu0 0.0
    %1046 = vmatprep.subr.mxu0 0.0
    %1047 = vmatpush1.msra.mxu0 0.0
    %1048 = vmatprep.subr.mxu0 0.0
    %1049 = vmatpush1.msra.mxu0 0.0
    %1050 = vmatprep.subr.mxu0 0.0
    %1051 = vmatpush1.msra.mxu0 0.0
    %1052 = vmatprep.subr.mxu0 0.0
    %1053 = vmatpush1.msra.mxu0 0.0
    %1054 = vmatprep.subr.mxu0 0.0
    %1055 = vmatpush1.msra.mxu0 0.0
    %1056 = vmatprep.subr.mxu0 0.0
    %1057 = vmatpush1.msra.mxu0 0.0
    %1058 = vmatprep.subr.mxu0 0.0
    %1059 = vmatpush1.msra.mxu0 0.0
    %1060 = vmatprep.subr.mxu0 0.0
    %1061 = vmatpush1.msra.mxu0 0.0
    %1062 = vmatprep.subr.mxu0 0.0
    %1063 = vmatpush1.msra.mxu0 0.0
    %1064 = vmatprep.subr.mxu0 0.0
    %1065 = vmatpush1.msra.mxu0 0.0
    %1066 = vmatprep.subr.mxu0 0.0
    %1067 = vmatpush1.msra.mxu0 0.0
    %1068 = vmatprep.subr.mxu0 0.0
    %1069 = vmatpush1.msra.mxu0 0.0
    %1070 = vmatprep.subr.mxu0 0.0
    %1071 = vmatpush1.msra.mxu0 0.0
    %1072 = vmatprep.subr.mxu0 0.0
    %1073 = vmatpush1.msra.mxu0 0.0
    %1074 = vmatprep.subr.mxu0 0.0
    %1075 = vmatpush1.msra.mxu0 0.0
    %1076 = vmatprep.subr.mxu0 0.0
    %1077 = vmatpush1.msra.mxu0 0.0
    %1078 = vmatprep.subr.mxu0 0.0
    %1079 = vmatpush1.msra.mxu0 0.0
    %1080 = vmatprep.subr.mxu0 0.0
    %1081 = vmatpush1.msra.mxu0 0.0
    %1082 = vmatprep.mubr.f32.mxu0 0.0
    %1083 = vmatmul.mubr.f32.gmra.mrb[0].mxu0 %v971
    %v1084 = vpop.f32.mrb[0].mxu0
    %v1085 = vadd.f32 0.0, %v1084
    %v1086 = vpop.f32.mrb[0].mxu0
    %1087 = vmatprep.mubr.f32.mxu0 0.0
    %1088 = vmatmul.mubr.f32.gmra.mrb[0].mxu0 %v974
    %v1089 = vpop.f32.mrb[0].mxu0
    %v1090 = vadd.f32 0.0, %v1089
    %v1091 = vpop.f32.mrb[0].mxu0
    %1092 = vmatprep.mubr.f32.mxu0 0.0
    %1093 = vmatmul.mubr.f32.gmra.mrb[0].mxu0 %v977
    %v1094 = vpop.f32.mrb[0].mxu0
    %v1095 = vadd.f32 0.0, %v1094
    %v1096 = vpop.f32.mrb[0].mxu0
    %1097 = vmatprep.mubr.f32.mxu0 0.0
    %1098 = vmatmul.mubr.f32.gmra.mrb[0].mxu0 %v980
    %v1099 = vpop.f32.mrb[0].mxu0
    %v1100 = vadd.f32 0.0, %v1099
    %v1101 = vpop.f32.mrb[0].mxu0
    %1102 = vmatprep.mubr.f32.mxu0 0.0
    %1103 = vmatmul.mubr.f32.gmra.mrb[0].mxu0 %v983
    %v1104 = vpop.f32.mrb[0].mxu0
    %v1105 = vadd.f32 0.0, %v1104
    %v1106 = vpop.f32.mrb[0].mxu0
    %1107 = vmatprep.mubr.f32.mxu0 0.0
    %1108 = vmatmul.mubr.f32.gmra.mrb[0].mxu0 %v986
    %v1109 = vpop.f32.mrb[0].mxu0
    %v1110 = vadd.f32 0.0, %v1109
    %v1111 = vpop.f32.mrb[0].mxu0
    %1112 = vmatprep.mubr.f32.mxu0 0.0
    %1113 = vmatmul.mubr.f32.gmra.mrb[0].mxu0 %v989
    %v1114 = vpop.f32.mrb[0].mxu0
    %v1115 = vadd.f32 0.0, %v1114
    %v1116 = vpop.f32.mrb[0].mxu0
    %1117 = vmatprep.mubr.f32.mxu0 0.0
    %1118 = vmatmul.mubr.f32.gmra.mrb[0].mxu0 %v992
    %v1119 = vpop.f32.mrb[0].mxu0
    %v1120 = vadd.f32 0.0, %v1119
    %v1121 = vpop.f32.mrb[0].mxu0
    %1122 = vmatprep.mubr.f32.mxu0 0.0
    %1123 = vmatmul.mubr.f32.gmra.mrb[0].mxu0 %v995
    %v1124 = vpop.f32.mrb[0].mxu0
    %v1125 = vadd.f32 0.0, %v1124
    %v1126 = vpop.f32.mrb[0].mxu0
    %1127 = vmatprep.mubr.f32.mxu0 0.0
    %1128 = vmatmul.mubr.f32.gmra.mrb[0].mxu0 %v998
    %v1129 = vpop.f32.mrb[0].mxu0
    %v1130 = vadd.f32 0.0, %v1129
    %v1131 = vpop.f32.mrb[0].mxu0
    %1132 = vmatprep.mubr.f32.mxu0 0.0
    %1133 = vmatmul.mubr.f32.gmra.mrb[0].mxu0 %v1001
    %v1134 = vpop.f32.mrb[0].mxu0
    %v1135 = vadd.f32 0.0, %v1134
    %v1136 = vpop.f32.mrb[0].mxu0
    %1137 = vmatprep.mubr.f32.mxu0 0.0
    %1138 = vmatmul.mubr.f32.gmra.mrb[0].mxu0 %v1004
    %v1139 = vpop.f32.mrb[0].mxu0
    %v1140 = vadd.f32 0.0, %v1139
    %v1141 = vpop.f32.mrb[0].mxu0
    %1142 = vmatprep.mubr.f32.mxu0 0.0
    %1143 = vmatmul.mubr.f32.gmra.mrb[0].mxu0 %v1007
    %v1144 = vpop.f32.mrb[0].mxu0
    %v1145 = vadd.f32 0.0, %v1144
    %v1146 = vpop.f32.mrb[0].mxu0
    %1147 = vmatprep.mubr.f32.mxu0 0.0
    %1148 = vmatmul.mubr.f32.gmra.mrb[0].mxu0 %v1010
    %v1149 = vpop.f32.mrb[0].mxu0
    %v1150 = vadd.f32 0.0, %v1149
    %v1151 = vpop.f32.mrb[0].mxu0
    %1152 = vmatprep.mubr.f32.mxu0 0.0
    %1153 = vmatmul.mubr.f32.gmra.mrb[0].mxu0 %v1013
    %v1154 = vpop.f32.mrb[0].mxu0
    %v1155 = vadd.f32 0.0, %v1154
    %v1156 = vpop.f32.mrb[0].mxu0
    %1157 = vmatprep.mubr.f32.mxu0 0.0
    %1158 = vmatmul.mubr.f32.gmra.mrb[0].mxu0 %v1016
    %v1159 = vpop.f32.mrb[0].mxu0
    %v1160 = vadd.f32 0.0, %v1159
    %v1161 = vpop.f32.mrb[0].mxu0
    %1162 = vdwg.mxu0
    %v1163 = vadd.f32 %v728, %v1085
    %v1164 = vadd.f32 %v733, %v1090
    %v1165 = vadd.f32 %v738, %v1095
    %v1166 = vadd.f32 %v743, %v1100
    %v1167 = vadd.f32 %v748, %v1105
    %v1168 = vadd.f32 %v753, %v1110
    %v1169 = vadd.f32 %v758, %v1115
    %v1170 = vadd.f32 %v763, %v1120
    %v1171 = vadd.f32 %v768, %v1125
    %v1172 = vadd.f32 %v773, %v1130
    %v1173 = vadd.f32 %v778, %v1135
    %v1174 = vadd.f32 %v783, %v1140
    %v1175 = vadd.f32 %v788, %v1145
    %v1176 = vadd.f32 %v793, %v1150
    %v1177 = vadd.f32 %v798, %v1155
    %v1178 = vadd.f32 %v803, %v1160
    %s1179 = scalar_lea.vmem %s1, 384
    %v1180 = vld [vmem:[%s1179] sm:$0xff]
    %v1181 = vld [vmem:[%s1179 + $0x8] sm:$0xff]
    %v1182 = vld [vmem:[%s1179 + $0x10] sm:$0xff]
    %v1183 = vld [vmem:[%s1179 + $0x18] sm:$0xff]
    %v1184 = vld [vmem:[%s1179 + $0x20] sm:$0xff]
    %v1185 = vld [vmem:[%s1179 + $0x28] sm:$0xff]
    %v1186 = vld [vmem:[%s1179 + $0x30] sm:$0xff]
    %v1187 = vld [vmem:[%s1179 + $0x38] sm:$0xff]
    %v1188 = vld [vmem:[%s1179 + $0x40] sm:$0xff]
    %v1189 = vld [vmem:[%s1179 + $0x48] sm:$0xff]
    %v1190 = vld [vmem:[%s1179 + $0x50] sm:$0xff]
    %v1191 = vld [vmem:[%s1179 + $0x58] sm:$0xff]
    %v1192 = vld [vmem:[%s1179 + $0x60] sm:$0xff]
    %v1193 = vld [vmem:[%s1179 + $0x68] sm:$0xff]
    %v1194 = vld [vmem:[%s1179 + $0x70] sm:$0xff]
    %v1195 = vld [vmem:[%s1179 + $0x78] sm:$0xff]
    %1196 = vmatprep.subr.mxu0 0.0
    %1197 = vmatpush1.msra.mxu0 %v77
    %1198 = vmatprep.subr.mxu0 0.0
    %1199 = vmatpush1.msra.mxu0 %v78
    %1200 = vmatprep.subr.mxu0 0.0
    %1201 = vmatpush1.msra.mxu0 %v79
    %1202 = vmatprep.subr.mxu0 0.0
    %1203 = vmatpush1.msra.mxu0 %v80
    %1204 = vmatprep.subr.mxu0 0.0
    %1205 = vmatpush1.msra.mxu0 %v81
    %1206 = vmatprep.subr.mxu0 0.0
    %1207 = vmatpush1.msra.mxu0 %v82
    %1208 = vmatprep.subr.mxu0 0.0
    %1209 = vmatpush1.msra.mxu0 %v83
    %1210 = vmatprep.subr.mxu0 0.0
    %1211 = vmatpush1.msra.mxu0 %v84
    %1212 = vmatprep.subr.mxu0 0.0
    %1213 = vmatpush1.msra.mxu0 %v85
    %1214 = vmatprep.subr.mxu0 0.0
    %1215 = vmatpush1.msra.mxu0 %v86
    %1216 = vmatprep.subr.mxu0 0.0
    %1217 = vmatpush1.msra.mxu0 %v87
    %1218 = vmatprep.subr.mxu0 0.0
    %1219 = vmatpush1.msra.mxu0 %v88
    %1220 = vmatprep.subr.mxu0 0.0
    %1221 = vmatpush1.msra.mxu0 %v89
    %1222 = vmatprep.subr.mxu0 0.0
    %1223 = vmatpush1.msra.mxu0 %v90
    %1224 = vmatprep.subr.mxu0 0.0
    %1225 = vmatpush1.msra.mxu0 %v91
    %1226 = vmatprep.subr.mxu0 0.0
    %1227 = vmatpush1.msra.mxu0 %v92
    %1228 = vmatprep.subr.mxu0 0.0
    %1229 = vmatpush1.msra.mxu0 0.0
    %1230 = vmatprep.subr.mxu0 0.0
    %1231 = vmatpush1.msra.mxu0 0.0
    %1232 = vmatprep.subr.mxu0 0.0
    %1233 = vmatpush1.msra.mxu0 0.0
    %1234 = vmatprep.subr.mxu0 0.0
    %1235 = vmatpush1.msra.mxu0 0.0
    %1236 = vmatprep.subr.mxu0 0.0
    %1237 = vmatpush1.msra.mxu0 0.0
    %1238 = vmatprep.subr.mxu0 0.0
    %1239 = vmatpush1.msra.mxu0 0.0
    %1240 = vmatprep.subr.mxu0 0.0
    %1241 = vmatpush1.msra.mxu0 0.0
    %1242 = vmatprep.subr.mxu0 0.0
    %1243 = vmatpush1.msra.mxu0 0.0
    %1244 = vmatprep.subr.mxu0 0.0
    %1245 = vmatpush1.msra.mxu0 0.0
    %1246 = vmatprep.subr.mxu0 0.0
    %1247 = vmatpush1.msra.mxu0 0.0
    %1248 = vmatprep.subr.mxu0 0.0
    %1249 = vmatpush1.msra.mxu0 0.0
    %1250 = vmatprep.subr.mxu0 0.0
    %1251 = vmatpush1.msra.mxu0 0.0
    %1252 = vmatprep.subr.mxu0 0.0
    %1253 = vmatpush1.msra.mxu0 0.0
    %1254 = vmatprep.subr.mxu0 0.0
    %1255 = vmatpush1.msra.mxu0 0.0
    %1256 = vmatprep.subr.mxu0 0.0
    %1257 = vmatpush1.msra.mxu0 0.0
    %1258 = vmatprep.subr.mxu0 0.0
    %1259 = vmatpush1.msra.mxu0 0.0
    %1260 = vmatprep.mubr.f32.mxu0 0.0
    %1261 = vmatmul.mubr.f32.gmra.mrb[0].mxu0 %v1180
    %v1262 = vpop.f32.mrb[0].mxu0
    %v1263 = vadd.f32 0.0, %v1262
    %v1264 = vpop.f32.mrb[0].mxu0
    %1265 = vmatprep.mubr.f32.mxu0 0.0
    %1266 = vmatmul.mubr.f32.gmra.mrb[0].mxu0 %v1181
    %v1267 = vpop.f32.mrb[0].mxu0
    %v1268 = vadd.f32 0.0, %v1267
    %v1269 = vpop.f32.mrb[0].mxu0
    %1270 = vmatprep.mubr.f32.mxu0 0.0
    %1271 = vmatmul.mubr.f32.gmra.mrb[0].mxu0 %v1182
    %v1272 = vpop.f32.mrb[0].mxu0
    %v1273 = vadd.f32 0.0, %v1272
    %v1274 = vpop.f32.mrb[0].mxu0
    %1275 = vmatprep.mubr.f32.mxu0 0.0
    %1276 = vmatmul.mubr.f32.gmra.mrb[0].mxu0 %v1183
    %v1277 = vpop.f32.mrb[0].mxu0
    %v1278 = vadd.f32 0.0, %v1277
    %v1279 = vpop.f32.mrb[0].mxu0
    %1280 = vmatprep.mubr.f32.mxu0 0.0
    %1281 = vmatmul.mubr.f32.gmra.mrb[0].mxu0 %v1184
    %v1282 = vpop.f32.mrb[0].mxu0
    %v1283 = vadd.f32 0.0, %v1282
    %v1284 = vpop.f32.mrb[0].mxu0
    %1285 = vmatprep.mubr.f32.mxu0 0.0
    %1286 = vmatmul.mubr.f32.gmra.mrb[0].mxu0 %v1185
    %v1287 = vpop.f32.mrb[0].mxu0
    %v1288 = vadd.f32 0.0, %v1287
    %v1289 = vpop.f32.mrb[0].mxu0
    %1290 = vmatprep.mubr.f32.mxu0 0.0
    %1291 = vmatmul.mubr.f32.gmra.mrb[0].mxu0 %v1186
    %v1292 = vpop.f32.mrb[0].mxu0
    %v1293 = vadd.f32 0.0, %v1292
    %v1294 = vpop.f32.mrb[0].mxu0
    %1295 = vmatprep.mubr.f32.mxu0 0.0
    %1296 = vmatmul.mubr.f32.gmra.mrb[0].mxu0 %v1187
    %v1297 = vpop.f32.mrb[0].mxu0
    %v1298 = vadd.f32 0.0, %v1297
    %v1299 = vpop.f32.mrb[0].mxu0
    %1300 = vmatprep.mubr.f32.mxu0 0.0
    %1301 = vmatmul.mubr.f32.gmra.mrb[0].mxu0 %v1188
    %v1302 = vpop.f32.mrb[0].mxu0
    %v1303 = vadd.f32 0.0, %v1302
    %v1304 = vpop.f32.mrb[0].mxu0
    %1305 = vmatprep.mubr.f32.mxu0 0.0
    %1306 = vmatmul.mubr.f32.gmra.mrb[0].mxu0 %v1189
    %v1307 = vpop.f32.mrb[0].mxu0
    %v1308 = vadd.f32 0.0, %v1307
    %v1309 = vpop.f32.mrb[0].mxu0
    %1310 = vmatprep.mubr.f32.mxu0 0.0
    %1311 = vmatmul.mubr.f32.gmra.mrb[0].mxu0 %v1190
    %v1312 = vpop.f32.mrb[0].mxu0
    %v1313 = vadd.f32 0.0, %v1312
    %v1314 = vpop.f32.mrb[0].mxu0
    %1315 = vmatprep.mubr.f32.mxu0 0.0
    %1316 = vmatmul.mubr.f32.gmra.mrb[0].mxu0 %v1191
    %v1317 = vpop.f32.mrb[0].mxu0
    %v1318 = vadd.f32 0.0, %v1317
    %v1319 = vpop.f32.mrb[0].mxu0
    %1320 = vmatprep.mubr.f32.mxu0 0.0
    %1321 = vmatmul.mubr.f32.gmra.mrb[0].mxu0 %v1192
    %v1322 = vpop.f32.mrb[0].mxu0
    %v1323 = vadd.f32 0.0, %v1322
    %v1324 = vpop.f32.mrb[0].mxu0
    %1325 = vmatprep.mubr.f32.mxu0 0.0
    %1326 = vmatmul.mubr.f32.gmra.mrb[0].mxu0 %v1193
    %v1327 = vpop.f32.mrb[0].mxu0
    %v1328 = vadd.f32 0.0, %v1327
    %v1329 = vpop.f32.mrb[0].mxu0
    %1330 = vmatprep.mubr.f32.mxu0 0.0
    %1331 = vmatmul.mubr.f32.gmra.mrb[0].mxu0 %v1194
    %v1332 = vpop.f32.mrb[0].mxu0
    %v1333 = vadd.f32 0.0, %v1332
    %v1334 = vpop.f32.mrb[0].mxu0
    %1335 = vmatprep.mubr.f32.mxu0 0.0
    %1336 = vmatmul.mubr.f32.gmra.mrb[0].mxu0 %v1195
    %v1337 = vpop.f32.mrb[0].mxu0
    %v1338 = vadd.f32 0.0, %v1337
    %v1339 = vpop.f32.mrb[0].mxu0
    %1340 = vdwg.mxu0
    %s1341 = scalar_lea.vmem %s3, 24
    %v1342 = vld [vmem:[%s1341] sm:$0xff]
    %v1344 = vsel %vm419, %v1263, 0
    %v1347 = vsel %vm419, %v1268, 0
    %v1350 = vsel %vm419, %v1273, 0
    %v1353 = vsel %vm419, %v1278, 0
    %v1356 = vsel %vm419, %v1283, 0
    %v1359 = vsel %vm419, %v1288, 0
    %v1362 = vsel %vm419, %v1293, 0
    %v1365 = vsel %vm419, %v1298, 0
    %v1368 = vsel %vm419, %v1303, 0
    %v1371 = vsel %vm419, %v1308, 0
    %v1374 = vsel %vm419, %v1313, 0
    %v1377 = vsel %vm419, %v1318, 0
    %v1380 = vsel %vm419, %v1323, 0
    %v1383 = vsel %vm419, %v1328, 0
    %v1386 = vsel %vm419, %v1333, 0
    %v1389 = vsel %vm419, %v1338, 0
    %1391 = vmatprep.subr.mxu0 0.0
    %1392 = vmatpush1.msra.mxu0 %v1342
    %1393 = vmatprep.subr.mxu0 0.0
    %1394 = vmatpush1.msra.mxu0 0.0
    %1395 = vmatprep.subr.mxu0 0.0
    %1396 = vmatpush1.msra.mxu0 0.0
    %1397 = vmatprep.subr.mxu0 0.0
    %1398 = vmatpush1.msra.mxu0 0.0
    %1399 = vmatprep.subr.mxu0 0.0
    %1400 = vmatpush1.msra.mxu0 0.0
    %1401 = vmatprep.subr.mxu0 0.0
    %1402 = vmatpush1.msra.mxu0 0.0
    %1403 = vmatprep.subr.mxu0 0.0
    %1404 = vmatpush1.msra.mxu0 0.0
    %1405 = vmatprep.subr.mxu0 0.0
    %1406 = vmatpush1.msra.mxu0 0.0
    %1407 = vmatprep.subr.mxu0 0.0
    %1408 = vmatpush1.msra.mxu0 0.0
    %1409 = vmatprep.subr.mxu0 0.0
    %1410 = vmatpush1.msra.mxu0 0.0
    %1411 = vmatprep.subr.mxu0 0.0
    %1412 = vmatpush1.msra.mxu0 0.0
    %1413 = vmatprep.subr.mxu0 0.0
    %1414 = vmatpush1.msra.mxu0 0.0
    %1415 = vmatprep.subr.mxu0 0.0
    %1416 = vmatpush1.msra.mxu0 0.0
    %1417 = vmatprep.subr.mxu0 0.0
    %1418 = vmatpush1.msra.mxu0 0.0
    %1419 = vmatprep.subr.mxu0 0.0
    %1420 = vmatpush1.msra.mxu0 0.0
    %1421 = vmatprep.subr.mxu0 0.0
    %1422 = vmatpush1.msra.mxu0 0.0
    %1423 = vmatprep.subr.mxu0 0.0
    %1424 = vmatpush1.msra.mxu0 0.0
    %1425 = vmatprep.subr.mxu0 0.0
    %1426 = vmatpush1.msra.mxu0 0.0
    %1427 = vmatprep.subr.mxu0 0.0
    %1428 = vmatpush1.msra.mxu0 0.0
    %1429 = vmatprep.subr.mxu0 0.0
    %1430 = vmatpush1.msra.mxu0 0.0
    %1431 = vmatprep.subr.mxu0 0.0
    %1432 = vmatpush1.msra.mxu0 0.0
    %1433 = vmatprep.subr.mxu0 0.0
    %1434 = vmatpush1.msra.mxu0 0.0
    %1435 = vmatprep.subr.mxu0 0.0
    %1436 = vmatpush1.msra.mxu0 0.0
    %1437 = vmatprep.subr.mxu0 0.0
    %1438 = vmatpush1.msra.mxu0 0.0
    %1439 = vmatprep.subr.mxu0 0.0
    %1440 = vmatpush1.msra.mxu0 0.0
    %1441 = vmatprep.subr.mxu0 0.0
    %1442 = vmatpush1.msra.mxu0 0.0
    %1443 = vmatprep.subr.mxu0 0.0
    %1444 = vmatpush1.msra.mxu0 0.0
    %1445 = vmatprep.subr.mxu0 0.0
    %1446 = vmatpush1.msra.mxu0 0.0
    %1447 = vmatprep.subr.mxu0 0.0
    %1448 = vmatpush1.msra.mxu0 0.0
    %1449 = vmatprep.subr.mxu0 0.0
    %1450 = vmatpush1.msra.mxu0 0.0
    %1451 = vmatprep.subr.mxu0 0.0
    %1452 = vmatpush1.msra.mxu0 0.0
    %1453 = vmatprep.subr.mxu0 0.0
    %1454 = vmatpush1.msra.mxu0 0.0
    %1455 = vmatprep.mubr.f32.mxu0 0.0
    %1456 = vmatmul.mubr.f32.gmra.mrb[0].mxu0 %v1344
    %v1457 = vpop.f32.mrb[0].mxu0
    %v1458 = vadd.f32 0.0, %v1457
    %v1459 = vpop.f32.mrb[0].mxu0
    %1460 = vmatprep.mubr.f32.mxu0 0.0
    %1461 = vmatmul.mubr.f32.gmra.mrb[0].mxu0 %v1347
    %v1462 = vpop.f32.mrb[0].mxu0
    %v1463 = vadd.f32 0.0, %v1462
    %v1464 = vpop.f32.mrb[0].mxu0
    %1465 = vmatprep.mubr.f32.mxu0 0.0
    %1466 = vmatmul.mubr.f32.gmra.mrb[0].mxu0 %v1350
    %v1467 = vpop.f32.mrb[0].mxu0
    %v1468 = vadd.f32 0.0, %v1467
    %v1469 = vpop.f32.mrb[0].mxu0
    %1470 = vmatprep.mubr.f32.mxu0 0.0
    %1471 = vmatmul.mubr.f32.gmra.mrb[0].mxu0 %v1353
    %v1472 = vpop.f32.mrb[0].mxu0
    %v1473 = vadd.f32 0.0, %v1472
    %v1474 = vpop.f32.mrb[0].mxu0
    %1475 = vmatprep.mubr.f32.mxu0 0.0
    %1476 = vmatmul.mubr.f32.gmra.mrb[0].mxu0 %v1356
    %v1477 = vpop.f32.mrb[0].mxu0
    %v1478 = vadd.f32 0.0, %v1477
    %v1479 = vpop.f32.mrb[0].mxu0
    %1480 = vmatprep.mubr.f32.mxu0 0.0
    %1481 = vmatmul.mubr.f32.gmra.mrb[0].mxu0 %v1359
    %v1482 = vpop.f32.mrb[0].mxu0
    %v1483 = vadd.f32 0.0, %v1482
    %v1484 = vpop.f32.mrb[0].mxu0
    %1485 = vmatprep.mubr.f32.mxu0 0.0
    %1486 = vmatmul.mubr.f32.gmra.mrb[0].mxu0 %v1362
    %v1487 = vpop.f32.mrb[0].mxu0
    %v1488 = vadd.f32 0.0, %v1487
    %v1489 = vpop.f32.mrb[0].mxu0
    %1490 = vmatprep.mubr.f32.mxu0 0.0
    %1491 = vmatmul.mubr.f32.gmra.mrb[0].mxu0 %v1365
    %v1492 = vpop.f32.mrb[0].mxu0
    %v1493 = vadd.f32 0.0, %v1492
    %v1494 = vpop.f32.mrb[0].mxu0
    %1495 = vmatprep.mubr.f32.mxu0 0.0
    %1496 = vmatmul.mubr.f32.gmra.mrb[0].mxu0 %v1368
    %v1497 = vpop.f32.mrb[0].mxu0
    %v1498 = vadd.f32 0.0, %v1497
    %v1499 = vpop.f32.mrb[0].mxu0
    %1500 = vmatprep.mubr.f32.mxu0 0.0
    %1501 = vmatmul.mubr.f32.gmra.mrb[0].mxu0 %v1371
    %v1502 = vpop.f32.mrb[0].mxu0
    %v1503 = vadd.f32 0.0, %v1502
    %v1504 = vpop.f32.mrb[0].mxu0
    %1505 = vmatprep.mubr.f32.mxu0 0.0
    %1506 = vmatmul.mubr.f32.gmra.mrb[0].mxu0 %v1374
    %v1507 = vpop.f32.mrb[0].mxu0
    %v1508 = vadd.f32 0.0, %v1507
    %v1509 = vpop.f32.mrb[0].mxu0
    %1510 = vmatprep.mubr.f32.mxu0 0.0
    %1511 = vmatmul.mubr.f32.gmra.mrb[0].mxu0 %v1377
    %v1512 = vpop.f32.mrb[0].mxu0
    %v1513 = vadd.f32 0.0, %v1512
    %v1514 = vpop.f32.mrb[0].mxu0
    %1515 = vmatprep.mubr.f32.mxu0 0.0
    %1516 = vmatmul.mubr.f32.gmra.mrb[0].mxu0 %v1380
    %v1517 = vpop.f32.mrb[0].mxu0
    %v1518 = vadd.f32 0.0, %v1517
    %v1519 = vpop.f32.mrb[0].mxu0
    %1520 = vmatprep.mubr.f32.mxu0 0.0
    %1521 = vmatmul.mubr.f32.gmra.mrb[0].mxu0 %v1383
    %v1522 = vpop.f32.mrb[0].mxu0
    %v1523 = vadd.f32 0.0, %v1522
    %v1524 = vpop.f32.mrb[0].mxu0
    %1525 = vmatprep.mubr.f32.mxu0 0.0
    %1526 = vmatmul.mubr.f32.gmra.mrb[0].mxu0 %v1386
    %v1527 = vpop.f32.mrb[0].mxu0
    %v1528 = vadd.f32 0.0, %v1527
    %v1529 = vpop.f32.mrb[0].mxu0
    %1530 = vmatprep.mubr.f32.mxu0 0.0
    %1531 = vmatmul.mubr.f32.gmra.mrb[0].mxu0 %v1389
    %v1532 = vpop.f32.mrb[0].mxu0
    %v1533 = vadd.f32 0.0, %v1532
    %v1534 = vpop.f32.mrb[0].mxu0
    %1535 = vdwg.mxu0
    %v1536 = vadd.f32 %v1163, %v1458
    %v1537 = vadd.f32 %v1164, %v1463
    %v1538 = vadd.f32 %v1165, %v1468
    %v1539 = vadd.f32 %v1166, %v1473
    %v1540 = vadd.f32 %v1167, %v1478
    %v1541 = vadd.f32 %v1168, %v1483
    %v1542 = vadd.f32 %v1169, %v1488
    %v1543 = vadd.f32 %v1170, %v1493
    %v1544 = vadd.f32 %v1171, %v1498
    %v1545 = vadd.f32 %v1172, %v1503
    %v1546 = vadd.f32 %v1173, %v1508
    %v1547 = vadd.f32 %v1174, %v1513
    %v1548 = vadd.f32 %v1175, %v1518
    %v1549 = vadd.f32 %v1176, %v1523
    %v1550 = vadd.f32 %v1177, %v1528
    %v1551 = vadd.f32 %v1178, %v1533
    %s1552 = scalar_lea.vmem %s1, 512
    %v1553 = vld [vmem:[%s1552] sm:$0xff]
    %v1554 = vld [vmem:[%s1552 + $0x8] sm:$0xff]
    %v1555 = vld [vmem:[%s1552 + $0x10] sm:$0xff]
    %v1556 = vld [vmem:[%s1552 + $0x18] sm:$0xff]
    %v1557 = vld [vmem:[%s1552 + $0x20] sm:$0xff]
    %v1558 = vld [vmem:[%s1552 + $0x28] sm:$0xff]
    %v1559 = vld [vmem:[%s1552 + $0x30] sm:$0xff]
    %v1560 = vld [vmem:[%s1552 + $0x38] sm:$0xff]
    %v1561 = vld [vmem:[%s1552 + $0x40] sm:$0xff]
    %v1562 = vld [vmem:[%s1552 + $0x48] sm:$0xff]
    %v1563 = vld [vmem:[%s1552 + $0x50] sm:$0xff]
    %v1564 = vld [vmem:[%s1552 + $0x58] sm:$0xff]
    %v1565 = vld [vmem:[%s1552 + $0x60] sm:$0xff]
    %v1566 = vld [vmem:[%s1552 + $0x68] sm:$0xff]
    %v1567 = vld [vmem:[%s1552 + $0x70] sm:$0xff]
    %v1568 = vld [vmem:[%s1552 + $0x78] sm:$0xff]
    %1569 = vmatprep.subr.mxu0 0.0
    %1570 = vmatpush1.msra.mxu0 %v77
    %1571 = vmatprep.subr.mxu0 0.0
    %1572 = vmatpush1.msra.mxu0 %v78
    %1573 = vmatprep.subr.mxu0 0.0
    %1574 = vmatpush1.msra.mxu0 %v79
    %1575 = vmatprep.subr.mxu0 0.0
    %1576 = vmatpush1.msra.mxu0 %v80
    %1577 = vmatprep.subr.mxu0 0.0
    %1578 = vmatpush1.msra.mxu0 %v81
    %1579 = vmatprep.subr.mxu0 0.0
    %1580 = vmatpush1.msra.mxu0 %v82
    %1581 = vmatprep.subr.mxu0 0.0
    %1582 = vmatpush1.msra.mxu0 %v83
    %1583 = vmatprep.subr.mxu0 0.0
    %1584 = vmatpush1.msra.mxu0 %v84
    %1585 = vmatprep.subr.mxu0 0.0
    %1586 = vmatpush1.msra.mxu0 %v85
    %1587 = vmatprep.subr.mxu0 0.0
    %1588 = vmatpush1.msra.mxu0 %v86
    %1589 = vmatprep.subr.mxu0 0.0
    %1590 = vmatpush1.msra.mxu0 %v87
    %1591 = vmatprep.subr.mxu0 0.0
    %1592 = vmatpush1.msra.mxu0 %v88
    %1593 = vmatprep.subr.mxu0 0.0
    %1594 = vmatpush1.msra.mxu0 %v89
    %1595 = vmatprep.subr.mxu0 0.0
    %1596 = vmatpush1.msra.mxu0 %v90
    %1597 = vmatprep.subr.mxu0 0.0
    %1598 = vmatpush1.msra.mxu0 %v91
    %1599 = vmatprep.subr.mxu0 0.0
    %1600 = vmatpush1.msra.mxu0 %v92
    %1601 = vmatprep.subr.mxu0 0.0
    %1602 = vmatpush1.msra.mxu0 0.0
    %1603 = vmatprep.subr.mxu0 0.0
    %1604 = vmatpush1.msra.mxu0 0.0
    %1605 = vmatprep.subr.mxu0 0.0
    %1606 = vmatpush1.msra.mxu0 0.0
    %1607 = vmatprep.subr.mxu0 0.0
    %1608 = vmatpush1.msra.mxu0 0.0
    %1609 = vmatprep.subr.mxu0 0.0
    %1610 = vmatpush1.msra.mxu0 0.0
    %1611 = vmatprep.subr.mxu0 0.0
    %1612 = vmatpush1.msra.mxu0 0.0
    %1613 = vmatprep.subr.mxu0 0.0
    %1614 = vmatpush1.msra.mxu0 0.0
    %1615 = vmatprep.subr.mxu0 0.0
    %1616 = vmatpush1.msra.mxu0 0.0
    %1617 = vmatprep.subr.mxu0 0.0
    %1618 = vmatpush1.msra.mxu0 0.0
    %1619 = vmatprep.subr.mxu0 0.0
    %1620 = vmatpush1.msra.mxu0 0.0
    %1621 = vmatprep.subr.mxu0 0.0
    %1622 = vmatpush1.msra.mxu0 0.0
    %1623 = vmatprep.subr.mxu0 0.0
    %1624 = vmatpush1.msra.mxu0 0.0
    %1625 = vmatprep.subr.mxu0 0.0
    %1626 = vmatpush1.msra.mxu0 0.0
    %1627 = vmatprep.subr.mxu0 0.0
    %1628 = vmatpush1.msra.mxu0 0.0
    %1629 = vmatprep.subr.mxu0 0.0
    %1630 = vmatpush1.msra.mxu0 0.0
    %1631 = vmatprep.subr.mxu0 0.0
    %1632 = vmatpush1.msra.mxu0 0.0
    %1633 = vmatprep.mubr.f32.mxu0 0.0
    %1634 = vmatmul.mubr.f32.gmra.mrb[0].mxu0 %v1553
    %v1635 = vpop.f32.mrb[0].mxu0
    %v1636 = vadd.f32 0.0, %v1635
    %v1637 = vpop.f32.mrb[0].mxu0
    %1638 = vmatprep.mubr.f32.mxu0 0.0
    %1639 = vmatmul.mubr.f32.gmra.mrb[0].mxu0 %v1554
    %v1640 = vpop.f32.mrb[0].mxu0
    %v1641 = vadd.f32 0.0, %v1640
    %v1642 = vpop.f32.mrb[0].mxu0
    %1643 = vmatprep.mubr.f32.mxu0 0.0
    %1644 = vmatmul.mubr.f32.gmra.mrb[0].mxu0 %v1555
    %v1645 = vpop.f32.mrb[0].mxu0
    %v1646 = vadd.f32 0.0, %v1645
    %v1647 = vpop.f32.mrb[0].mxu0
    %1648 = vmatprep.mubr.f32.mxu0 0.0
    %1649 = vmatmul.mubr.f32.gmra.mrb[0].mxu0 %v1556
    %v1650 = vpop.f32.mrb[0].mxu0
    %v1651 = vadd.f32 0.0, %v1650
    %v1652 = vpop.f32.mrb[0].mxu0
    %1653 = vmatprep.mubr.f32.mxu0 0.0
    %1654 = vmatmul.mubr.f32.gmra.mrb[0].mxu0 %v1557
    %v1655 = vpop.f32.mrb[0].mxu0
    %v1656 = vadd.f32 0.0, %v1655
    %v1657 = vpop.f32.mrb[0].mxu0
    %1658 = vmatprep.mubr.f32.mxu0 0.0
    %1659 = vmatmul.mubr.f32.gmra.mrb[0].mxu0 %v1558
    %v1660 = vpop.f32.mrb[0].mxu0
    %v1661 = vadd.f32 0.0, %v1660
    %v1662 = vpop.f32.mrb[0].mxu0
    %1663 = vmatprep.mubr.f32.mxu0 0.0
    %1664 = vmatmul.mubr.f32.gmra.mrb[0].mxu0 %v1559
    %v1665 = vpop.f32.mrb[0].mxu0
    %v1666 = vadd.f32 0.0, %v1665
    %v1667 = vpop.f32.mrb[0].mxu0
    %1668 = vmatprep.mubr.f32.mxu0 0.0
    %1669 = vmatmul.mubr.f32.gmra.mrb[0].mxu0 %v1560
    %v1670 = vpop.f32.mrb[0].mxu0
    %v1671 = vadd.f32 0.0, %v1670
    %v1672 = vpop.f32.mrb[0].mxu0
    %1673 = vmatprep.mubr.f32.mxu0 0.0
    %1674 = vmatmul.mubr.f32.gmra.mrb[0].mxu0 %v1561
    %v1675 = vpop.f32.mrb[0].mxu0
    %v1676 = vadd.f32 0.0, %v1675
    %v1677 = vpop.f32.mrb[0].mxu0
    %1678 = vmatprep.mubr.f32.mxu0 0.0
    %1679 = vmatmul.mubr.f32.gmra.mrb[0].mxu0 %v1562
    %v1680 = vpop.f32.mrb[0].mxu0
    %v1681 = vadd.f32 0.0, %v1680
    %v1682 = vpop.f32.mrb[0].mxu0
    %1683 = vmatprep.mubr.f32.mxu0 0.0
    %1684 = vmatmul.mubr.f32.gmra.mrb[0].mxu0 %v1563
    %v1685 = vpop.f32.mrb[0].mxu0
    %v1686 = vadd.f32 0.0, %v1685
    %v1687 = vpop.f32.mrb[0].mxu0
    %1688 = vmatprep.mubr.f32.mxu0 0.0
    %1689 = vmatmul.mubr.f32.gmra.mrb[0].mxu0 %v1564
    %v1690 = vpop.f32.mrb[0].mxu0
    %v1691 = vadd.f32 0.0, %v1690
    %v1692 = vpop.f32.mrb[0].mxu0
    %1693 = vmatprep.mubr.f32.mxu0 0.0
    %1694 = vmatmul.mubr.f32.gmra.mrb[0].mxu0 %v1565
    %v1695 = vpop.f32.mrb[0].mxu0
    %v1696 = vadd.f32 0.0, %v1695
    %v1697 = vpop.f32.mrb[0].mxu0
    %1698 = vmatprep.mubr.f32.mxu0 0.0
    %1699 = vmatmul.mubr.f32.gmra.mrb[0].mxu0 %v1566
    %v1700 = vpop.f32.mrb[0].mxu0
    %v1701 = vadd.f32 0.0, %v1700
    %v1702 = vpop.f32.mrb[0].mxu0
    %1703 = vmatprep.mubr.f32.mxu0 0.0
    %1704 = vmatmul.mubr.f32.gmra.mrb[0].mxu0 %v1567
    %v1705 = vpop.f32.mrb[0].mxu0
    %v1706 = vadd.f32 0.0, %v1705
    %v1707 = vpop.f32.mrb[0].mxu0
    %1708 = vmatprep.mubr.f32.mxu0 0.0
    %1709 = vmatmul.mubr.f32.gmra.mrb[0].mxu0 %v1568
    %v1710 = vpop.f32.mrb[0].mxu0
    %v1711 = vadd.f32 0.0, %v1710
    %v1712 = vpop.f32.mrb[0].mxu0
    %1713 = vdwg.mxu0
    %s1714 = scalar_lea.vmem %s3, 32
    %v1715 = vld [vmem:[%s1714] sm:$0xff]
    %v1717 = vsel %vm419, %v1636, 0
    %v1720 = vsel %vm419, %v1641, 0
    %v1723 = vsel %vm419, %v1646, 0
    %v1726 = vsel %vm419, %v1651, 0
    %v1729 = vsel %vm419, %v1656, 0
    %v1732 = vsel %vm419, %v1661, 0
    %v1735 = vsel %vm419, %v1666, 0
    %v1738 = vsel %vm419, %v1671, 0
    %v1741 = vsel %vm419, %v1676, 0
    %v1744 = vsel %vm419, %v1681, 0
    %v1747 = vsel %vm419, %v1686, 0
    %v1750 = vsel %vm419, %v1691, 0
    %v1753 = vsel %vm419, %v1696, 0
    %v1756 = vsel %vm419, %v1701, 0
    %v1759 = vsel %vm419, %v1706, 0
    %v1762 = vsel %vm419, %v1711, 0
    %1764 = vmatprep.subr.mxu0 0.0
    %1765 = vmatpush1.msra.mxu0 %v1715
    %1766 = vmatprep.subr.mxu0 0.0
    %1767 = vmatpush1.msra.mxu0 0.0
    %1768 = vmatprep.subr.mxu0 0.0
    %1769 = vmatpush1.msra.mxu0 0.0
    %1770 = vmatprep.subr.mxu0 0.0
    %1771 = vmatpush1.msra.mxu0 0.0
    %1772 = vmatprep.subr.mxu0 0.0
    %1773 = vmatpush1.msra.mxu0 0.0
    %1774 = vmatprep.subr.mxu0 0.0
    %1775 = vmatpush1.msra.mxu0 0.0
    %1776 = vmatprep.subr.mxu0 0.0
    %1777 = vmatpush1.msra.mxu0 0.0
    %1778 = vmatprep.subr.mxu0 0.0
    %1779 = vmatpush1.msra.mxu0 0.0
    %1780 = vmatprep.subr.mxu0 0.0
    %1781 = vmatpush1.msra.mxu0 0.0
    %1782 = vmatprep.subr.mxu0 0.0
    %1783 = vmatpush1.msra.mxu0 0.0
    %1784 = vmatprep.subr.mxu0 0.0
    %1785 = vmatpush1.msra.mxu0 0.0
    %1786 = vmatprep.subr.mxu0 0.0
    %1787 = vmatpush1.msra.mxu0 0.0
    %1788 = vmatprep.subr.mxu0 0.0
    %1789 = vmatpush1.msra.mxu0 0.0
    %1790 = vmatprep.subr.mxu0 0.0
    %1791 = vmatpush1.msra.mxu0 0.0
    %1792 = vmatprep.subr.mxu0 0.0
    %1793 = vmatpush1.msra.mxu0 0.0
    %1794 = vmatprep.subr.mxu0 0.0
    %1795 = vmatpush1.msra.mxu0 0.0
    %1796 = vmatprep.subr.mxu0 0.0
    %1797 = vmatpush1.msra.mxu0 0.0
    %1798 = vmatprep.subr.mxu0 0.0
    %1799 = vmatpush1.msra.mxu0 0.0
    %1800 = vmatprep.subr.mxu0 0.0
    %1801 = vmatpush1.msra.mxu0 0.0
    %1802 = vmatprep.subr.mxu0 0.0
    %1803 = vmatpush1.msra.mxu0 0.0
    %1804 = vmatprep.subr.mxu0 0.0
    %1805 = vmatpush1.msra.mxu0 0.0
    %1806 = vmatprep.subr.mxu0 0.0
    %1807 = vmatpush1.msra.mxu0 0.0
    %1808 = vmatprep.subr.mxu0 0.0
    %1809 = vmatpush1.msra.mxu0 0.0
    %1810 = vmatprep.subr.mxu0 0.0
    %1811 = vmatpush1.msra.mxu0 0.0
    %1812 = vmatprep.subr.mxu0 0.0
    %1813 = vmatpush1.msra.mxu0 0.0
    %1814 = vmatprep.subr.mxu0 0.0
    %1815 = vmatpush1.msra.mxu0 0.0
    %1816 = vmatprep.subr.mxu0 0.0
    %1817 = vmatpush1.msra.mxu0 0.0
    %1818 = vmatprep.subr.mxu0 0.0
    %1819 = vmatpush1.msra.mxu0 0.0
    %1820 = vmatprep.subr.mxu0 0.0
    %1821 = vmatpush1.msra.mxu0 0.0
    %1822 = vmatprep.subr.mxu0 0.0
    %1823 = vmatpush1.msra.mxu0 0.0
    %1824 = vmatprep.subr.mxu0 0.0
    %1825 = vmatpush1.msra.mxu0 0.0
    %1826 = vmatprep.subr.mxu0 0.0
    %1827 = vmatpush1.msra.mxu0 0.0
    %1828 = vmatprep.mubr.f32.mxu0 0.0
    %1829 = vmatmul.mubr.f32.gmra.mrb[0].mxu0 %v1717
    %v1830 = vpop.f32.mrb[0].mxu0
    %v1831 = vadd.f32 0.0, %v1830
    %v1832 = vpop.f32.mrb[0].mxu0
    %1833 = vmatprep.mubr.f32.mxu0 0.0
    %1834 = vmatmul.mubr.f32.gmra.mrb[0].mxu0 %v1720
    %v1835 = vpop.f32.mrb[0].mxu0
    %v1836 = vadd.f32 0.0, %v1835
    %v1837 = vpop.f32.mrb[0].mxu0
    %1838 = vmatprep.mubr.f32.mxu0 0.0
    %1839 = vmatmul.mubr.f32.gmra.mrb[0].mxu0 %v1723
    %v1840 = vpop.f32.mrb[0].mxu0
    %v1841 = vadd.f32 0.0, %v1840
    %v1842 = vpop.f32.mrb[0].mxu0
    %1843 = vmatprep.mubr.f32.mxu0 0.0
    %1844 = vmatmul.mubr.f32.gmra.mrb[0].mxu0 %v1726
    %v1845 = vpop.f32.mrb[0].mxu0
    %v1846 = vadd.f32 0.0, %v1845
    %v1847 = vpop.f32.mrb[0].mxu0
    %1848 = vmatprep.mubr.f32.mxu0 0.0
    %1849 = vmatmul.mubr.f32.gmra.mrb[0].mxu0 %v1729
    %v1850 = vpop.f32.mrb[0].mxu0
    %v1851 = vadd.f32 0.0, %v1850
    %v1852 = vpop.f32.mrb[0].mxu0
    %1853 = vmatprep.mubr.f32.mxu0 0.0
    %1854 = vmatmul.mubr.f32.gmra.mrb[0].mxu0 %v1732
    %v1855 = vpop.f32.mrb[0].mxu0
    %v1856 = vadd.f32 0.0, %v1855
    %v1857 = vpop.f32.mrb[0].mxu0
    %1858 = vmatprep.mubr.f32.mxu0 0.0
    %1859 = vmatmul.mubr.f32.gmra.mrb[0].mxu0 %v1735
    %v1860 = vpop.f32.mrb[0].mxu0
    %v1861 = vadd.f32 0.0, %v1860
    %v1862 = vpop.f32.mrb[0].mxu0
    %1863 = vmatprep.mubr.f32.mxu0 0.0
    %1864 = vmatmul.mubr.f32.gmra.mrb[0].mxu0 %v1738
    %v1865 = vpop.f32.mrb[0].mxu0
    %v1866 = vadd.f32 0.0, %v1865
    %v1867 = vpop.f32.mrb[0].mxu0
    %1868 = vmatprep.mubr.f32.mxu0 0.0
    %1869 = vmatmul.mubr.f32.gmra.mrb[0].mxu0 %v1741
    %v1870 = vpop.f32.mrb[0].mxu0
    %v1871 = vadd.f32 0.0, %v1870
    %v1872 = vpop.f32.mrb[0].mxu0
    %1873 = vmatprep.mubr.f32.mxu0 0.0
    %1874 = vmatmul.mubr.f32.gmra.mrb[0].mxu0 %v1744
    %v1875 = vpop.f32.mrb[0].mxu0
    %v1876 = vadd.f32 0.0, %v1875
    %v1877 = vpop.f32.mrb[0].mxu0
    %1878 = vmatprep.mubr.f32.mxu0 0.0
    %1879 = vmatmul.mubr.f32.gmra.mrb[0].mxu0 %v1747
    %v1880 = vpop.f32.mrb[0].mxu0
    %v1881 = vadd.f32 0.0, %v1880
    %v1882 = vpop.f32.mrb[0].mxu0
    %1883 = vmatprep.mubr.f32.mxu0 0.0
    %1884 = vmatmul.mubr.f32.gmra.mrb[0].mxu0 %v1750
    %v1885 = vpop.f32.mrb[0].mxu0
    %v1886 = vadd.f32 0.0, %v1885
    %v1887 = vpop.f32.mrb[0].mxu0
    %1888 = vmatprep.mubr.f32.mxu0 0.0
    %1889 = vmatmul.mubr.f32.gmra.mrb[0].mxu0 %v1753
    %v1890 = vpop.f32.mrb[0].mxu0
    %v1891 = vadd.f32 0.0, %v1890
    %v1892 = vpop.f32.mrb[0].mxu0
    %1893 = vmatprep.mubr.f32.mxu0 0.0
    %1894 = vmatmul.mubr.f32.gmra.mrb[0].mxu0 %v1756
    %v1895 = vpop.f32.mrb[0].mxu0
    %v1896 = vadd.f32 0.0, %v1895
    %v1897 = vpop.f32.mrb[0].mxu0
    %1898 = vmatprep.mubr.f32.mxu0 0.0
    %1899 = vmatmul.mubr.f32.gmra.mrb[0].mxu0 %v1759
    %v1900 = vpop.f32.mrb[0].mxu0
    %v1901 = vadd.f32 0.0, %v1900
    %v1902 = vpop.f32.mrb[0].mxu0
    %1903 = vmatprep.mubr.f32.mxu0 0.0
    %1904 = vmatmul.mubr.f32.gmra.mrb[0].mxu0 %v1762
    %v1905 = vpop.f32.mrb[0].mxu0
    %v1906 = vadd.f32 0.0, %v1905
    %v1907 = vpop.f32.mrb[0].mxu0
    %1908 = vdwg.mxu0
    %v1909 = vadd.f32 %v1536, %v1831
    %v1910 = vadd.f32 %v1537, %v1836
    %v1911 = vadd.f32 %v1538, %v1841
    %v1912 = vadd.f32 %v1539, %v1846
    %v1913 = vadd.f32 %v1540, %v1851
    %v1914 = vadd.f32 %v1541, %v1856
    %v1915 = vadd.f32 %v1542, %v1861
    %v1916 = vadd.f32 %v1543, %v1866
    %v1917 = vadd.f32 %v1544, %v1871
    %v1918 = vadd.f32 %v1545, %v1876
    %v1919 = vadd.f32 %v1546, %v1881
    %v1920 = vadd.f32 %v1547, %v1886
    %v1921 = vadd.f32 %v1548, %v1891
    %v1922 = vadd.f32 %v1549, %v1896
    %v1923 = vadd.f32 %v1550, %v1901
    %v1924 = vadd.f32 %v1551, %v1906
    %s1925 = scalar_lea.vmem %s1, 640
    %v1926 = vld [vmem:[%s1925] sm:$0xff]
    %v1927 = vld [vmem:[%s1925 + $0x8] sm:$0xff]
    %v1928 = vld [vmem:[%s1925 + $0x10] sm:$0xff]
    %v1929 = vld [vmem:[%s1925 + $0x18] sm:$0xff]
    %v1930 = vld [vmem:[%s1925 + $0x20] sm:$0xff]
    %v1931 = vld [vmem:[%s1925 + $0x28] sm:$0xff]
    %v1932 = vld [vmem:[%s1925 + $0x30] sm:$0xff]
    %v1933 = vld [vmem:[%s1925 + $0x38] sm:$0xff]
    %v1934 = vld [vmem:[%s1925 + $0x40] sm:$0xff]
    %v1935 = vld [vmem:[%s1925 + $0x48] sm:$0xff]
    %v1936 = vld [vmem:[%s1925 + $0x50] sm:$0xff]
    %v1937 = vld [vmem:[%s1925 + $0x58] sm:$0xff]
    %v1938 = vld [vmem:[%s1925 + $0x60] sm:$0xff]
    %v1939 = vld [vmem:[%s1925 + $0x68] sm:$0xff]
    %v1940 = vld [vmem:[%s1925 + $0x70] sm:$0xff]
    %v1941 = vld [vmem:[%s1925 + $0x78] sm:$0xff]
    %1942 = vmatprep.subr.mxu0 0.0
    %1943 = vmatpush1.msra.mxu0 %v77
    %1944 = vmatprep.subr.mxu0 0.0
    %1945 = vmatpush1.msra.mxu0 %v78
    %1946 = vmatprep.subr.mxu0 0.0
    %1947 = vmatpush1.msra.mxu0 %v79
    %1948 = vmatprep.subr.mxu0 0.0
    %1949 = vmatpush1.msra.mxu0 %v80
    %1950 = vmatprep.subr.mxu0 0.0
    %1951 = vmatpush1.msra.mxu0 %v81
    %1952 = vmatprep.subr.mxu0 0.0
    %1953 = vmatpush1.msra.mxu0 %v82
    %1954 = vmatprep.subr.mxu0 0.0
    %1955 = vmatpush1.msra.mxu0 %v83
    %1956 = vmatprep.subr.mxu0 0.0
    %1957 = vmatpush1.msra.mxu0 %v84
    %1958 = vmatprep.subr.mxu0 0.0
    %1959 = vmatpush1.msra.mxu0 %v85
    %1960 = vmatprep.subr.mxu0 0.0
    %1961 = vmatpush1.msra.mxu0 %v86
    %1962 = vmatprep.subr.mxu0 0.0
    %1963 = vmatpush1.msra.mxu0 %v87
    %1964 = vmatprep.subr.mxu0 0.0
    %1965 = vmatpush1.msra.mxu0 %v88
    %1966 = vmatprep.subr.mxu0 0.0
    %1967 = vmatpush1.msra.mxu0 %v89
    %1968 = vmatprep.subr.mxu0 0.0
    %1969 = vmatpush1.msra.mxu0 %v90
    %1970 = vmatprep.subr.mxu0 0.0
    %1971 = vmatpush1.msra.mxu0 %v91
    %1972 = vmatprep.subr.mxu0 0.0
    %1973 = vmatpush1.msra.mxu0 %v92
    %1974 = vmatprep.subr.mxu0 0.0
    %1975 = vmatpush1.msra.mxu0 0.0
    %1976 = vmatprep.subr.mxu0 0.0
    %1977 = vmatpush1.msra.mxu0 0.0
    %1978 = vmatprep.subr.mxu0 0.0
    %1979 = vmatpush1.msra.mxu0 0.0
    %1980 = vmatprep.subr.mxu0 0.0
    %1981 = vmatpush1.msra.mxu0 0.0
    %1982 = vmatprep.subr.mxu0 0.0
    %1983 = vmatpush1.msra.mxu0 0.0
    %1984 = vmatprep.subr.mxu0 0.0
    %1985 = vmatpush1.msra.mxu0 0.0
    %1986 = vmatprep.subr.mxu0 0.0
    %1987 = vmatpush1.msra.mxu0 0.0
    %1988 = vmatprep.subr.mxu0 0.0
    %1989 = vmatpush1.msra.mxu0 0.0
    %1990 = vmatprep.subr.mxu0 0.0
    %1991 = vmatpush1.msra.mxu0 0.0
    %1992 = vmatprep.subr.mxu0 0.0
    %1993 = vmatpush1.msra.mxu0 0.0
    %1994 = vmatprep.subr.mxu0 0.0
    %1995 = vmatpush1.msra.mxu0 0.0
    %1996 = vmatprep.subr.mxu0 0.0
    %1997 = vmatpush1.msra.mxu0 0.0
    %1998 = vmatprep.subr.mxu0 0.0
    %1999 = vmatpush1.msra.mxu0 0.0
    %2000 = vmatprep.subr.mxu0 0.0
    %2001 = vmatpush1.msra.mxu0 0.0
    %2002 = vmatprep.subr.mxu0 0.0
    %2003 = vmatpush1.msra.mxu0 0.0
    %2004 = vmatprep.subr.mxu0 0.0
    %2005 = vmatpush1.msra.mxu0 0.0
    %2006 = vmatprep.mubr.f32.mxu0 0.0
    %2007 = vmatmul.mubr.f32.gmra.mrb[0].mxu0 %v1926
    %v2008 = vpop.f32.mrb[0].mxu0
    %v2009 = vadd.f32 0.0, %v2008
    %v2010 = vpop.f32.mrb[0].mxu0
    %2011 = vmatprep.mubr.f32.mxu0 0.0
    %2012 = vmatmul.mubr.f32.gmra.mrb[0].mxu0 %v1927
    %v2013 = vpop.f32.mrb[0].mxu0
    %v2014 = vadd.f32 0.0, %v2013
    %v2015 = vpop.f32.mrb[0].mxu0
    %2016 = vmatprep.mubr.f32.mxu0 0.0
    %2017 = vmatmul.mubr.f32.gmra.mrb[0].mxu0 %v1928
    %v2018 = vpop.f32.mrb[0].mxu0
    %v2019 = vadd.f32 0.0, %v2018
    %v2020 = vpop.f32.mrb[0].mxu0
    %2021 = vmatprep.mubr.f32.mxu0 0.0
    %2022 = vmatmul.mubr.f32.gmra.mrb[0].mxu0 %v1929
    %v2023 = vpop.f32.mrb[0].mxu0
    %v2024 = vadd.f32 0.0, %v2023
    %v2025 = vpop.f32.mrb[0].mxu0
    %2026 = vmatprep.mubr.f32.mxu0 0.0
    %2027 = vmatmul.mubr.f32.gmra.mrb[0].mxu0 %v1930
    %v2028 = vpop.f32.mrb[0].mxu0
    %v2029 = vadd.f32 0.0, %v2028
    %v2030 = vpop.f32.mrb[0].mxu0
    %2031 = vmatprep.mubr.f32.mxu0 0.0
    %2032 = vmatmul.mubr.f32.gmra.mrb[0].mxu0 %v1931
    %v2033 = vpop.f32.mrb[0].mxu0
    %v2034 = vadd.f32 0.0, %v2033
    %v2035 = vpop.f32.mrb[0].mxu0
    %2036 = vmatprep.mubr.f32.mxu0 0.0
    %2037 = vmatmul.mubr.f32.gmra.mrb[0].mxu0 %v1932
    %v2038 = vpop.f32.mrb[0].mxu0
    %v2039 = vadd.f32 0.0, %v2038
    %v2040 = vpop.f32.mrb[0].mxu0
    %2041 = vmatprep.mubr.f32.mxu0 0.0
    %2042 = vmatmul.mubr.f32.gmra.mrb[0].mxu0 %v1933
    %v2043 = vpop.f32.mrb[0].mxu0
    %v2044 = vadd.f32 0.0, %v2043
    %v2045 = vpop.f32.mrb[0].mxu0
    %2046 = vmatprep.mubr.f32.mxu0 0.0
    %2047 = vmatmul.mubr.f32.gmra.mrb[0].mxu0 %v1934
    %v2048 = vpop.f32.mrb[0].mxu0
    %v2049 = vadd.f32 0.0, %v2048
    %v2050 = vpop.f32.mrb[0].mxu0
    %2051 = vmatprep.mubr.f32.mxu0 0.0
    %2052 = vmatmul.mubr.f32.gmra.mrb[0].mxu0 %v1935
    %v2053 = vpop.f32.mrb[0].mxu0
    %v2054 = vadd.f32 0.0, %v2053
    %v2055 = vpop.f32.mrb[0].mxu0
    %2056 = vmatprep.mubr.f32.mxu0 0.0
    %2057 = vmatmul.mubr.f32.gmra.mrb[0].mxu0 %v1936
    %v2058 = vpop.f32.mrb[0].mxu0
    %v2059 = vadd.f32 0.0, %v2058
    %v2060 = vpop.f32.mrb[0].mxu0
    %2061 = vmatprep.mubr.f32.mxu0 0.0
    %2062 = vmatmul.mubr.f32.gmra.mrb[0].mxu0 %v1937
    %v2063 = vpop.f32.mrb[0].mxu0
    %v2064 = vadd.f32 0.0, %v2063
    %v2065 = vpop.f32.mrb[0].mxu0
    %2066 = vmatprep.mubr.f32.mxu0 0.0
    %2067 = vmatmul.mubr.f32.gmra.mrb[0].mxu0 %v1938
    %v2068 = vpop.f32.mrb[0].mxu0
    %v2069 = vadd.f32 0.0, %v2068
    %v2070 = vpop.f32.mrb[0].mxu0
    %2071 = vmatprep.mubr.f32.mxu0 0.0
    %2072 = vmatmul.mubr.f32.gmra.mrb[0].mxu0 %v1939
    %v2073 = vpop.f32.mrb[0].mxu0
    %v2074 = vadd.f32 0.0, %v2073
    %v2075 = vpop.f32.mrb[0].mxu0
    %2076 = vmatprep.mubr.f32.mxu0 0.0
    %2077 = vmatmul.mubr.f32.gmra.mrb[0].mxu0 %v1940
    %v2078 = vpop.f32.mrb[0].mxu0
    %v2079 = vadd.f32 0.0, %v2078
    %v2080 = vpop.f32.mrb[0].mxu0
    %2081 = vmatprep.mubr.f32.mxu0 0.0
    %2082 = vmatmul.mubr.f32.gmra.mrb[0].mxu0 %v1941
    %v2083 = vpop.f32.mrb[0].mxu0
    %v2084 = vadd.f32 0.0, %v2083
    %v2085 = vpop.f32.mrb[0].mxu0
    %2086 = vdwg.mxu0
    %s2087 = scalar_lea.vmem %s3, 40
    %v2088 = vld [vmem:[%s2087] sm:$0xff]
    %v2090 = vsel %vm419, %v2009, 0
    %v2093 = vsel %vm419, %v2014, 0
    %v2096 = vsel %vm419, %v2019, 0
    %v2099 = vsel %vm419, %v2024, 0
    %v2102 = vsel %vm419, %v2029, 0
    %v2105 = vsel %vm419, %v2034, 0
    %v2108 = vsel %vm419, %v2039, 0
    %v2111 = vsel %vm419, %v2044, 0
    %v2114 = vsel %vm419, %v2049, 0
    %v2117 = vsel %vm419, %v2054, 0
    %v2120 = vsel %vm419, %v2059, 0
    %v2123 = vsel %vm419, %v2064, 0
    %v2126 = vsel %vm419, %v2069, 0
    %v2129 = vsel %vm419, %v2074, 0
    %v2132 = vsel %vm419, %v2079, 0
    %v2135 = vsel %vm419, %v2084, 0
    %2137 = vmatprep.subr.mxu0 0.0
    %2138 = vmatpush1.msra.mxu0 %v2088
    %2139 = vmatprep.subr.mxu0 0.0
    %2140 = vmatpush1.msra.mxu0 0.0
    %2141 = vmatprep.subr.mxu0 0.0
    %2142 = vmatpush1.msra.mxu0 0.0
    %2143 = vmatprep.subr.mxu0 0.0
    %2144 = vmatpush1.msra.mxu0 0.0
    %2145 = vmatprep.subr.mxu0 0.0
    %2146 = vmatpush1.msra.mxu0 0.0
    %2147 = vmatprep.subr.mxu0 0.0
    %2148 = vmatpush1.msra.mxu0 0.0
    %2149 = vmatprep.subr.mxu0 0.0
    %2150 = vmatpush1.msra.mxu0 0.0
    %2151 = vmatprep.subr.mxu0 0.0
    %2152 = vmatpush1.msra.mxu0 0.0
    %2153 = vmatprep.subr.mxu0 0.0
    %2154 = vmatpush1.msra.mxu0 0.0
    %2155 = vmatprep.subr.mxu0 0.0
    %2156 = vmatpush1.msra.mxu0 0.0
    %2157 = vmatprep.subr.mxu0 0.0
    %2158 = vmatpush1.msra.mxu0 0.0
    %2159 = vmatprep.subr.mxu0 0.0
    %2160 = vmatpush1.msra.mxu0 0.0
    %2161 = vmatprep.subr.mxu0 0.0
    %2162 = vmatpush1.msra.mxu0 0.0
    %2163 = vmatprep.subr.mxu0 0.0
    %2164 = vmatpush1.msra.mxu0 0.0
    %2165 = vmatprep.subr.mxu0 0.0
    %2166 = vmatpush1.msra.mxu0 0.0
    %2167 = vmatprep.subr.mxu0 0.0
    %2168 = vmatpush1.msra.mxu0 0.0
    %2169 = vmatprep.subr.mxu0 0.0
    %2170 = vmatpush1.msra.mxu0 0.0
    %2171 = vmatprep.subr.mxu0 0.0
    %2172 = vmatpush1.msra.mxu0 0.0
    %2173 = vmatprep.subr.mxu0 0.0
    %2174 = vmatpush1.msra.mxu0 0.0
    %2175 = vmatprep.subr.mxu0 0.0
    %2176 = vmatpush1.msra.mxu0 0.0
    %2177 = vmatprep.subr.mxu0 0.0
    %2178 = vmatpush1.msra.mxu0 0.0
    %2179 = vmatprep.subr.mxu0 0.0
    %2180 = vmatpush1.msra.mxu0 0.0
    %2181 = vmatprep.subr.mxu0 0.0
    %2182 = vmatpush1.msra.mxu0 0.0
    %2183 = vmatprep.subr.mxu0 0.0
    %2184 = vmatpush1.msra.mxu0 0.0
    %2185 = vmatprep.subr.mxu0 0.0
    %2186 = vmatpush1.msra.mxu0 0.0
    %2187 = vmatprep.subr.mxu0 0.0
    %2188 = vmatpush1.msra.mxu0 0.0
    %2189 = vmatprep.subr.mxu0 0.0
    %2190 = vmatpush1.msra.mxu0 0.0
    %2191 = vmatprep.subr.mxu0 0.0
    %2192 = vmatpush1.msra.mxu0 0.0
    %2193 = vmatprep.subr.mxu0 0.0
    %2194 = vmatpush1.msra.mxu0 0.0
    %2195 = vmatprep.subr.mxu0 0.0
    %2196 = vmatpush1.msra.mxu0 0.0
    %2197 = vmatprep.subr.mxu0 0.0
    %2198 = vmatpush1.msra.mxu0 0.0
    %2199 = vmatprep.subr.mxu0 0.0
    %2200 = vmatpush1.msra.mxu0 0.0
    %2201 = vmatprep.mubr.f32.mxu0 0.0
    %2202 = vmatmul.mubr.f32.gmra.mrb[0].mxu0 %v2090
    %v2203 = vpop.f32.mrb[0].mxu0
    %v2204 = vadd.f32 0.0, %v2203
    %v2205 = vpop.f32.mrb[0].mxu0
    %2206 = vmatprep.mubr.f32.mxu0 0.0
    %2207 = vmatmul.mubr.f32.gmra.mrb[0].mxu0 %v2093
    %v2208 = vpop.f32.mrb[0].mxu0
    %v2209 = vadd.f32 0.0, %v2208
    %v2210 = vpop.f32.mrb[0].mxu0
    %2211 = vmatprep.mubr.f32.mxu0 0.0
    %2212 = vmatmul.mubr.f32.gmra.mrb[0].mxu0 %v2096
    %v2213 = vpop.f32.mrb[0].mxu0
    %v2214 = vadd.f32 0.0, %v2213
    %v2215 = vpop.f32.mrb[0].mxu0
    %2216 = vmatprep.mubr.f32.mxu0 0.0
    %2217 = vmatmul.mubr.f32.gmra.mrb[0].mxu0 %v2099
    %v2218 = vpop.f32.mrb[0].mxu0
    %v2219 = vadd.f32 0.0, %v2218
    %v2220 = vpop.f32.mrb[0].mxu0
    %2221 = vmatprep.mubr.f32.mxu0 0.0
    %2222 = vmatmul.mubr.f32.gmra.mrb[0].mxu0 %v2102
    %v2223 = vpop.f32.mrb[0].mxu0
    %v2224 = vadd.f32 0.0, %v2223
    %v2225 = vpop.f32.mrb[0].mxu0
    %2226 = vmatprep.mubr.f32.mxu0 0.0
    %2227 = vmatmul.mubr.f32.gmra.mrb[0].mxu0 %v2105
    %v2228 = vpop.f32.mrb[0].mxu0
    %v2229 = vadd.f32 0.0, %v2228
    %v2230 = vpop.f32.mrb[0].mxu0
    %2231 = vmatprep.mubr.f32.mxu0 0.0
    %2232 = vmatmul.mubr.f32.gmra.mrb[0].mxu0 %v2108
    %v2233 = vpop.f32.mrb[0].mxu0
    %v2234 = vadd.f32 0.0, %v2233
    %v2235 = vpop.f32.mrb[0].mxu0
    %2236 = vmatprep.mubr.f32.mxu0 0.0
    %2237 = vmatmul.mubr.f32.gmra.mrb[0].mxu0 %v2111
    %v2238 = vpop.f32.mrb[0].mxu0
    %v2239 = vadd.f32 0.0, %v2238
    %v2240 = vpop.f32.mrb[0].mxu0
    %2241 = vmatprep.mubr.f32.mxu0 0.0
    %2242 = vmatmul.mubr.f32.gmra.mrb[0].mxu0 %v2114
    %v2243 = vpop.f32.mrb[0].mxu0
    %v2244 = vadd.f32 0.0, %v2243
    %v2245 = vpop.f32.mrb[0].mxu0
    %2246 = vmatprep.mubr.f32.mxu0 0.0
    %2247 = vmatmul.mubr.f32.gmra.mrb[0].mxu0 %v2117
    %v2248 = vpop.f32.mrb[0].mxu0
    %v2249 = vadd.f32 0.0, %v2248
    %v2250 = vpop.f32.mrb[0].mxu0
    %2251 = vmatprep.mubr.f32.mxu0 0.0
    %2252 = vmatmul.mubr.f32.gmra.mrb[0].mxu0 %v2120
    %v2253 = vpop.f32.mrb[0].mxu0
    %v2254 = vadd.f32 0.0, %v2253
    %v2255 = vpop.f32.mrb[0].mxu0
    %2256 = vmatprep.mubr.f32.mxu0 0.0
    %2257 = vmatmul.mubr.f32.gmra.mrb[0].mxu0 %v2123
    %v2258 = vpop.f32.mrb[0].mxu0
    %v2259 = vadd.f32 0.0, %v2258
    %v2260 = vpop.f32.mrb[0].mxu0
    %2261 = vmatprep.mubr.f32.mxu0 0.0
    %2262 = vmatmul.mubr.f32.gmra.mrb[0].mxu0 %v2126
    %v2263 = vpop.f32.mrb[0].mxu0
    %v2264 = vadd.f32 0.0, %v2263
    %v2265 = vpop.f32.mrb[0].mxu0
    %2266 = vmatprep.mubr.f32.mxu0 0.0
    %2267 = vmatmul.mubr.f32.gmra.mrb[0].mxu0 %v2129
    %v2268 = vpop.f32.mrb[0].mxu0
    %v2269 = vadd.f32 0.0, %v2268
    %v2270 = vpop.f32.mrb[0].mxu0
    %2271 = vmatprep.mubr.f32.mxu0 0.0
    %2272 = vmatmul.mubr.f32.gmra.mrb[0].mxu0 %v2132
    %v2273 = vpop.f32.mrb[0].mxu0
    %v2274 = vadd.f32 0.0, %v2273
    %v2275 = vpop.f32.mrb[0].mxu0
    %2276 = vmatprep.mubr.f32.mxu0 0.0
    %2277 = vmatmul.mubr.f32.gmra.mrb[0].mxu0 %v2135
    %v2278 = vpop.f32.mrb[0].mxu0
    %v2279 = vadd.f32 0.0, %v2278
    %v2280 = vpop.f32.mrb[0].mxu0
    %2281 = vdwg.mxu0
    %v2282 = vadd.f32 %v1909, %v2204
    %v2283 = vadd.f32 %v1910, %v2209
    %v2284 = vadd.f32 %v1911, %v2214
    %v2285 = vadd.f32 %v1912, %v2219
    %v2286 = vadd.f32 %v1913, %v2224
    %v2287 = vadd.f32 %v1914, %v2229
    %v2288 = vadd.f32 %v1915, %v2234
    %v2289 = vadd.f32 %v1916, %v2239
    %v2290 = vadd.f32 %v1917, %v2244
    %v2291 = vadd.f32 %v1918, %v2249
    %v2292 = vadd.f32 %v1919, %v2254
    %v2293 = vadd.f32 %v1920, %v2259
    %v2294 = vadd.f32 %v1921, %v2264
    %v2295 = vadd.f32 %v1922, %v2269
    %v2296 = vadd.f32 %v1923, %v2274
    %v2297 = vadd.f32 %v1924, %v2279
    %s2298 = scalar_lea.vmem %s1, 768
    %v2299 = vld [vmem:[%s2298] sm:$0xff]
    %v2300 = vld [vmem:[%s2298 + $0x8] sm:$0xff]
    %v2301 = vld [vmem:[%s2298 + $0x10] sm:$0xff]
    %v2302 = vld [vmem:[%s2298 + $0x18] sm:$0xff]
    %v2303 = vld [vmem:[%s2298 + $0x20] sm:$0xff]
    %v2304 = vld [vmem:[%s2298 + $0x28] sm:$0xff]
    %v2305 = vld [vmem:[%s2298 + $0x30] sm:$0xff]
    %v2306 = vld [vmem:[%s2298 + $0x38] sm:$0xff]
    %v2307 = vld [vmem:[%s2298 + $0x40] sm:$0xff]
    %v2308 = vld [vmem:[%s2298 + $0x48] sm:$0xff]
    %v2309 = vld [vmem:[%s2298 + $0x50] sm:$0xff]
    %v2310 = vld [vmem:[%s2298 + $0x58] sm:$0xff]
    %v2311 = vld [vmem:[%s2298 + $0x60] sm:$0xff]
    %v2312 = vld [vmem:[%s2298 + $0x68] sm:$0xff]
    %v2313 = vld [vmem:[%s2298 + $0x70] sm:$0xff]
    %v2314 = vld [vmem:[%s2298 + $0x78] sm:$0xff]
    %2315 = vmatprep.subr.mxu0 0.0
    %2316 = vmatpush1.msra.mxu0 %v77
    %2317 = vmatprep.subr.mxu0 0.0
    %2318 = vmatpush1.msra.mxu0 %v78
    %2319 = vmatprep.subr.mxu0 0.0
    %2320 = vmatpush1.msra.mxu0 %v79
    %2321 = vmatprep.subr.mxu0 0.0
    %2322 = vmatpush1.msra.mxu0 %v80
    %2323 = vmatprep.subr.mxu0 0.0
    %2324 = vmatpush1.msra.mxu0 %v81
    %2325 = vmatprep.subr.mxu0 0.0
    %2326 = vmatpush1.msra.mxu0 %v82
    %2327 = vmatprep.subr.mxu0 0.0
    %2328 = vmatpush1.msra.mxu0 %v83
    %2329 = vmatprep.subr.mxu0 0.0
    %2330 = vmatpush1.msra.mxu0 %v84
    %2331 = vmatprep.subr.mxu0 0.0
    %2332 = vmatpush1.msra.mxu0 %v85
    %2333 = vmatprep.subr.mxu0 0.0
    %2334 = vmatpush1.msra.mxu0 %v86
    %2335 = vmatprep.subr.mxu0 0.0
    %2336 = vmatpush1.msra.mxu0 %v87
    %2337 = vmatprep.subr.mxu0 0.0
    %2338 = vmatpush1.msra.mxu0 %v88
    %2339 = vmatprep.subr.mxu0 0.0
    %2340 = vmatpush1.msra.mxu0 %v89
    %2341 = vmatprep.subr.mxu0 0.0
    %2342 = vmatpush1.msra.mxu0 %v90
    %2343 = vmatprep.subr.mxu0 0.0
    %2344 = vmatpush1.msra.mxu0 %v91
    %2345 = vmatprep.subr.mxu0 0.0
    %2346 = vmatpush1.msra.mxu0 %v92
    %2347 = vmatprep.subr.mxu0 0.0
    %2348 = vmatpush1.msra.mxu0 0.0
    %2349 = vmatprep.subr.mxu0 0.0
    %2350 = vmatpush1.msra.mxu0 0.0
    %2351 = vmatprep.subr.mxu0 0.0
    %2352 = vmatpush1.msra.mxu0 0.0
    %2353 = vmatprep.subr.mxu0 0.0
    %2354 = vmatpush1.msra.mxu0 0.0
    %2355 = vmatprep.subr.mxu0 0.0
    %2356 = vmatpush1.msra.mxu0 0.0
    %2357 = vmatprep.subr.mxu0 0.0
    %2358 = vmatpush1.msra.mxu0 0.0
    %2359 = vmatprep.subr.mxu0 0.0
    %2360 = vmatpush1.msra.mxu0 0.0
    %2361 = vmatprep.subr.mxu0 0.0
    %2362 = vmatpush1.msra.mxu0 0.0
    %2363 = vmatprep.subr.mxu0 0.0
    %2364 = vmatpush1.msra.mxu0 0.0
    %2365 = vmatprep.subr.mxu0 0.0
    %2366 = vmatpush1.msra.mxu0 0.0
    %2367 = vmatprep.subr.mxu0 0.0
    %2368 = vmatpush1.msra.mxu0 0.0
    %2369 = vmatprep.subr.mxu0 0.0
    %2370 = vmatpush1.msra.mxu0 0.0
    %2371 = vmatprep.subr.mxu0 0.0
    %2372 = vmatpush1.msra.mxu0 0.0
    %2373 = vmatprep.subr.mxu0 0.0
    %2374 = vmatpush1.msra.mxu0 0.0
    %2375 = vmatprep.subr.mxu0 0.0
    %2376 = vmatpush1.msra.mxu0 0.0
    %2377 = vmatprep.subr.mxu0 0.0
    %2378 = vmatpush1.msra.mxu0 0.0
    %2379 = vmatprep.mubr.f32.mxu0 0.0
    %2380 = vmatmul.mubr.f32.gmra.mrb[0].mxu0 %v2299
    %v2381 = vpop.f32.mrb[0].mxu0
    %v2382 = vadd.f32 0.0, %v2381
    %v2383 = vpop.f32.mrb[0].mxu0
    %2384 = vmatprep.mubr.f32.mxu0 0.0
    %2385 = vmatmul.mubr.f32.gmra.mrb[0].mxu0 %v2300
    %v2386 = vpop.f32.mrb[0].mxu0
    %v2387 = vadd.f32 0.0, %v2386
    %v2388 = vpop.f32.mrb[0].mxu0
    %2389 = vmatprep.mubr.f32.mxu0 0.0
    %2390 = vmatmul.mubr.f32.gmra.mrb[0].mxu0 %v2301
    %v2391 = vpop.f32.mrb[0].mxu0
    %v2392 = vadd.f32 0.0, %v2391
    %v2393 = vpop.f32.mrb[0].mxu0
    %2394 = vmatprep.mubr.f32.mxu0 0.0
    %2395 = vmatmul.mubr.f32.gmra.mrb[0].mxu0 %v2302
    %v2396 = vpop.f32.mrb[0].mxu0
    %v2397 = vadd.f32 0.0, %v2396
    %v2398 = vpop.f32.mrb[0].mxu0
    %2399 = vmatprep.mubr.f32.mxu0 0.0
    %2400 = vmatmul.mubr.f32.gmra.mrb[0].mxu0 %v2303
    %v2401 = vpop.f32.mrb[0].mxu0
    %v2402 = vadd.f32 0.0, %v2401
    %v2403 = vpop.f32.mrb[0].mxu0
    %2404 = vmatprep.mubr.f32.mxu0 0.0
    %2405 = vmatmul.mubr.f32.gmra.mrb[0].mxu0 %v2304
    %v2406 = vpop.f32.mrb[0].mxu0
    %v2407 = vadd.f32 0.0, %v2406
    %v2408 = vpop.f32.mrb[0].mxu0
    %2409 = vmatprep.mubr.f32.mxu0 0.0
    %2410 = vmatmul.mubr.f32.gmra.mrb[0].mxu0 %v2305
    %v2411 = vpop.f32.mrb[0].mxu0
    %v2412 = vadd.f32 0.0, %v2411
    %v2413 = vpop.f32.mrb[0].mxu0
    %2414 = vmatprep.mubr.f32.mxu0 0.0
    %2415 = vmatmul.mubr.f32.gmra.mrb[0].mxu0 %v2306
    %v2416 = vpop.f32.mrb[0].mxu0
    %v2417 = vadd.f32 0.0, %v2416
    %v2418 = vpop.f32.mrb[0].mxu0
    %2419 = vmatprep.mubr.f32.mxu0 0.0
    %2420 = vmatmul.mubr.f32.gmra.mrb[0].mxu0 %v2307
    %v2421 = vpop.f32.mrb[0].mxu0
    %v2422 = vadd.f32 0.0, %v2421
    %v2423 = vpop.f32.mrb[0].mxu0
    %2424 = vmatprep.mubr.f32.mxu0 0.0
    %2425 = vmatmul.mubr.f32.gmra.mrb[0].mxu0 %v2308
    %v2426 = vpop.f32.mrb[0].mxu0
    %v2427 = vadd.f32 0.0, %v2426
    %v2428 = vpop.f32.mrb[0].mxu0
    %2429 = vmatprep.mubr.f32.mxu0 0.0
    %2430 = vmatmul.mubr.f32.gmra.mrb[0].mxu0 %v2309
    %v2431 = vpop.f32.mrb[0].mxu0
    %v2432 = vadd.f32 0.0, %v2431
    %v2433 = vpop.f32.mrb[0].mxu0
    %2434 = vmatprep.mubr.f32.mxu0 0.0
    %2435 = vmatmul.mubr.f32.gmra.mrb[0].mxu0 %v2310
    %v2436 = vpop.f32.mrb[0].mxu0
    %v2437 = vadd.f32 0.0, %v2436
    %v2438 = vpop.f32.mrb[0].mxu0
    %2439 = vmatprep.mubr.f32.mxu0 0.0
    %2440 = vmatmul.mubr.f32.gmra.mrb[0].mxu0 %v2311
    %v2441 = vpop.f32.mrb[0].mxu0
    %v2442 = vadd.f32 0.0, %v2441
    %v2443 = vpop.f32.mrb[0].mxu0
    %2444 = vmatprep.mubr.f32.mxu0 0.0
    %2445 = vmatmul.mubr.f32.gmra.mrb[0].mxu0 %v2312
    %v2446 = vpop.f32.mrb[0].mxu0
    %v2447 = vadd.f32 0.0, %v2446
    %v2448 = vpop.f32.mrb[0].mxu0
    %2449 = vmatprep.mubr.f32.mxu0 0.0
    %2450 = vmatmul.mubr.f32.gmra.mrb[0].mxu0 %v2313
    %v2451 = vpop.f32.mrb[0].mxu0
    %v2452 = vadd.f32 0.0, %v2451
    %v2453 = vpop.f32.mrb[0].mxu0
    %2454 = vmatprep.mubr.f32.mxu0 0.0
    %2455 = vmatmul.mubr.f32.gmra.mrb[0].mxu0 %v2314
    %v2456 = vpop.f32.mrb[0].mxu0
    %v2457 = vadd.f32 0.0, %v2456
    %v2458 = vpop.f32.mrb[0].mxu0
    %2459 = vdwg.mxu0
    %s2460 = scalar_lea.vmem %s3, 48
    %v2461 = vld [vmem:[%s2460] sm:$0xff]
    %v2463 = vsel %vm419, %v2382, 0
    %v2466 = vsel %vm419, %v2387, 0
    %v2469 = vsel %vm419, %v2392, 0
    %v2472 = vsel %vm419, %v2397, 0
    %v2475 = vsel %vm419, %v2402, 0
    %v2478 = vsel %vm419, %v2407, 0
    %v2481 = vsel %vm419, %v2412, 0
    %v2484 = vsel %vm419, %v2417, 0
    %v2487 = vsel %vm419, %v2422, 0
    %v2490 = vsel %vm419, %v2427, 0
    %v2493 = vsel %vm419, %v2432, 0
    %v2496 = vsel %vm419, %v2437, 0
    %v2499 = vsel %vm419, %v2442, 0
    %v2502 = vsel %vm419, %v2447, 0
    %v2505 = vsel %vm419, %v2452, 0
    %v2508 = vsel %vm419, %v2457, 0
    %2510 = vmatprep.subr.mxu0 0.0
    %2511 = vmatpush1.msra.mxu0 %v2461
    %2512 = vmatprep.subr.mxu0 0.0
    %2513 = vmatpush1.msra.mxu0 0.0
    %2514 = vmatprep.subr.mxu0 0.0
    %2515 = vmatpush1.msra.mxu0 0.0
    %2516 = vmatprep.subr.mxu0 0.0
    %2517 = vmatpush1.msra.mxu0 0.0
    %2518 = vmatprep.subr.mxu0 0.0
    %2519 = vmatpush1.msra.mxu0 0.0
    %2520 = vmatprep.subr.mxu0 0.0
    %2521 = vmatpush1.msra.mxu0 0.0
    %2522 = vmatprep.subr.mxu0 0.0
    %2523 = vmatpush1.msra.mxu0 0.0
    %2524 = vmatprep.subr.mxu0 0.0
    %2525 = vmatpush1.msra.mxu0 0.0
    %2526 = vmatprep.subr.mxu0 0.0
    %2527 = vmatpush1.msra.mxu0 0.0
    %2528 = vmatprep.subr.mxu0 0.0
    %2529 = vmatpush1.msra.mxu0 0.0
    %2530 = vmatprep.subr.mxu0 0.0
    %2531 = vmatpush1.msra.mxu0 0.0
    %2532 = vmatprep.subr.mxu0 0.0
    %2533 = vmatpush1.msra.mxu0 0.0
    %2534 = vmatprep.subr.mxu0 0.0
    %2535 = vmatpush1.msra.mxu0 0.0
    %2536 = vmatprep.subr.mxu0 0.0
    %2537 = vmatpush1.msra.mxu0 0.0
    %2538 = vmatprep.subr.mxu0 0.0
    %2539 = vmatpush1.msra.mxu0 0.0
    %2540 = vmatprep.subr.mxu0 0.0
    %2541 = vmatpush1.msra.mxu0 0.0
    %2542 = vmatprep.subr.mxu0 0.0
    %2543 = vmatpush1.msra.mxu0 0.0
    %2544 = vmatprep.subr.mxu0 0.0
    %2545 = vmatpush1.msra.mxu0 0.0
    %2546 = vmatprep.subr.mxu0 0.0
    %2547 = vmatpush1.msra.mxu0 0.0
    %2548 = vmatprep.subr.mxu0 0.0
    %2549 = vmatpush1.msra.mxu0 0.0
    %2550 = vmatprep.subr.mxu0 0.0
    %2551 = vmatpush1.msra.mxu0 0.0
    %2552 = vmatprep.subr.mxu0 0.0
    %2553 = vmatpush1.msra.mxu0 0.0
    %2554 = vmatprep.subr.mxu0 0.0
    %2555 = vmatpush1.msra.mxu0 0.0
    %2556 = vmatprep.subr.mxu0 0.0
    %2557 = vmatpush1.msra.mxu0 0.0
    %2558 = vmatprep.subr.mxu0 0.0
    %2559 = vmatpush1.msra.mxu0 0.0
    %2560 = vmatprep.subr.mxu0 0.0
    %2561 = vmatpush1.msra.mxu0 0.0
    %2562 = vmatprep.subr.mxu0 0.0
    %2563 = vmatpush1.msra.mxu0 0.0
    %2564 = vmatprep.subr.mxu0 0.0
    %2565 = vmatpush1.msra.mxu0 0.0
    %2566 = vmatprep.subr.mxu0 0.0
    %2567 = vmatpush1.msra.mxu0 0.0
    %2568 = vmatprep.subr.mxu0 0.0
    %2569 = vmatpush1.msra.mxu0 0.0
    %2570 = vmatprep.subr.mxu0 0.0
    %2571 = vmatpush1.msra.mxu0 0.0
    %2572 = vmatprep.subr.mxu0 0.0
    %2573 = vmatpush1.msra.mxu0 0.0
    %2574 = vmatprep.mubr.f32.mxu0 0.0
    %2575 = vmatmul.mubr.f32.gmra.mrb[0].mxu0 %v2463
    %v2576 = vpop.f32.mrb[0].mxu0
    %v2577 = vadd.f32 0.0, %v2576
    %v2578 = vpop.f32.mrb[0].mxu0
    %2579 = vmatprep.mubr.f32.mxu0 0.0
    %2580 = vmatmul.mubr.f32.gmra.mrb[0].mxu0 %v2466
    %v2581 = vpop.f32.mrb[0].mxu0
    %v2582 = vadd.f32 0.0, %v2581
    %v2583 = vpop.f32.mrb[0].mxu0
    %2584 = vmatprep.mubr.f32.mxu0 0.0
    %2585 = vmatmul.mubr.f32.gmra.mrb[0].mxu0 %v2469
    %v2586 = vpop.f32.mrb[0].mxu0
    %v2587 = vadd.f32 0.0, %v2586
    %v2588 = vpop.f32.mrb[0].mxu0
    %2589 = vmatprep.mubr.f32.mxu0 0.0
    %2590 = vmatmul.mubr.f32.gmra.mrb[0].mxu0 %v2472
    %v2591 = vpop.f32.mrb[0].mxu0
    %v2592 = vadd.f32 0.0, %v2591
    %v2593 = vpop.f32.mrb[0].mxu0
    %2594 = vmatprep.mubr.f32.mxu0 0.0
    %2595 = vmatmul.mubr.f32.gmra.mrb[0].mxu0 %v2475
    %v2596 = vpop.f32.mrb[0].mxu0
    %v2597 = vadd.f32 0.0, %v2596
    %v2598 = vpop.f32.mrb[0].mxu0
    %2599 = vmatprep.mubr.f32.mxu0 0.0
    %2600 = vmatmul.mubr.f32.gmra.mrb[0].mxu0 %v2478
    %v2601 = vpop.f32.mrb[0].mxu0
    %v2602 = vadd.f32 0.0, %v2601
    %v2603 = vpop.f32.mrb[0].mxu0
    %2604 = vmatprep.mubr.f32.mxu0 0.0
    %2605 = vmatmul.mubr.f32.gmra.mrb[0].mxu0 %v2481
    %v2606 = vpop.f32.mrb[0].mxu0
    %v2607 = vadd.f32 0.0, %v2606
    %v2608 = vpop.f32.mrb[0].mxu0
    %2609 = vmatprep.mubr.f32.mxu0 0.0
    %2610 = vmatmul.mubr.f32.gmra.mrb[0].mxu0 %v2484
    %v2611 = vpop.f32.mrb[0].mxu0
    %v2612 = vadd.f32 0.0, %v2611
    %v2613 = vpop.f32.mrb[0].mxu0
    %2614 = vmatprep.mubr.f32.mxu0 0.0
    %2615 = vmatmul.mubr.f32.gmra.mrb[0].mxu0 %v2487
    %v2616 = vpop.f32.mrb[0].mxu0
    %v2617 = vadd.f32 0.0, %v2616
    %v2618 = vpop.f32.mrb[0].mxu0
    %2619 = vmatprep.mubr.f32.mxu0 0.0
    %2620 = vmatmul.mubr.f32.gmra.mrb[0].mxu0 %v2490
    %v2621 = vpop.f32.mrb[0].mxu0
    %v2622 = vadd.f32 0.0, %v2621
    %v2623 = vpop.f32.mrb[0].mxu0
    %2624 = vmatprep.mubr.f32.mxu0 0.0
    %2625 = vmatmul.mubr.f32.gmra.mrb[0].mxu0 %v2493
    %v2626 = vpop.f32.mrb[0].mxu0
    %v2627 = vadd.f32 0.0, %v2626
    %v2628 = vpop.f32.mrb[0].mxu0
    %2629 = vmatprep.mubr.f32.mxu0 0.0
    %2630 = vmatmul.mubr.f32.gmra.mrb[0].mxu0 %v2496
    %v2631 = vpop.f32.mrb[0].mxu0
    %v2632 = vadd.f32 0.0, %v2631
    %v2633 = vpop.f32.mrb[0].mxu0
    %2634 = vmatprep.mubr.f32.mxu0 0.0
    %2635 = vmatmul.mubr.f32.gmra.mrb[0].mxu0 %v2499
    %v2636 = vpop.f32.mrb[0].mxu0
    %v2637 = vadd.f32 0.0, %v2636
    %v2638 = vpop.f32.mrb[0].mxu0
    %2639 = vmatprep.mubr.f32.mxu0 0.0
    %2640 = vmatmul.mubr.f32.gmra.mrb[0].mxu0 %v2502
    %v2641 = vpop.f32.mrb[0].mxu0
    %v2642 = vadd.f32 0.0, %v2641
    %v2643 = vpop.f32.mrb[0].mxu0
    %2644 = vmatprep.mubr.f32.mxu0 0.0
    %2645 = vmatmul.mubr.f32.gmra.mrb[0].mxu0 %v2505
    %v2646 = vpop.f32.mrb[0].mxu0
    %v2647 = vadd.f32 0.0, %v2646
    %v2648 = vpop.f32.mrb[0].mxu0
    %2649 = vmatprep.mubr.f32.mxu0 0.0
    %2650 = vmatmul.mubr.f32.gmra.mrb[0].mxu0 %v2508
    %v2651 = vpop.f32.mrb[0].mxu0
    %v2652 = vadd.f32 0.0, %v2651
    %v2653 = vpop.f32.mrb[0].mxu0
    %2654 = vdwg.mxu0
    %v2655 = vadd.f32 %v2282, %v2577
    %v2656 = vadd.f32 %v2283, %v2582
    %v2657 = vadd.f32 %v2284, %v2587
    %v2658 = vadd.f32 %v2285, %v2592
    %v2659 = vadd.f32 %v2286, %v2597
    %v2660 = vadd.f32 %v2287, %v2602
    %v2661 = vadd.f32 %v2288, %v2607
    %v2662 = vadd.f32 %v2289, %v2612
    %v2663 = vadd.f32 %v2290, %v2617
    %v2664 = vadd.f32 %v2291, %v2622
    %v2665 = vadd.f32 %v2292, %v2627
    %v2666 = vadd.f32 %v2293, %v2632
    %v2667 = vadd.f32 %v2294, %v2637
    %v2668 = vadd.f32 %v2295, %v2642
    %v2669 = vadd.f32 %v2296, %v2647
    %v2670 = vadd.f32 %v2297, %v2652
    %s2671 = scalar_lea.vmem %s1, 896
    %v2672 = vld [vmem:[%s2671] sm:$0xff]
    %v2673 = vld [vmem:[%s2671 + $0x8] sm:$0xff]
    %v2674 = vld [vmem:[%s2671 + $0x10] sm:$0xff]
    %v2675 = vld [vmem:[%s2671 + $0x18] sm:$0xff]
    %v2676 = vld [vmem:[%s2671 + $0x20] sm:$0xff]
    %v2677 = vld [vmem:[%s2671 + $0x28] sm:$0xff]
    %v2678 = vld [vmem:[%s2671 + $0x30] sm:$0xff]
    %v2679 = vld [vmem:[%s2671 + $0x38] sm:$0xff]
    %v2680 = vld [vmem:[%s2671 + $0x40] sm:$0xff]
    %v2681 = vld [vmem:[%s2671 + $0x48] sm:$0xff]
    %v2682 = vld [vmem:[%s2671 + $0x50] sm:$0xff]
    %v2683 = vld [vmem:[%s2671 + $0x58] sm:$0xff]
    %v2684 = vld [vmem:[%s2671 + $0x60] sm:$0xff]
    %v2685 = vld [vmem:[%s2671 + $0x68] sm:$0xff]
    %v2686 = vld [vmem:[%s2671 + $0x70] sm:$0xff]
    %v2687 = vld [vmem:[%s2671 + $0x78] sm:$0xff]
    %2688 = vmatprep.subr.mxu0 0.0
    %2689 = vmatpush1.msra.mxu0 %v77
    %2690 = vmatprep.subr.mxu0 0.0
    %2691 = vmatpush1.msra.mxu0 %v78
    %2692 = vmatprep.subr.mxu0 0.0
    %2693 = vmatpush1.msra.mxu0 %v79
    %2694 = vmatprep.subr.mxu0 0.0
    %2695 = vmatpush1.msra.mxu0 %v80
    %2696 = vmatprep.subr.mxu0 0.0
    %2697 = vmatpush1.msra.mxu0 %v81
    %2698 = vmatprep.subr.mxu0 0.0
    %2699 = vmatpush1.msra.mxu0 %v82
    %2700 = vmatprep.subr.mxu0 0.0
    %2701 = vmatpush1.msra.mxu0 %v83
    %2702 = vmatprep.subr.mxu0 0.0
    %2703 = vmatpush1.msra.mxu0 %v84
    %2704 = vmatprep.subr.mxu0 0.0
    %2705 = vmatpush1.msra.mxu0 %v85
    %2706 = vmatprep.subr.mxu0 0.0
    %2707 = vmatpush1.msra.mxu0 %v86
    %2708 = vmatprep.subr.mxu0 0.0
    %2709 = vmatpush1.msra.mxu0 %v87
    %2710 = vmatprep.subr.mxu0 0.0
    %2711 = vmatpush1.msra.mxu0 %v88
    %2712 = vmatprep.subr.mxu0 0.0
    %2713 = vmatpush1.msra.mxu0 %v89
    %2714 = vmatprep.subr.mxu0 0.0
    %2715 = vmatpush1.msra.mxu0 %v90
    %2716 = vmatprep.subr.mxu0 0.0
    %2717 = vmatpush1.msra.mxu0 %v91
    %2718 = vmatprep.subr.mxu0 0.0
    %2719 = vmatpush1.msra.mxu0 %v92
    %2720 = vmatprep.subr.mxu0 0.0
    %2721 = vmatpush1.msra.mxu0 0.0
    %2722 = vmatprep.subr.mxu0 0.0
    %2723 = vmatpush1.msra.mxu0 0.0
    %2724 = vmatprep.subr.mxu0 0.0
    %2725 = vmatpush1.msra.mxu0 0.0
    %2726 = vmatprep.subr.mxu0 0.0
    %2727 = vmatpush1.msra.mxu0 0.0
    %2728 = vmatprep.subr.mxu0 0.0
    %2729 = vmatpush1.msra.mxu0 0.0
    %2730 = vmatprep.subr.mxu0 0.0
    %2731 = vmatpush1.msra.mxu0 0.0
    %2732 = vmatprep.subr.mxu0 0.0
    %2733 = vmatpush1.msra.mxu0 0.0
    %2734 = vmatprep.subr.mxu0 0.0
    %2735 = vmatpush1.msra.mxu0 0.0
    %2736 = vmatprep.subr.mxu0 0.0
    %2737 = vmatpush1.msra.mxu0 0.0
    %2738 = vmatprep.subr.mxu0 0.0
    %2739 = vmatpush1.msra.mxu0 0.0
    %2740 = vmatprep.subr.mxu0 0.0
    %2741 = vmatpush1.msra.mxu0 0.0
    %2742 = vmatprep.subr.mxu0 0.0
    %2743 = vmatpush1.msra.mxu0 0.0
    %2744 = vmatprep.subr.mxu0 0.0
    %2745 = vmatpush1.msra.mxu0 0.0
    %2746 = vmatprep.subr.mxu0 0.0
    %2747 = vmatpush1.msra.mxu0 0.0
    %2748 = vmatprep.subr.mxu0 0.0
    %2749 = vmatpush1.msra.mxu0 0.0
    %2750 = vmatprep.subr.mxu0 0.0
    %2751 = vmatpush1.msra.mxu0 0.0
    %2752 = vmatprep.mubr.f32.mxu0 0.0
    %2753 = vmatmul.mubr.f32.gmra.mrb[0].mxu0 %v2672
    %v2754 = vpop.f32.mrb[0].mxu0
    %v2755 = vadd.f32 0.0, %v2754
    %v2756 = vpop.f32.mrb[0].mxu0
    %2757 = vmatprep.mubr.f32.mxu0 0.0
    %2758 = vmatmul.mubr.f32.gmra.mrb[0].mxu0 %v2673
    %v2759 = vpop.f32.mrb[0].mxu0
    %v2760 = vadd.f32 0.0, %v2759
    %v2761 = vpop.f32.mrb[0].mxu0
    %2762 = vmatprep.mubr.f32.mxu0 0.0
    %2763 = vmatmul.mubr.f32.gmra.mrb[0].mxu0 %v2674
    %v2764 = vpop.f32.mrb[0].mxu0
    %v2765 = vadd.f32 0.0, %v2764
    %v2766 = vpop.f32.mrb[0].mxu0
    %2767 = vmatprep.mubr.f32.mxu0 0.0
    %2768 = vmatmul.mubr.f32.gmra.mrb[0].mxu0 %v2675
    %v2769 = vpop.f32.mrb[0].mxu0
    %v2770 = vadd.f32 0.0, %v2769
    %v2771 = vpop.f32.mrb[0].mxu0
    %2772 = vmatprep.mubr.f32.mxu0 0.0
    %2773 = vmatmul.mubr.f32.gmra.mrb[0].mxu0 %v2676
    %v2774 = vpop.f32.mrb[0].mxu0
    %v2775 = vadd.f32 0.0, %v2774
    %v2776 = vpop.f32.mrb[0].mxu0
    %2777 = vmatprep.mubr.f32.mxu0 0.0
    %2778 = vmatmul.mubr.f32.gmra.mrb[0].mxu0 %v2677
    %v2779 = vpop.f32.mrb[0].mxu0
    %v2780 = vadd.f32 0.0, %v2779
    %v2781 = vpop.f32.mrb[0].mxu0
    %2782 = vmatprep.mubr.f32.mxu0 0.0
    %2783 = vmatmul.mubr.f32.gmra.mrb[0].mxu0 %v2678
    %v2784 = vpop.f32.mrb[0].mxu0
    %v2785 = vadd.f32 0.0, %v2784
    %v2786 = vpop.f32.mrb[0].mxu0
    %2787 = vmatprep.mubr.f32.mxu0 0.0
    %2788 = vmatmul.mubr.f32.gmra.mrb[0].mxu0 %v2679
    %v2789 = vpop.f32.mrb[0].mxu0
    %v2790 = vadd.f32 0.0, %v2789
    %v2791 = vpop.f32.mrb[0].mxu0
    %2792 = vmatprep.mubr.f32.mxu0 0.0
    %2793 = vmatmul.mubr.f32.gmra.mrb[0].mxu0 %v2680
    %v2794 = vpop.f32.mrb[0].mxu0
    %v2795 = vadd.f32 0.0, %v2794
    %v2796 = vpop.f32.mrb[0].mxu0
    %2797 = vmatprep.mubr.f32.mxu0 0.0
    %2798 = vmatmul.mubr.f32.gmra.mrb[0].mxu0 %v2681
    %v2799 = vpop.f32.mrb[0].mxu0
    %v2800 = vadd.f32 0.0, %v2799
    %v2801 = vpop.f32.mrb[0].mxu0
    %2802 = vmatprep.mubr.f32.mxu0 0.0
    %2803 = vmatmul.mubr.f32.gmra.mrb[0].mxu0 %v2682
    %v2804 = vpop.f32.mrb[0].mxu0
    %v2805 = vadd.f32 0.0, %v2804
    %v2806 = vpop.f32.mrb[0].mxu0
    %2807 = vmatprep.mubr.f32.mxu0 0.0
    %2808 = vmatmul.mubr.f32.gmra.mrb[0].mxu0 %v2683
    %v2809 = vpop.f32.mrb[0].mxu0
    %v2810 = vadd.f32 0.0, %v2809
    %v2811 = vpop.f32.mrb[0].mxu0
    %2812 = vmatprep.mubr.f32.mxu0 0.0
    %2813 = vmatmul.mubr.f32.gmra.mrb[0].mxu0 %v2684
    %v2814 = vpop.f32.mrb[0].mxu0
    %v2815 = vadd.f32 0.0, %v2814
    %v2816 = vpop.f32.mrb[0].mxu0
    %2817 = vmatprep.mubr.f32.mxu0 0.0
    %2818 = vmatmul.mubr.f32.gmra.mrb[0].mxu0 %v2685
    %v2819 = vpop.f32.mrb[0].mxu0
    %v2820 = vadd.f32 0.0, %v2819
    %v2821 = vpop.f32.mrb[0].mxu0
    %2822 = vmatprep.mubr.f32.mxu0 0.0
    %2823 = vmatmul.mubr.f32.gmra.mrb[0].mxu0 %v2686
    %v2824 = vpop.f32.mrb[0].mxu0
    %v2825 = vadd.f32 0.0, %v2824
    %v2826 = vpop.f32.mrb[0].mxu0
    %2827 = vmatprep.mubr.f32.mxu0 0.0
    %2828 = vmatmul.mubr.f32.gmra.mrb[0].mxu0 %v2687
    %v2829 = vpop.f32.mrb[0].mxu0
    %v2830 = vadd.f32 0.0, %v2829
    %v2831 = vpop.f32.mrb[0].mxu0
    %2832 = vdwg.mxu0
    %s2833 = scalar_lea.vmem %s3, 56
    %v2834 = vld [vmem:[%s2833] sm:$0xff]
    %v2836 = vsel %vm419, %v2755, 0
    %v2839 = vsel %vm419, %v2760, 0
    %v2842 = vsel %vm419, %v2765, 0
    %v2845 = vsel %vm419, %v2770, 0
    %v2848 = vsel %vm419, %v2775, 0
    %v2851 = vsel %vm419, %v2780, 0
    %v2854 = vsel %vm419, %v2785, 0
    %v2857 = vsel %vm419, %v2790, 0
    %v2860 = vsel %vm419, %v2795, 0
    %v2863 = vsel %vm419, %v2800, 0
    %v2866 = vsel %vm419, %v2805, 0
    %v2869 = vsel %vm419, %v2810, 0
    %v2872 = vsel %vm419, %v2815, 0
    %v2875 = vsel %vm419, %v2820, 0
    %v2878 = vsel %vm419, %v2825, 0
    %v2881 = vsel %vm419, %v2830, 0
    %2883 = vmatprep.subr.mxu0 0.0
    %2884 = vmatpush1.msra.mxu0 %v2834
    %2885 = vmatprep.subr.mxu0 0.0
    %2886 = vmatpush1.msra.mxu0 0.0
    %2887 = vmatprep.subr.mxu0 0.0
    %2888 = vmatpush1.msra.mxu0 0.0
    %2889 = vmatprep.subr.mxu0 0.0
    %2890 = vmatpush1.msra.mxu0 0.0
    %2891 = vmatprep.subr.mxu0 0.0
    %2892 = vmatpush1.msra.mxu0 0.0
    %2893 = vmatprep.subr.mxu0 0.0
    %2894 = vmatpush1.msra.mxu0 0.0
    %2895 = vmatprep.subr.mxu0 0.0
    %2896 = vmatpush1.msra.mxu0 0.0
    %2897 = vmatprep.subr.mxu0 0.0
    %2898 = vmatpush1.msra.mxu0 0.0
    %2899 = vmatprep.subr.mxu0 0.0
    %2900 = vmatpush1.msra.mxu0 0.0
    %2901 = vmatprep.subr.mxu0 0.0
    %2902 = vmatpush1.msra.mxu0 0.0
    %2903 = vmatprep.subr.mxu0 0.0
    %2904 = vmatpush1.msra.mxu0 0.0
    %2905 = vmatprep.subr.mxu0 0.0
    %2906 = vmatpush1.msra.mxu0 0.0
    %2907 = vmatprep.subr.mxu0 0.0
    %2908 = vmatpush1.msra.mxu0 0.0
    %2909 = vmatprep.subr.mxu0 0.0
    %2910 = vmatpush1.msra.mxu0 0.0
    %2911 = vmatprep.subr.mxu0 0.0
    %2912 = vmatpush1.msra.mxu0 0.0
    %2913 = vmatprep.subr.mxu0 0.0
    %2914 = vmatpush1.msra.mxu0 0.0
    %2915 = vmatprep.subr.mxu0 0.0
    %2916 = vmatpush1.msra.mxu0 0.0
    %2917 = vmatprep.subr.mxu0 0.0
    %2918 = vmatpush1.msra.mxu0 0.0
    %2919 = vmatprep.subr.mxu0 0.0
    %2920 = vmatpush1.msra.mxu0 0.0
    %2921 = vmatprep.subr.mxu0 0.0
    %2922 = vmatpush1.msra.mxu0 0.0
    %2923 = vmatprep.subr.mxu0 0.0
    %2924 = vmatpush1.msra.mxu0 0.0
    %2925 = vmatprep.subr.mxu0 0.0
    %2926 = vmatpush1.msra.mxu0 0.0
    %2927 = vmatprep.subr.mxu0 0.0
    %2928 = vmatpush1.msra.mxu0 0.0
    %2929 = vmatprep.subr.mxu0 0.0
    %2930 = vmatpush1.msra.mxu0 0.0
    %2931 = vmatprep.subr.mxu0 0.0
    %2932 = vmatpush1.msra.mxu0 0.0
    %2933 = vmatprep.subr.mxu0 0.0
    %2934 = vmatpush1.msra.mxu0 0.0
    %2935 = vmatprep.subr.mxu0 0.0
    %2936 = vmatpush1.msra.mxu0 0.0
    %2937 = vmatprep.subr.mxu0 0.0
    %2938 = vmatpush1.msra.mxu0 0.0
    %2939 = vmatprep.subr.mxu0 0.0
    %2940 = vmatpush1.msra.mxu0 0.0
    %2941 = vmatprep.subr.mxu0 0.0
    %2942 = vmatpush1.msra.mxu0 0.0
    %2943 = vmatprep.subr.mxu0 0.0
    %2944 = vmatpush1.msra.mxu0 0.0
    %2945 = vmatprep.subr.mxu0 0.0
    %2946 = vmatpush1.msra.mxu0 0.0
    %2947 = vmatprep.mubr.f32.mxu0 0.0
    %2948 = vmatmul.mubr.f32.gmra.mrb[0].mxu0 %v2836
    %v2949 = vpop.f32.mrb[0].mxu0
    %v2950 = vadd.f32 0.0, %v2949
    %v2951 = vpop.f32.mrb[0].mxu0
    %2952 = vmatprep.mubr.f32.mxu0 0.0
    %2953 = vmatmul.mubr.f32.gmra.mrb[0].mxu0 %v2839
    %v2954 = vpop.f32.mrb[0].mxu0
    %v2955 = vadd.f32 0.0, %v2954
    %v2956 = vpop.f32.mrb[0].mxu0
    %2957 = vmatprep.mubr.f32.mxu0 0.0
    %2958 = vmatmul.mubr.f32.gmra.mrb[0].mxu0 %v2842
    %v2959 = vpop.f32.mrb[0].mxu0
    %v2960 = vadd.f32 0.0, %v2959
    %v2961 = vpop.f32.mrb[0].mxu0
    %2962 = vmatprep.mubr.f32.mxu0 0.0
    %2963 = vmatmul.mubr.f32.gmra.mrb[0].mxu0 %v2845
    %v2964 = vpop.f32.mrb[0].mxu0
    %v2965 = vadd.f32 0.0, %v2964
    %v2966 = vpop.f32.mrb[0].mxu0
    %2967 = vmatprep.mubr.f32.mxu0 0.0
    %2968 = vmatmul.mubr.f32.gmra.mrb[0].mxu0 %v2848
    %v2969 = vpop.f32.mrb[0].mxu0
    %v2970 = vadd.f32 0.0, %v2969
    %v2971 = vpop.f32.mrb[0].mxu0
    %2972 = vmatprep.mubr.f32.mxu0 0.0
    %2973 = vmatmul.mubr.f32.gmra.mrb[0].mxu0 %v2851
    %v2974 = vpop.f32.mrb[0].mxu0
    %v2975 = vadd.f32 0.0, %v2974
    %v2976 = vpop.f32.mrb[0].mxu0
    %2977 = vmatprep.mubr.f32.mxu0 0.0
    %2978 = vmatmul.mubr.f32.gmra.mrb[0].mxu0 %v2854
    %v2979 = vpop.f32.mrb[0].mxu0
    %v2980 = vadd.f32 0.0, %v2979
    %v2981 = vpop.f32.mrb[0].mxu0
    %2982 = vmatprep.mubr.f32.mxu0 0.0
    %2983 = vmatmul.mubr.f32.gmra.mrb[0].mxu0 %v2857
    %v2984 = vpop.f32.mrb[0].mxu0
    %v2985 = vadd.f32 0.0, %v2984
    %v2986 = vpop.f32.mrb[0].mxu0
    %2987 = vmatprep.mubr.f32.mxu0 0.0
    %2988 = vmatmul.mubr.f32.gmra.mrb[0].mxu0 %v2860
    %v2989 = vpop.f32.mrb[0].mxu0
    %v2990 = vadd.f32 0.0, %v2989
    %v2991 = vpop.f32.mrb[0].mxu0
    %2992 = vmatprep.mubr.f32.mxu0 0.0
    %2993 = vmatmul.mubr.f32.gmra.mrb[0].mxu0 %v2863
    %v2994 = vpop.f32.mrb[0].mxu0
    %v2995 = vadd.f32 0.0, %v2994
    %v2996 = vpop.f32.mrb[0].mxu0
    %2997 = vmatprep.mubr.f32.mxu0 0.0
    %2998 = vmatmul.mubr.f32.gmra.mrb[0].mxu0 %v2866
    %v2999 = vpop.f32.mrb[0].mxu0
    %v3000 = vadd.f32 0.0, %v2999
    %v3001 = vpop.f32.mrb[0].mxu0
    %3002 = vmatprep.mubr.f32.mxu0 0.0
    %3003 = vmatmul.mubr.f32.gmra.mrb[0].mxu0 %v2869
    %v3004 = vpop.f32.mrb[0].mxu0
    %v3005 = vadd.f32 0.0, %v3004
    %v3006 = vpop.f32.mrb[0].mxu0
    %3007 = vmatprep.mubr.f32.mxu0 0.0
    %3008 = vmatmul.mubr.f32.gmra.mrb[0].mxu0 %v2872
    %v3009 = vpop.f32.mrb[0].mxu0
    %v3010 = vadd.f32 0.0, %v3009
    %v3011 = vpop.f32.mrb[0].mxu0
    %3012 = vmatprep.mubr.f32.mxu0 0.0
    %3013 = vmatmul.mubr.f32.gmra.mrb[0].mxu0 %v2875
    %v3014 = vpop.f32.mrb[0].mxu0
    %v3015 = vadd.f32 0.0, %v3014
    %v3016 = vpop.f32.mrb[0].mxu0
    %3017 = vmatprep.mubr.f32.mxu0 0.0
    %3018 = vmatmul.mubr.f32.gmra.mrb[0].mxu0 %v2878
    %v3019 = vpop.f32.mrb[0].mxu0
    %v3020 = vadd.f32 0.0, %v3019
    %v3021 = vpop.f32.mrb[0].mxu0
    %3022 = vmatprep.mubr.f32.mxu0 0.0
    %3023 = vmatmul.mubr.f32.gmra.mrb[0].mxu0 %v2881
    %v3024 = vpop.f32.mrb[0].mxu0
    %v3025 = vadd.f32 0.0, %v3024
    %v3026 = vpop.f32.mrb[0].mxu0
    %3027 = vdwg.mxu0
    %v3028 = vadd.f32 %v2655, %v2950
    %v3029 = vadd.f32 %v2656, %v2955
    %v3030 = vadd.f32 %v2657, %v2960
    %v3031 = vadd.f32 %v2658, %v2965
    %v3032 = vadd.f32 %v2659, %v2970
    %v3033 = vadd.f32 %v2660, %v2975
    %v3034 = vadd.f32 %v2661, %v2980
    %v3035 = vadd.f32 %v2662, %v2985
    %v3036 = vadd.f32 %v2663, %v2990
    %v3037 = vadd.f32 %v2664, %v2995
    %v3038 = vadd.f32 %v2665, %v3000
    %v3039 = vadd.f32 %v2666, %v3005
    %v3040 = vadd.f32 %v2667, %v3010
    %v3041 = vadd.f32 %v2668, %v3015
    %v3042 = vadd.f32 %v2669, %v3020
    %v3043 = vadd.f32 %v2670, %v3025
    %s3044 = scalar_lea.vmem %s1, 1024
    %v3045 = vld [vmem:[%s3044] sm:$0xff]
    %v3046 = vld [vmem:[%s3044 + $0x8] sm:$0xff]
    %v3047 = vld [vmem:[%s3044 + $0x10] sm:$0xff]
    %v3048 = vld [vmem:[%s3044 + $0x18] sm:$0xff]
    %v3049 = vld [vmem:[%s3044 + $0x20] sm:$0xff]
    %v3050 = vld [vmem:[%s3044 + $0x28] sm:$0xff]
    %v3051 = vld [vmem:[%s3044 + $0x30] sm:$0xff]
    %v3052 = vld [vmem:[%s3044 + $0x38] sm:$0xff]
    %v3053 = vld [vmem:[%s3044 + $0x40] sm:$0xff]
    %v3054 = vld [vmem:[%s3044 + $0x48] sm:$0xff]
    %v3055 = vld [vmem:[%s3044 + $0x50] sm:$0xff]
    %v3056 = vld [vmem:[%s3044 + $0x58] sm:$0xff]
    %v3057 = vld [vmem:[%s3044 + $0x60] sm:$0xff]
    %v3058 = vld [vmem:[%s3044 + $0x68] sm:$0xff]
    %v3059 = vld [vmem:[%s3044 + $0x70] sm:$0xff]
    %v3060 = vld [vmem:[%s3044 + $0x78] sm:$0xff]
    %3061 = vmatprep.subr.mxu0 0.0
    %3062 = vmatpush1.msra.mxu0 %v77
    %3063 = vmatprep.subr.mxu0 0.0
    %3064 = vmatpush1.msra.mxu0 %v78
    %3065 = vmatprep.subr.mxu0 0.0
    %3066 = vmatpush1.msra.mxu0 %v79
    %3067 = vmatprep.subr.mxu0 0.0
    %3068 = vmatpush1.msra.mxu0 %v80
    %3069 = vmatprep.subr.mxu0 0.0
    %3070 = vmatpush1.msra.mxu0 %v81
    %3071 = vmatprep.subr.mxu0 0.0
    %3072 = vmatpush1.msra.mxu0 %v82
    %3073 = vmatprep.subr.mxu0 0.0
    %3074 = vmatpush1.msra.mxu0 %v83
    %3075 = vmatprep.subr.mxu0 0.0
    %3076 = vmatpush1.msra.mxu0 %v84
    %3077 = vmatprep.subr.mxu0 0.0
    %3078 = vmatpush1.msra.mxu0 %v85
    %3079 = vmatprep.subr.mxu0 0.0
    %3080 = vmatpush1.msra.mxu0 %v86
    %3081 = vmatprep.subr.mxu0 0.0
    %3082 = vmatpush1.msra.mxu0 %v87
    %3083 = vmatprep.subr.mxu0 0.0
    %3084 = vmatpush1.msra.mxu0 %v88
    %3085 = vmatprep.subr.mxu0 0.0
    %3086 = vmatpush1.msra.mxu0 %v89
    %3087 = vmatprep.subr.mxu0 0.0
    %3088 = vmatpush1.msra.mxu0 %v90
    %3089 = vmatprep.subr.mxu0 0.0
    %3090 = vmatpush1.msra.mxu0 %v91
    %3091 = vmatprep.subr.mxu0 0.0
    %3092 = vmatpush1.msra.mxu0 %v92
    %3093 = vmatprep.subr.mxu0 0.0
    %3094 = vmatpush1.msra.mxu0 0.0
    %3095 = vmatprep.subr.mxu0 0.0
    %3096 = vmatpush1.msra.mxu0 0.0
    %3097 = vmatprep.subr.mxu0 0.0
    %3098 = vmatpush1.msra.mxu0 0.0
    %3099 = vmatprep.subr.mxu0 0.0
    %3100 = vmatpush1.msra.mxu0 0.0
    %3101 = vmatprep.subr.mxu0 0.0
    %3102 = vmatpush1.msra.mxu0 0.0
    %3103 = vmatprep.subr.mxu0 0.0
    %3104 = vmatpush1.msra.mxu0 0.0
    %3105 = vmatprep.subr.mxu0 0.0
    %3106 = vmatpush1.msra.mxu0 0.0
    %3107 = vmatprep.subr.mxu0 0.0
    %3108 = vmatpush1.msra.mxu0 0.0
    %3109 = vmatprep.subr.mxu0 0.0
    %3110 = vmatpush1.msra.mxu0 0.0
    %3111 = vmatprep.subr.mxu0 0.0
    %3112 = vmatpush1.msra.mxu0 0.0
    %3113 = vmatprep.subr.mxu0 0.0
    %3114 = vmatpush1.msra.mxu0 0.0
    %3115 = vmatprep.subr.mxu0 0.0
    %3116 = vmatpush1.msra.mxu0 0.0
    %3117 = vmatprep.subr.mxu0 0.0
    %3118 = vmatpush1.msra.mxu0 0.0
    %3119 = vmatprep.subr.mxu0 0.0
    %3120 = vmatpush1.msra.mxu0 0.0
    %3121 = vmatprep.subr.mxu0 0.0
    %3122 = vmatpush1.msra.mxu0 0.0
    %3123 = vmatprep.subr.mxu0 0.0
    %3124 = vmatpush1.msra.mxu0 0.0
    %3125 = vmatprep.mubr.f32.mxu0 0.0
    %3126 = vmatmul.mubr.f32.gmra.mrb[0].mxu0 %v3045
    %v3127 = vpop.f32.mrb[0].mxu0
    %v3128 = vadd.f32 0.0, %v3127
    %v3129 = vpop.f32.mrb[0].mxu0
    %3130 = vmatprep.mubr.f32.mxu0 0.0
    %3131 = vmatmul.mubr.f32.gmra.mrb[0].mxu0 %v3046
    %v3132 = vpop.f32.mrb[0].mxu0
    %v3133 = vadd.f32 0.0, %v3132
    %v3134 = vpop.f32.mrb[0].mxu0
    %3135 = vmatprep.mubr.f32.mxu0 0.0
    %3136 = vmatmul.mubr.f32.gmra.mrb[0].mxu0 %v3047
    %v3137 = vpop.f32.mrb[0].mxu0
    %v3138 = vadd.f32 0.0, %v3137
    %v3139 = vpop.f32.mrb[0].mxu0
    %3140 = vmatprep.mubr.f32.mxu0 0.0
    %3141 = vmatmul.mubr.f32.gmra.mrb[0].mxu0 %v3048
    %v3142 = vpop.f32.mrb[0].mxu0
    %v3143 = vadd.f32 0.0, %v3142
    %v3144 = vpop.f32.mrb[0].mxu0
    %3145 = vmatprep.mubr.f32.mxu0 0.0
    %3146 = vmatmul.mubr.f32.gmra.mrb[0].mxu0 %v3049
    %v3147 = vpop.f32.mrb[0].mxu0
    %v3148 = vadd.f32 0.0, %v3147
    %v3149 = vpop.f32.mrb[0].mxu0
    %3150 = vmatprep.mubr.f32.mxu0 0.0
    %3151 = vmatmul.mubr.f32.gmra.mrb[0].mxu0 %v3050
    %v3152 = vpop.f32.mrb[0].mxu0
    %v3153 = vadd.f32 0.0, %v3152
    %v3154 = vpop.f32.mrb[0].mxu0
    %3155 = vmatprep.mubr.f32.mxu0 0.0
    %3156 = vmatmul.mubr.f32.gmra.mrb[0].mxu0 %v3051
    %v3157 = vpop.f32.mrb[0].mxu0
    %v3158 = vadd.f32 0.0, %v3157
    %v3159 = vpop.f32.mrb[0].mxu0
    %3160 = vmatprep.mubr.f32.mxu0 0.0
    %3161 = vmatmul.mubr.f32.gmra.mrb[0].mxu0 %v3052
    %v3162 = vpop.f32.mrb[0].mxu0
    %v3163 = vadd.f32 0.0, %v3162
    %v3164 = vpop.f32.mrb[0].mxu0
    %3165 = vmatprep.mubr.f32.mxu0 0.0
    %3166 = vmatmul.mubr.f32.gmra.mrb[0].mxu0 %v3053
    %v3167 = vpop.f32.mrb[0].mxu0
    %v3168 = vadd.f32 0.0, %v3167
    %v3169 = vpop.f32.mrb[0].mxu0
    %3170 = vmatprep.mubr.f32.mxu0 0.0
    %3171 = vmatmul.mubr.f32.gmra.mrb[0].mxu0 %v3054
    %v3172 = vpop.f32.mrb[0].mxu0
    %v3173 = vadd.f32 0.0, %v3172
    %v3174 = vpop.f32.mrb[0].mxu0
    %3175 = vmatprep.mubr.f32.mxu0 0.0
    %3176 = vmatmul.mubr.f32.gmra.mrb[0].mxu0 %v3055
    %v3177 = vpop.f32.mrb[0].mxu0
    %v3178 = vadd.f32 0.0, %v3177
    %v3179 = vpop.f32.mrb[0].mxu0
    %3180 = vmatprep.mubr.f32.mxu0 0.0
    %3181 = vmatmul.mubr.f32.gmra.mrb[0].mxu0 %v3056
    %v3182 = vpop.f32.mrb[0].mxu0
    %v3183 = vadd.f32 0.0, %v3182
    %v3184 = vpop.f32.mrb[0].mxu0
    %3185 = vmatprep.mubr.f32.mxu0 0.0
    %3186 = vmatmul.mubr.f32.gmra.mrb[0].mxu0 %v3057
    %v3187 = vpop.f32.mrb[0].mxu0
    %v3188 = vadd.f32 0.0, %v3187
    %v3189 = vpop.f32.mrb[0].mxu0
    %3190 = vmatprep.mubr.f32.mxu0 0.0
    %3191 = vmatmul.mubr.f32.gmra.mrb[0].mxu0 %v3058
    %v3192 = vpop.f32.mrb[0].mxu0
    %v3193 = vadd.f32 0.0, %v3192
    %v3194 = vpop.f32.mrb[0].mxu0
    %3195 = vmatprep.mubr.f32.mxu0 0.0
    %3196 = vmatmul.mubr.f32.gmra.mrb[0].mxu0 %v3059
    %v3197 = vpop.f32.mrb[0].mxu0
    %v3198 = vadd.f32 0.0, %v3197
    %v3199 = vpop.f32.mrb[0].mxu0
    %3200 = vmatprep.mubr.f32.mxu0 0.0
    %3201 = vmatmul.mubr.f32.gmra.mrb[0].mxu0 %v3060
    %v3202 = vpop.f32.mrb[0].mxu0
    %v3203 = vadd.f32 0.0, %v3202
    %v3204 = vpop.f32.mrb[0].mxu0
    %3205 = vdwg.mxu0
    %s3206 = scalar_lea.vmem %s3, 64
    %v3207 = vld [vmem:[%s3206] sm:$0xff]
    %v3209 = vsel %vm419, %v3128, 0
    %v3212 = vsel %vm419, %v3133, 0
    %v3215 = vsel %vm419, %v3138, 0
    %v3218 = vsel %vm419, %v3143, 0
    %v3221 = vsel %vm419, %v3148, 0
    %v3224 = vsel %vm419, %v3153, 0
    %v3227 = vsel %vm419, %v3158, 0
    %v3230 = vsel %vm419, %v3163, 0
    %v3233 = vsel %vm419, %v3168, 0
    %v3236 = vsel %vm419, %v3173, 0
    %v3239 = vsel %vm419, %v3178, 0
    %v3242 = vsel %vm419, %v3183, 0
    %v3245 = vsel %vm419, %v3188, 0
    %v3248 = vsel %vm419, %v3193, 0
    %v3251 = vsel %vm419, %v3198, 0
    %v3254 = vsel %vm419, %v3203, 0
    %3256 = vmatprep.subr.mxu0 0.0
    %3257 = vmatpush1.msra.mxu0 %v3207
    %3258 = vmatprep.subr.mxu0 0.0
    %3259 = vmatpush1.msra.mxu0 0.0
    %3260 = vmatprep.subr.mxu0 0.0
    %3261 = vmatpush1.msra.mxu0 0.0
    %3262 = vmatprep.subr.mxu0 0.0
    %3263 = vmatpush1.msra.mxu0 0.0
    %3264 = vmatprep.subr.mxu0 0.0
    %3265 = vmatpush1.msra.mxu0 0.0
    %3266 = vmatprep.subr.mxu0 0.0
    %3267 = vmatpush1.msra.mxu0 0.0
    %3268 = vmatprep.subr.mxu0 0.0
    %3269 = vmatpush1.msra.mxu0 0.0
    %3270 = vmatprep.subr.mxu0 0.0
    %3271 = vmatpush1.msra.mxu0 0.0
    %3272 = vmatprep.subr.mxu0 0.0
    %3273 = vmatpush1.msra.mxu0 0.0
    %3274 = vmatprep.subr.mxu0 0.0
    %3275 = vmatpush1.msra.mxu0 0.0
    %3276 = vmatprep.subr.mxu0 0.0
    %3277 = vmatpush1.msra.mxu0 0.0
    %3278 = vmatprep.subr.mxu0 0.0
    %3279 = vmatpush1.msra.mxu0 0.0
    %3280 = vmatprep.subr.mxu0 0.0
    %3281 = vmatpush1.msra.mxu0 0.0
    %3282 = vmatprep.subr.mxu0 0.0
    %3283 = vmatpush1.msra.mxu0 0.0
    %3284 = vmatprep.subr.mxu0 0.0
    %3285 = vmatpush1.msra.mxu0 0.0
    %3286 = vmatprep.subr.mxu0 0.0
    %3287 = vmatpush1.msra.mxu0 0.0
    %3288 = vmatprep.subr.mxu0 0.0
    %3289 = vmatpush1.msra.mxu0 0.0
    %3290 = vmatprep.subr.mxu0 0.0
    %3291 = vmatpush1.msra.mxu0 0.0
    %3292 = vmatprep.subr.mxu0 0.0
    %3293 = vmatpush1.msra.mxu0 0.0
    %3294 = vmatprep.subr.mxu0 0.0
    %3295 = vmatpush1.msra.mxu0 0.0
    %3296 = vmatprep.subr.mxu0 0.0
    %3297 = vmatpush1.msra.mxu0 0.0
    %3298 = vmatprep.subr.mxu0 0.0
    %3299 = vmatpush1.msra.mxu0 0.0
    %3300 = vmatprep.subr.mxu0 0.0
    %3301 = vmatpush1.msra.mxu0 0.0
    %3302 = vmatprep.subr.mxu0 0.0
    %3303 = vmatpush1.msra.mxu0 0.0
    %3304 = vmatprep.subr.mxu0 0.0
    %3305 = vmatpush1.msra.mxu0 0.0
    %3306 = vmatprep.subr.mxu0 0.0
    %3307 = vmatpush1.msra.mxu0 0.0
    %3308 = vmatprep.subr.mxu0 0.0
    %3309 = vmatpush1.msra.mxu0 0.0
    %3310 = vmatprep.subr.mxu0 0.0
    %3311 = vmatpush1.msra.mxu0 0.0
    %3312 = vmatprep.subr.mxu0 0.0
    %3313 = vmatpush1.msra.mxu0 0.0
    %3314 = vmatprep.subr.mxu0 0.0
    %3315 = vmatpush1.msra.mxu0 0.0
    %3316 = vmatprep.subr.mxu0 0.0
    %3317 = vmatpush1.msra.mxu0 0.0
    %3318 = vmatprep.subr.mxu0 0.0
    %3319 = vmatpush1.msra.mxu0 0.0
    %3320 = vmatprep.mubr.f32.mxu0 0.0
    %3321 = vmatmul.mubr.f32.gmra.mrb[0].mxu0 %v3209
    %v3322 = vpop.f32.mrb[0].mxu0
    %v3323 = vadd.f32 0.0, %v3322
    %v3324 = vpop.f32.mrb[0].mxu0
    %3325 = vmatprep.mubr.f32.mxu0 0.0
    %3326 = vmatmul.mubr.f32.gmra.mrb[0].mxu0 %v3212
    %v3327 = vpop.f32.mrb[0].mxu0
    %v3328 = vadd.f32 0.0, %v3327
    %v3329 = vpop.f32.mrb[0].mxu0
    %3330 = vmatprep.mubr.f32.mxu0 0.0
    %3331 = vmatmul.mubr.f32.gmra.mrb[0].mxu0 %v3215
    %v3332 = vpop.f32.mrb[0].mxu0
    %v3333 = vadd.f32 0.0, %v3332
    %v3334 = vpop.f32.mrb[0].mxu0
    %3335 = vmatprep.mubr.f32.mxu0 0.0
    %3336 = vmatmul.mubr.f32.gmra.mrb[0].mxu0 %v3218
    %v3337 = vpop.f32.mrb[0].mxu0
    %v3338 = vadd.f32 0.0, %v3337
    %v3339 = vpop.f32.mrb[0].mxu0
    %3340 = vmatprep.mubr.f32.mxu0 0.0
    %3341 = vmatmul.mubr.f32.gmra.mrb[0].mxu0 %v3221
    %v3342 = vpop.f32.mrb[0].mxu0
    %v3343 = vadd.f32 0.0, %v3342
    %v3344 = vpop.f32.mrb[0].mxu0
    %3345 = vmatprep.mubr.f32.mxu0 0.0
    %3346 = vmatmul.mubr.f32.gmra.mrb[0].mxu0 %v3224
    %v3347 = vpop.f32.mrb[0].mxu0
    %v3348 = vadd.f32 0.0, %v3347
    %v3349 = vpop.f32.mrb[0].mxu0
    %3350 = vmatprep.mubr.f32.mxu0 0.0
    %3351 = vmatmul.mubr.f32.gmra.mrb[0].mxu0 %v3227
    %v3352 = vpop.f32.mrb[0].mxu0
    %v3353 = vadd.f32 0.0, %v3352
    %v3354 = vpop.f32.mrb[0].mxu0
    %3355 = vmatprep.mubr.f32.mxu0 0.0
    %3356 = vmatmul.mubr.f32.gmra.mrb[0].mxu0 %v3230
    %v3357 = vpop.f32.mrb[0].mxu0
    %v3358 = vadd.f32 0.0, %v3357
    %v3359 = vpop.f32.mrb[0].mxu0
    %3360 = vmatprep.mubr.f32.mxu0 0.0
    %3361 = vmatmul.mubr.f32.gmra.mrb[0].mxu0 %v3233
    %v3362 = vpop.f32.mrb[0].mxu0
    %v3363 = vadd.f32 0.0, %v3362
    %v3364 = vpop.f32.mrb[0].mxu0
    %3365 = vmatprep.mubr.f32.mxu0 0.0
    %3366 = vmatmul.mubr.f32.gmra.mrb[0].mxu0 %v3236
    %v3367 = vpop.f32.mrb[0].mxu0
    %v3368 = vadd.f32 0.0, %v3367
    %v3369 = vpop.f32.mrb[0].mxu0
    %3370 = vmatprep.mubr.f32.mxu0 0.0
    %3371 = vmatmul.mubr.f32.gmra.mrb[0].mxu0 %v3239
    %v3372 = vpop.f32.mrb[0].mxu0
    %v3373 = vadd.f32 0.0, %v3372
    %v3374 = vpop.f32.mrb[0].mxu0
    %3375 = vmatprep.mubr.f32.mxu0 0.0
    %3376 = vmatmul.mubr.f32.gmra.mrb[0].mxu0 %v3242
    %v3377 = vpop.f32.mrb[0].mxu0
    %v3378 = vadd.f32 0.0, %v3377
    %v3379 = vpop.f32.mrb[0].mxu0
    %3380 = vmatprep.mubr.f32.mxu0 0.0
    %3381 = vmatmul.mubr.f32.gmra.mrb[0].mxu0 %v3245
    %v3382 = vpop.f32.mrb[0].mxu0
    %v3383 = vadd.f32 0.0, %v3382
    %v3384 = vpop.f32.mrb[0].mxu0
    %3385 = vmatprep.mubr.f32.mxu0 0.0
    %3386 = vmatmul.mubr.f32.gmra.mrb[0].mxu0 %v3248
    %v3387 = vpop.f32.mrb[0].mxu0
    %v3388 = vadd.f32 0.0, %v3387
    %v3389 = vpop.f32.mrb[0].mxu0
    %3390 = vmatprep.mubr.f32.mxu0 0.0
    %3391 = vmatmul.mubr.f32.gmra.mrb[0].mxu0 %v3251
    %v3392 = vpop.f32.mrb[0].mxu0
    %v3393 = vadd.f32 0.0, %v3392
    %v3394 = vpop.f32.mrb[0].mxu0
    %3395 = vmatprep.mubr.f32.mxu0 0.0
    %3396 = vmatmul.mubr.f32.gmra.mrb[0].mxu0 %v3254
    %v3397 = vpop.f32.mrb[0].mxu0
    %v3398 = vadd.f32 0.0, %v3397
    %v3399 = vpop.f32.mrb[0].mxu0
    %3400 = vdwg.mxu0
    %v3401 = vadd.f32 %v3028, %v3323
    %v3402 = vadd.f32 %v3029, %v3328
    %v3403 = vadd.f32 %v3030, %v3333
    %v3404 = vadd.f32 %v3031, %v3338
    %v3405 = vadd.f32 %v3032, %v3343
    %v3406 = vadd.f32 %v3033, %v3348
    %v3407 = vadd.f32 %v3034, %v3353
    %v3408 = vadd.f32 %v3035, %v3358
    %v3409 = vadd.f32 %v3036, %v3363
    %v3410 = vadd.f32 %v3037, %v3368
    %v3411 = vadd.f32 %v3038, %v3373
    %v3412 = vadd.f32 %v3039, %v3378
    %v3413 = vadd.f32 %v3040, %v3383
    %v3414 = vadd.f32 %v3041, %v3388
    %v3415 = vadd.f32 %v3042, %v3393
    %v3416 = vadd.f32 %v3043, %v3398
    %v3417 = vld [vmem:[%s4] sm:$0x1]
    %v3419 = vlaneseq
    %v3420 = vshrl.u32 %v3419, 7
    %v3421 = vsub.s32 0, %v3420
    %v3422 = vrot.slane %v3417, %v3421
    %v3424 = vadd.f32 %v3401, %v3422
    %v3425 = vadd.f32 %v3402, %v3422
    %v3426 = vadd.f32 %v3403, %v3422
    %v3427 = vadd.f32 %v3404, %v3422
    %v3428 = vadd.f32 %v3405, %v3422
    %v3429 = vadd.f32 %v3406, %v3422
    %v3430 = vadd.f32 %v3407, %v3422
    %v3431 = vadd.f32 %v3408, %v3422
    %v3432 = vadd.f32 %v3409, %v3422
    %v3433 = vadd.f32 %v3410, %v3422
    %v3434 = vadd.f32 %v3411, %v3422
    %v3435 = vadd.f32 %v3412, %v3422
    %v3436 = vadd.f32 %v3413, %v3422
    %v3437 = vadd.f32 %v3414, %v3422
    %v3438 = vadd.f32 %v3415, %v3422
    %v3439 = vadd.f32 %v3416, %v3422
    %v3440 = vmax.f32 %v3424, 0.0
    %v3441 = vmax.f32 %v3425, 0.0
    %v3442 = vmax.f32 %v3426, 0.0
    %v3443 = vmax.f32 %v3427, 0.0
    %v3444 = vmax.f32 %v3428, 0.0
    %v3445 = vmax.f32 %v3429, 0.0
    %v3446 = vmax.f32 %v3430, 0.0
    %v3447 = vmax.f32 %v3431, 0.0
    %v3448 = vmax.f32 %v3432, 0.0
    %v3449 = vmax.f32 %v3433, 0.0
    %v3450 = vmax.f32 %v3434, 0.0
    %v3451 = vmax.f32 %v3435, 0.0
    %v3452 = vmax.f32 %v3436, 0.0
    %v3453 = vmax.f32 %v3437, 0.0
    %v3454 = vmax.f32 %v3438, 0.0
    %v3455 = vmax.f32 %v3439, 0.0
    %3456 = vmatprep.subr.mxu0 0.0
    %3457 = vmatpush1.msra.mxu0 %v3440
    %3458 = vmatprep.subr.mxu0 0.0
    %3459 = vmatpush1.msra.mxu0 %v3441
    %3460 = vmatprep.subr.mxu0 0.0
    %3461 = vmatpush1.msra.mxu0 %v3442
    %3462 = vmatprep.subr.mxu0 0.0
    %3463 = vmatpush1.msra.mxu0 %v3443
    %3464 = vmatprep.subr.mxu0 0.0
    %3465 = vmatpush1.msra.mxu0 %v3444
    %3466 = vmatprep.subr.mxu0 0.0
    %3467 = vmatpush1.msra.mxu0 %v3445
    %3468 = vmatprep.subr.mxu0 0.0
    %3469 = vmatpush1.msra.mxu0 %v3446
    %3470 = vmatprep.subr.mxu0 0.0
    %3471 = vmatpush1.msra.mxu0 %v3447
    %3472 = vmatprep.subr.mxu0 0.0
    %3473 = vmatpush1.msra.mxu0 %v3448
    %3474 = vmatprep.subr.mxu0 0.0
    %3475 = vmatpush1.msra.mxu0 %v3449
    %3476 = vmatprep.subr.mxu0 0.0
    %3477 = vmatpush1.msra.mxu0 %v3450
    %3478 = vmatprep.subr.mxu0 0.0
    %3479 = vmatpush1.msra.mxu0 %v3451
    %3480 = vmatprep.subr.mxu0 0.0
    %3481 = vmatpush1.msra.mxu0 %v3452
    %3482 = vmatprep.subr.mxu0 0.0
    %3483 = vmatpush1.msra.mxu0 %v3453
    %3484 = vmatprep.subr.mxu0 0.0
    %3485 = vmatpush1.msra.mxu0 %v3454
    %3486 = vmatprep.subr.mxu0 0.0
    %3487 = vmatpush1.msra.mxu0 %v3455
    %3488 = vmatprep.subr.mxu0 0.0
    %3489 = vmatpush1.msra.mxu0 0.0
    %3490 = vmatprep.subr.mxu0 0.0
    %3491 = vmatpush1.msra.mxu0 0.0
    %3492 = vmatprep.subr.mxu0 0.0
    %3493 = vmatpush1.msra.mxu0 0.0
    %3494 = vmatprep.subr.mxu0 0.0
    %3495 = vmatpush1.msra.mxu0 0.0
    %3496 = vmatprep.subr.mxu0 0.0
    %3497 = vmatpush1.msra.mxu0 0.0
    %3498 = vmatprep.subr.mxu0 0.0
    %3499 = vmatpush1.msra.mxu0 0.0
    %3500 = vmatprep.subr.mxu0 0.0
    %3501 = vmatpush1.msra.mxu0 0.0
    %3502 = vmatprep.subr.mxu0 0.0
    %3503 = vmatpush1.msra.mxu0 0.0
    %3504 = vmatprep.subr.mxu0 0.0
    %3505 = vmatpush1.msra.mxu0 0.0
    %3506 = vmatprep.subr.mxu0 0.0
    %3507 = vmatpush1.msra.mxu0 0.0
    %3508 = vmatprep.subr.mxu0 0.0
    %3509 = vmatpush1.msra.mxu0 0.0
    %3510 = vmatprep.subr.mxu0 0.0
    %3511 = vmatpush1.msra.mxu0 0.0
    %3512 = vmatprep.subr.mxu0 0.0
    %3513 = vmatpush1.msra.mxu0 0.0
    %3514 = vmatprep.subr.mxu0 0.0
    %3515 = vmatpush1.msra.mxu0 0.0
    %3516 = vmatprep.subr.mxu0 0.0
    %3517 = vmatpush1.msra.mxu0 0.0
    %3518 = vmatprep.subr.mxu0 0.0
    %3519 = vmatpush1.msra.mxu0 0.0
    %3520 = vmatprep.mubr.f32.mxu0 0.0
    %3521 = vmatmul.mubr.f32.gmra.mrb[0].mxu0 %v93
    %v3522 = vpop.f32.mrb[0].mxu0
    %v3523 = vadd.f32 0.0, %v3522
    %v3524 = vpop.f32.mrb[0].mxu0
    %3525 = vmatprep.mubr.f32.mxu0 0.0
    %3526 = vmatmul.mubr.f32.gmra.mrb[0].mxu0 %v94
    %v3527 = vpop.f32.mrb[0].mxu0
    %v3528 = vadd.f32 0.0, %v3527
    %v3529 = vpop.f32.mrb[0].mxu0
    %3530 = vmatprep.mubr.f32.mxu0 0.0
    %3531 = vmatmul.mubr.f32.gmra.mrb[0].mxu0 %v95
    %v3532 = vpop.f32.mrb[0].mxu0
    %v3533 = vadd.f32 0.0, %v3532
    %v3534 = vpop.f32.mrb[0].mxu0
    %3535 = vmatprep.mubr.f32.mxu0 0.0
    %3536 = vmatmul.mubr.f32.gmra.mrb[0].mxu0 %v96
    %v3537 = vpop.f32.mrb[0].mxu0
    %v3538 = vadd.f32 0.0, %v3537
    %v3539 = vpop.f32.mrb[0].mxu0
    %3540 = vmatprep.mubr.f32.mxu0 0.0
    %3541 = vmatmul.mubr.f32.gmra.mrb[0].mxu0 %v97
    %v3542 = vpop.f32.mrb[0].mxu0
    %v3543 = vadd.f32 0.0, %v3542
    %v3544 = vpop.f32.mrb[0].mxu0
    %3545 = vmatprep.mubr.f32.mxu0 0.0
    %3546 = vmatmul.mubr.f32.gmra.mrb[0].mxu0 %v98
    %v3547 = vpop.f32.mrb[0].mxu0
    %v3548 = vadd.f32 0.0, %v3547
    %v3549 = vpop.f32.mrb[0].mxu0
    %3550 = vmatprep.mubr.f32.mxu0 0.0
    %3551 = vmatmul.mubr.f32.gmra.mrb[0].mxu0 %v99
    %v3552 = vpop.f32.mrb[0].mxu0
    %v3553 = vadd.f32 0.0, %v3552
    %v3554 = vpop.f32.mrb[0].mxu0
    %3555 = vmatprep.mubr.f32.mxu0 0.0
    %3556 = vmatmul.mubr.f32.gmra.mrb[0].mxu0 %v100
    %v3557 = vpop.f32.mrb[0].mxu0
    %v3558 = vadd.f32 0.0, %v3557
    %v3559 = vpop.f32.mrb[0].mxu0
    %3560 = vmatprep.mubr.f32.mxu0 0.0
    %3561 = vmatmul.mubr.f32.gmra.mrb[0].mxu0 %v101
    %v3562 = vpop.f32.mrb[0].mxu0
    %v3563 = vadd.f32 0.0, %v3562
    %v3564 = vpop.f32.mrb[0].mxu0
    %3565 = vmatprep.mubr.f32.mxu0 0.0
    %3566 = vmatmul.mubr.f32.gmra.mrb[0].mxu0 %v102
    %v3567 = vpop.f32.mrb[0].mxu0
    %v3568 = vadd.f32 0.0, %v3567
    %v3569 = vpop.f32.mrb[0].mxu0
    %3570 = vmatprep.mubr.f32.mxu0 0.0
    %3571 = vmatmul.mubr.f32.gmra.mrb[0].mxu0 %v103
    %v3572 = vpop.f32.mrb[0].mxu0
    %v3573 = vadd.f32 0.0, %v3572
    %v3574 = vpop.f32.mrb[0].mxu0
    %3575 = vmatprep.mubr.f32.mxu0 0.0
    %3576 = vmatmul.mubr.f32.gmra.mrb[0].mxu0 %v104
    %v3577 = vpop.f32.mrb[0].mxu0
    %v3578 = vadd.f32 0.0, %v3577
    %v3579 = vpop.f32.mrb[0].mxu0
    %3580 = vmatprep.mubr.f32.mxu0 0.0
    %3581 = vmatmul.mubr.f32.gmra.mrb[0].mxu0 %v105
    %v3582 = vpop.f32.mrb[0].mxu0
    %v3583 = vadd.f32 0.0, %v3582
    %v3584 = vpop.f32.mrb[0].mxu0
    %3585 = vmatprep.mubr.f32.mxu0 0.0
    %3586 = vmatmul.mubr.f32.gmra.mrb[0].mxu0 %v106
    %v3587 = vpop.f32.mrb[0].mxu0
    %v3588 = vadd.f32 0.0, %v3587
    %v3589 = vpop.f32.mrb[0].mxu0
    %3590 = vmatprep.mubr.f32.mxu0 0.0
    %3591 = vmatmul.mubr.f32.gmra.mrb[0].mxu0 %v107
    %v3592 = vpop.f32.mrb[0].mxu0
    %v3593 = vadd.f32 0.0, %v3592
    %v3594 = vpop.f32.mrb[0].mxu0
    %3595 = vmatprep.mubr.f32.mxu0 0.0
    %3596 = vmatmul.mubr.f32.gmra.mrb[0].mxu0 %v108
    %v3597 = vpop.f32.mrb[0].mxu0
    %v3598 = vadd.f32 0.0, %v3597
    %v3599 = vpop.f32.mrb[0].mxu0
    %3600 = vdwg.mxu0
    %v3601 = vld [vmem:[#allocation4] sm:$0xff]
    %v3602 = vld [vmem:[#allocation4 + $0x8] sm:$0xff]
    %v3603 = vld [vmem:[#allocation4 + $0x10] sm:$0xff]
    %v3604 = vld [vmem:[#allocation4 + $0x18] sm:$0xff]
    %v3605 = vld [vmem:[#allocation4 + $0x20] sm:$0xff]
    %v3606 = vld [vmem:[#allocation4 + $0x28] sm:$0xff]
    %v3607 = vld [vmem:[#allocation4 + $0x30] sm:$0xff]
    %v3608 = vld [vmem:[#allocation4 + $0x38] sm:$0xff]
    %3609 = vmatprep.subr.mxu0 0.0
    %3610 = vmatpush1.msra.mxu0 %v3440
    %3611 = vmatprep.subr.mxu0 0.0
    %3612 = vmatpush1.msra.mxu0 %v3441
    %3613 = vmatprep.subr.mxu0 0.0
    %3614 = vmatpush1.msra.mxu0 %v3442
    %3615 = vmatprep.subr.mxu0 0.0
    %3616 = vmatpush1.msra.mxu0 %v3443
    %3617 = vmatprep.subr.mxu0 0.0
    %3618 = vmatpush1.msra.mxu0 %v3444
    %3619 = vmatprep.subr.mxu0 0.0
    %3620 = vmatpush1.msra.mxu0 %v3445
    %3621 = vmatprep.subr.mxu0 0.0
    %3622 = vmatpush1.msra.mxu0 %v3446
    %3623 = vmatprep.subr.mxu0 0.0
    %3624 = vmatpush1.msra.mxu0 %v3447
    %3625 = vmatprep.subr.mxu0 0.0
    %3626 = vmatpush1.msra.mxu0 %v3448
    %3627 = vmatprep.subr.mxu0 0.0
    %3628 = vmatpush1.msra.mxu0 %v3449
    %3629 = vmatprep.subr.mxu0 0.0
    %3630 = vmatpush1.msra.mxu0 %v3450
    %3631 = vmatprep.subr.mxu0 0.0
    %3632 = vmatpush1.msra.mxu0 %v3451
    %3633 = vmatprep.subr.mxu0 0.0
    %3634 = vmatpush1.msra.mxu0 %v3452
    %3635 = vmatprep.subr.mxu0 0.0
    %3636 = vmatpush1.msra.mxu0 %v3453
    %3637 = vmatprep.subr.mxu0 0.0
    %3638 = vmatpush1.msra.mxu0 %v3454
    %3639 = vmatprep.subr.mxu0 0.0
    %3640 = vmatpush1.msra.mxu0 %v3455
    %3641 = vmatprep.subr.mxu0 0.0
    %3642 = vmatpush1.msra.mxu0 0.0
    %3643 = vmatprep.subr.mxu0 0.0
    %3644 = vmatpush1.msra.mxu0 0.0
    %3645 = vmatprep.subr.mxu0 0.0
    %3646 = vmatpush1.msra.mxu0 0.0
    %3647 = vmatprep.subr.mxu0 0.0
    %3648 = vmatpush1.msra.mxu0 0.0
    %3649 = vmatprep.subr.mxu0 0.0
    %3650 = vmatpush1.msra.mxu0 0.0
    %3651 = vmatprep.subr.mxu0 0.0
    %3652 = vmatpush1.msra.mxu0 0.0
    %3653 = vmatprep.subr.mxu0 0.0
    %3654 = vmatpush1.msra.mxu0 0.0
    %3655 = vmatprep.subr.mxu0 0.0
    %3656 = vmatpush1.msra.mxu0 0.0
    %3657 = vmatprep.subr.mxu0 0.0
    %3658 = vmatpush1.msra.mxu0 0.0
    %3659 = vmatprep.subr.mxu0 0.0
    %3660 = vmatpush1.msra.mxu0 0.0
    %3661 = vmatprep.subr.mxu0 0.0
    %3662 = vmatpush1.msra.mxu0 0.0
    %3663 = vmatprep.subr.mxu0 0.0
    %3664 = vmatpush1.msra.mxu0 0.0
    %3665 = vmatprep.subr.mxu0 0.0
    %3666 = vmatpush1.msra.mxu0 0.0
    %3667 = vmatprep.subr.mxu0 0.0
    %3668 = vmatpush1.msra.mxu0 0.0
    %3669 = vmatprep.subr.mxu0 0.0
    %3670 = vmatpush1.msra.mxu0 0.0
    %3671 = vmatprep.subr.mxu0 0.0
    %3672 = vmatpush1.msra.mxu0 0.0
    %3673 = vmatprep.mubr.f32.mxu0 0.0
    %3674 = vmatmul.mubr.f32.gmra.mrb[0].mxu0 %v256
    %v3675 = vpop.f32.mrb[0].mxu0
    %v3676 = vadd.f32 0.0, %v3675
    %v3677 = vpop.f32.mrb[0].mxu0
    %3678 = vmatprep.mubr.f32.mxu0 0.0
    %3679 = vmatmul.mubr.f32.gmra.mrb[0].mxu0 %v257
    %v3680 = vpop.f32.mrb[0].mxu0
    %v3681 = vadd.f32 0.0, %v3680
    %v3682 = vpop.f32.mrb[0].mxu0
    %3683 = vmatprep.mubr.f32.mxu0 0.0
    %3684 = vmatmul.mubr.f32.gmra.mrb[0].mxu0 %v258
    %v3685 = vpop.f32.mrb[0].mxu0
    %v3686 = vadd.f32 0.0, %v3685
    %v3687 = vpop.f32.mrb[0].mxu0
    %3688 = vmatprep.mubr.f32.mxu0 0.0
    %3689 = vmatmul.mubr.f32.gmra.mrb[0].mxu0 %v259
    %v3690 = vpop.f32.mrb[0].mxu0
    %v3691 = vadd.f32 0.0, %v3690
    %v3692 = vpop.f32.mrb[0].mxu0
    %3693 = vmatprep.mubr.f32.mxu0 0.0
    %3694 = vmatmul.mubr.f32.gmra.mrb[0].mxu0 %v260
    %v3695 = vpop.f32.mrb[0].mxu0
    %v3696 = vadd.f32 0.0, %v3695
    %v3697 = vpop.f32.mrb[0].mxu0
    %3698 = vmatprep.mubr.f32.mxu0 0.0
    %3699 = vmatmul.mubr.f32.gmra.mrb[0].mxu0 %v261
    %v3700 = vpop.f32.mrb[0].mxu0
    %v3701 = vadd.f32 0.0, %v3700
    %v3702 = vpop.f32.mrb[0].mxu0
    %3703 = vmatprep.mubr.f32.mxu0 0.0
    %3704 = vmatmul.mubr.f32.gmra.mrb[0].mxu0 %v262
    %v3705 = vpop.f32.mrb[0].mxu0
    %v3706 = vadd.f32 0.0, %v3705
    %v3707 = vpop.f32.mrb[0].mxu0
    %3708 = vmatprep.mubr.f32.mxu0 0.0
    %3709 = vmatmul.mubr.f32.gmra.mrb[0].mxu0 %v263
    %v3710 = vpop.f32.mrb[0].mxu0
    %v3711 = vadd.f32 0.0, %v3710
    %v3712 = vpop.f32.mrb[0].mxu0
    %3713 = vmatprep.mubr.f32.mxu0 0.0
    %3714 = vmatmul.mubr.f32.gmra.mrb[0].mxu0 %v264
    %v3715 = vpop.f32.mrb[0].mxu0
    %v3716 = vadd.f32 0.0, %v3715
    %v3717 = vpop.f32.mrb[0].mxu0
    %3718 = vmatprep.mubr.f32.mxu0 0.0
    %3719 = vmatmul.mubr.f32.gmra.mrb[0].mxu0 %v265
    %v3720 = vpop.f32.mrb[0].mxu0
    %v3721 = vadd.f32 0.0, %v3720
    %v3722 = vpop.f32.mrb[0].mxu0
    %3723 = vmatprep.mubr.f32.mxu0 0.0
    %3724 = vmatmul.mubr.f32.gmra.mrb[0].mxu0 %v266
    %v3725 = vpop.f32.mrb[0].mxu0
    %v3726 = vadd.f32 0.0, %v3725
    %v3727 = vpop.f32.mrb[0].mxu0
    %3728 = vmatprep.mubr.f32.mxu0 0.0
    %3729 = vmatmul.mubr.f32.gmra.mrb[0].mxu0 %v267
    %v3730 = vpop.f32.mrb[0].mxu0
    %v3731 = vadd.f32 0.0, %v3730
    %v3732 = vpop.f32.mrb[0].mxu0
    %3733 = vmatprep.mubr.f32.mxu0 0.0
    %3734 = vmatmul.mubr.f32.gmra.mrb[0].mxu0 %v268
    %v3735 = vpop.f32.mrb[0].mxu0
    %v3736 = vadd.f32 0.0, %v3735
    %v3737 = vpop.f32.mrb[0].mxu0
    %3738 = vmatprep.mubr.f32.mxu0 0.0
    %3739 = vmatmul.mubr.f32.gmra.mrb[0].mxu0 %v269
    %v3740 = vpop.f32.mrb[0].mxu0
    %v3741 = vadd.f32 0.0, %v3740
    %v3742 = vpop.f32.mrb[0].mxu0
    %3743 = vmatprep.mubr.f32.mxu0 0.0
    %3744 = vmatmul.mubr.f32.gmra.mrb[0].mxu0 %v270
    %v3745 = vpop.f32.mrb[0].mxu0
    %v3746 = vadd.f32 0.0, %v3745
    %v3747 = vpop.f32.mrb[0].mxu0
    %3748 = vmatprep.mubr.f32.mxu0 0.0
    %3749 = vmatmul.mubr.f32.gmra.mrb[0].mxu0 %v271
    %v3750 = vpop.f32.mrb[0].mxu0
    %v3751 = vadd.f32 0.0, %v3750
    %v3752 = vpop.f32.mrb[0].mxu0
    %3753 = vdwg.mxu0
    %s3754 = scalar_lea.vmem [#allocation4], 64
    %v3755 = vld [vmem:[%s3754] sm:$0xff]
    %v3756 = vld [vmem:[%s3754 + $0x8] sm:$0xff]
    %v3757 = vld [vmem:[%s3754 + $0x10] sm:$0xff]
    %v3758 = vld [vmem:[%s3754 + $0x18] sm:$0xff]
    %v3759 = vld [vmem:[%s3754 + $0x20] sm:$0xff]
    %v3760 = vld [vmem:[%s3754 + $0x28] sm:$0xff]
    %v3761 = vld [vmem:[%s3754 + $0x30] sm:$0xff]
    %v3762 = vld [vmem:[%s3754 + $0x38] sm:$0xff]
    %vm3763 = vcmask 523264
    %v3765 = vsel %vm3763, %v3676, 0
    %v3768 = vsel %vm3763, %v3681, 0
    %v3771 = vsel %vm3763, %v3686, 0
    %v3774 = vsel %vm3763, %v3691, 0
    %v3777 = vsel %vm3763, %v3696, 0
    %v3780 = vsel %vm3763, %v3701, 0
    %v3783 = vsel %vm3763, %v3706, 0
    %v3786 = vsel %vm3763, %v3711, 0
    %v3789 = vsel %vm3763, %v3716, 0
    %v3792 = vsel %vm3763, %v3721, 0
    %v3795 = vsel %vm3763, %v3726, 0
    %v3798 = vsel %vm3763, %v3731, 0
    %v3801 = vsel %vm3763, %v3736, 0
    %v3804 = vsel %vm3763, %v3741, 0
    %v3807 = vsel %vm3763, %v3746, 0
    %v3810 = vsel %vm3763, %v3751, 0
    %3812 = vmatprep.subr.mxu0 0.0
    %3813 = vmatpush1.msra.mxu0 %v3755
    %3814 = vmatprep.subr.mxu0 0.0
    %3815 = vmatpush1.msra.mxu0 %v3756
    %3816 = vmatprep.subr.mxu0 0.0
    %3817 = vmatpush1.msra.mxu0 %v3757
    %3818 = vmatprep.subr.mxu0 0.0
    %3819 = vmatpush1.msra.mxu0 %v3758
    %3820 = vmatprep.subr.mxu0 0.0
    %3821 = vmatpush1.msra.mxu0 %v3759
    %3822 = vmatprep.subr.mxu0 0.0
    %3823 = vmatpush1.msra.mxu0 %v3760
    %3824 = vmatprep.subr.mxu0 0.0
    %3825 = vmatpush1.msra.mxu0 %v3761
    %3826 = vmatprep.subr.mxu0 0.0
    %3827 = vmatpush1.msra.mxu0 %v3762
    %3828 = vmatprep.subr.mxu0 0.0
    %3829 = vmatpush1.msra.mxu0 0.0
    %3830 = vmatprep.subr.mxu0 0.0
    %3831 = vmatpush1.msra.mxu0 0.0
    %3832 = vmatprep.subr.mxu0 0.0
    %3833 = vmatpush1.msra.mxu0 0.0
    %3834 = vmatprep.subr.mxu0 0.0
    %3835 = vmatpush1.msra.mxu0 0.0
    %3836 = vmatprep.subr.mxu0 0.0
    %3837 = vmatpush1.msra.mxu0 0.0
    %3838 = vmatprep.subr.mxu0 0.0
    %3839 = vmatpush1.msra.mxu0 0.0
    %3840 = vmatprep.subr.mxu0 0.0
    %3841 = vmatpush1.msra.mxu0 0.0
    %3842 = vmatprep.subr.mxu0 0.0
    %3843 = vmatpush1.msra.mxu0 0.0
    %3844 = vmatprep.subr.mxu0 0.0
    %3845 = vmatpush1.msra.mxu0 0.0
    %3846 = vmatprep.subr.mxu0 0.0
    %3847 = vmatpush1.msra.mxu0 0.0
    %3848 = vmatprep.subr.mxu0 0.0
    %3849 = vmatpush1.msra.mxu0 0.0
    %3850 = vmatprep.subr.mxu0 0.0
    %3851 = vmatpush1.msra.mxu0 0.0
    %3852 = vmatprep.subr.mxu0 0.0
    %3853 = vmatpush1.msra.mxu0 0.0
    %3854 = vmatprep.subr.mxu0 0.0
    %3855 = vmatpush1.msra.mxu0 0.0
    %3856 = vmatprep.subr.mxu0 0.0
    %3857 = vmatpush1.msra.mxu0 0.0
    %3858 = vmatprep.subr.mxu0 0.0
    %3859 = vmatpush1.msra.mxu0 0.0
    %3860 = vmatprep.subr.mxu0 0.0
    %3861 = vmatpush1.msra.mxu0 0.0
    %3862 = vmatprep.subr.mxu0 0.0
    %3863 = vmatpush1.msra.mxu0 0.0
    %3864 = vmatprep.subr.mxu0 0.0
    %3865 = vmatpush1.msra.mxu0 0.0
    %3866 = vmatprep.subr.mxu0 0.0
    %3867 = vmatpush1.msra.mxu0 0.0
    %3868 = vmatprep.subr.mxu0 0.0
    %3869 = vmatpush1.msra.mxu0 0.0
    %3870 = vmatprep.subr.mxu0 0.0
    %3871 = vmatpush1.msra.mxu0 0.0
    %3872 = vmatprep.subr.mxu0 0.0
    %3873 = vmatpush1.msra.mxu0 0.0
    %3874 = vmatprep.subr.mxu0 0.0
    %3875 = vmatpush1.msra.mxu0 0.0
    %3876 = vmatprep.mubr.f32.mxu0 0.0
    %3877 = vmatmul.mubr.f32.gmra.mrb[0].mxu0 %v3765
    %v3878 = vpop.f32.mrb[0].mxu0
    %v3879 = vadd.f32 0.0, %v3878
    %v3880 = vpop.f32.mrb[0].mxu0
    %3881 = vmatprep.mubr.f32.mxu0 0.0
    %3882 = vmatmul.mubr.f32.gmra.mrb[0].mxu0 %v3768
    %v3883 = vpop.f32.mrb[0].mxu0
    %v3884 = vadd.f32 0.0, %v3883
    %v3885 = vpop.f32.mrb[0].mxu0
    %3886 = vmatprep.mubr.f32.mxu0 0.0
    %3887 = vmatmul.mubr.f32.gmra.mrb[0].mxu0 %v3771
    %v3888 = vpop.f32.mrb[0].mxu0
    %v3889 = vadd.f32 0.0, %v3888
    %v3890 = vpop.f32.mrb[0].mxu0
    %3891 = vmatprep.mubr.f32.mxu0 0.0
    %3892 = vmatmul.mubr.f32.gmra.mrb[0].mxu0 %v3774
    %v3893 = vpop.f32.mrb[0].mxu0
    %v3894 = vadd.f32 0.0, %v3893
    %v3895 = vpop.f32.mrb[0].mxu0
    %3896 = vmatprep.mubr.f32.mxu0 0.0
    %3897 = vmatmul.mubr.f32.gmra.mrb[0].mxu0 %v3777
    %v3898 = vpop.f32.mrb[0].mxu0
    %v3899 = vadd.f32 0.0, %v3898
    %v3900 = vpop.f32.mrb[0].mxu0
    %3901 = vmatprep.mubr.f32.mxu0 0.0
    %3902 = vmatmul.mubr.f32.gmra.mrb[0].mxu0 %v3780
    %v3903 = vpop.f32.mrb[0].mxu0
    %v3904 = vadd.f32 0.0, %v3903
    %v3905 = vpop.f32.mrb[0].mxu0
    %3906 = vmatprep.mubr.f32.mxu0 0.0
    %3907 = vmatmul.mubr.f32.gmra.mrb[0].mxu0 %v3783
    %v3908 = vpop.f32.mrb[0].mxu0
    %v3909 = vadd.f32 0.0, %v3908
    %v3910 = vpop.f32.mrb[0].mxu0
    %3911 = vmatprep.mubr.f32.mxu0 0.0
    %3912 = vmatmul.mubr.f32.gmra.mrb[0].mxu0 %v3786
    %v3913 = vpop.f32.mrb[0].mxu0
    %v3914 = vadd.f32 0.0, %v3913
    %v3915 = vpop.f32.mrb[0].mxu0
    %3916 = vmatprep.mubr.f32.mxu0 0.0
    %3917 = vmatmul.mubr.f32.gmra.mrb[0].mxu0 %v3789
    %v3918 = vpop.f32.mrb[0].mxu0
    %v3919 = vadd.f32 0.0, %v3918
    %v3920 = vpop.f32.mrb[0].mxu0
    %3921 = vmatprep.mubr.f32.mxu0 0.0
    %3922 = vmatmul.mubr.f32.gmra.mrb[0].mxu0 %v3792
    %v3923 = vpop.f32.mrb[0].mxu0
    %v3924 = vadd.f32 0.0, %v3923
    %v3925 = vpop.f32.mrb[0].mxu0
    %3926 = vmatprep.mubr.f32.mxu0 0.0
    %3927 = vmatmul.mubr.f32.gmra.mrb[0].mxu0 %v3795
    %v3928 = vpop.f32.mrb[0].mxu0
    %v3929 = vadd.f32 0.0, %v3928
    %v3930 = vpop.f32.mrb[0].mxu0
    %3931 = vmatprep.mubr.f32.mxu0 0.0
    %3932 = vmatmul.mubr.f32.gmra.mrb[0].mxu0 %v3798
    %v3933 = vpop.f32.mrb[0].mxu0
    %v3934 = vadd.f32 0.0, %v3933
    %v3935 = vpop.f32.mrb[0].mxu0
    %3936 = vmatprep.mubr.f32.mxu0 0.0
    %3937 = vmatmul.mubr.f32.gmra.mrb[0].mxu0 %v3801
    %v3938 = vpop.f32.mrb[0].mxu0
    %v3939 = vadd.f32 0.0, %v3938
    %v3940 = vpop.f32.mrb[0].mxu0
    %3941 = vmatprep.mubr.f32.mxu0 0.0
    %3942 = vmatmul.mubr.f32.gmra.mrb[0].mxu0 %v3804
    %v3943 = vpop.f32.mrb[0].mxu0
    %v3944 = vadd.f32 0.0, %v3943
    %v3945 = vpop.f32.mrb[0].mxu0
    %3946 = vmatprep.mubr.f32.mxu0 0.0
    %3947 = vmatmul.mubr.f32.gmra.mrb[0].mxu0 %v3807
    %v3948 = vpop.f32.mrb[0].mxu0
    %v3949 = vadd.f32 0.0, %v3948
    %v3950 = vpop.f32.mrb[0].mxu0
    %3951 = vmatprep.mubr.f32.mxu0 0.0
    %3952 = vmatmul.mubr.f32.gmra.mrb[0].mxu0 %v3810
    %v3953 = vpop.f32.mrb[0].mxu0
    %v3954 = vadd.f32 0.0, %v3953
    %v3955 = vpop.f32.mrb[0].mxu0
    %3956 = vdwg.mxu0
    %v3958 = vsel %vm3763, %v3523, 0
    %v3961 = vsel %vm3763, %v3528, 0
    %v3964 = vsel %vm3763, %v3533, 0
    %v3967 = vsel %vm3763, %v3538, 0
    %v3970 = vsel %vm3763, %v3543, 0
    %v3973 = vsel %vm3763, %v3548, 0
    %v3976 = vsel %vm3763, %v3553, 0
    %v3979 = vsel %vm3763, %v3558, 0
    %v3982 = vsel %vm3763, %v3563, 0
    %v3985 = vsel %vm3763, %v3568, 0
    %v3988 = vsel %vm3763, %v3573, 0
    %v3991 = vsel %vm3763, %v3578, 0
    %v3994 = vsel %vm3763, %v3583, 0
    %v3997 = vsel %vm3763, %v3588, 0
    %v4000 = vsel %vm3763, %v3593, 0
    %v4003 = vsel %vm3763, %v3598, 0
    %4005 = vmatprep.subr.mxu0 0.0
    %4006 = vmatpush1.msra.mxu0 %v3601
    %4007 = vmatprep.subr.mxu0 0.0
    %4008 = vmatpush1.msra.mxu0 %v3602
    %4009 = vmatprep.subr.mxu0 0.0
    %4010 = vmatpush1.msra.mxu0 %v3603
    %4011 = vmatprep.subr.mxu0 0.0
    %4012 = vmatpush1.msra.mxu0 %v3604
    %4013 = vmatprep.subr.mxu0 0.0
    %4014 = vmatpush1.msra.mxu0 %v3605
    %4015 = vmatprep.subr.mxu0 0.0
    %4016 = vmatpush1.msra.mxu0 %v3606
    %4017 = vmatprep.subr.mxu0 0.0
    %4018 = vmatpush1.msra.mxu0 %v3607
    %4019 = vmatprep.subr.mxu0 0.0
    %4020 = vmatpush1.msra.mxu0 %v3608
    %4021 = vmatprep.subr.mxu0 0.0
    %4022 = vmatpush1.msra.mxu0 0.0
    %4023 = vmatprep.subr.mxu0 0.0
    %4024 = vmatpush1.msra.mxu0 0.0
    %4025 = vmatprep.subr.mxu0 0.0
    %4026 = vmatpush1.msra.mxu0 0.0
    %4027 = vmatprep.subr.mxu0 0.0
    %4028 = vmatpush1.msra.mxu0 0.0
    %4029 = vmatprep.subr.mxu0 0.0
    %4030 = vmatpush1.msra.mxu0 0.0
    %4031 = vmatprep.subr.mxu0 0.0
    %4032 = vmatpush1.msra.mxu0 0.0
    %4033 = vmatprep.subr.mxu0 0.0
    %4034 = vmatpush1.msra.mxu0 0.0
    %4035 = vmatprep.subr.mxu0 0.0
    %4036 = vmatpush1.msra.mxu0 0.0
    %4037 = vmatprep.subr.mxu0 0.0
    %4038 = vmatpush1.msra.mxu0 0.0
    %4039 = vmatprep.subr.mxu0 0.0
    %4040 = vmatpush1.msra.mxu0 0.0
    %4041 = vmatprep.subr.mxu0 0.0
    %4042 = vmatpush1.msra.mxu0 0.0
    %4043 = vmatprep.subr.mxu0 0.0
    %4044 = vmatpush1.msra.mxu0 0.0
    %4045 = vmatprep.subr.mxu0 0.0
    %4046 = vmatpush1.msra.mxu0 0.0
    %4047 = vmatprep.subr.mxu0 0.0
    %4048 = vmatpush1.msra.mxu0 0.0
    %4049 = vmatprep.subr.mxu0 0.0
    %4050 = vmatpush1.msra.mxu0 0.0
    %4051 = vmatprep.subr.mxu0 0.0
    %4052 = vmatpush1.msra.mxu0 0.0
    %4053 = vmatprep.subr.mxu0 0.0
    %4054 = vmatpush1.msra.mxu0 0.0
    %4055 = vmatprep.subr.mxu0 0.0
    %4056 = vmatpush1.msra.mxu0 0.0
    %4057 = vmatprep.subr.mxu0 0.0
    %4058 = vmatpush1.msra.mxu0 0.0
    %4059 = vmatprep.subr.mxu0 0.0
    %4060 = vmatpush1.msra.mxu0 0.0
    %4061 = vmatprep.subr.mxu0 0.0
    %4062 = vmatpush1.msra.mxu0 0.0
    %4063 = vmatprep.subr.mxu0 0.0
    %4064 = vmatpush1.msra.mxu0 0.0
    %4065 = vmatprep.subr.mxu0 0.0
    %4066 = vmatpush1.msra.mxu0 0.0
    %4067 = vmatprep.subr.mxu0 0.0
    %4068 = vmatpush1.msra.mxu0 0.0
    %4069 = vmatprep.mubr.f32.mxu0 0.0
    %4070 = vmatmul.mubr.f32.gmra.mrb[0].mxu0 %v3958
    %v4071 = vpop.f32.mrb[0].mxu0
    %v4072 = vadd.f32 %v3879, %v4071
    %v4073 = vpop.f32.mrb[0].mxu0
    %4074 = vmatprep.mubr.f32.mxu0 0.0
    %4075 = vmatmul.mubr.f32.gmra.mrb[0].mxu0 %v3961
    %v4076 = vpop.f32.mrb[0].mxu0
    %v4077 = vadd.f32 %v3884, %v4076
    %v4078 = vpop.f32.mrb[0].mxu0
    %4079 = vmatprep.mubr.f32.mxu0 0.0
    %4080 = vmatmul.mubr.f32.gmra.mrb[0].mxu0 %v3964
    %v4081 = vpop.f32.mrb[0].mxu0
    %v4082 = vadd.f32 %v3889, %v4081
    %v4083 = vpop.f32.mrb[0].mxu0
    %4084 = vmatprep.mubr.f32.mxu0 0.0
    %4085 = vmatmul.mubr.f32.gmra.mrb[0].mxu0 %v3967
    %v4086 = vpop.f32.mrb[0].mxu0
    %v4087 = vadd.f32 %v3894, %v4086
    %v4088 = vpop.f32.mrb[0].mxu0
    %4089 = vmatprep.mubr.f32.mxu0 0.0
    %4090 = vmatmul.mubr.f32.gmra.mrb[0].mxu0 %v3970
    %v4091 = vpop.f32.mrb[0].mxu0
    %v4092 = vadd.f32 %v3899, %v4091
    %v4093 = vpop.f32.mrb[0].mxu0
    %4094 = vmatprep.mubr.f32.mxu0 0.0
    %4095 = vmatmul.mubr.f32.gmra.mrb[0].mxu0 %v3973
    %v4096 = vpop.f32.mrb[0].mxu0
    %v4097 = vadd.f32 %v3904, %v4096
    %v4098 = vpop.f32.mrb[0].mxu0
    %4099 = vmatprep.mubr.f32.mxu0 0.0
    %4100 = vmatmul.mubr.f32.gmra.mrb[0].mxu0 %v3976
    %v4101 = vpop.f32.mrb[0].mxu0
    %v4102 = vadd.f32 %v3909, %v4101
    %v4103 = vpop.f32.mrb[0].mxu0
    %4104 = vmatprep.mubr.f32.mxu0 0.0
    %4105 = vmatmul.mubr.f32.gmra.mrb[0].mxu0 %v3979
    %v4106 = vpop.f32.mrb[0].mxu0
    %v4107 = vadd.f32 %v3914, %v4106
    %v4108 = vpop.f32.mrb[0].mxu0
    %4109 = vmatprep.mubr.f32.mxu0 0.0
    %4110 = vmatmul.mubr.f32.gmra.mrb[0].mxu0 %v3982
    %v4111 = vpop.f32.mrb[0].mxu0
    %v4112 = vadd.f32 %v3919, %v4111
    %v4113 = vpop.f32.mrb[0].mxu0
    %4114 = vmatprep.mubr.f32.mxu0 0.0
    %4115 = vmatmul.mubr.f32.gmra.mrb[0].mxu0 %v3985
    %v4116 = vpop.f32.mrb[0].mxu0
    %v4117 = vadd.f32 %v3924, %v4116
    %v4118 = vpop.f32.mrb[0].mxu0
    %4119 = vmatprep.mubr.f32.mxu0 0.0
    %4120 = vmatmul.mubr.f32.gmra.mrb[0].mxu0 %v3988
    %v4121 = vpop.f32.mrb[0].mxu0
    %v4122 = vadd.f32 %v3929, %v4121
    %v4123 = vpop.f32.mrb[0].mxu0
    %4124 = vmatprep.mubr.f32.mxu0 0.0
    %4125 = vmatmul.mubr.f32.gmra.mrb[0].mxu0 %v3991
    %v4126 = vpop.f32.mrb[0].mxu0
    %v4127 = vadd.f32 %v3934, %v4126
    %v4128 = vpop.f32.mrb[0].mxu0
    %4129 = vmatprep.mubr.f32.mxu0 0.0
    %4130 = vmatmul.mubr.f32.gmra.mrb[0].mxu0 %v3994
    %v4131 = vpop.f32.mrb[0].mxu0
    %v4132 = vadd.f32 %v3939, %v4131
    %v4133 = vpop.f32.mrb[0].mxu0
    %4134 = vmatprep.mubr.f32.mxu0 0.0
    %4135 = vmatmul.mubr.f32.gmra.mrb[0].mxu0 %v3997
    %v4136 = vpop.f32.mrb[0].mxu0
    %v4137 = vadd.f32 %v3944, %v4136
    %v4138 = vpop.f32.mrb[0].mxu0
    %4139 = vmatprep.mubr.f32.mxu0 0.0
    %4140 = vmatmul.mubr.f32.gmra.mrb[0].mxu0 %v4000
    %v4141 = vpop.f32.mrb[0].mxu0
    %v4142 = vadd.f32 %v3949, %v4141
    %v4143 = vpop.f32.mrb[0].mxu0
    %4144 = vmatprep.mubr.f32.mxu0 0.0
    %4145 = vmatmul.mubr.f32.gmra.mrb[0].mxu0 %v4003
    %v4146 = vpop.f32.mrb[0].mxu0
    %v4147 = vadd.f32 %v3954, %v4146
    %v4148 = vpop.f32.mrb[0].mxu0
    %4149 = vdwg.mxu0
    %4150 = vmatprep.subr.mxu0 0.0
    %4151 = vmatpush1.msra.mxu0 %v3440
    %4152 = vmatprep.subr.mxu0 0.0
    %4153 = vmatpush1.msra.mxu0 %v3441
    %4154 = vmatprep.subr.mxu0 0.0
    %4155 = vmatpush1.msra.mxu0 %v3442
    %4156 = vmatprep.subr.mxu0 0.0
    %4157 = vmatpush1.msra.mxu0 %v3443
    %4158 = vmatprep.subr.mxu0 0.0
    %4159 = vmatpush1.msra.mxu0 %v3444
    %4160 = vmatprep.subr.mxu0 0.0
    %4161 = vmatpush1.msra.mxu0 %v3445
    %4162 = vmatprep.subr.mxu0 0.0
    %4163 = vmatpush1.msra.mxu0 %v3446
    %4164 = vmatprep.subr.mxu0 0.0
    %4165 = vmatpush1.msra.mxu0 %v3447
    %4166 = vmatprep.subr.mxu0 0.0
    %4167 = vmatpush1.msra.mxu0 %v3448
    %4168 = vmatprep.subr.mxu0 0.0
    %4169 = vmatpush1.msra.mxu0 %v3449
    %4170 = vmatprep.subr.mxu0 0.0
    %4171 = vmatpush1.msra.mxu0 %v3450
    %4172 = vmatprep.subr.mxu0 0.0
    %4173 = vmatpush1.msra.mxu0 %v3451
    %4174 = vmatprep.subr.mxu0 0.0
    %4175 = vmatpush1.msra.mxu0 %v3452
    %4176 = vmatprep.subr.mxu0 0.0
    %4177 = vmatpush1.msra.mxu0 %v3453
    %4178 = vmatprep.subr.mxu0 0.0
    %4179 = vmatpush1.msra.mxu0 %v3454
    %4180 = vmatprep.subr.mxu0 0.0
    %4181 = vmatpush1.msra.mxu0 %v3455
    %4182 = vmatprep.subr.mxu0 0.0
    %4183 = vmatpush1.msra.mxu0 0.0
    %4184 = vmatprep.subr.mxu0 0.0
    %4185 = vmatpush1.msra.mxu0 0.0
    %4186 = vmatprep.subr.mxu0 0.0
    %4187 = vmatpush1.msra.mxu0 0.0
    %4188 = vmatprep.subr.mxu0 0.0
    %4189 = vmatpush1.msra.mxu0 0.0
    %4190 = vmatprep.subr.mxu0 0.0
    %4191 = vmatpush1.msra.mxu0 0.0
    %4192 = vmatprep.subr.mxu0 0.0
    %4193 = vmatpush1.msra.mxu0 0.0
    %4194 = vmatprep.subr.mxu0 0.0
    %4195 = vmatpush1.msra.mxu0 0.0
    %4196 = vmatprep.subr.mxu0 0.0
    %4197 = vmatpush1.msra.mxu0 0.0
    %4198 = vmatprep.subr.mxu0 0.0
    %4199 = vmatpush1.msra.mxu0 0.0
    %4200 = vmatprep.subr.mxu0 0.0
    %4201 = vmatpush1.msra.mxu0 0.0
    %4202 = vmatprep.subr.mxu0 0.0
    %4203 = vmatpush1.msra.mxu0 0.0
    %4204 = vmatprep.subr.mxu0 0.0
    %4205 = vmatpush1.msra.mxu0 0.0
    %4206 = vmatprep.subr.mxu0 0.0
    %4207 = vmatpush1.msra.mxu0 0.0
    %4208 = vmatprep.subr.mxu0 0.0
    %4209 = vmatpush1.msra.mxu0 0.0
    %4210 = vmatprep.subr.mxu0 0.0
    %4211 = vmatpush1.msra.mxu0 0.0
    %4212 = vmatprep.subr.mxu0 0.0
    %4213 = vmatpush1.msra.mxu0 0.0
    %4214 = vmatprep.mubr.f32.mxu0 0.0
    %4215 = vmatmul.mubr.f32.gmra.mrb[0].mxu0 %v807
    %v4216 = vpop.f32.mrb[0].mxu0
    %v4217 = vadd.f32 0.0, %v4216
    %v4218 = vpop.f32.mrb[0].mxu0
    %4219 = vmatprep.mubr.f32.mxu0 0.0
    %4220 = vmatmul.mubr.f32.gmra.mrb[0].mxu0 %v808
    %v4221 = vpop.f32.mrb[0].mxu0
    %v4222 = vadd.f32 0.0, %v4221
    %v4223 = vpop.f32.mrb[0].mxu0
    %4224 = vmatprep.mubr.f32.mxu0 0.0
    %4225 = vmatmul.mubr.f32.gmra.mrb[0].mxu0 %v809
    %v4226 = vpop.f32.mrb[0].mxu0
    %v4227 = vadd.f32 0.0, %v4226
    %v4228 = vpop.f32.mrb[0].mxu0
    %4229 = vmatprep.mubr.f32.mxu0 0.0
    %4230 = vmatmul.mubr.f32.gmra.mrb[0].mxu0 %v810
    %v4231 = vpop.f32.mrb[0].mxu0
    %v4232 = vadd.f32 0.0, %v4231
    %v4233 = vpop.f32.mrb[0].mxu0
    %4234 = vmatprep.mubr.f32.mxu0 0.0
    %4235 = vmatmul.mubr.f32.gmra.mrb[0].mxu0 %v811
    %v4236 = vpop.f32.mrb[0].mxu0
    %v4237 = vadd.f32 0.0, %v4236
    %v4238 = vpop.f32.mrb[0].mxu0
    %4239 = vmatprep.mubr.f32.mxu0 0.0
    %4240 = vmatmul.mubr.f32.gmra.mrb[0].mxu0 %v812
    %v4241 = vpop.f32.mrb[0].mxu0
    %v4242 = vadd.f32 0.0, %v4241
    %v4243 = vpop.f32.mrb[0].mxu0
    %4244 = vmatprep.mubr.f32.mxu0 0.0
    %4245 = vmatmul.mubr.f32.gmra.mrb[0].mxu0 %v813
    %v4246 = vpop.f32.mrb[0].mxu0
    %v4247 = vadd.f32 0.0, %v4246
    %v4248 = vpop.f32.mrb[0].mxu0
    %4249 = vmatprep.mubr.f32.mxu0 0.0
    %4250 = vmatmul.mubr.f32.gmra.mrb[0].mxu0 %v814
    %v4251 = vpop.f32.mrb[0].mxu0
    %v4252 = vadd.f32 0.0, %v4251
    %v4253 = vpop.f32.mrb[0].mxu0
    %4254 = vmatprep.mubr.f32.mxu0 0.0
    %4255 = vmatmul.mubr.f32.gmra.mrb[0].mxu0 %v815
    %v4256 = vpop.f32.mrb[0].mxu0
    %v4257 = vadd.f32 0.0, %v4256
    %v4258 = vpop.f32.mrb[0].mxu0
    %4259 = vmatprep.mubr.f32.mxu0 0.0
    %4260 = vmatmul.mubr.f32.gmra.mrb[0].mxu0 %v816
    %v4261 = vpop.f32.mrb[0].mxu0
    %v4262 = vadd.f32 0.0, %v4261
    %v4263 = vpop.f32.mrb[0].mxu0
    %4264 = vmatprep.mubr.f32.mxu0 0.0
    %4265 = vmatmul.mubr.f32.gmra.mrb[0].mxu0 %v817
    %v4266 = vpop.f32.mrb[0].mxu0
    %v4267 = vadd.f32 0.0, %v4266
    %v4268 = vpop.f32.mrb[0].mxu0
    %4269 = vmatprep.mubr.f32.mxu0 0.0
    %4270 = vmatmul.mubr.f32.gmra.mrb[0].mxu0 %v818
    %v4271 = vpop.f32.mrb[0].mxu0
    %v4272 = vadd.f32 0.0, %v4271
    %v4273 = vpop.f32.mrb[0].mxu0
    %4274 = vmatprep.mubr.f32.mxu0 0.0
    %4275 = vmatmul.mubr.f32.gmra.mrb[0].mxu0 %v819
    %v4276 = vpop.f32.mrb[0].mxu0
    %v4277 = vadd.f32 0.0, %v4276
    %v4278 = vpop.f32.mrb[0].mxu0
    %4279 = vmatprep.mubr.f32.mxu0 0.0
    %4280 = vmatmul.mubr.f32.gmra.mrb[0].mxu0 %v820
    %v4281 = vpop.f32.mrb[0].mxu0
    %v4282 = vadd.f32 0.0, %v4281
    %v4283 = vpop.f32.mrb[0].mxu0
    %4284 = vmatprep.mubr.f32.mxu0 0.0
    %4285 = vmatmul.mubr.f32.gmra.mrb[0].mxu0 %v821
    %v4286 = vpop.f32.mrb[0].mxu0
    %v4287 = vadd.f32 0.0, %v4286
    %v4288 = vpop.f32.mrb[0].mxu0
    %4289 = vmatprep.mubr.f32.mxu0 0.0
    %4290 = vmatmul.mubr.f32.gmra.mrb[0].mxu0 %v822
    %v4291 = vpop.f32.mrb[0].mxu0
    %v4292 = vadd.f32 0.0, %v4291
    %v4293 = vpop.f32.mrb[0].mxu0
    %4294 = vdwg.mxu0
    %s4295 = scalar_lea.vmem [#allocation4], 128
    %v4296 = vld [vmem:[%s4295] sm:$0xff]
    %v4297 = vld [vmem:[%s4295 + $0x8] sm:$0xff]
    %v4298 = vld [vmem:[%s4295 + $0x10] sm:$0xff]
    %v4299 = vld [vmem:[%s4295 + $0x18] sm:$0xff]
    %v4300 = vld [vmem:[%s4295 + $0x20] sm:$0xff]
    %v4301 = vld [vmem:[%s4295 + $0x28] sm:$0xff]
    %v4302 = vld [vmem:[%s4295 + $0x30] sm:$0xff]
    %v4303 = vld [vmem:[%s4295 + $0x38] sm:$0xff]
    %v4305 = vsel %vm3763, %v4217, 0
    %v4308 = vsel %vm3763, %v4222, 0
    %v4311 = vsel %vm3763, %v4227, 0
    %v4314 = vsel %vm3763, %v4232, 0
    %v4317 = vsel %vm3763, %v4237, 0
    %v4320 = vsel %vm3763, %v4242, 0
    %v4323 = vsel %vm3763, %v4247, 0
    %v4326 = vsel %vm3763, %v4252, 0
    %v4329 = vsel %vm3763, %v4257, 0
    %v4332 = vsel %vm3763, %v4262, 0
    %v4335 = vsel %vm3763, %v4267, 0
    %v4338 = vsel %vm3763, %v4272, 0
    %v4341 = vsel %vm3763, %v4277, 0
    %v4344 = vsel %vm3763, %v4282, 0
    %v4347 = vsel %vm3763, %v4287, 0
    %v4350 = vsel %vm3763, %v4292, 0
    %4352 = vmatprep.subr.mxu0 0.0
    %4353 = vmatpush1.msra.mxu0 %v4296
    %4354 = vmatprep.subr.mxu0 0.0
    %4355 = vmatpush1.msra.mxu0 %v4297
    %4356 = vmatprep.subr.mxu0 0.0
    %4357 = vmatpush1.msra.mxu0 %v4298
    %4358 = vmatprep.subr.mxu0 0.0
    %4359 = vmatpush1.msra.mxu0 %v4299
    %4360 = vmatprep.subr.mxu0 0.0
    %4361 = vmatpush1.msra.mxu0 %v4300
    %4362 = vmatprep.subr.mxu0 0.0
    %4363 = vmatpush1.msra.mxu0 %v4301
    %4364 = vmatprep.subr.mxu0 0.0
    %4365 = vmatpush1.msra.mxu0 %v4302
    %4366 = vmatprep.subr.mxu0 0.0
    %4367 = vmatpush1.msra.mxu0 %v4303
    %4368 = vmatprep.subr.mxu0 0.0
    %4369 = vmatpush1.msra.mxu0 0.0
    %4370 = vmatprep.subr.mxu0 0.0
    %4371 = vmatpush1.msra.mxu0 0.0
    %4372 = vmatprep.subr.mxu0 0.0
    %4373 = vmatpush1.msra.mxu0 0.0
    %4374 = vmatprep.subr.mxu0 0.0
    %4375 = vmatpush1.msra.mxu0 0.0
    %4376 = vmatprep.subr.mxu0 0.0
    %4377 = vmatpush1.msra.mxu0 0.0
    %4378 = vmatprep.subr.mxu0 0.0
    %4379 = vmatpush1.msra.mxu0 0.0
    %4380 = vmatprep.subr.mxu0 0.0
    %4381 = vmatpush1.msra.mxu0 0.0
    %4382 = vmatprep.subr.mxu0 0.0
    %4383 = vmatpush1.msra.mxu0 0.0
    %4384 = vmatprep.subr.mxu0 0.0
    %4385 = vmatpush1.msra.mxu0 0.0
    %4386 = vmatprep.subr.mxu0 0.0
    %4387 = vmatpush1.msra.mxu0 0.0
    %4388 = vmatprep.subr.mxu0 0.0
    %4389 = vmatpush1.msra.mxu0 0.0
    %4390 = vmatprep.subr.mxu0 0.0
    %4391 = vmatpush1.msra.mxu0 0.0
    %4392 = vmatprep.subr.mxu0 0.0
    %4393 = vmatpush1.msra.mxu0 0.0
    %4394 = vmatprep.subr.mxu0 0.0
    %4395 = vmatpush1.msra.mxu0 0.0
    %4396 = vmatprep.subr.mxu0 0.0
    %4397 = vmatpush1.msra.mxu0 0.0
    %4398 = vmatprep.subr.mxu0 0.0
    %4399 = vmatpush1.msra.mxu0 0.0
    %4400 = vmatprep.subr.mxu0 0.0
    %4401 = vmatpush1.msra.mxu0 0.0
    %4402 = vmatprep.subr.mxu0 0.0
    %4403 = vmatpush1.msra.mxu0 0.0
    %4404 = vmatprep.subr.mxu0 0.0
    %4405 = vmatpush1.msra.mxu0 0.0
    %4406 = vmatprep.subr.mxu0 0.0
    %4407 = vmatpush1.msra.mxu0 0.0
    %4408 = vmatprep.subr.mxu0 0.0
    %4409 = vmatpush1.msra.mxu0 0.0
    %4410 = vmatprep.subr.mxu0 0.0
    %4411 = vmatpush1.msra.mxu0 0.0
    %4412 = vmatprep.subr.mxu0 0.0
    %4413 = vmatpush1.msra.mxu0 0.0
    %4414 = vmatprep.subr.mxu0 0.0
    %4415 = vmatpush1.msra.mxu0 0.0
    %4416 = vmatprep.mubr.f32.mxu0 0.0
    %4417 = vmatmul.mubr.f32.gmra.mrb[0].mxu0 %v4305
    %v4418 = vpop.f32.mrb[0].mxu0
    %v4419 = vadd.f32 0.0, %v4418
    %v4420 = vpop.f32.mrb[0].mxu0
    %4421 = vmatprep.mubr.f32.mxu0 0.0
    %4422 = vmatmul.mubr.f32.gmra.mrb[0].mxu0 %v4308
    %v4423 = vpop.f32.mrb[0].mxu0
    %v4424 = vadd.f32 0.0, %v4423
    %v4425 = vpop.f32.mrb[0].mxu0
    %4426 = vmatprep.mubr.f32.mxu0 0.0
    %4427 = vmatmul.mubr.f32.gmra.mrb[0].mxu0 %v4311
    %v4428 = vpop.f32.mrb[0].mxu0
    %v4429 = vadd.f32 0.0, %v4428
    %v4430 = vpop.f32.mrb[0].mxu0
    %4431 = vmatprep.mubr.f32.mxu0 0.0
    %4432 = vmatmul.mubr.f32.gmra.mrb[0].mxu0 %v4314
    %v4433 = vpop.f32.mrb[0].mxu0
    %v4434 = vadd.f32 0.0, %v4433
    %v4435 = vpop.f32.mrb[0].mxu0
    %4436 = vmatprep.mubr.f32.mxu0 0.0
    %4437 = vmatmul.mubr.f32.gmra.mrb[0].mxu0 %v4317
    %v4438 = vpop.f32.mrb[0].mxu0
    %v4439 = vadd.f32 0.0, %v4438
    %v4440 = vpop.f32.mrb[0].mxu0
    %4441 = vmatprep.mubr.f32.mxu0 0.0
    %4442 = vmatmul.mubr.f32.gmra.mrb[0].mxu0 %v4320
    %v4443 = vpop.f32.mrb[0].mxu0
    %v4444 = vadd.f32 0.0, %v4443
    %v4445 = vpop.f32.mrb[0].mxu0
    %4446 = vmatprep.mubr.f32.mxu0 0.0
    %4447 = vmatmul.mubr.f32.gmra.mrb[0].mxu0 %v4323
    %v4448 = vpop.f32.mrb[0].mxu0
    %v4449 = vadd.f32 0.0, %v4448
    %v4450 = vpop.f32.mrb[0].mxu0
    %4451 = vmatprep.mubr.f32.mxu0 0.0
    %4452 = vmatmul.mubr.f32.gmra.mrb[0].mxu0 %v4326
    %v4453 = vpop.f32.mrb[0].mxu0
    %v4454 = vadd.f32 0.0, %v4453
    %v4455 = vpop.f32.mrb[0].mxu0
    %4456 = vmatprep.mubr.f32.mxu0 0.0
    %4457 = vmatmul.mubr.f32.gmra.mrb[0].mxu0 %v4329
    %v4458 = vpop.f32.mrb[0].mxu0
    %v4459 = vadd.f32 0.0, %v4458
    %v4460 = vpop.f32.mrb[0].mxu0
    %4461 = vmatprep.mubr.f32.mxu0 0.0
    %4462 = vmatmul.mubr.f32.gmra.mrb[0].mxu0 %v4332
    %v4463 = vpop.f32.mrb[0].mxu0
    %v4464 = vadd.f32 0.0, %v4463
    %v4465 = vpop.f32.mrb[0].mxu0
    %4466 = vmatprep.mubr.f32.mxu0 0.0
    %4467 = vmatmul.mubr.f32.gmra.mrb[0].mxu0 %v4335
    %v4468 = vpop.f32.mrb[0].mxu0
    %v4469 = vadd.f32 0.0, %v4468
    %v4470 = vpop.f32.mrb[0].mxu0
    %4471 = vmatprep.mubr.f32.mxu0 0.0
    %4472 = vmatmul.mubr.f32.gmra.mrb[0].mxu0 %v4338
    %v4473 = vpop.f32.mrb[0].mxu0
    %v4474 = vadd.f32 0.0, %v4473
    %v4475 = vpop.f32.mrb[0].mxu0
    %4476 = vmatprep.mubr.f32.mxu0 0.0
    %4477 = vmatmul.mubr.f32.gmra.mrb[0].mxu0 %v4341
    %v4478 = vpop.f32.mrb[0].mxu0
    %v4479 = vadd.f32 0.0, %v4478
    %v4480 = vpop.f32.mrb[0].mxu0
    %4481 = vmatprep.mubr.f32.mxu0 0.0
    %4482 = vmatmul.mubr.f32.gmra.mrb[0].mxu0 %v4344
    %v4483 = vpop.f32.mrb[0].mxu0
    %v4484 = vadd.f32 0.0, %v4483
    %v4485 = vpop.f32.mrb[0].mxu0
    %4486 = vmatprep.mubr.f32.mxu0 0.0
    %4487 = vmatmul.mubr.f32.gmra.mrb[0].mxu0 %v4347
    %v4488 = vpop.f32.mrb[0].mxu0
    %v4489 = vadd.f32 0.0, %v4488
    %v4490 = vpop.f32.mrb[0].mxu0
    %4491 = vmatprep.mubr.f32.mxu0 0.0
    %4492 = vmatmul.mubr.f32.gmra.mrb[0].mxu0 %v4350
    %v4493 = vpop.f32.mrb[0].mxu0
    %v4494 = vadd.f32 0.0, %v4493
    %v4495 = vpop.f32.mrb[0].mxu0
    %4496 = vdwg.mxu0
    %v4497 = vadd.f32 %v4072, %v4419
    %v4498 = vadd.f32 %v4077, %v4424
    %v4499 = vadd.f32 %v4082, %v4429
    %v4500 = vadd.f32 %v4087, %v4434
    %v4501 = vadd.f32 %v4092, %v4439
    %v4502 = vadd.f32 %v4097, %v4444
    %v4503 = vadd.f32 %v4102, %v4449
    %v4504 = vadd.f32 %v4107, %v4454
    %v4505 = vadd.f32 %v4112, %v4459
    %v4506 = vadd.f32 %v4117, %v4464
    %v4507 = vadd.f32 %v4122, %v4469
    %v4508 = vadd.f32 %v4127, %v4474
    %v4509 = vadd.f32 %v4132, %v4479
    %v4510 = vadd.f32 %v4137, %v4484
    %v4511 = vadd.f32 %v4142, %v4489
    %v4512 = vadd.f32 %v4147, %v4494
    %4513 = vmatprep.subr.mxu0 0.0
    %4514 = vmatpush1.msra.mxu0 %v3440
    %4515 = vmatprep.subr.mxu0 0.0
    %4516 = vmatpush1.msra.mxu0 %v3441
    %4517 = vmatprep.subr.mxu0 0.0
    %4518 = vmatpush1.msra.mxu0 %v3442
    %4519 = vmatprep.subr.mxu0 0.0
    %4520 = vmatpush1.msra.mxu0 %v3443
    %4521 = vmatprep.subr.mxu0 0.0
    %4522 = vmatpush1.msra.mxu0 %v3444
    %4523 = vmatprep.subr.mxu0 0.0
    %4524 = vmatpush1.msra.mxu0 %v3445
    %4525 = vmatprep.subr.mxu0 0.0
    %4526 = vmatpush1.msra.mxu0 %v3446
    %4527 = vmatprep.subr.mxu0 0.0
    %4528 = vmatpush1.msra.mxu0 %v3447
    %4529 = vmatprep.subr.mxu0 0.0
    %4530 = vmatpush1.msra.mxu0 %v3448
    %4531 = vmatprep.subr.mxu0 0.0
    %4532 = vmatpush1.msra.mxu0 %v3449
    %4533 = vmatprep.subr.mxu0 0.0
    %4534 = vmatpush1.msra.mxu0 %v3450
    %4535 = vmatprep.subr.mxu0 0.0
    %4536 = vmatpush1.msra.mxu0 %v3451
    %4537 = vmatprep.subr.mxu0 0.0
    %4538 = vmatpush1.msra.mxu0 %v3452
    %4539 = vmatprep.subr.mxu0 0.0
    %4540 = vmatpush1.msra.mxu0 %v3453
    %4541 = vmatprep.subr.mxu0 0.0
    %4542 = vmatpush1.msra.mxu0 %v3454
    %4543 = vmatprep.subr.mxu0 0.0
    %4544 = vmatpush1.msra.mxu0 %v3455
    %4545 = vmatprep.subr.mxu0 0.0
    %4546 = vmatpush1.msra.mxu0 0.0
    %4547 = vmatprep.subr.mxu0 0.0
    %4548 = vmatpush1.msra.mxu0 0.0
    %4549 = vmatprep.subr.mxu0 0.0
    %4550 = vmatpush1.msra.mxu0 0.0
    %4551 = vmatprep.subr.mxu0 0.0
    %4552 = vmatpush1.msra.mxu0 0.0
    %4553 = vmatprep.subr.mxu0 0.0
    %4554 = vmatpush1.msra.mxu0 0.0
    %4555 = vmatprep.subr.mxu0 0.0
    %4556 = vmatpush1.msra.mxu0 0.0
    %4557 = vmatprep.subr.mxu0 0.0
    %4558 = vmatpush1.msra.mxu0 0.0
    %4559 = vmatprep.subr.mxu0 0.0
    %4560 = vmatpush1.msra.mxu0 0.0
    %4561 = vmatprep.subr.mxu0 0.0
    %4562 = vmatpush1.msra.mxu0 0.0
    %4563 = vmatprep.subr.mxu0 0.0
    %4564 = vmatpush1.msra.mxu0 0.0
    %4565 = vmatprep.subr.mxu0 0.0
    %4566 = vmatpush1.msra.mxu0 0.0
    %4567 = vmatprep.subr.mxu0 0.0
    %4568 = vmatpush1.msra.mxu0 0.0
    %4569 = vmatprep.subr.mxu0 0.0
    %4570 = vmatpush1.msra.mxu0 0.0
    %4571 = vmatprep.subr.mxu0 0.0
    %4572 = vmatpush1.msra.mxu0 0.0
    %4573 = vmatprep.subr.mxu0 0.0
    %4574 = vmatpush1.msra.mxu0 0.0
    %4575 = vmatprep.subr.mxu0 0.0
    %4576 = vmatpush1.msra.mxu0 0.0
    %4577 = vmatprep.mubr.f32.mxu0 0.0
    %4578 = vmatmul.mubr.f32.gmra.mrb[0].mxu0 %v1180
    %v4579 = vpop.f32.mrb[0].mxu0
    %v4580 = vadd.f32 0.0, %v4579
    %v4581 = vpop.f32.mrb[0].mxu0
    %4582 = vmatprep.mubr.f32.mxu0 0.0
    %4583 = vmatmul.mubr.f32.gmra.mrb[0].mxu0 %v1181
    %v4584 = vpop.f32.mrb[0].mxu0
    %v4585 = vadd.f32 0.0, %v4584
    %v4586 = vpop.f32.mrb[0].mxu0
    %4587 = vmatprep.mubr.f32.mxu0 0.0
    %4588 = vmatmul.mubr.f32.gmra.mrb[0].mxu0 %v1182
    %v4589 = vpop.f32.mrb[0].mxu0
    %v4590 = vadd.f32 0.0, %v4589
    %v4591 = vpop.f32.mrb[0].mxu0
    %4592 = vmatprep.mubr.f32.mxu0 0.0
    %4593 = vmatmul.mubr.f32.gmra.mrb[0].mxu0 %v1183
    %v4594 = vpop.f32.mrb[0].mxu0
    %v4595 = vadd.f32 0.0, %v4594
    %v4596 = vpop.f32.mrb[0].mxu0
    %4597 = vmatprep.mubr.f32.mxu0 0.0
    %4598 = vmatmul.mubr.f32.gmra.mrb[0].mxu0 %v1184
    %v4599 = vpop.f32.mrb[0].mxu0
    %v4600 = vadd.f32 0.0, %v4599
    %v4601 = vpop.f32.mrb[0].mxu0
    %4602 = vmatprep.mubr.f32.mxu0 0.0
    %4603 = vmatmul.mubr.f32.gmra.mrb[0].mxu0 %v1185
    %v4604 = vpop.f32.mrb[0].mxu0
    %v4605 = vadd.f32 0.0, %v4604
    %v4606 = vpop.f32.mrb[0].mxu0
    %4607 = vmatprep.mubr.f32.mxu0 0.0
    %4608 = vmatmul.mubr.f32.gmra.mrb[0].mxu0 %v1186
    %v4609 = vpop.f32.mrb[0].mxu0
    %v4610 = vadd.f32 0.0, %v4609
    %v4611 = vpop.f32.mrb[0].mxu0
    %4612 = vmatprep.mubr.f32.mxu0 0.0
    %4613 = vmatmul.mubr.f32.gmra.mrb[0].mxu0 %v1187
    %v4614 = vpop.f32.mrb[0].mxu0
    %v4615 = vadd.f32 0.0, %v4614
    %v4616 = vpop.f32.mrb[0].mxu0
    %4617 = vmatprep.mubr.f32.mxu0 0.0
    %4618 = vmatmul.mubr.f32.gmra.mrb[0].mxu0 %v1188
    %v4619 = vpop.f32.mrb[0].mxu0
    %v4620 = vadd.f32 0.0, %v4619
    %v4621 = vpop.f32.mrb[0].mxu0
    %4622 = vmatprep.mubr.f32.mxu0 0.0
    %4623 = vmatmul.mubr.f32.gmra.mrb[0].mxu0 %v1189
    %v4624 = vpop.f32.mrb[0].mxu0
    %v4625 = vadd.f32 0.0, %v4624
    %v4626 = vpop.f32.mrb[0].mxu0
    %4627 = vmatprep.mubr.f32.mxu0 0.0
    %4628 = vmatmul.mubr.f32.gmra.mrb[0].mxu0 %v1190
    %v4629 = vpop.f32.mrb[0].mxu0
    %v4630 = vadd.f32 0.0, %v4629
    %v4631 = vpop.f32.mrb[0].mxu0
    %4632 = vmatprep.mubr.f32.mxu0 0.0
    %4633 = vmatmul.mubr.f32.gmra.mrb[0].mxu0 %v1191
    %v4634 = vpop.f32.mrb[0].mxu0
    %v4635 = vadd.f32 0.0, %v4634
    %v4636 = vpop.f32.mrb[0].mxu0
    %4637 = vmatprep.mubr.f32.mxu0 0.0
    %4638 = vmatmul.mubr.f32.gmra.mrb[0].mxu0 %v1192
    %v4639 = vpop.f32.mrb[0].mxu0
    %v4640 = vadd.f32 0.0, %v4639
    %v4641 = vpop.f32.mrb[0].mxu0
    %4642 = vmatprep.mubr.f32.mxu0 0.0
    %4643 = vmatmul.mubr.f32.gmra.mrb[0].mxu0 %v1193
    %v4644 = vpop.f32.mrb[0].mxu0
    %v4645 = vadd.f32 0.0, %v4644
    %v4646 = vpop.f32.mrb[0].mxu0
    %4647 = vmatprep.mubr.f32.mxu0 0.0
    %4648 = vmatmul.mubr.f32.gmra.mrb[0].mxu0 %v1194
    %v4649 = vpop.f32.mrb[0].mxu0
    %v4650 = vadd.f32 0.0, %v4649
    %v4651 = vpop.f32.mrb[0].mxu0
    %4652 = vmatprep.mubr.f32.mxu0 0.0
    %4653 = vmatmul.mubr.f32.gmra.mrb[0].mxu0 %v1195
    %v4654 = vpop.f32.mrb[0].mxu0
    %v4655 = vadd.f32 0.0, %v4654
    %v4656 = vpop.f32.mrb[0].mxu0
    %4657 = vdwg.mxu0
    %s4658 = scalar_lea.vmem [#allocation4], 192
    %v4659 = vld [vmem:[%s4658] sm:$0xff]
    %v4660 = vld [vmem:[%s4658 + $0x8] sm:$0xff]
    %v4661 = vld [vmem:[%s4658 + $0x10] sm:$0xff]
    %v4662 = vld [vmem:[%s4658 + $0x18] sm:$0xff]
    %v4663 = vld [vmem:[%s4658 + $0x20] sm:$0xff]
    %v4664 = vld [vmem:[%s4658 + $0x28] sm:$0xff]
    %v4665 = vld [vmem:[%s4658 + $0x30] sm:$0xff]
    %v4666 = vld [vmem:[%s4658 + $0x38] sm:$0xff]
    %v4668 = vsel %vm3763, %v4580, 0
    %v4671 = vsel %vm3763, %v4585, 0
    %v4674 = vsel %vm3763, %v4590, 0
    %v4677 = vsel %vm3763, %v4595, 0
    %v4680 = vsel %vm3763, %v4600, 0
    %v4683 = vsel %vm3763, %v4605, 0
    %v4686 = vsel %vm3763, %v4610, 0
    %v4689 = vsel %vm3763, %v4615, 0
    %v4692 = vsel %vm3763, %v4620, 0
    %v4695 = vsel %vm3763, %v4625, 0
    %v4698 = vsel %vm3763, %v4630, 0
    %v4701 = vsel %vm3763, %v4635, 0
    %v4704 = vsel %vm3763, %v4640, 0
    %v4707 = vsel %vm3763, %v4645, 0
    %v4710 = vsel %vm3763, %v4650, 0
    %v4713 = vsel %vm3763, %v4655, 0
    %4715 = vmatprep.subr.mxu0 0.0
    %4716 = vmatpush1.msra.mxu0 %v4659
    %4717 = vmatprep.subr.mxu0 0.0
    %4718 = vmatpush1.msra.mxu0 %v4660
    %4719 = vmatprep.subr.mxu0 0.0
    %4720 = vmatpush1.msra.mxu0 %v4661
    %4721 = vmatprep.subr.mxu0 0.0
    %4722 = vmatpush1.msra.mxu0 %v4662
    %4723 = vmatprep.subr.mxu0 0.0
    %4724 = vmatpush1.msra.mxu0 %v4663
    %4725 = vmatprep.subr.mxu0 0.0
    %4726 = vmatpush1.msra.mxu0 %v4664
    %4727 = vmatprep.subr.mxu0 0.0
    %4728 = vmatpush1.msra.mxu0 %v4665
    %4729 = vmatprep.subr.mxu0 0.0
    %4730 = vmatpush1.msra.mxu0 %v4666
    %4731 = vmatprep.subr.mxu0 0.0
    %4732 = vmatpush1.msra.mxu0 0.0
    %4733 = vmatprep.subr.mxu0 0.0
    %4734 = vmatpush1.msra.mxu0 0.0
    %4735 = vmatprep.subr.mxu0 0.0
    %4736 = vmatpush1.msra.mxu0 0.0
    %4737 = vmatprep.subr.mxu0 0.0
    %4738 = vmatpush1.msra.mxu0 0.0
    %4739 = vmatprep.subr.mxu0 0.0
    %4740 = vmatpush1.msra.mxu0 0.0
    %4741 = vmatprep.subr.mxu0 0.0
    %4742 = vmatpush1.msra.mxu0 0.0
    %4743 = vmatprep.subr.mxu0 0.0
    %4744 = vmatpush1.msra.mxu0 0.0
    %4745 = vmatprep.subr.mxu0 0.0
    %4746 = vmatpush1.msra.mxu0 0.0
    %4747 = vmatprep.subr.mxu0 0.0
    %4748 = vmatpush1.msra.mxu0 0.0
    %4749 = vmatprep.subr.mxu0 0.0
    %4750 = vmatpush1.msra.mxu0 0.0
    %4751 = vmatprep.subr.mxu0 0.0
    %4752 = vmatpush1.msra.mxu0 0.0
    %4753 = vmatprep.subr.mxu0 0.0
    %4754 = vmatpush1.msra.mxu0 0.0
    %4755 = vmatprep.subr.mxu0 0.0
    %4756 = vmatpush1.msra.mxu0 0.0
    %4757 = vmatprep.subr.mxu0 0.0
    %4758 = vmatpush1.msra.mxu0 0.0
    %4759 = vmatprep.subr.mxu0 0.0
    %4760 = vmatpush1.msra.mxu0 0.0
    %4761 = vmatprep.subr.mxu0 0.0
    %4762 = vmatpush1.msra.mxu0 0.0
    %4763 = vmatprep.subr.mxu0 0.0
    %4764 = vmatpush1.msra.mxu0 0.0
    %4765 = vmatprep.subr.mxu0 0.0
    %4766 = vmatpush1.msra.mxu0 0.0
    %4767 = vmatprep.subr.mxu0 0.0
    %4768 = vmatpush1.msra.mxu0 0.0
    %4769 = vmatprep.subr.mxu0 0.0
    %4770 = vmatpush1.msra.mxu0 0.0
    %4771 = vmatprep.subr.mxu0 0.0
    %4772 = vmatpush1.msra.mxu0 0.0
    %4773 = vmatprep.subr.mxu0 0.0
    %4774 = vmatpush1.msra.mxu0 0.0
    %4775 = vmatprep.subr.mxu0 0.0
    %4776 = vmatpush1.msra.mxu0 0.0
    %4777 = vmatprep.subr.mxu0 0.0
    %4778 = vmatpush1.msra.mxu0 0.0
    %4779 = vmatprep.mubr.f32.mxu0 0.0
    %4780 = vmatmul.mubr.f32.gmra.mrb[0].mxu0 %v4668
    %v4781 = vpop.f32.mrb[0].mxu0
    %v4782 = vadd.f32 0.0, %v4781
    %v4783 = vpop.f32.mrb[0].mxu0
    %4784 = vmatprep.mubr.f32.mxu0 0.0
    %4785 = vmatmul.mubr.f32.gmra.mrb[0].mxu0 %v4671
    %v4786 = vpop.f32.mrb[0].mxu0
    %v4787 = vadd.f32 0.0, %v4786
    %v4788 = vpop.f32.mrb[0].mxu0
    %4789 = vmatprep.mubr.f32.mxu0 0.0
    %4790 = vmatmul.mubr.f32.gmra.mrb[0].mxu0 %v4674
    %v4791 = vpop.f32.mrb[0].mxu0
    %v4792 = vadd.f32 0.0, %v4791
    %v4793 = vpop.f32.mrb[0].mxu0
    %4794 = vmatprep.mubr.f32.mxu0 0.0
    %4795 = vmatmul.mubr.f32.gmra.mrb[0].mxu0 %v4677
    %v4796 = vpop.f32.mrb[0].mxu0
    %v4797 = vadd.f32 0.0, %v4796
    %v4798 = vpop.f32.mrb[0].mxu0
    %4799 = vmatprep.mubr.f32.mxu0 0.0
    %4800 = vmatmul.mubr.f32.gmra.mrb[0].mxu0 %v4680
    %v4801 = vpop.f32.mrb[0].mxu0
    %v4802 = vadd.f32 0.0, %v4801
    %v4803 = vpop.f32.mrb[0].mxu0
    %4804 = vmatprep.mubr.f32.mxu0 0.0
    %4805 = vmatmul.mubr.f32.gmra.mrb[0].mxu0 %v4683
    %v4806 = vpop.f32.mrb[0].mxu0
    %v4807 = vadd.f32 0.0, %v4806
    %v4808 = vpop.f32.mrb[0].mxu0
    %4809 = vmatprep.mubr.f32.mxu0 0.0
    %4810 = vmatmul.mubr.f32.gmra.mrb[0].mxu0 %v4686
    %v4811 = vpop.f32.mrb[0].mxu0
    %v4812 = vadd.f32 0.0, %v4811
    %v4813 = vpop.f32.mrb[0].mxu0
    %4814 = vmatprep.mubr.f32.mxu0 0.0
    %4815 = vmatmul.mubr.f32.gmra.mrb[0].mxu0 %v4689
    %v4816 = vpop.f32.mrb[0].mxu0
    %v4817 = vadd.f32 0.0, %v4816
    %v4818 = vpop.f32.mrb[0].mxu0
    %4819 = vmatprep.mubr.f32.mxu0 0.0
    %4820 = vmatmul.mubr.f32.gmra.mrb[0].mxu0 %v4692
    %v4821 = vpop.f32.mrb[0].mxu0
    %v4822 = vadd.f32 0.0, %v4821
    %v4823 = vpop.f32.mrb[0].mxu0
    %4824 = vmatprep.mubr.f32.mxu0 0.0
    %4825 = vmatmul.mubr.f32.gmra.mrb[0].mxu0 %v4695
    %v4826 = vpop.f32.mrb[0].mxu0
    %v4827 = vadd.f32 0.0, %v4826
    %v4828 = vpop.f32.mrb[0].mxu0
    %4829 = vmatprep.mubr.f32.mxu0 0.0
    %4830 = vmatmul.mubr.f32.gmra.mrb[0].mxu0 %v4698
    %v4831 = vpop.f32.mrb[0].mxu0
    %v4832 = vadd.f32 0.0, %v4831
    %v4833 = vpop.f32.mrb[0].mxu0
    %4834 = vmatprep.mubr.f32.mxu0 0.0
    %4835 = vmatmul.mubr.f32.gmra.mrb[0].mxu0 %v4701
    %v4836 = vpop.f32.mrb[0].mxu0
    %v4837 = vadd.f32 0.0, %v4836
    %v4838 = vpop.f32.mrb[0].mxu0
    %4839 = vmatprep.mubr.f32.mxu0 0.0
    %4840 = vmatmul.mubr.f32.gmra.mrb[0].mxu0 %v4704
    %v4841 = vpop.f32.mrb[0].mxu0
    %v4842 = vadd.f32 0.0, %v4841
    %v4843 = vpop.f32.mrb[0].mxu0
    %4844 = vmatprep.mubr.f32.mxu0 0.0
    %4845 = vmatmul.mubr.f32.gmra.mrb[0].mxu0 %v4707
    %v4846 = vpop.f32.mrb[0].mxu0
    %v4847 = vadd.f32 0.0, %v4846
    %v4848 = vpop.f32.mrb[0].mxu0
    %4849 = vmatprep.mubr.f32.mxu0 0.0
    %4850 = vmatmul.mubr.f32.gmra.mrb[0].mxu0 %v4710
    %v4851 = vpop.f32.mrb[0].mxu0
    %v4852 = vadd.f32 0.0, %v4851
    %v4853 = vpop.f32.mrb[0].mxu0
    %4854 = vmatprep.mubr.f32.mxu0 0.0
    %4855 = vmatmul.mubr.f32.gmra.mrb[0].mxu0 %v4713
    %v4856 = vpop.f32.mrb[0].mxu0
    %v4857 = vadd.f32 0.0, %v4856
    %v4858 = vpop.f32.mrb[0].mxu0
    %4859 = vdwg.mxu0
    %v4860 = vadd.f32 %v4497, %v4782
    %v4861 = vadd.f32 %v4498, %v4787
    %v4862 = vadd.f32 %v4499, %v4792
    %v4863 = vadd.f32 %v4500, %v4797
    %v4864 = vadd.f32 %v4501, %v4802
    %v4865 = vadd.f32 %v4502, %v4807
    %v4866 = vadd.f32 %v4503, %v4812
    %v4867 = vadd.f32 %v4504, %v4817
    %v4868 = vadd.f32 %v4505, %v4822
    %v4869 = vadd.f32 %v4506, %v4827
    %v4870 = vadd.f32 %v4507, %v4832
    %v4871 = vadd.f32 %v4508, %v4837
    %v4872 = vadd.f32 %v4509, %v4842
    %v4873 = vadd.f32 %v4510, %v4847
    %v4874 = vadd.f32 %v4511, %v4852
    %v4875 = vadd.f32 %v4512, %v4857
    %4876 = vmatprep.subr.mxu0 0.0
    %4877 = vmatpush1.msra.mxu0 %v3440
    %4878 = vmatprep.subr.mxu0 0.0
    %4879 = vmatpush1.msra.mxu0 %v3441
    %4880 = vmatprep.subr.mxu0 0.0
    %4881 = vmatpush1.msra.mxu0 %v3442
    %4882 = vmatprep.subr.mxu0 0.0
    %4883 = vmatpush1.msra.mxu0 %v3443
    %4884 = vmatprep.subr.mxu0 0.0
    %4885 = vmatpush1.msra.mxu0 %v3444
    %4886 = vmatprep.subr.mxu0 0.0
    %4887 = vmatpush1.msra.mxu0 %v3445
    %4888 = vmatprep.subr.mxu0 0.0
    %4889 = vmatpush1.msra.mxu0 %v3446
    %4890 = vmatprep.subr.mxu0 0.0
    %4891 = vmatpush1.msra.mxu0 %v3447
    %4892 = vmatprep.subr.mxu0 0.0
    %4893 = vmatpush1.msra.mxu0 %v3448
    %4894 = vmatprep.subr.mxu0 0.0
    %4895 = vmatpush1.msra.mxu0 %v3449
    %4896 = vmatprep.subr.mxu0 0.0
    %4897 = vmatpush1.msra.mxu0 %v3450
    %4898 = vmatprep.subr.mxu0 0.0
    %4899 = vmatpush1.msra.mxu0 %v3451
    %4900 = vmatprep.subr.mxu0 0.0
    %4901 = vmatpush1.msra.mxu0 %v3452
    %4902 = vmatprep.subr.mxu0 0.0
    %4903 = vmatpush1.msra.mxu0 %v3453
    %4904 = vmatprep.subr.mxu0 0.0
    %4905 = vmatpush1.msra.mxu0 %v3454
    %4906 = vmatprep.subr.mxu0 0.0
    %4907 = vmatpush1.msra.mxu0 %v3455
    %4908 = vmatprep.subr.mxu0 0.0
    %4909 = vmatpush1.msra.mxu0 0.0
    %4910 = vmatprep.subr.mxu0 0.0
    %4911 = vmatpush1.msra.mxu0 0.0
    %4912 = vmatprep.subr.mxu0 0.0
    %4913 = vmatpush1.msra.mxu0 0.0
    %4914 = vmatprep.subr.mxu0 0.0
    %4915 = vmatpush1.msra.mxu0 0.0
    %4916 = vmatprep.subr.mxu0 0.0
    %4917 = vmatpush1.msra.mxu0 0.0
    %4918 = vmatprep.subr.mxu0 0.0
    %4919 = vmatpush1.msra.mxu0 0.0
    %4920 = vmatprep.subr.mxu0 0.0
    %4921 = vmatpush1.msra.mxu0 0.0
    %4922 = vmatprep.subr.mxu0 0.0
    %4923 = vmatpush1.msra.mxu0 0.0
    %4924 = vmatprep.subr.mxu0 0.0
    %4925 = vmatpush1.msra.mxu0 0.0
    %4926 = vmatprep.subr.mxu0 0.0
    %4927 = vmatpush1.msra.mxu0 0.0
    %4928 = vmatprep.subr.mxu0 0.0
    %4929 = vmatpush1.msra.mxu0 0.0
    %4930 = vmatprep.subr.mxu0 0.0
    %4931 = vmatpush1.msra.mxu0 0.0
    %4932 = vmatprep.subr.mxu0 0.0
    %4933 = vmatpush1.msra.mxu0 0.0
    %4934 = vmatprep.subr.mxu0 0.0
    %4935 = vmatpush1.msra.mxu0 0.0
    %4936 = vmatprep.subr.mxu0 0.0
    %4937 = vmatpush1.msra.mxu0 0.0
    %4938 = vmatprep.subr.mxu0 0.0
    %4939 = vmatpush1.msra.mxu0 0.0
    %4940 = vmatprep.mubr.f32.mxu0 0.0
    %4941 = vmatmul.mubr.f32.gmra.mrb[0].mxu0 %v1553
    %v4942 = vpop.f32.mrb[0].mxu0
    %v4943 = vadd.f32 0.0, %v4942
    %v4944 = vpop.f32.mrb[0].mxu0
    %4945 = vmatprep.mubr.f32.mxu0 0.0
    %4946 = vmatmul.mubr.f32.gmra.mrb[0].mxu0 %v1554
    %v4947 = vpop.f32.mrb[0].mxu0
    %v4948 = vadd.f32 0.0, %v4947
    %v4949 = vpop.f32.mrb[0].mxu0
    %4950 = vmatprep.mubr.f32.mxu0 0.0
    %4951 = vmatmul.mubr.f32.gmra.mrb[0].mxu0 %v1555
    %v4952 = vpop.f32.mrb[0].mxu0
    %v4953 = vadd.f32 0.0, %v4952
    %v4954 = vpop.f32.mrb[0].mxu0
    %4955 = vmatprep.mubr.f32.mxu0 0.0
    %4956 = vmatmul.mubr.f32.gmra.mrb[0].mxu0 %v1556
    %v4957 = vpop.f32.mrb[0].mxu0
    %v4958 = vadd.f32 0.0, %v4957
    %v4959 = vpop.f32.mrb[0].mxu0
    %4960 = vmatprep.mubr.f32.mxu0 0.0
    %4961 = vmatmul.mubr.f32.gmra.mrb[0].mxu0 %v1557
    %v4962 = vpop.f32.mrb[0].mxu0
    %v4963 = vadd.f32 0.0, %v4962
    %v4964 = vpop.f32.mrb[0].mxu0
    %4965 = vmatprep.mubr.f32.mxu0 0.0
    %4966 = vmatmul.mubr.f32.gmra.mrb[0].mxu0 %v1558
    %v4967 = vpop.f32.mrb[0].mxu0
    %v4968 = vadd.f32 0.0, %v4967
    %v4969 = vpop.f32.mrb[0].mxu0
    %4970 = vmatprep.mubr.f32.mxu0 0.0
    %4971 = vmatmul.mubr.f32.gmra.mrb[0].mxu0 %v1559
    %v4972 = vpop.f32.mrb[0].mxu0
    %v4973 = vadd.f32 0.0, %v4972
    %v4974 = vpop.f32.mrb[0].mxu0
    %4975 = vmatprep.mubr.f32.mxu0 0.0
    %4976 = vmatmul.mubr.f32.gmra.mrb[0].mxu0 %v1560
    %v4977 = vpop.f32.mrb[0].mxu0
    %v4978 = vadd.f32 0.0, %v4977
    %v4979 = vpop.f32.mrb[0].mxu0
    %4980 = vmatprep.mubr.f32.mxu0 0.0
    %4981 = vmatmul.mubr.f32.gmra.mrb[0].mxu0 %v1561
    %v4982 = vpop.f32.mrb[0].mxu0
    %v4983 = vadd.f32 0.0, %v4982
    %v4984 = vpop.f32.mrb[0].mxu0
    %4985 = vmatprep.mubr.f32.mxu0 0.0
    %4986 = vmatmul.mubr.f32.gmra.mrb[0].mxu0 %v1562
    %v4987 = vpop.f32.mrb[0].mxu0
    %v4988 = vadd.f32 0.0, %v4987
    %v4989 = vpop.f32.mrb[0].mxu0
    %4990 = vmatprep.mubr.f32.mxu0 0.0
    %4991 = vmatmul.mubr.f32.gmra.mrb[0].mxu0 %v1563
    %v4992 = vpop.f32.mrb[0].mxu0
    %v4993 = vadd.f32 0.0, %v4992
    %v4994 = vpop.f32.mrb[0].mxu0
    %4995 = vmatprep.mubr.f32.mxu0 0.0
    %4996 = vmatmul.mubr.f32.gmra.mrb[0].mxu0 %v1564
    %v4997 = vpop.f32.mrb[0].mxu0
    %v4998 = vadd.f32 0.0, %v4997
    %v4999 = vpop.f32.mrb[0].mxu0
    %5000 = vmatprep.mubr.f32.mxu0 0.0
    %5001 = vmatmul.mubr.f32.gmra.mrb[0].mxu0 %v1565
    %v5002 = vpop.f32.mrb[0].mxu0
    %v5003 = vadd.f32 0.0, %v5002
    %v5004 = vpop.f32.mrb[0].mxu0
    %5005 = vmatprep.mubr.f32.mxu0 0.0
    %5006 = vmatmul.mubr.f32.gmra.mrb[0].mxu0 %v1566
    %v5007 = vpop.f32.mrb[0].mxu0
    %v5008 = vadd.f32 0.0, %v5007
    %v5009 = vpop.f32.mrb[0].mxu0
    %5010 = vmatprep.mubr.f32.mxu0 0.0
    %5011 = vmatmul.mubr.f32.gmra.mrb[0].mxu0 %v1567
    %v5012 = vpop.f32.mrb[0].mxu0
    %v5013 = vadd.f32 0.0, %v5012
    %v5014 = vpop.f32.mrb[0].mxu0
    %5015 = vmatprep.mubr.f32.mxu0 0.0
    %5016 = vmatmul.mubr.f32.gmra.mrb[0].mxu0 %v1568
    %v5017 = vpop.f32.mrb[0].mxu0
    %v5018 = vadd.f32 0.0, %v5017
    %v5019 = vpop.f32.mrb[0].mxu0
    %5020 = vdwg.mxu0
    %s5021 = scalar_lea.vmem [#allocation4], 256
    %v5022 = vld [vmem:[%s5021] sm:$0xff]
    %v5023 = vld [vmem:[%s5021 + $0x8] sm:$0xff]
    %v5024 = vld [vmem:[%s5021 + $0x10] sm:$0xff]
    %v5025 = vld [vmem:[%s5021 + $0x18] sm:$0xff]
    %v5026 = vld [vmem:[%s5021 + $0x20] sm:$0xff]
    %v5027 = vld [vmem:[%s5021 + $0x28] sm:$0xff]
    %v5028 = vld [vmem:[%s5021 + $0x30] sm:$0xff]
    %v5029 = vld [vmem:[%s5021 + $0x38] sm:$0xff]
    %v5031 = vsel %vm3763, %v4943, 0
    %v5034 = vsel %vm3763, %v4948, 0
    %v5037 = vsel %vm3763, %v4953, 0
    %v5040 = vsel %vm3763, %v4958, 0
    %v5043 = vsel %vm3763, %v4963, 0
    %v5046 = vsel %vm3763, %v4968, 0
    %v5049 = vsel %vm3763, %v4973, 0
    %v5052 = vsel %vm3763, %v4978, 0
    %v5055 = vsel %vm3763, %v4983, 0
    %v5058 = vsel %vm3763, %v4988, 0
    %v5061 = vsel %vm3763, %v4993, 0
    %v5064 = vsel %vm3763, %v4998, 0
    %v5067 = vsel %vm3763, %v5003, 0
    %v5070 = vsel %vm3763, %v5008, 0
    %v5073 = vsel %vm3763, %v5013, 0
    %v5076 = vsel %vm3763, %v5018, 0
    %5078 = vmatprep.subr.mxu0 0.0
    %5079 = vmatpush1.msra.mxu0 %v5022
    %5080 = vmatprep.subr.mxu0 0.0
    %5081 = vmatpush1.msra.mxu0 %v5023
    %5082 = vmatprep.subr.mxu0 0.0
    %5083 = vmatpush1.msra.mxu0 %v5024
    %5084 = vmatprep.subr.mxu0 0.0
    %5085 = vmatpush1.msra.mxu0 %v5025
    %5086 = vmatprep.subr.mxu0 0.0
    %5087 = vmatpush1.msra.mxu0 %v5026
    %5088 = vmatprep.subr.mxu0 0.0
    %5089 = vmatpush1.msra.mxu0 %v5027
    %5090 = vmatprep.subr.mxu0 0.0
    %5091 = vmatpush1.msra.mxu0 %v5028
    %5092 = vmatprep.subr.mxu0 0.0
    %5093 = vmatpush1.msra.mxu0 %v5029
    %5094 = vmatprep.subr.mxu0 0.0
    %5095 = vmatpush1.msra.mxu0 0.0
    %5096 = vmatprep.subr.mxu0 0.0
    %5097 = vmatpush1.msra.mxu0 0.0
    %5098 = vmatprep.subr.mxu0 0.0
    %5099 = vmatpush1.msra.mxu0 0.0
    %5100 = vmatprep.subr.mxu0 0.0
    %5101 = vmatpush1.msra.mxu0 0.0
    %5102 = vmatprep.subr.mxu0 0.0
    %5103 = vmatpush1.msra.mxu0 0.0
    %5104 = vmatprep.subr.mxu0 0.0
    %5105 = vmatpush1.msra.mxu0 0.0
    %5106 = vmatprep.subr.mxu0 0.0
    %5107 = vmatpush1.msra.mxu0 0.0
    %5108 = vmatprep.subr.mxu0 0.0
    %5109 = vmatpush1.msra.mxu0 0.0
    %5110 = vmatprep.subr.mxu0 0.0
    %5111 = vmatpush1.msra.mxu0 0.0
    %5112 = vmatprep.subr.mxu0 0.0
    %5113 = vmatpush1.msra.mxu0 0.0
    %5114 = vmatprep.subr.mxu0 0.0
    %5115 = vmatpush1.msra.mxu0 0.0
    %5116 = vmatprep.subr.mxu0 0.0
    %5117 = vmatpush1.msra.mxu0 0.0
    %5118 = vmatprep.subr.mxu0 0.0
    %5119 = vmatpush1.msra.mxu0 0.0
    %5120 = vmatprep.subr.mxu0 0.0
    %5121 = vmatpush1.msra.mxu0 0.0
    %5122 = vmatprep.subr.mxu0 0.0
    %5123 = vmatpush1.msra.mxu0 0.0
    %5124 = vmatprep.subr.mxu0 0.0
    %5125 = vmatpush1.msra.mxu0 0.0
    %5126 = vmatprep.subr.mxu0 0.0
    %5127 = vmatpush1.msra.mxu0 0.0
    %5128 = vmatprep.subr.mxu0 0.0
    %5129 = vmatpush1.msra.mxu0 0.0
    %5130 = vmatprep.subr.mxu0 0.0
    %5131 = vmatpush1.msra.mxu0 0.0
    %5132 = vmatprep.subr.mxu0 0.0
    %5133 = vmatpush1.msra.mxu0 0.0
    %5134 = vmatprep.subr.mxu0 0.0
    %5135 = vmatpush1.msra.mxu0 0.0
    %5136 = vmatprep.subr.mxu0 0.0
    %5137 = vmatpush1.msra.mxu0 0.0
    %5138 = vmatprep.subr.mxu0 0.0
    %5139 = vmatpush1.msra.mxu0 0.0
    %5140 = vmatprep.subr.mxu0 0.0
    %5141 = vmatpush1.msra.mxu0 0.0
    %5142 = vmatprep.mubr.f32.mxu0 0.0
    %5143 = vmatmul.mubr.f32.gmra.mrb[0].mxu0 %v5031
    %v5144 = vpop.f32.mrb[0].mxu0
    %v5145 = vadd.f32 0.0, %v5144
    %v5146 = vpop.f32.mrb[0].mxu0
    %5147 = vmatprep.mubr.f32.mxu0 0.0
    %5148 = vmatmul.mubr.f32.gmra.mrb[0].mxu0 %v5034
    %v5149 = vpop.f32.mrb[0].mxu0
    %v5150 = vadd.f32 0.0, %v5149
    %v5151 = vpop.f32.mrb[0].mxu0
    %5152 = vmatprep.mubr.f32.mxu0 0.0
    %5153 = vmatmul.mubr.f32.gmra.mrb[0].mxu0 %v5037
    %v5154 = vpop.f32.mrb[0].mxu0
    %v5155 = vadd.f32 0.0, %v5154
    %v5156 = vpop.f32.mrb[0].mxu0
    %5157 = vmatprep.mubr.f32.mxu0 0.0
    %5158 = vmatmul.mubr.f32.gmra.mrb[0].mxu0 %v5040
    %v5159 = vpop.f32.mrb[0].mxu0
    %v5160 = vadd.f32 0.0, %v5159
    %v5161 = vpop.f32.mrb[0].mxu0
    %5162 = vmatprep.mubr.f32.mxu0 0.0
    %5163 = vmatmul.mubr.f32.gmra.mrb[0].mxu0 %v5043
    %v5164 = vpop.f32.mrb[0].mxu0
    %v5165 = vadd.f32 0.0, %v5164
    %v5166 = vpop.f32.mrb[0].mxu0
    %5167 = vmatprep.mubr.f32.mxu0 0.0
    %5168 = vmatmul.mubr.f32.gmra.mrb[0].mxu0 %v5046
    %v5169 = vpop.f32.mrb[0].mxu0
    %v5170 = vadd.f32 0.0, %v5169
    %v5171 = vpop.f32.mrb[0].mxu0
    %5172 = vmatprep.mubr.f32.mxu0 0.0
    %5173 = vmatmul.mubr.f32.gmra.mrb[0].mxu0 %v5049
    %v5174 = vpop.f32.mrb[0].mxu0
    %v5175 = vadd.f32 0.0, %v5174
    %v5176 = vpop.f32.mrb[0].mxu0
    %5177 = vmatprep.mubr.f32.mxu0 0.0
    %5178 = vmatmul.mubr.f32.gmra.mrb[0].mxu0 %v5052
    %v5179 = vpop.f32.mrb[0].mxu0
    %v5180 = vadd.f32 0.0, %v5179
    %v5181 = vpop.f32.mrb[0].mxu0
    %5182 = vmatprep.mubr.f32.mxu0 0.0
    %5183 = vmatmul.mubr.f32.gmra.mrb[0].mxu0 %v5055
    %v5184 = vpop.f32.mrb[0].mxu0
    %v5185 = vadd.f32 0.0, %v5184
    %v5186 = vpop.f32.mrb[0].mxu0
    %5187 = vmatprep.mubr.f32.mxu0 0.0
    %5188 = vmatmul.mubr.f32.gmra.mrb[0].mxu0 %v5058
    %v5189 = vpop.f32.mrb[0].mxu0
    %v5190 = vadd.f32 0.0, %v5189
    %v5191 = vpop.f32.mrb[0].mxu0
    %5192 = vmatprep.mubr.f32.mxu0 0.0
    %5193 = vmatmul.mubr.f32.gmra.mrb[0].mxu0 %v5061
    %v5194 = vpop.f32.mrb[0].mxu0
    %v5195 = vadd.f32 0.0, %v5194
    %v5196 = vpop.f32.mrb[0].mxu0
    %5197 = vmatprep.mubr.f32.mxu0 0.0
    %5198 = vmatmul.mubr.f32.gmra.mrb[0].mxu0 %v5064
    %v5199 = vpop.f32.mrb[0].mxu0
    %v5200 = vadd.f32 0.0, %v5199
    %v5201 = vpop.f32.mrb[0].mxu0
    %5202 = vmatprep.mubr.f32.mxu0 0.0
    %5203 = vmatmul.mubr.f32.gmra.mrb[0].mxu0 %v5067
    %v5204 = vpop.f32.mrb[0].mxu0
    %v5205 = vadd.f32 0.0, %v5204
    %v5206 = vpop.f32.mrb[0].mxu0
    %5207 = vmatprep.mubr.f32.mxu0 0.0
    %5208 = vmatmul.mubr.f32.gmra.mrb[0].mxu0 %v5070
    %v5209 = vpop.f32.mrb[0].mxu0
    %v5210 = vadd.f32 0.0, %v5209
    %v5211 = vpop.f32.mrb[0].mxu0
    %5212 = vmatprep.mubr.f32.mxu0 0.0
    %5213 = vmatmul.mubr.f32.gmra.mrb[0].mxu0 %v5073
    %v5214 = vpop.f32.mrb[0].mxu0
    %v5215 = vadd.f32 0.0, %v5214
    %v5216 = vpop.f32.mrb[0].mxu0
    %5217 = vmatprep.mubr.f32.mxu0 0.0
    %5218 = vmatmul.mubr.f32.gmra.mrb[0].mxu0 %v5076
    %v5219 = vpop.f32.mrb[0].mxu0
    %v5220 = vadd.f32 0.0, %v5219
    %v5221 = vpop.f32.mrb[0].mxu0
    %5222 = vdwg.mxu0
    %v5223 = vadd.f32 %v4860, %v5145
    %v5224 = vadd.f32 %v4861, %v5150
    %v5225 = vadd.f32 %v4862, %v5155
    %v5226 = vadd.f32 %v4863, %v5160
    %v5227 = vadd.f32 %v4864, %v5165
    %v5228 = vadd.f32 %v4865, %v5170
    %v5229 = vadd.f32 %v4866, %v5175
    %v5230 = vadd.f32 %v4867, %v5180
    %v5231 = vadd.f32 %v4868, %v5185
    %v5232 = vadd.f32 %v4869, %v5190
    %v5233 = vadd.f32 %v4870, %v5195
    %v5234 = vadd.f32 %v4871, %v5200
    %v5235 = vadd.f32 %v4872, %v5205
    %v5236 = vadd.f32 %v4873, %v5210
    %v5237 = vadd.f32 %v4874, %v5215
    %v5238 = vadd.f32 %v4875, %v5220
    %5239 = vmatprep.subr.mxu0 0.0
    %5240 = vmatpush1.msra.mxu0 %v3440
    %5241 = vmatprep.subr.mxu0 0.0
    %5242 = vmatpush1.msra.mxu0 %v3441
    %5243 = vmatprep.subr.mxu0 0.0
    %5244 = vmatpush1.msra.mxu0 %v3442
    %5245 = vmatprep.subr.mxu0 0.0
    %5246 = vmatpush1.msra.mxu0 %v3443
    %5247 = vmatprep.subr.mxu0 0.0
    %5248 = vmatpush1.msra.mxu0 %v3444
    %5249 = vmatprep.subr.mxu0 0.0
    %5250 = vmatpush1.msra.mxu0 %v3445
    %5251 = vmatprep.subr.mxu0 0.0
    %5252 = vmatpush1.msra.mxu0 %v3446
    %5253 = vmatprep.subr.mxu0 0.0
    %5254 = vmatpush1.msra.mxu0 %v3447
    %5255 = vmatprep.subr.mxu0 0.0
    %5256 = vmatpush1.msra.mxu0 %v3448
    %5257 = vmatprep.subr.mxu0 0.0
    %5258 = vmatpush1.msra.mxu0 %v3449
    %5259 = vmatprep.subr.mxu0 0.0
    %5260 = vmatpush1.msra.mxu0 %v3450
    %5261 = vmatprep.subr.mxu0 0.0
    %5262 = vmatpush1.msra.mxu0 %v3451
    %5263 = vmatprep.subr.mxu0 0.0
    %5264 = vmatpush1.msra.mxu0 %v3452
    %5265 = vmatprep.subr.mxu0 0.0
    %5266 = vmatpush1.msra.mxu0 %v3453
    %5267 = vmatprep.subr.mxu0 0.0
    %5268 = vmatpush1.msra.mxu0 %v3454
    %5269 = vmatprep.subr.mxu0 0.0
    %5270 = vmatpush1.msra.mxu0 %v3455
    %5271 = vmatprep.subr.mxu0 0.0
    %5272 = vmatpush1.msra.mxu0 0.0
    %5273 = vmatprep.subr.mxu0 0.0
    %5274 = vmatpush1.msra.mxu0 0.0
    %5275 = vmatprep.subr.mxu0 0.0
    %5276 = vmatpush1.msra.mxu0 0.0
    %5277 = vmatprep.subr.mxu0 0.0
    %5278 = vmatpush1.msra.mxu0 0.0
    %5279 = vmatprep.subr.mxu0 0.0
    %5280 = vmatpush1.msra.mxu0 0.0
    %5281 = vmatprep.subr.mxu0 0.0
    %5282 = vmatpush1.msra.mxu0 0.0
    %5283 = vmatprep.subr.mxu0 0.0
    %5284 = vmatpush1.msra.mxu0 0.0
    %5285 = vmatprep.subr.mxu0 0.0
    %5286 = vmatpush1.msra.mxu0 0.0
    %5287 = vmatprep.subr.mxu0 0.0
    %5288 = vmatpush1.msra.mxu0 0.0
    %5289 = vmatprep.subr.mxu0 0.0
    %5290 = vmatpush1.msra.mxu0 0.0
    %5291 = vmatprep.subr.mxu0 0.0
    %5292 = vmatpush1.msra.mxu0 0.0
    %5293 = vmatprep.subr.mxu0 0.0
    %5294 = vmatpush1.msra.mxu0 0.0
    %5295 = vmatprep.subr.mxu0 0.0
    %5296 = vmatpush1.msra.mxu0 0.0
    %5297 = vmatprep.subr.mxu0 0.0
    %5298 = vmatpush1.msra.mxu0 0.0
    %5299 = vmatprep.subr.mxu0 0.0
    %5300 = vmatpush1.msra.mxu0 0.0
    %5301 = vmatprep.subr.mxu0 0.0
    %5302 = vmatpush1.msra.mxu0 0.0
    %5303 = vmatprep.mubr.f32.mxu0 0.0
    %5304 = vmatmul.mubr.f32.gmra.mrb[0].mxu0 %v1926
    %v5305 = vpop.f32.mrb[0].mxu0
    %v5306 = vadd.f32 0.0, %v5305
    %v5307 = vpop.f32.mrb[0].mxu0
    %5308 = vmatprep.mubr.f32.mxu0 0.0
    %5309 = vmatmul.mubr.f32.gmra.mrb[0].mxu0 %v1927
    %v5310 = vpop.f32.mrb[0].mxu0
    %v5311 = vadd.f32 0.0, %v5310
    %v5312 = vpop.f32.mrb[0].mxu0
    %5313 = vmatprep.mubr.f32.mxu0 0.0
    %5314 = vmatmul.mubr.f32.gmra.mrb[0].mxu0 %v1928
    %v5315 = vpop.f32.mrb[0].mxu0
    %v5316 = vadd.f32 0.0, %v5315
    %v5317 = vpop.f32.mrb[0].mxu0
    %5318 = vmatprep.mubr.f32.mxu0 0.0
    %5319 = vmatmul.mubr.f32.gmra.mrb[0].mxu0 %v1929
    %v5320 = vpop.f32.mrb[0].mxu0
    %v5321 = vadd.f32 0.0, %v5320
    %v5322 = vpop.f32.mrb[0].mxu0
    %5323 = vmatprep.mubr.f32.mxu0 0.0
    %5324 = vmatmul.mubr.f32.gmra.mrb[0].mxu0 %v1930
    %v5325 = vpop.f32.mrb[0].mxu0
    %v5326 = vadd.f32 0.0, %v5325
    %v5327 = vpop.f32.mrb[0].mxu0
    %5328 = vmatprep.mubr.f32.mxu0 0.0
    %5329 = vmatmul.mubr.f32.gmra.mrb[0].mxu0 %v1931
    %v5330 = vpop.f32.mrb[0].mxu0
    %v5331 = vadd.f32 0.0, %v5330
    %v5332 = vpop.f32.mrb[0].mxu0
    %5333 = vmatprep.mubr.f32.mxu0 0.0
    %5334 = vmatmul.mubr.f32.gmra.mrb[0].mxu0 %v1932
    %v5335 = vpop.f32.mrb[0].mxu0
    %v5336 = vadd.f32 0.0, %v5335
    %v5337 = vpop.f32.mrb[0].mxu0
    %5338 = vmatprep.mubr.f32.mxu0 0.0
    %5339 = vmatmul.mubr.f32.gmra.mrb[0].mxu0 %v1933
    %v5340 = vpop.f32.mrb[0].mxu0
    %v5341 = vadd.f32 0.0, %v5340
    %v5342 = vpop.f32.mrb[0].mxu0
    %5343 = vmatprep.mubr.f32.mxu0 0.0
    %5344 = vmatmul.mubr.f32.gmra.mrb[0].mxu0 %v1934
    %v5345 = vpop.f32.mrb[0].mxu0
    %v5346 = vadd.f32 0.0, %v5345
    %v5347 = vpop.f32.mrb[0].mxu0
    %5348 = vmatprep.mubr.f32.mxu0 0.0
    %5349 = vmatmul.mubr.f32.gmra.mrb[0].mxu0 %v1935
    %v5350 = vpop.f32.mrb[0].mxu0
    %v5351 = vadd.f32 0.0, %v5350
    %v5352 = vpop.f32.mrb[0].mxu0
    %5353 = vmatprep.mubr.f32.mxu0 0.0
    %5354 = vmatmul.mubr.f32.gmra.mrb[0].mxu0 %v1936
    %v5355 = vpop.f32.mrb[0].mxu0
    %v5356 = vadd.f32 0.0, %v5355
    %v5357 = vpop.f32.mrb[0].mxu0
    %5358 = vmatprep.mubr.f32.mxu0 0.0
    %5359 = vmatmul.mubr.f32.gmra.mrb[0].mxu0 %v1937
    %v5360 = vpop.f32.mrb[0].mxu0
    %v5361 = vadd.f32 0.0, %v5360
    %v5362 = vpop.f32.mrb[0].mxu0
    %5363 = vmatprep.mubr.f32.mxu0 0.0
    %5364 = vmatmul.mubr.f32.gmra.mrb[0].mxu0 %v1938
    %v5365 = vpop.f32.mrb[0].mxu0
    %v5366 = vadd.f32 0.0, %v5365
    %v5367 = vpop.f32.mrb[0].mxu0
    %5368 = vmatprep.mubr.f32.mxu0 0.0
    %5369 = vmatmul.mubr.f32.gmra.mrb[0].mxu0 %v1939
    %v5370 = vpop.f32.mrb[0].mxu0
    %v5371 = vadd.f32 0.0, %v5370
    %v5372 = vpop.f32.mrb[0].mxu0
    %5373 = vmatprep.mubr.f32.mxu0 0.0
    %5374 = vmatmul.mubr.f32.gmra.mrb[0].mxu0 %v1940
    %v5375 = vpop.f32.mrb[0].mxu0
    %v5376 = vadd.f32 0.0, %v5375
    %v5377 = vpop.f32.mrb[0].mxu0
    %5378 = vmatprep.mubr.f32.mxu0 0.0
    %5379 = vmatmul.mubr.f32.gmra.mrb[0].mxu0 %v1941
    %v5380 = vpop.f32.mrb[0].mxu0
    %v5381 = vadd.f32 0.0, %v5380
    %v5382 = vpop.f32.mrb[0].mxu0
    %5383 = vdwg.mxu0
    %s5384 = scalar_lea.vmem [#allocation4], 320
    %v5385 = vld [vmem:[%s5384] sm:$0xff]
    %v5386 = vld [vmem:[%s5384 + $0x8] sm:$0xff]
    %v5387 = vld [vmem:[%s5384 + $0x10] sm:$0xff]
    %v5388 = vld [vmem:[%s5384 + $0x18] sm:$0xff]
    %v5389 = vld [vmem:[%s5384 + $0x20] sm:$0xff]
    %v5390 = vld [vmem:[%s5384 + $0x28] sm:$0xff]
    %v5391 = vld [vmem:[%s5384 + $0x30] sm:$0xff]
    %v5392 = vld [vmem:[%s5384 + $0x38] sm:$0xff]
    %v5394 = vsel %vm3763, %v5306, 0
    %v5397 = vsel %vm3763, %v5311, 0
    %v5400 = vsel %vm3763, %v5316, 0
    %v5403 = vsel %vm3763, %v5321, 0
    %v5406 = vsel %vm3763, %v5326, 0
    %v5409 = vsel %vm3763, %v5331, 0
    %v5412 = vsel %vm3763, %v5336, 0
    %v5415 = vsel %vm3763, %v5341, 0
    %v5418 = vsel %vm3763, %v5346, 0
    %v5421 = vsel %vm3763, %v5351, 0
    %v5424 = vsel %vm3763, %v5356, 0
    %v5427 = vsel %vm3763, %v5361, 0
    %v5430 = vsel %vm3763, %v5366, 0
    %v5433 = vsel %vm3763, %v5371, 0
    %v5436 = vsel %vm3763, %v5376, 0
    %v5439 = vsel %vm3763, %v5381, 0
    %5441 = vmatprep.subr.mxu0 0.0
    %5442 = vmatpush1.msra.mxu0 %v5385
    %5443 = vmatprep.subr.mxu0 0.0
    %5444 = vmatpush1.msra.mxu0 %v5386
    %5445 = vmatprep.subr.mxu0 0.0
    %5446 = vmatpush1.msra.mxu0 %v5387
    %5447 = vmatprep.subr.mxu0 0.0
    %5448 = vmatpush1.msra.mxu0 %v5388
    %5449 = vmatprep.subr.mxu0 0.0
    %5450 = vmatpush1.msra.mxu0 %v5389
    %5451 = vmatprep.subr.mxu0 0.0
    %5452 = vmatpush1.msra.mxu0 %v5390
    %5453 = vmatprep.subr.mxu0 0.0
    %5454 = vmatpush1.msra.mxu0 %v5391
    %5455 = vmatprep.subr.mxu0 0.0
    %5456 = vmatpush1.msra.mxu0 %v5392
    %5457 = vmatprep.subr.mxu0 0.0
    %5458 = vmatpush1.msra.mxu0 0.0
    %5459 = vmatprep.subr.mxu0 0.0
    %5460 = vmatpush1.msra.mxu0 0.0
    %5461 = vmatprep.subr.mxu0 0.0
    %5462 = vmatpush1.msra.mxu0 0.0
    %5463 = vmatprep.subr.mxu0 0.0
    %5464 = vmatpush1.msra.mxu0 0.0
    %5465 = vmatprep.subr.mxu0 0.0
    %5466 = vmatpush1.msra.mxu0 0.0
    %5467 = vmatprep.subr.mxu0 0.0
    %5468 = vmatpush1.msra.mxu0 0.0
    %5469 = vmatprep.subr.mxu0 0.0
    %5470 = vmatpush1.msra.mxu0 0.0
    %5471 = vmatprep.subr.mxu0 0.0
    %5472 = vmatpush1.msra.mxu0 0.0
    %5473 = vmatprep.subr.mxu0 0.0
    %5474 = vmatpush1.msra.mxu0 0.0
    %5475 = vmatprep.subr.mxu0 0.0
    %5476 = vmatpush1.msra.mxu0 0.0
    %5477 = vmatprep.subr.mxu0 0.0
    %5478 = vmatpush1.msra.mxu0 0.0
    %5479 = vmatprep.subr.mxu0 0.0
    %5480 = vmatpush1.msra.mxu0 0.0
    %5481 = vmatprep.subr.mxu0 0.0
    %5482 = vmatpush1.msra.mxu0 0.0
    %5483 = vmatprep.subr.mxu0 0.0
    %5484 = vmatpush1.msra.mxu0 0.0
    %5485 = vmatprep.subr.mxu0 0.0
    %5486 = vmatpush1.msra.mxu0 0.0
    %5487 = vmatprep.subr.mxu0 0.0
    %5488 = vmatpush1.msra.mxu0 0.0
    %5489 = vmatprep.subr.mxu0 0.0
    %5490 = vmatpush1.msra.mxu0 0.0
    %5491 = vmatprep.subr.mxu0 0.0
    %5492 = vmatpush1.msra.mxu0 0.0
    %5493 = vmatprep.subr.mxu0 0.0
    %5494 = vmatpush1.msra.mxu0 0.0
    %5495 = vmatprep.subr.mxu0 0.0
    %5496 = vmatpush1.msra.mxu0 0.0
    %5497 = vmatprep.subr.mxu0 0.0
    %5498 = vmatpush1.msra.mxu0 0.0
    %5499 = vmatprep.subr.mxu0 0.0
    %5500 = vmatpush1.msra.mxu0 0.0
    %5501 = vmatprep.subr.mxu0 0.0
    %5502 = vmatpush1.msra.mxu0 0.0
    %5503 = vmatprep.subr.mxu0 0.0
    %5504 = vmatpush1.msra.mxu0 0.0
    %5505 = vmatprep.mubr.f32.mxu0 0.0
    %5506 = vmatmul.mubr.f32.gmra.mrb[0].mxu0 %v5394
    %v5507 = vpop.f32.mrb[0].mxu0
    %v5508 = vadd.f32 0.0, %v5507
    %v5509 = vpop.f32.mrb[0].mxu0
    %5510 = vmatprep.mubr.f32.mxu0 0.0
    %5511 = vmatmul.mubr.f32.gmra.mrb[0].mxu0 %v5397
    %v5512 = vpop.f32.mrb[0].mxu0
    %v5513 = vadd.f32 0.0, %v5512
    %v5514 = vpop.f32.mrb[0].mxu0
    %5515 = vmatprep.mubr.f32.mxu0 0.0
    %5516 = vmatmul.mubr.f32.gmra.mrb[0].mxu0 %v5400
    %v5517 = vpop.f32.mrb[0].mxu0
    %v5518 = vadd.f32 0.0, %v5517
    %v5519 = vpop.f32.mrb[0].mxu0
    %5520 = vmatprep.mubr.f32.mxu0 0.0
    %5521 = vmatmul.mubr.f32.gmra.mrb[0].mxu0 %v5403
    %v5522 = vpop.f32.mrb[0].mxu0
    %v5523 = vadd.f32 0.0, %v5522
    %v5524 = vpop.f32.mrb[0].mxu0
    %5525 = vmatprep.mubr.f32.mxu0 0.0
    %5526 = vmatmul.mubr.f32.gmra.mrb[0].mxu0 %v5406
    %v5527 = vpop.f32.mrb[0].mxu0
    %v5528 = vadd.f32 0.0, %v5527
    %v5529 = vpop.f32.mrb[0].mxu0
    %5530 = vmatprep.mubr.f32.mxu0 0.0
    %5531 = vmatmul.mubr.f32.gmra.mrb[0].mxu0 %v5409
    %v5532 = vpop.f32.mrb[0].mxu0
    %v5533 = vadd.f32 0.0, %v5532
    %v5534 = vpop.f32.mrb[0].mxu0
    %5535 = vmatprep.mubr.f32.mxu0 0.0
    %5536 = vmatmul.mubr.f32.gmra.mrb[0].mxu0 %v5412
    %v5537 = vpop.f32.mrb[0].mxu0
    %v5538 = vadd.f32 0.0, %v5537
    %v5539 = vpop.f32.mrb[0].mxu0
    %5540 = vmatprep.mubr.f32.mxu0 0.0
    %5541 = vmatmul.mubr.f32.gmra.mrb[0].mxu0 %v5415
    %v5542 = vpop.f32.mrb[0].mxu0
    %v5543 = vadd.f32 0.0, %v5542
    %v5544 = vpop.f32.mrb[0].mxu0
    %5545 = vmatprep.mubr.f32.mxu0 0.0
    %5546 = vmatmul.mubr.f32.gmra.mrb[0].mxu0 %v5418
    %v5547 = vpop.f32.mrb[0].mxu0
    %v5548 = vadd.f32 0.0, %v5547
    %v5549 = vpop.f32.mrb[0].mxu0
    %5550 = vmatprep.mubr.f32.mxu0 0.0
    %5551 = vmatmul.mubr.f32.gmra.mrb[0].mxu0 %v5421
    %v5552 = vpop.f32.mrb[0].mxu0
    %v5553 = vadd.f32 0.0, %v5552
    %v5554 = vpop.f32.mrb[0].mxu0
    %5555 = vmatprep.mubr.f32.mxu0 0.0
    %5556 = vmatmul.mubr.f32.gmra.mrb[0].mxu0 %v5424
    %v5557 = vpop.f32.mrb[0].mxu0
    %v5558 = vadd.f32 0.0, %v5557
    %v5559 = vpop.f32.mrb[0].mxu0
    %5560 = vmatprep.mubr.f32.mxu0 0.0
    %5561 = vmatmul.mubr.f32.gmra.mrb[0].mxu0 %v5427
    %v5562 = vpop.f32.mrb[0].mxu0
    %v5563 = vadd.f32 0.0, %v5562
    %v5564 = vpop.f32.mrb[0].mxu0
    %5565 = vmatprep.mubr.f32.mxu0 0.0
    %5566 = vmatmul.mubr.f32.gmra.mrb[0].mxu0 %v5430
    %v5567 = vpop.f32.mrb[0].mxu0
    %v5568 = vadd.f32 0.0, %v5567
    %v5569 = vpop.f32.mrb[0].mxu0
    %5570 = vmatprep.mubr.f32.mxu0 0.0
    %5571 = vmatmul.mubr.f32.gmra.mrb[0].mxu0 %v5433
    %v5572 = vpop.f32.mrb[0].mxu0
    %v5573 = vadd.f32 0.0, %v5572
    %v5574 = vpop.f32.mrb[0].mxu0
    %5575 = vmatprep.mubr.f32.mxu0 0.0
    %5576 = vmatmul.mubr.f32.gmra.mrb[0].mxu0 %v5436
    %v5577 = vpop.f32.mrb[0].mxu0
    %v5578 = vadd.f32 0.0, %v5577
    %v5579 = vpop.f32.mrb[0].mxu0
    %5580 = vmatprep.mubr.f32.mxu0 0.0
    %5581 = vmatmul.mubr.f32.gmra.mrb[0].mxu0 %v5439
    %v5582 = vpop.f32.mrb[0].mxu0
    %v5583 = vadd.f32 0.0, %v5582
    %v5584 = vpop.f32.mrb[0].mxu0
    %5585 = vdwg.mxu0
    %v5586 = vadd.f32 %v5223, %v5508
    %v5587 = vadd.f32 %v5224, %v5513
    %v5588 = vadd.f32 %v5225, %v5518
    %v5589 = vadd.f32 %v5226, %v5523
    %v5590 = vadd.f32 %v5227, %v5528
    %v5591 = vadd.f32 %v5228, %v5533
    %v5592 = vadd.f32 %v5229, %v5538
    %v5593 = vadd.f32 %v5230, %v5543
    %v5594 = vadd.f32 %v5231, %v5548
    %v5595 = vadd.f32 %v5232, %v5553
    %v5596 = vadd.f32 %v5233, %v5558
    %v5597 = vadd.f32 %v5234, %v5563
    %v5598 = vadd.f32 %v5235, %v5568
    %v5599 = vadd.f32 %v5236, %v5573
    %v5600 = vadd.f32 %v5237, %v5578
    %v5601 = vadd.f32 %v5238, %v5583
    %5602 = vmatprep.subr.mxu0 0.0
    %5603 = vmatpush1.msra.mxu0 %v3440
    %5604 = vmatprep.subr.mxu0 0.0
    %5605 = vmatpush1.msra.mxu0 %v3441
    %5606 = vmatprep.subr.mxu0 0.0
    %5607 = vmatpush1.msra.mxu0 %v3442
    %5608 = vmatprep.subr.mxu0 0.0
    %5609 = vmatpush1.msra.mxu0 %v3443
    %5610 = vmatprep.subr.mxu0 0.0
    %5611 = vmatpush1.msra.mxu0 %v3444
    %5612 = vmatprep.subr.mxu0 0.0
    %5613 = vmatpush1.msra.mxu0 %v3445
    %5614 = vmatprep.subr.mxu0 0.0
    %5615 = vmatpush1.msra.mxu0 %v3446
    %5616 = vmatprep.subr.mxu0 0.0
    %5617 = vmatpush1.msra.mxu0 %v3447
    %5618 = vmatprep.subr.mxu0 0.0
    %5619 = vmatpush1.msra.mxu0 %v3448
    %5620 = vmatprep.subr.mxu0 0.0
    %5621 = vmatpush1.msra.mxu0 %v3449
    %5622 = vmatprep.subr.mxu0 0.0
    %5623 = vmatpush1.msra.mxu0 %v3450
    %5624 = vmatprep.subr.mxu0 0.0
    %5625 = vmatpush1.msra.mxu0 %v3451
    %5626 = vmatprep.subr.mxu0 0.0
    %5627 = vmatpush1.msra.mxu0 %v3452
    %5628 = vmatprep.subr.mxu0 0.0
    %5629 = vmatpush1.msra.mxu0 %v3453
    %5630 = vmatprep.subr.mxu0 0.0
    %5631 = vmatpush1.msra.mxu0 %v3454
    %5632 = vmatprep.subr.mxu0 0.0
    %5633 = vmatpush1.msra.mxu0 %v3455
    %5634 = vmatprep.subr.mxu0 0.0
    %5635 = vmatpush1.msra.mxu0 0.0
    %5636 = vmatprep.subr.mxu0 0.0
    %5637 = vmatpush1.msra.mxu0 0.0
    %5638 = vmatprep.subr.mxu0 0.0
    %5639 = vmatpush1.msra.mxu0 0.0
    %5640 = vmatprep.subr.mxu0 0.0
    %5641 = vmatpush1.msra.mxu0 0.0
    %5642 = vmatprep.subr.mxu0 0.0
    %5643 = vmatpush1.msra.mxu0 0.0
    %5644 = vmatprep.subr.mxu0 0.0
    %5645 = vmatpush1.msra.mxu0 0.0
    %5646 = vmatprep.subr.mxu0 0.0
    %5647 = vmatpush1.msra.mxu0 0.0
    %5648 = vmatprep.subr.mxu0 0.0
    %5649 = vmatpush1.msra.mxu0 0.0
    %5650 = vmatprep.subr.mxu0 0.0
    %5651 = vmatpush1.msra.mxu0 0.0
    %5652 = vmatprep.subr.mxu0 0.0
    %5653 = vmatpush1.msra.mxu0 0.0
    %5654 = vmatprep.subr.mxu0 0.0
    %5655 = vmatpush1.msra.mxu0 0.0
    %5656 = vmatprep.subr.mxu0 0.0
    %5657 = vmatpush1.msra.mxu0 0.0
    %5658 = vmatprep.subr.mxu0 0.0
    %5659 = vmatpush1.msra.mxu0 0.0
    %5660 = vmatprep.subr.mxu0 0.0
    %5661 = vmatpush1.msra.mxu0 0.0
    %5662 = vmatprep.subr.mxu0 0.0
    %5663 = vmatpush1.msra.mxu0 0.0
    %5664 = vmatprep.subr.mxu0 0.0
    %5665 = vmatpush1.msra.mxu0 0.0
    %5666 = vmatprep.mubr.f32.mxu0 0.0
    %5667 = vmatmul.mubr.f32.gmra.mrb[0].mxu0 %v2299
    %v5668 = vpop.f32.mrb[0].mxu0
    %v5669 = vadd.f32 0.0, %v5668
    %v5670 = vpop.f32.mrb[0].mxu0
    %5671 = vmatprep.mubr.f32.mxu0 0.0
    %5672 = vmatmul.mubr.f32.gmra.mrb[0].mxu0 %v2300
    %v5673 = vpop.f32.mrb[0].mxu0
    %v5674 = vadd.f32 0.0, %v5673
    %v5675 = vpop.f32.mrb[0].mxu0
    %5676 = vmatprep.mubr.f32.mxu0 0.0
    %5677 = vmatmul.mubr.f32.gmra.mrb[0].mxu0 %v2301
    %v5678 = vpop.f32.mrb[0].mxu0
    %v5679 = vadd.f32 0.0, %v5678
    %v5680 = vpop.f32.mrb[0].mxu0
    %5681 = vmatprep.mubr.f32.mxu0 0.0
    %5682 = vmatmul.mubr.f32.gmra.mrb[0].mxu0 %v2302
    %v5683 = vpop.f32.mrb[0].mxu0
    %v5684 = vadd.f32 0.0, %v5683
    %v5685 = vpop.f32.mrb[0].mxu0
    %5686 = vmatprep.mubr.f32.mxu0 0.0
    %5687 = vmatmul.mubr.f32.gmra.mrb[0].mxu0 %v2303
    %v5688 = vpop.f32.mrb[0].mxu0
    %v5689 = vadd.f32 0.0, %v5688
    %v5690 = vpop.f32.mrb[0].mxu0
    %5691 = vmatprep.mubr.f32.mxu0 0.0
    %5692 = vmatmul.mubr.f32.gmra.mrb[0].mxu0 %v2304
    %v5693 = vpop.f32.mrb[0].mxu0
    %v5694 = vadd.f32 0.0, %v5693
    %v5695 = vpop.f32.mrb[0].mxu0
    %5696 = vmatprep.mubr.f32.mxu0 0.0
    %5697 = vmatmul.mubr.f32.gmra.mrb[0].mxu0 %v2305
    %v5698 = vpop.f32.mrb[0].mxu0
    %v5699 = vadd.f32 0.0, %v5698
    %v5700 = vpop.f32.mrb[0].mxu0
    %5701 = vmatprep.mubr.f32.mxu0 0.0
    %5702 = vmatmul.mubr.f32.gmra.mrb[0].mxu0 %v2306
    %v5703 = vpop.f32.mrb[0].mxu0
    %v5704 = vadd.f32 0.0, %v5703
    %v5705 = vpop.f32.mrb[0].mxu0
    %5706 = vmatprep.mubr.f32.mxu0 0.0
    %5707 = vmatmul.mubr.f32.gmra.mrb[0].mxu0 %v2307
    %v5708 = vpop.f32.mrb[0].mxu0
    %v5709 = vadd.f32 0.0, %v5708
    %v5710 = vpop.f32.mrb[0].mxu0
    %5711 = vmatprep.mubr.f32.mxu0 0.0
    %5712 = vmatmul.mubr.f32.gmra.mrb[0].mxu0 %v2308
    %v5713 = vpop.f32.mrb[0].mxu0
    %v5714 = vadd.f32 0.0, %v5713
    %v5715 = vpop.f32.mrb[0].mxu0
    %5716 = vmatprep.mubr.f32.mxu0 0.0
    %5717 = vmatmul.mubr.f32.gmra.mrb[0].mxu0 %v2309
    %v5718 = vpop.f32.mrb[0].mxu0
    %v5719 = vadd.f32 0.0, %v5718
    %v5720 = vpop.f32.mrb[0].mxu0
    %5721 = vmatprep.mubr.f32.mxu0 0.0
    %5722 = vmatmul.mubr.f32.gmra.mrb[0].mxu0 %v2310
    %v5723 = vpop.f32.mrb[0].mxu0
    %v5724 = vadd.f32 0.0, %v5723
    %v5725 = vpop.f32.mrb[0].mxu0
    %5726 = vmatprep.mubr.f32.mxu0 0.0
    %5727 = vmatmul.mubr.f32.gmra.mrb[0].mxu0 %v2311
    %v5728 = vpop.f32.mrb[0].mxu0
    %v5729 = vadd.f32 0.0, %v5728
    %v5730 = vpop.f32.mrb[0].mxu0
    %5731 = vmatprep.mubr.f32.mxu0 0.0
    %5732 = vmatmul.mubr.f32.gmra.mrb[0].mxu0 %v2312
    %v5733 = vpop.f32.mrb[0].mxu0
    %v5734 = vadd.f32 0.0, %v5733
    %v5735 = vpop.f32.mrb[0].mxu0
    %5736 = vmatprep.mubr.f32.mxu0 0.0
    %5737 = vmatmul.mubr.f32.gmra.mrb[0].mxu0 %v2313
    %v5738 = vpop.f32.mrb[0].mxu0
    %v5739 = vadd.f32 0.0, %v5738
    %v5740 = vpop.f32.mrb[0].mxu0
    %5741 = vmatprep.mubr.f32.mxu0 0.0
    %5742 = vmatmul.mubr.f32.gmra.mrb[0].mxu0 %v2314
    %v5743 = vpop.f32.mrb[0].mxu0
    %v5744 = vadd.f32 0.0, %v5743
    %v5745 = vpop.f32.mrb[0].mxu0
    %5746 = vdwg.mxu0
    %s5747 = scalar_lea.vmem [#allocation4], 384
    %v5748 = vld [vmem:[%s5747] sm:$0xff]
    %v5749 = vld [vmem:[%s5747 + $0x8] sm:$0xff]
    %v5750 = vld [vmem:[%s5747 + $0x10] sm:$0xff]
    %v5751 = vld [vmem:[%s5747 + $0x18] sm:$0xff]
    %v5752 = vld [vmem:[%s5747 + $0x20] sm:$0xff]
    %v5753 = vld [vmem:[%s5747 + $0x28] sm:$0xff]
    %v5754 = vld [vmem:[%s5747 + $0x30] sm:$0xff]
    %v5755 = vld [vmem:[%s5747 + $0x38] sm:$0xff]
    %v5757 = vsel %vm3763, %v5669, 0
    %v5760 = vsel %vm3763, %v5674, 0
    %v5763 = vsel %vm3763, %v5679, 0
    %v5766 = vsel %vm3763, %v5684, 0
    %v5769 = vsel %vm3763, %v5689, 0
    %v5772 = vsel %vm3763, %v5694, 0
    %v5775 = vsel %vm3763, %v5699, 0
    %v5778 = vsel %vm3763, %v5704, 0
    %v5781 = vsel %vm3763, %v5709, 0
    %v5784 = vsel %vm3763, %v5714, 0
    %v5787 = vsel %vm3763, %v5719, 0
    %v5790 = vsel %vm3763, %v5724, 0
    %v5793 = vsel %vm3763, %v5729, 0
    %v5796 = vsel %vm3763, %v5734, 0
    %v5799 = vsel %vm3763, %v5739, 0
    %v5802 = vsel %vm3763, %v5744, 0
    %5804 = vmatprep.subr.mxu0 0.0
    %5805 = vmatpush1.msra.mxu0 %v5748
    %5806 = vmatprep.subr.mxu0 0.0
    %5807 = vmatpush1.msra.mxu0 %v5749
    %5808 = vmatprep.subr.mxu0 0.0
    %5809 = vmatpush1.msra.mxu0 %v5750
    %5810 = vmatprep.subr.mxu0 0.0
    %5811 = vmatpush1.msra.mxu0 %v5751
    %5812 = vmatprep.subr.mxu0 0.0
    %5813 = vmatpush1.msra.mxu0 %v5752
    %5814 = vmatprep.subr.mxu0 0.0
    %5815 = vmatpush1.msra.mxu0 %v5753
    %5816 = vmatprep.subr.mxu0 0.0
    %5817 = vmatpush1.msra.mxu0 %v5754
    %5818 = vmatprep.subr.mxu0 0.0
    %5819 = vmatpush1.msra.mxu0 %v5755
    %5820 = vmatprep.subr.mxu0 0.0
    %5821 = vmatpush1.msra.mxu0 0.0
    %5822 = vmatprep.subr.mxu0 0.0
    %5823 = vmatpush1.msra.mxu0 0.0
    %5824 = vmatprep.subr.mxu0 0.0
    %5825 = vmatpush1.msra.mxu0 0.0
    %5826 = vmatprep.subr.mxu0 0.0
    %5827 = vmatpush1.msra.mxu0 0.0
    %5828 = vmatprep.subr.mxu0 0.0
    %5829 = vmatpush1.msra.mxu0 0.0
    %5830 = vmatprep.subr.mxu0 0.0
    %5831 = vmatpush1.msra.mxu0 0.0
    %5832 = vmatprep.subr.mxu0 0.0
    %5833 = vmatpush1.msra.mxu0 0.0
    %5834 = vmatprep.subr.mxu0 0.0
    %5835 = vmatpush1.msra.mxu0 0.0
    %5836 = vmatprep.subr.mxu0 0.0
    %5837 = vmatpush1.msra.mxu0 0.0
    %5838 = vmatprep.subr.mxu0 0.0
    %5839 = vmatpush1.msra.mxu0 0.0
    %5840 = vmatprep.subr.mxu0 0.0
    %5841 = vmatpush1.msra.mxu0 0.0
    %5842 = vmatprep.subr.mxu0 0.0
    %5843 = vmatpush1.msra.mxu0 0.0
    %5844 = vmatprep.subr.mxu0 0.0
    %5845 = vmatpush1.msra.mxu0 0.0
    %5846 = vmatprep.subr.mxu0 0.0
    %5847 = vmatpush1.msra.mxu0 0.0
    %5848 = vmatprep.subr.mxu0 0.0
    %5849 = vmatpush1.msra.mxu0 0.0
    %5850 = vmatprep.subr.mxu0 0.0
    %5851 = vmatpush1.msra.mxu0 0.0
    %5852 = vmatprep.subr.mxu0 0.0
    %5853 = vmatpush1.msra.mxu0 0.0
    %5854 = vmatprep.subr.mxu0 0.0
    %5855 = vmatpush1.msra.mxu0 0.0
    %5856 = vmatprep.subr.mxu0 0.0
    %5857 = vmatpush1.msra.mxu0 0.0
    %5858 = vmatprep.subr.mxu0 0.0
    %5859 = vmatpush1.msra.mxu0 0.0
    %5860 = vmatprep.subr.mxu0 0.0
    %5861 = vmatpush1.msra.mxu0 0.0
    %5862 = vmatprep.subr.mxu0 0.0
    %5863 = vmatpush1.msra.mxu0 0.0
    %5864 = vmatprep.subr.mxu0 0.0
    %5865 = vmatpush1.msra.mxu0 0.0
    %5866 = vmatprep.subr.mxu0 0.0
    %5867 = vmatpush1.msra.mxu0 0.0
    %5868 = vmatprep.mubr.f32.mxu0 0.0
    %5869 = vmatmul.mubr.f32.gmra.mrb[0].mxu0 %v5757
    %v5870 = vpop.f32.mrb[0].mxu0
    %v5871 = vadd.f32 0.0, %v5870
    %v5872 = vpop.f32.mrb[0].mxu0
    %5873 = vmatprep.mubr.f32.mxu0 0.0
    %5874 = vmatmul.mubr.f32.gmra.mrb[0].mxu0 %v5760
    %v5875 = vpop.f32.mrb[0].mxu0
    %v5876 = vadd.f32 0.0, %v5875
    %v5877 = vpop.f32.mrb[0].mxu0
    %5878 = vmatprep.mubr.f32.mxu0 0.0
    %5879 = vmatmul.mubr.f32.gmra.mrb[0].mxu0 %v5763
    %v5880 = vpop.f32.mrb[0].mxu0
    %v5881 = vadd.f32 0.0, %v5880
    %v5882 = vpop.f32.mrb[0].mxu0
    %5883 = vmatprep.mubr.f32.mxu0 0.0
    %5884 = vmatmul.mubr.f32.gmra.mrb[0].mxu0 %v5766
    %v5885 = vpop.f32.mrb[0].mxu0
    %v5886 = vadd.f32 0.0, %v5885
    %v5887 = vpop.f32.mrb[0].mxu0
    %5888 = vmatprep.mubr.f32.mxu0 0.0
    %5889 = vmatmul.mubr.f32.gmra.mrb[0].mxu0 %v5769
    %v5890 = vpop.f32.mrb[0].mxu0
    %v5891 = vadd.f32 0.0, %v5890
    %v5892 = vpop.f32.mrb[0].mxu0
    %5893 = vmatprep.mubr.f32.mxu0 0.0
    %5894 = vmatmul.mubr.f32.gmra.mrb[0].mxu0 %v5772
    %v5895 = vpop.f32.mrb[0].mxu0
    %v5896 = vadd.f32 0.0, %v5895
    %v5897 = vpop.f32.mrb[0].mxu0
    %5898 = vmatprep.mubr.f32.mxu0 0.0
    %5899 = vmatmul.mubr.f32.gmra.mrb[0].mxu0 %v5775
    %v5900 = vpop.f32.mrb[0].mxu0
    %v5901 = vadd.f32 0.0, %v5900
    %v5902 = vpop.f32.mrb[0].mxu0
    %5903 = vmatprep.mubr.f32.mxu0 0.0
    %5904 = vmatmul.mubr.f32.gmra.mrb[0].mxu0 %v5778
    %v5905 = vpop.f32.mrb[0].mxu0
    %v5906 = vadd.f32 0.0, %v5905
    %v5907 = vpop.f32.mrb[0].mxu0
    %5908 = vmatprep.mubr.f32.mxu0 0.0
    %5909 = vmatmul.mubr.f32.gmra.mrb[0].mxu0 %v5781
    %v5910 = vpop.f32.mrb[0].mxu0
    %v5911 = vadd.f32 0.0, %v5910
    %v5912 = vpop.f32.mrb[0].mxu0
    %5913 = vmatprep.mubr.f32.mxu0 0.0
    %5914 = vmatmul.mubr.f32.gmra.mrb[0].mxu0 %v5784
    %v5915 = vpop.f32.mrb[0].mxu0
    %v5916 = vadd.f32 0.0, %v5915
    %v5917 = vpop.f32.mrb[0].mxu0
    %5918 = vmatprep.mubr.f32.mxu0 0.0
    %5919 = vmatmul.mubr.f32.gmra.mrb[0].mxu0 %v5787
    %v5920 = vpop.f32.mrb[0].mxu0
    %v5921 = vadd.f32 0.0, %v5920
    %v5922 = vpop.f32.mrb[0].mxu0
    %5923 = vmatprep.mubr.f32.mxu0 0.0
    %5924 = vmatmul.mubr.f32.gmra.mrb[0].mxu0 %v5790
    %v5925 = vpop.f32.mrb[0].mxu0
    %v5926 = vadd.f32 0.0, %v5925
    %v5927 = vpop.f32.mrb[0].mxu0
    %5928 = vmatprep.mubr.f32.mxu0 0.0
    %5929 = vmatmul.mubr.f32.gmra.mrb[0].mxu0 %v5793
    %v5930 = vpop.f32.mrb[0].mxu0
    %v5931 = vadd.f32 0.0, %v5930
    %v5932 = vpop.f32.mrb[0].mxu0
    %5933 = vmatprep.mubr.f32.mxu0 0.0
    %5934 = vmatmul.mubr.f32.gmra.mrb[0].mxu0 %v5796
    %v5935 = vpop.f32.mrb[0].mxu0
    %v5936 = vadd.f32 0.0, %v5935
    %v5937 = vpop.f32.mrb[0].mxu0
    %5938 = vmatprep.mubr.f32.mxu0 0.0
    %5939 = vmatmul.mubr.f32.gmra.mrb[0].mxu0 %v5799
    %v5940 = vpop.f32.mrb[0].mxu0
    %v5941 = vadd.f32 0.0, %v5940
    %v5942 = vpop.f32.mrb[0].mxu0
    %5943 = vmatprep.mubr.f32.mxu0 0.0
    %5944 = vmatmul.mubr.f32.gmra.mrb[0].mxu0 %v5802
    %v5945 = vpop.f32.mrb[0].mxu0
    %v5946 = vadd.f32 0.0, %v5945
    %v5947 = vpop.f32.mrb[0].mxu0
    %5948 = vdwg.mxu0
    %v5949 = vadd.f32 %v5586, %v5871
    %v5950 = vadd.f32 %v5587, %v5876
    %v5951 = vadd.f32 %v5588, %v5881
    %v5952 = vadd.f32 %v5589, %v5886
    %v5953 = vadd.f32 %v5590, %v5891
    %v5954 = vadd.f32 %v5591, %v5896
    %v5955 = vadd.f32 %v5592, %v5901
    %v5956 = vadd.f32 %v5593, %v5906
    %v5957 = vadd.f32 %v5594, %v5911
    %v5958 = vadd.f32 %v5595, %v5916
    %v5959 = vadd.f32 %v5596, %v5921
    %v5960 = vadd.f32 %v5597, %v5926
    %v5961 = vadd.f32 %v5598, %v5931
    %v5962 = vadd.f32 %v5599, %v5936
    %v5963 = vadd.f32 %v5600, %v5941
    %v5964 = vadd.f32 %v5601, %v5946
    %5965 = vmatprep.subr.mxu0 0.0
    %5966 = vmatpush1.msra.mxu0 %v3440
    %5967 = vmatprep.subr.mxu0 0.0
    %5968 = vmatpush1.msra.mxu0 %v3441
    %5969 = vmatprep.subr.mxu0 0.0
    %5970 = vmatpush1.msra.mxu0 %v3442
    %5971 = vmatprep.subr.mxu0 0.0
    %5972 = vmatpush1.msra.mxu0 %v3443
    %5973 = vmatprep.subr.mxu0 0.0
    %5974 = vmatpush1.msra.mxu0 %v3444
    %5975 = vmatprep.subr.mxu0 0.0
    %5976 = vmatpush1.msra.mxu0 %v3445
    %5977 = vmatprep.subr.mxu0 0.0
    %5978 = vmatpush1.msra.mxu0 %v3446
    %5979 = vmatprep.subr.mxu0 0.0
    %5980 = vmatpush1.msra.mxu0 %v3447
    %5981 = vmatprep.subr.mxu0 0.0
    %5982 = vmatpush1.msra.mxu0 %v3448
    %5983 = vmatprep.subr.mxu0 0.0
    %5984 = vmatpush1.msra.mxu0 %v3449
    %5985 = vmatprep.subr.mxu0 0.0
    %5986 = vmatpush1.msra.mxu0 %v3450
    %5987 = vmatprep.subr.mxu0 0.0
    %5988 = vmatpush1.msra.mxu0 %v3451
    %5989 = vmatprep.subr.mxu0 0.0
    %5990 = vmatpush1.msra.mxu0 %v3452
    %5991 = vmatprep.subr.mxu0 0.0
    %5992 = vmatpush1.msra.mxu0 %v3453
    %5993 = vmatprep.subr.mxu0 0.0
    %5994 = vmatpush1.msra.mxu0 %v3454
    %5995 = vmatprep.subr.mxu0 0.0
    %5996 = vmatpush1.msra.mxu0 %v3455
    %5997 = vmatprep.subr.mxu0 0.0
    %5998 = vmatpush1.msra.mxu0 0.0
    %5999 = vmatprep.subr.mxu0 0.0
    %6000 = vmatpush1.msra.mxu0 0.0
    %6001 = vmatprep.subr.mxu0 0.0
    %6002 = vmatpush1.msra.mxu0 0.0
    %6003 = vmatprep.subr.mxu0 0.0
    %6004 = vmatpush1.msra.mxu0 0.0
    %6005 = vmatprep.subr.mxu0 0.0
    %6006 = vmatpush1.msra.mxu0 0.0
    %6007 = vmatprep.subr.mxu0 0.0
    %6008 = vmatpush1.msra.mxu0 0.0
    %6009 = vmatprep.subr.mxu0 0.0
    %6010 = vmatpush1.msra.mxu0 0.0
    %6011 = vmatprep.subr.mxu0 0.0
    %6012 = vmatpush1.msra.mxu0 0.0
    %6013 = vmatprep.subr.mxu0 0.0
    %6014 = vmatpush1.msra.mxu0 0.0
    %6015 = vmatprep.subr.mxu0 0.0
    %6016 = vmatpush1.msra.mxu0 0.0
    %6017 = vmatprep.subr.mxu0 0.0
    %6018 = vmatpush1.msra.mxu0 0.0
    %6019 = vmatprep.subr.mxu0 0.0
    %6020 = vmatpush1.msra.mxu0 0.0
    %6021 = vmatprep.subr.mxu0 0.0
    %6022 = vmatpush1.msra.mxu0 0.0
    %6023 = vmatprep.subr.mxu0 0.0
    %6024 = vmatpush1.msra.mxu0 0.0
    %6025 = vmatprep.subr.mxu0 0.0
    %6026 = vmatpush1.msra.mxu0 0.0
    %6027 = vmatprep.subr.mxu0 0.0
    %6028 = vmatpush1.msra.mxu0 0.0
    %6029 = vmatprep.mubr.f32.mxu0 0.0
    %6030 = vmatmul.mubr.f32.gmra.mrb[0].mxu0 %v2672
    %v6031 = vpop.f32.mrb[0].mxu0
    %v6032 = vadd.f32 0.0, %v6031
    %v6033 = vpop.f32.mrb[0].mxu0
    %6034 = vmatprep.mubr.f32.mxu0 0.0
    %6035 = vmatmul.mubr.f32.gmra.mrb[0].mxu0 %v2673
    %v6036 = vpop.f32.mrb[0].mxu0
    %v6037 = vadd.f32 0.0, %v6036
    %v6038 = vpop.f32.mrb[0].mxu0
    %6039 = vmatprep.mubr.f32.mxu0 0.0
    %6040 = vmatmul.mubr.f32.gmra.mrb[0].mxu0 %v2674
    %v6041 = vpop.f32.mrb[0].mxu0
    %v6042 = vadd.f32 0.0, %v6041
    %v6043 = vpop.f32.mrb[0].mxu0
    %6044 = vmatprep.mubr.f32.mxu0 0.0
    %6045 = vmatmul.mubr.f32.gmra.mrb[0].mxu0 %v2675
    %v6046 = vpop.f32.mrb[0].mxu0
    %v6047 = vadd.f32 0.0, %v6046
    %v6048 = vpop.f32.mrb[0].mxu0
    %6049 = vmatprep.mubr.f32.mxu0 0.0
    %6050 = vmatmul.mubr.f32.gmra.mrb[0].mxu0 %v2676
    %v6051 = vpop.f32.mrb[0].mxu0
    %v6052 = vadd.f32 0.0, %v6051
    %v6053 = vpop.f32.mrb[0].mxu0
    %6054 = vmatprep.mubr.f32.mxu0 0.0
    %6055 = vmatmul.mubr.f32.gmra.mrb[0].mxu0 %v2677
    %v6056 = vpop.f32.mrb[0].mxu0
    %v6057 = vadd.f32 0.0, %v6056
    %v6058 = vpop.f32.mrb[0].mxu0
    %6059 = vmatprep.mubr.f32.mxu0 0.0
    %6060 = vmatmul.mubr.f32.gmra.mrb[0].mxu0 %v2678
    %v6061 = vpop.f32.mrb[0].mxu0
    %v6062 = vadd.f32 0.0, %v6061
    %v6063 = vpop.f32.mrb[0].mxu0
    %6064 = vmatprep.mubr.f32.mxu0 0.0
    %6065 = vmatmul.mubr.f32.gmra.mrb[0].mxu0 %v2679
    %v6066 = vpop.f32.mrb[0].mxu0
    %v6067 = vadd.f32 0.0, %v6066
    %v6068 = vpop.f32.mrb[0].mxu0
    %6069 = vmatprep.mubr.f32.mxu0 0.0
    %6070 = vmatmul.mubr.f32.gmra.mrb[0].mxu0 %v2680
    %v6071 = vpop.f32.mrb[0].mxu0
    %v6072 = vadd.f32 0.0, %v6071
    %v6073 = vpop.f32.mrb[0].mxu0
    %6074 = vmatprep.mubr.f32.mxu0 0.0
    %6075 = vmatmul.mubr.f32.gmra.mrb[0].mxu0 %v2681
    %v6076 = vpop.f32.mrb[0].mxu0
    %v6077 = vadd.f32 0.0, %v6076
    %v6078 = vpop.f32.mrb[0].mxu0
    %6079 = vmatprep.mubr.f32.mxu0 0.0
    %6080 = vmatmul.mubr.f32.gmra.mrb[0].mxu0 %v2682
    %v6081 = vpop.f32.mrb[0].mxu0
    %v6082 = vadd.f32 0.0, %v6081
    %v6083 = vpop.f32.mrb[0].mxu0
    %6084 = vmatprep.mubr.f32.mxu0 0.0
    %6085 = vmatmul.mubr.f32.gmra.mrb[0].mxu0 %v2683
    %v6086 = vpop.f32.mrb[0].mxu0
    %v6087 = vadd.f32 0.0, %v6086
    %v6088 = vpop.f32.mrb[0].mxu0
    %6089 = vmatprep.mubr.f32.mxu0 0.0
    %6090 = vmatmul.mubr.f32.gmra.mrb[0].mxu0 %v2684
    %v6091 = vpop.f32.mrb[0].mxu0
    %v6092 = vadd.f32 0.0, %v6091
    %v6093 = vpop.f32.mrb[0].mxu0
    %6094 = vmatprep.mubr.f32.mxu0 0.0
    %6095 = vmatmul.mubr.f32.gmra.mrb[0].mxu0 %v2685
    %v6096 = vpop.f32.mrb[0].mxu0
    %v6097 = vadd.f32 0.0, %v6096
    %v6098 = vpop.f32.mrb[0].mxu0
    %6099 = vmatprep.mubr.f32.mxu0 0.0
    %6100 = vmatmul.mubr.f32.gmra.mrb[0].mxu0 %v2686
    %v6101 = vpop.f32.mrb[0].mxu0
    %v6102 = vadd.f32 0.0, %v6101
    %v6103 = vpop.f32.mrb[0].mxu0
    %6104 = vmatprep.mubr.f32.mxu0 0.0
    %6105 = vmatmul.mubr.f32.gmra.mrb[0].mxu0 %v2687
    %v6106 = vpop.f32.mrb[0].mxu0
    %v6107 = vadd.f32 0.0, %v6106
    %v6108 = vpop.f32.mrb[0].mxu0
    %6109 = vdwg.mxu0
    %s6110 = scalar_lea.vmem [#allocation4], 448
    %v6111 = vld [vmem:[%s6110] sm:$0xff]
    %v6112 = vld [vmem:[%s6110 + $0x8] sm:$0xff]
    %v6113 = vld [vmem:[%s6110 + $0x10] sm:$0xff]
    %v6114 = vld [vmem:[%s6110 + $0x18] sm:$0xff]
    %v6115 = vld [vmem:[%s6110 + $0x20] sm:$0xff]
    %v6116 = vld [vmem:[%s6110 + $0x28] sm:$0xff]
    %v6117 = vld [vmem:[%s6110 + $0x30] sm:$0xff]
    %v6118 = vld [vmem:[%s6110 + $0x38] sm:$0xff]
    %v6120 = vsel %vm3763, %v6032, 0
    %v6123 = vsel %vm3763, %v6037, 0
    %v6126 = vsel %vm3763, %v6042, 0
    %v6129 = vsel %vm3763, %v6047, 0
    %v6132 = vsel %vm3763, %v6052, 0
    %v6135 = vsel %vm3763, %v6057, 0
    %v6138 = vsel %vm3763, %v6062, 0
    %v6141 = vsel %vm3763, %v6067, 0
    %v6144 = vsel %vm3763, %v6072, 0
    %v6147 = vsel %vm3763, %v6077, 0
    %v6150 = vsel %vm3763, %v6082, 0
    %v6153 = vsel %vm3763, %v6087, 0
    %v6156 = vsel %vm3763, %v6092, 0
    %v6159 = vsel %vm3763, %v6097, 0
    %v6162 = vsel %vm3763, %v6102, 0
    %v6165 = vsel %vm3763, %v6107, 0
    %6167 = vmatprep.subr.mxu0 0.0
    %6168 = vmatpush1.msra.mxu0 %v6111
    %6169 = vmatprep.subr.mxu0 0.0
    %6170 = vmatpush1.msra.mxu0 %v6112
    %6171 = vmatprep.subr.mxu0 0.0
    %6172 = vmatpush1.msra.mxu0 %v6113
    %6173 = vmatprep.subr.mxu0 0.0
    %6174 = vmatpush1.msra.mxu0 %v6114
    %6175 = vmatprep.subr.mxu0 0.0
    %6176 = vmatpush1.msra.mxu0 %v6115
    %6177 = vmatprep.subr.mxu0 0.0
    %6178 = vmatpush1.msra.mxu0 %v6116
    %6179 = vmatprep.subr.mxu0 0.0
    %6180 = vmatpush1.msra.mxu0 %v6117
    %6181 = vmatprep.subr.mxu0 0.0
    %6182 = vmatpush1.msra.mxu0 %v6118
    %6183 = vmatprep.subr.mxu0 0.0
    %6184 = vmatpush1.msra.mxu0 0.0
    %6185 = vmatprep.subr.mxu0 0.0
    %6186 = vmatpush1.msra.mxu0 0.0
    %6187 = vmatprep.subr.mxu0 0.0
    %6188 = vmatpush1.msra.mxu0 0.0
    %6189 = vmatprep.subr.mxu0 0.0
    %6190 = vmatpush1.msra.mxu0 0.0
    %6191 = vmatprep.subr.mxu0 0.0
    %6192 = vmatpush1.msra.mxu0 0.0
    %6193 = vmatprep.subr.mxu0 0.0
    %6194 = vmatpush1.msra.mxu0 0.0
    %6195 = vmatprep.subr.mxu0 0.0
    %6196 = vmatpush1.msra.mxu0 0.0
    %6197 = vmatprep.subr.mxu0 0.0
    %6198 = vmatpush1.msra.mxu0 0.0
    %6199 = vmatprep.subr.mxu0 0.0
    %6200 = vmatpush1.msra.mxu0 0.0
    %6201 = vmatprep.subr.mxu0 0.0
    %6202 = vmatpush1.msra.mxu0 0.0
    %6203 = vmatprep.subr.mxu0 0.0
    %6204 = vmatpush1.msra.mxu0 0.0
    %6205 = vmatprep.subr.mxu0 0.0
    %6206 = vmatpush1.msra.mxu0 0.0
    %6207 = vmatprep.subr.mxu0 0.0
    %6208 = vmatpush1.msra.mxu0 0.0
    %6209 = vmatprep.subr.mxu0 0.0
    %6210 = vmatpush1.msra.mxu0 0.0
    %6211 = vmatprep.subr.mxu0 0.0
    %6212 = vmatpush1.msra.mxu0 0.0
    %6213 = vmatprep.subr.mxu0 0.0
    %6214 = vmatpush1.msra.mxu0 0.0
    %6215 = vmatprep.subr.mxu0 0.0
    %6216 = vmatpush1.msra.mxu0 0.0
    %6217 = vmatprep.subr.mxu0 0.0
    %6218 = vmatpush1.msra.mxu0 0.0
    %6219 = vmatprep.subr.mxu0 0.0
    %6220 = vmatpush1.msra.mxu0 0.0
    %6221 = vmatprep.subr.mxu0 0.0
    %6222 = vmatpush1.msra.mxu0 0.0
    %6223 = vmatprep.subr.mxu0 0.0
    %6224 = vmatpush1.msra.mxu0 0.0
    %6225 = vmatprep.subr.mxu0 0.0
    %6226 = vmatpush1.msra.mxu0 0.0
    %6227 = vmatprep.subr.mxu0 0.0
    %6228 = vmatpush1.msra.mxu0 0.0
    %6229 = vmatprep.subr.mxu0 0.0
    %6230 = vmatpush1.msra.mxu0 0.0
    %6231 = vmatprep.mubr.f32.mxu0 0.0
    %6232 = vmatmul.mubr.f32.gmra.mrb[0].mxu0 %v6120
    %v6233 = vpop.f32.mrb[0].mxu0
    %v6234 = vadd.f32 0.0, %v6233
    %v6235 = vpop.f32.mrb[0].mxu0
    %6236 = vmatprep.mubr.f32.mxu0 0.0
    %6237 = vmatmul.mubr.f32.gmra.mrb[0].mxu0 %v6123
    %v6238 = vpop.f32.mrb[0].mxu0
    %v6239 = vadd.f32 0.0, %v6238
    %v6240 = vpop.f32.mrb[0].mxu0
    %6241 = vmatprep.mubr.f32.mxu0 0.0
    %6242 = vmatmul.mubr.f32.gmra.mrb[0].mxu0 %v6126
    %v6243 = vpop.f32.mrb[0].mxu0
    %v6244 = vadd.f32 0.0, %v6243
    %v6245 = vpop.f32.mrb[0].mxu0
    %6246 = vmatprep.mubr.f32.mxu0 0.0
    %6247 = vmatmul.mubr.f32.gmra.mrb[0].mxu0 %v6129
    %v6248 = vpop.f32.mrb[0].mxu0
    %v6249 = vadd.f32 0.0, %v6248
    %v6250 = vpop.f32.mrb[0].mxu0
    %6251 = vmatprep.mubr.f32.mxu0 0.0
    %6252 = vmatmul.mubr.f32.gmra.mrb[0].mxu0 %v6132
    %v6253 = vpop.f32.mrb[0].mxu0
    %v6254 = vadd.f32 0.0, %v6253
    %v6255 = vpop.f32.mrb[0].mxu0
    %6256 = vmatprep.mubr.f32.mxu0 0.0
    %6257 = vmatmul.mubr.f32.gmra.mrb[0].mxu0 %v6135
    %v6258 = vpop.f32.mrb[0].mxu0
    %v6259 = vadd.f32 0.0, %v6258
    %v6260 = vpop.f32.mrb[0].mxu0
    %6261 = vmatprep.mubr.f32.mxu0 0.0
    %6262 = vmatmul.mubr.f32.gmra.mrb[0].mxu0 %v6138
    %v6263 = vpop.f32.mrb[0].mxu0
    %v6264 = vadd.f32 0.0, %v6263
    %v6265 = vpop.f32.mrb[0].mxu0
    %6266 = vmatprep.mubr.f32.mxu0 0.0
    %6267 = vmatmul.mubr.f32.gmra.mrb[0].mxu0 %v6141
    %v6268 = vpop.f32.mrb[0].mxu0
    %v6269 = vadd.f32 0.0, %v6268
    %v6270 = vpop.f32.mrb[0].mxu0
    %6271 = vmatprep.mubr.f32.mxu0 0.0
    %6272 = vmatmul.mubr.f32.gmra.mrb[0].mxu0 %v6144
    %v6273 = vpop.f32.mrb[0].mxu0
    %v6274 = vadd.f32 0.0, %v6273
    %v6275 = vpop.f32.mrb[0].mxu0
    %6276 = vmatprep.mubr.f32.mxu0 0.0
    %6277 = vmatmul.mubr.f32.gmra.mrb[0].mxu0 %v6147
    %v6278 = vpop.f32.mrb[0].mxu0
    %v6279 = vadd.f32 0.0, %v6278
    %v6280 = vpop.f32.mrb[0].mxu0
    %6281 = vmatprep.mubr.f32.mxu0 0.0
    %6282 = vmatmul.mubr.f32.gmra.mrb[0].mxu0 %v6150
    %v6283 = vpop.f32.mrb[0].mxu0
    %v6284 = vadd.f32 0.0, %v6283
    %v6285 = vpop.f32.mrb[0].mxu0
    %6286 = vmatprep.mubr.f32.mxu0 0.0
    %6287 = vmatmul.mubr.f32.gmra.mrb[0].mxu0 %v6153
    %v6288 = vpop.f32.mrb[0].mxu0
    %v6289 = vadd.f32 0.0, %v6288
    %v6290 = vpop.f32.mrb[0].mxu0
    %6291 = vmatprep.mubr.f32.mxu0 0.0
    %6292 = vmatmul.mubr.f32.gmra.mrb[0].mxu0 %v6156
    %v6293 = vpop.f32.mrb[0].mxu0
    %v6294 = vadd.f32 0.0, %v6293
    %v6295 = vpop.f32.mrb[0].mxu0
    %6296 = vmatprep.mubr.f32.mxu0 0.0
    %6297 = vmatmul.mubr.f32.gmra.mrb[0].mxu0 %v6159
    %v6298 = vpop.f32.mrb[0].mxu0
    %v6299 = vadd.f32 0.0, %v6298
    %v6300 = vpop.f32.mrb[0].mxu0
    %6301 = vmatprep.mubr.f32.mxu0 0.0
    %6302 = vmatmul.mubr.f32.gmra.mrb[0].mxu0 %v6162
    %v6303 = vpop.f32.mrb[0].mxu0
    %v6304 = vadd.f32 0.0, %v6303
    %v6305 = vpop.f32.mrb[0].mxu0
    %6306 = vmatprep.mubr.f32.mxu0 0.0
    %6307 = vmatmul.mubr.f32.gmra.mrb[0].mxu0 %v6165
    %v6308 = vpop.f32.mrb[0].mxu0
    %v6309 = vadd.f32 0.0, %v6308
    %v6310 = vpop.f32.mrb[0].mxu0
    %6311 = vdwg.mxu0
    %v6312 = vadd.f32 %v5949, %v6234
    %v6313 = vadd.f32 %v5950, %v6239
    %v6314 = vadd.f32 %v5951, %v6244
    %v6315 = vadd.f32 %v5952, %v6249
    %v6316 = vadd.f32 %v5953, %v6254
    %v6317 = vadd.f32 %v5954, %v6259
    %v6318 = vadd.f32 %v5955, %v6264
    %v6319 = vadd.f32 %v5956, %v6269
    %v6320 = vadd.f32 %v5957, %v6274
    %v6321 = vadd.f32 %v5958, %v6279
    %v6322 = vadd.f32 %v5959, %v6284
    %v6323 = vadd.f32 %v5960, %v6289
    %v6324 = vadd.f32 %v5961, %v6294
    %v6325 = vadd.f32 %v5962, %v6299
    %v6326 = vadd.f32 %v5963, %v6304
    %v6327 = vadd.f32 %v5964, %v6309
    %6328 = vmatprep.subr.mxu0 0.0
    %6329 = vmatpush1.msra.mxu0 %v3440
    %6330 = vmatprep.subr.mxu0 0.0
    %6331 = vmatpush1.msra.mxu0 %v3441
    %6332 = vmatprep.subr.mxu0 0.0
    %6333 = vmatpush1.msra.mxu0 %v3442
    %6334 = vmatprep.subr.mxu0 0.0
    %6335 = vmatpush1.msra.mxu0 %v3443
    %6336 = vmatprep.subr.mxu0 0.0
    %6337 = vmatpush1.msra.mxu0 %v3444
    %6338 = vmatprep.subr.mxu0 0.0
    %6339 = vmatpush1.msra.mxu0 %v3445
    %6340 = vmatprep.subr.mxu0 0.0
    %6341 = vmatpush1.msra.mxu0 %v3446
    %6342 = vmatprep.subr.mxu0 0.0
    %6343 = vmatpush1.msra.mxu0 %v3447
    %6344 = vmatprep.subr.mxu0 0.0
    %6345 = vmatpush1.msra.mxu0 %v3448
    %6346 = vmatprep.subr.mxu0 0.0
    %6347 = vmatpush1.msra.mxu0 %v3449
    %6348 = vmatprep.subr.mxu0 0.0
    %6349 = vmatpush1.msra.mxu0 %v3450
    %6350 = vmatprep.subr.mxu0 0.0
    %6351 = vmatpush1.msra.mxu0 %v3451
    %6352 = vmatprep.subr.mxu0 0.0
    %6353 = vmatpush1.msra.mxu0 %v3452
    %6354 = vmatprep.subr.mxu0 0.0
    %6355 = vmatpush1.msra.mxu0 %v3453
    %6356 = vmatprep.subr.mxu0 0.0
    %6357 = vmatpush1.msra.mxu0 %v3454
    %6358 = vmatprep.subr.mxu0 0.0
    %6359 = vmatpush1.msra.mxu0 %v3455
    %6360 = vmatprep.subr.mxu0 0.0
    %6361 = vmatpush1.msra.mxu0 0.0
    %6362 = vmatprep.subr.mxu0 0.0
    %6363 = vmatpush1.msra.mxu0 0.0
    %6364 = vmatprep.subr.mxu0 0.0
    %6365 = vmatpush1.msra.mxu0 0.0
    %6366 = vmatprep.subr.mxu0 0.0
    %6367 = vmatpush1.msra.mxu0 0.0
    %6368 = vmatprep.subr.mxu0 0.0
    %6369 = vmatpush1.msra.mxu0 0.0
    %6370 = vmatprep.subr.mxu0 0.0
    %6371 = vmatpush1.msra.mxu0 0.0
    %6372 = vmatprep.subr.mxu0 0.0
    %6373 = vmatpush1.msra.mxu0 0.0
    %6374 = vmatprep.subr.mxu0 0.0
    %6375 = vmatpush1.msra.mxu0 0.0
    %6376 = vmatprep.subr.mxu0 0.0
    %6377 = vmatpush1.msra.mxu0 0.0
    %6378 = vmatprep.subr.mxu0 0.0
    %6379 = vmatpush1.msra.mxu0 0.0
    %6380 = vmatprep.subr.mxu0 0.0
    %6381 = vmatpush1.msra.mxu0 0.0
    %6382 = vmatprep.subr.mxu0 0.0
    %6383 = vmatpush1.msra.mxu0 0.0
    %6384 = vmatprep.subr.mxu0 0.0
    %6385 = vmatpush1.msra.mxu0 0.0
    %6386 = vmatprep.subr.mxu0 0.0
    %6387 = vmatpush1.msra.mxu0 0.0
    %6388 = vmatprep.subr.mxu0 0.0
    %6389 = vmatpush1.msra.mxu0 0.0
    %6390 = vmatprep.subr.mxu0 0.0
    %6391 = vmatpush1.msra.mxu0 0.0
    %6392 = vmatprep.mubr.f32.mxu0 0.0
    %6393 = vmatmul.mubr.f32.gmra.mrb[0].mxu0 %v3045
    %v6394 = vpop.f32.mrb[0].mxu0
    %v6395 = vadd.f32 0.0, %v6394
    %v6396 = vpop.f32.mrb[0].mxu0
    %6397 = vmatprep.mubr.f32.mxu0 0.0
    %6398 = vmatmul.mubr.f32.gmra.mrb[0].mxu0 %v3046
    %v6399 = vpop.f32.mrb[0].mxu0
    %v6400 = vadd.f32 0.0, %v6399
    %v6401 = vpop.f32.mrb[0].mxu0
    %6402 = vmatprep.mubr.f32.mxu0 0.0
    %6403 = vmatmul.mubr.f32.gmra.mrb[0].mxu0 %v3047
    %v6404 = vpop.f32.mrb[0].mxu0
    %v6405 = vadd.f32 0.0, %v6404
    %v6406 = vpop.f32.mrb[0].mxu0
    %6407 = vmatprep.mubr.f32.mxu0 0.0
    %6408 = vmatmul.mubr.f32.gmra.mrb[0].mxu0 %v3048
    %v6409 = vpop.f32.mrb[0].mxu0
    %v6410 = vadd.f32 0.0, %v6409
    %v6411 = vpop.f32.mrb[0].mxu0
    %6412 = vmatprep.mubr.f32.mxu0 0.0
    %6413 = vmatmul.mubr.f32.gmra.mrb[0].mxu0 %v3049
    %v6414 = vpop.f32.mrb[0].mxu0
    %v6415 = vadd.f32 0.0, %v6414
    %v6416 = vpop.f32.mrb[0].mxu0
    %6417 = vmatprep.mubr.f32.mxu0 0.0
    %6418 = vmatmul.mubr.f32.gmra.mrb[0].mxu0 %v3050
    %v6419 = vpop.f32.mrb[0].mxu0
    %v6420 = vadd.f32 0.0, %v6419
    %v6421 = vpop.f32.mrb[0].mxu0
    %6422 = vmatprep.mubr.f32.mxu0 0.0
    %6423 = vmatmul.mubr.f32.gmra.mrb[0].mxu0 %v3051
    %v6424 = vpop.f32.mrb[0].mxu0
    %v6425 = vadd.f32 0.0, %v6424
    %v6426 = vpop.f32.mrb[0].mxu0
    %6427 = vmatprep.mubr.f32.mxu0 0.0
    %6428 = vmatmul.mubr.f32.gmra.mrb[0].mxu0 %v3052
    %v6429 = vpop.f32.mrb[0].mxu0
    %v6430 = vadd.f32 0.0, %v6429
    %v6431 = vpop.f32.mrb[0].mxu0
    %6432 = vmatprep.mubr.f32.mxu0 0.0
    %6433 = vmatmul.mubr.f32.gmra.mrb[0].mxu0 %v3053
    %v6434 = vpop.f32.mrb[0].mxu0
    %v6435 = vadd.f32 0.0, %v6434
    %v6436 = vpop.f32.mrb[0].mxu0
    %6437 = vmatprep.mubr.f32.mxu0 0.0
    %6438 = vmatmul.mubr.f32.gmra.mrb[0].mxu0 %v3054
    %v6439 = vpop.f32.mrb[0].mxu0
    %v6440 = vadd.f32 0.0, %v6439
    %v6441 = vpop.f32.mrb[0].mxu0
    %6442 = vmatprep.mubr.f32.mxu0 0.0
    %6443 = vmatmul.mubr.f32.gmra.mrb[0].mxu0 %v3055
    %v6444 = vpop.f32.mrb[0].mxu0
    %v6445 = vadd.f32 0.0, %v6444
    %v6446 = vpop.f32.mrb[0].mxu0
    %6447 = vmatprep.mubr.f32.mxu0 0.0
    %6448 = vmatmul.mubr.f32.gmra.mrb[0].mxu0 %v3056
    %v6449 = vpop.f32.mrb[0].mxu0
    %v6450 = vadd.f32 0.0, %v6449
    %v6451 = vpop.f32.mrb[0].mxu0
    %6452 = vmatprep.mubr.f32.mxu0 0.0
    %6453 = vmatmul.mubr.f32.gmra.mrb[0].mxu0 %v3057
    %v6454 = vpop.f32.mrb[0].mxu0
    %v6455 = vadd.f32 0.0, %v6454
    %v6456 = vpop.f32.mrb[0].mxu0
    %6457 = vmatprep.mubr.f32.mxu0 0.0
    %6458 = vmatmul.mubr.f32.gmra.mrb[0].mxu0 %v3058
    %v6459 = vpop.f32.mrb[0].mxu0
    %v6460 = vadd.f32 0.0, %v6459
    %v6461 = vpop.f32.mrb[0].mxu0
    %6462 = vmatprep.mubr.f32.mxu0 0.0
    %6463 = vmatmul.mubr.f32.gmra.mrb[0].mxu0 %v3059
    %v6464 = vpop.f32.mrb[0].mxu0
    %v6465 = vadd.f32 0.0, %v6464
    %v6466 = vpop.f32.mrb[0].mxu0
    %6467 = vmatprep.mubr.f32.mxu0 0.0
    %6468 = vmatmul.mubr.f32.gmra.mrb[0].mxu0 %v3060
    %v6469 = vpop.f32.mrb[0].mxu0
    %v6470 = vadd.f32 0.0, %v6469
    %v6471 = vpop.f32.mrb[0].mxu0
    %6472 = vdwg.mxu0
    %s6473 = scalar_lea.vmem [#allocation4], 512
    %v6474 = vld [vmem:[%s6473] sm:$0xff]
    %v6475 = vld [vmem:[%s6473 + $0x8] sm:$0xff]
    %v6476 = vld [vmem:[%s6473 + $0x10] sm:$0xff]
    %v6477 = vld [vmem:[%s6473 + $0x18] sm:$0xff]
    %v6478 = vld [vmem:[%s6473 + $0x20] sm:$0xff]
    %v6479 = vld [vmem:[%s6473 + $0x28] sm:$0xff]
    %v6480 = vld [vmem:[%s6473 + $0x30] sm:$0xff]
    %v6481 = vld [vmem:[%s6473 + $0x38] sm:$0xff]
    %v6483 = vsel %vm3763, %v6395, 0
    %v6486 = vsel %vm3763, %v6400, 0
    %v6489 = vsel %vm3763, %v6405, 0
    %v6492 = vsel %vm3763, %v6410, 0
    %v6495 = vsel %vm3763, %v6415, 0
    %v6498 = vsel %vm3763, %v6420, 0
    %v6501 = vsel %vm3763, %v6425, 0
    %v6504 = vsel %vm3763, %v6430, 0
    %v6507 = vsel %vm3763, %v6435, 0
    %v6510 = vsel %vm3763, %v6440, 0
    %v6513 = vsel %vm3763, %v6445, 0
    %v6516 = vsel %vm3763, %v6450, 0
    %v6519 = vsel %vm3763, %v6455, 0
    %v6522 = vsel %vm3763, %v6460, 0
    %v6525 = vsel %vm3763, %v6465, 0
    %v6528 = vsel %vm3763, %v6470, 0
    %6530 = vmatprep.subr.mxu0 0.0
    %6531 = vmatpush1.msra.mxu0 %v6474
    %6532 = vmatprep.subr.mxu0 0.0
    %6533 = vmatpush1.msra.mxu0 %v6475
    %6534 = vmatprep.subr.mxu0 0.0
    %6535 = vmatpush1.msra.mxu0 %v6476
    %6536 = vmatprep.subr.mxu0 0.0
    %6537 = vmatpush1.msra.mxu0 %v6477
    %6538 = vmatprep.subr.mxu0 0.0
    %6539 = vmatpush1.msra.mxu0 %v6478
    %6540 = vmatprep.subr.mxu0 0.0
    %6541 = vmatpush1.msra.mxu0 %v6479
    %6542 = vmatprep.subr.mxu0 0.0
    %6543 = vmatpush1.msra.mxu0 %v6480
    %6544 = vmatprep.subr.mxu0 0.0
    %6545 = vmatpush1.msra.mxu0 %v6481
    %6546 = vmatprep.subr.mxu0 0.0
    %6547 = vmatpush1.msra.mxu0 0.0
    %6548 = vmatprep.subr.mxu0 0.0
    %6549 = vmatpush1.msra.mxu0 0.0
    %6550 = vmatprep.subr.mxu0 0.0
    %6551 = vmatpush1.msra.mxu0 0.0
    %6552 = vmatprep.subr.mxu0 0.0
    %6553 = vmatpush1.msra.mxu0 0.0
    %6554 = vmatprep.subr.mxu0 0.0
    %6555 = vmatpush1.msra.mxu0 0.0
    %6556 = vmatprep.subr.mxu0 0.0
    %6557 = vmatpush1.msra.mxu0 0.0
    %6558 = vmatprep.subr.mxu0 0.0
    %6559 = vmatpush1.msra.mxu0 0.0
    %6560 = vmatprep.subr.mxu0 0.0
    %6561 = vmatpush1.msra.mxu0 0.0
    %6562 = vmatprep.subr.mxu0 0.0
    %6563 = vmatpush1.msra.mxu0 0.0
    %6564 = vmatprep.subr.mxu0 0.0
    %6565 = vmatpush1.msra.mxu0 0.0
    %6566 = vmatprep.subr.mxu0 0.0
    %6567 = vmatpush1.msra.mxu0 0.0
    %6568 = vmatprep.subr.mxu0 0.0
    %6569 = vmatpush1.msra.mxu0 0.0
    %6570 = vmatprep.subr.mxu0 0.0
    %6571 = vmatpush1.msra.mxu0 0.0
    %6572 = vmatprep.subr.mxu0 0.0
    %6573 = vmatpush1.msra.mxu0 0.0
    %6574 = vmatprep.subr.mxu0 0.0
    %6575 = vmatpush1.msra.mxu0 0.0
    %6576 = vmatprep.subr.mxu0 0.0
    %6577 = vmatpush1.msra.mxu0 0.0
    %6578 = vmatprep.subr.mxu0 0.0
    %6579 = vmatpush1.msra.mxu0 0.0
    %6580 = vmatprep.subr.mxu0 0.0
    %6581 = vmatpush1.msra.mxu0 0.0
    %6582 = vmatprep.subr.mxu0 0.0
    %6583 = vmatpush1.msra.mxu0 0.0
    %6584 = vmatprep.subr.mxu0 0.0
    %6585 = vmatpush1.msra.mxu0 0.0
    %6586 = vmatprep.subr.mxu0 0.0
    %6587 = vmatpush1.msra.mxu0 0.0
    %6588 = vmatprep.subr.mxu0 0.0
    %6589 = vmatpush1.msra.mxu0 0.0
    %6590 = vmatprep.subr.mxu0 0.0
    %6591 = vmatpush1.msra.mxu0 0.0
    %6592 = vmatprep.subr.mxu0 0.0
    %6593 = vmatpush1.msra.mxu0 0.0
    %6594 = vmatprep.mubr.f32.mxu0 0.0
    %6595 = vmatmul.mubr.f32.gmra.mrb[0].mxu0 %v6483
    %v6596 = vpop.f32.mrb[0].mxu0
    %v6597 = vadd.f32 0.0, %v6596
    %v6598 = vpop.f32.mrb[0].mxu0
    %6599 = vmatprep.mubr.f32.mxu0 0.0
    %6600 = vmatmul.mubr.f32.gmra.mrb[0].mxu0 %v6486
    %v6601 = vpop.f32.mrb[0].mxu0
    %v6602 = vadd.f32 0.0, %v6601
    %v6603 = vpop.f32.mrb[0].mxu0
    %6604 = vmatprep.mubr.f32.mxu0 0.0
    %6605 = vmatmul.mubr.f32.gmra.mrb[0].mxu0 %v6489
    %v6606 = vpop.f32.mrb[0].mxu0
    %v6607 = vadd.f32 0.0, %v6606
    %v6608 = vpop.f32.mrb[0].mxu0
    %6609 = vmatprep.mubr.f32.mxu0 0.0
    %6610 = vmatmul.mubr.f32.gmra.mrb[0].mxu0 %v6492
    %v6611 = vpop.f32.mrb[0].mxu0
    %v6612 = vadd.f32 0.0, %v6611
    %v6613 = vpop.f32.mrb[0].mxu0
    %6614 = vmatprep.mubr.f32.mxu0 0.0
    %6615 = vmatmul.mubr.f32.gmra.mrb[0].mxu0 %v6495
    %v6616 = vpop.f32.mrb[0].mxu0
    %v6617 = vadd.f32 0.0, %v6616
    %v6618 = vpop.f32.mrb[0].mxu0
    %6619 = vmatprep.mubr.f32.mxu0 0.0
    %6620 = vmatmul.mubr.f32.gmra.mrb[0].mxu0 %v6498
    %v6621 = vpop.f32.mrb[0].mxu0
    %v6622 = vadd.f32 0.0, %v6621
    %v6623 = vpop.f32.mrb[0].mxu0
    %6624 = vmatprep.mubr.f32.mxu0 0.0
    %6625 = vmatmul.mubr.f32.gmra.mrb[0].mxu0 %v6501
    %v6626 = vpop.f32.mrb[0].mxu0
    %v6627 = vadd.f32 0.0, %v6626
    %v6628 = vpop.f32.mrb[0].mxu0
    %6629 = vmatprep.mubr.f32.mxu0 0.0
    %6630 = vmatmul.mubr.f32.gmra.mrb[0].mxu0 %v6504
    %v6631 = vpop.f32.mrb[0].mxu0
    %v6632 = vadd.f32 0.0, %v6631
    %v6633 = vpop.f32.mrb[0].mxu0
    %6634 = vmatprep.mubr.f32.mxu0 0.0
    %6635 = vmatmul.mubr.f32.gmra.mrb[0].mxu0 %v6507
    %v6636 = vpop.f32.mrb[0].mxu0
    %v6637 = vadd.f32 0.0, %v6636
    %v6638 = vpop.f32.mrb[0].mxu0
    %6639 = vmatprep.mubr.f32.mxu0 0.0
    %6640 = vmatmul.mubr.f32.gmra.mrb[0].mxu0 %v6510
    %v6641 = vpop.f32.mrb[0].mxu0
    %v6642 = vadd.f32 0.0, %v6641
    %v6643 = vpop.f32.mrb[0].mxu0
    %6644 = vmatprep.mubr.f32.mxu0 0.0
    %6645 = vmatmul.mubr.f32.gmra.mrb[0].mxu0 %v6513
    %v6646 = vpop.f32.mrb[0].mxu0
    %v6647 = vadd.f32 0.0, %v6646
    %v6648 = vpop.f32.mrb[0].mxu0
    %6649 = vmatprep.mubr.f32.mxu0 0.0
    %6650 = vmatmul.mubr.f32.gmra.mrb[0].mxu0 %v6516
    %v6651 = vpop.f32.mrb[0].mxu0
    %v6652 = vadd.f32 0.0, %v6651
    %v6653 = vpop.f32.mrb[0].mxu0
    %6654 = vmatprep.mubr.f32.mxu0 0.0
    %6655 = vmatmul.mubr.f32.gmra.mrb[0].mxu0 %v6519
    %v6656 = vpop.f32.mrb[0].mxu0
    %v6657 = vadd.f32 0.0, %v6656
    %v6658 = vpop.f32.mrb[0].mxu0
    %6659 = vmatprep.mubr.f32.mxu0 0.0
    %6660 = vmatmul.mubr.f32.gmra.mrb[0].mxu0 %v6522
    %v6661 = vpop.f32.mrb[0].mxu0
    %v6662 = vadd.f32 0.0, %v6661
    %v6663 = vpop.f32.mrb[0].mxu0
    %6664 = vmatprep.mubr.f32.mxu0 0.0
    %6665 = vmatmul.mubr.f32.gmra.mrb[0].mxu0 %v6525
    %v6666 = vpop.f32.mrb[0].mxu0
    %v6667 = vadd.f32 0.0, %v6666
    %v6668 = vpop.f32.mrb[0].mxu0
    %6669 = vmatprep.mubr.f32.mxu0 0.0
    %6670 = vmatmul.mubr.f32.gmra.mrb[0].mxu0 %v6528
    %v6671 = vpop.f32.mrb[0].mxu0
    %v6672 = vadd.f32 0.0, %v6671
    %v6673 = vpop.f32.mrb[0].mxu0
    %6674 = vdwg.mxu0
    %v6675 = vadd.f32 %v6312, %v6597
    %v6676 = vadd.f32 %v6313, %v6602
    %v6677 = vadd.f32 %v6314, %v6607
    %v6678 = vadd.f32 %v6315, %v6612
    %v6679 = vadd.f32 %v6316, %v6617
    %v6680 = vadd.f32 %v6317, %v6622
    %v6681 = vadd.f32 %v6318, %v6627
    %v6682 = vadd.f32 %v6319, %v6632
    %v6683 = vadd.f32 %v6320, %v6637
    %v6684 = vadd.f32 %v6321, %v6642
    %v6685 = vadd.f32 %v6322, %v6647
    %v6686 = vadd.f32 %v6323, %v6652
    %v6687 = vadd.f32 %v6324, %v6657
    %v6688 = vadd.f32 %v6325, %v6662
    %v6689 = vadd.f32 %v6326, %v6667
    %v6690 = vadd.f32 %v6327, %v6672
    %v6691 = vld [vmem:[%s6] sm:$0x1]
    %v6693 = vlaneseq
    %v6694 = vshrl.u32 %v6693, 7
    %v6695 = vsub.s32 0, %v6694
    %v6696 = vrot.slane %v6691, %v6695
    %v6698 = vadd.f32 %v6675, %v6696
    %v6699 = vadd.f32 %v6676, %v6696
    %v6700 = vadd.f32 %v6677, %v6696
    %v6701 = vadd.f32 %v6678, %v6696
    %v6702 = vadd.f32 %v6679, %v6696
    %v6703 = vadd.f32 %v6680, %v6696
    %v6704 = vadd.f32 %v6681, %v6696
    %v6705 = vadd.f32 %v6682, %v6696
    %v6706 = vadd.f32 %v6683, %v6696
    %v6707 = vadd.f32 %v6684, %v6696
    %v6708 = vadd.f32 %v6685, %v6696
    %v6709 = vadd.f32 %v6686, %v6696
    %v6710 = vadd.f32 %v6687, %v6696
    %v6711 = vadd.f32 %v6688, %v6696
    %v6712 = vadd.f32 %v6689, %v6696
    %v6713 = vadd.f32 %v6690, %v6696
    %v6714 = vmax.f32 %v6698, 0.0
    %v6715 = vmax.f32 %v6699, 0.0
    %v6716 = vmax.f32 %v6700, 0.0
    %v6717 = vmax.f32 %v6701, 0.0
    %v6718 = vmax.f32 %v6702, 0.0
    %v6719 = vmax.f32 %v6703, 0.0
    %v6720 = vmax.f32 %v6704, 0.0
    %v6721 = vmax.f32 %v6705, 0.0
    %v6722 = vmax.f32 %v6706, 0.0
    %v6723 = vmax.f32 %v6707, 0.0
    %v6724 = vmax.f32 %v6708, 0.0
    %v6725 = vmax.f32 %v6709, 0.0
    %v6726 = vmax.f32 %v6710, 0.0
    %v6727 = vmax.f32 %v6711, 0.0
    %v6728 = vmax.f32 %v6712, 0.0
    %v6729 = vmax.f32 %v6713, 0.0
    %v6730 = vld [vmem:[%s7] sm:$0xff]
    %v6731 = vld [vmem:[%s7 + $0x8] sm:$0xff]
    %v6732 = vld [vmem:[%s7 + $0x10] sm:$0xff]
    %v6733 = vld [vmem:[%s7 + $0x18] sm:$0xff]
    %v6734 = vld [vmem:[%s7 + $0x20] sm:$0xff]
    %v6735 = vld [vmem:[%s7 + $0x28] sm:$0xff]
    %v6736 = vld [vmem:[%s7 + $0x30] sm:$0xff]
    %v6737 = vld [vmem:[%s7 + $0x38] sm:$0xff]
    %v6738 = vld [vmem:[%s8] sm:$0x1]
    %v6740 = vlaneseq
    %v6741 = vshrl.u32 %v6740, 7
    %v6742 = vsub.s32 0, %v6741
    %v6743 = vrot.slane %v6738, %v6742
    %v6746 = vsel %vm3763, %v6714, 0
    %v6749 = vsel %vm3763, %v6715, 0
    %v6752 = vsel %vm3763, %v6716, 0
    %v6755 = vsel %vm3763, %v6717, 0
    %v6758 = vsel %vm3763, %v6718, 0
    %v6761 = vsel %vm3763, %v6719, 0
    %v6764 = vsel %vm3763, %v6720, 0
    %v6767 = vsel %vm3763, %v6721, 0
    %v6770 = vsel %vm3763, %v6722, 0
    %v6773 = vsel %vm3763, %v6723, 0
    %v6776 = vsel %vm3763, %v6724, 0
    %v6779 = vsel %vm3763, %v6725, 0
    %v6782 = vsel %vm3763, %v6726, 0
    %v6785 = vsel %vm3763, %v6727, 0
    %v6788 = vsel %vm3763, %v6728, 0
    %v6791 = vsel %vm3763, %v6729, 0
    %6793 = vmatprep.subr.mxu0 0.0
    %6794 = vmatpush1.msra.mxu0 %v6730
    %6795 = vmatprep.subr.mxu0 0.0
    %6796 = vmatpush1.msra.mxu0 %v6731
    %6797 = vmatprep.subr.mxu0 0.0
    %6798 = vmatpush1.msra.mxu0 %v6732
    %6799 = vmatprep.subr.mxu0 0.0
    %6800 = vmatpush1.msra.mxu0 %v6733
    %6801 = vmatprep.subr.mxu0 0.0
    %6802 = vmatpush1.msra.mxu0 %v6734
    %6803 = vmatprep.subr.mxu0 0.0
    %6804 = vmatpush1.msra.mxu0 %v6735
    %6805 = vmatprep.subr.mxu0 0.0
    %6806 = vmatpush1.msra.mxu0 %v6736
    %6807 = vmatprep.subr.mxu0 0.0
    %6808 = vmatpush1.msra.mxu0 %v6737
    %6809 = vmatprep.subr.mxu0 0.0
    %6810 = vmatpush1.msra.mxu0 0.0
    %6811 = vmatprep.subr.mxu0 0.0
    %6812 = vmatpush1.msra.mxu0 0.0
    %6813 = vmatprep.subr.mxu0 0.0
    %6814 = vmatpush1.msra.mxu0 0.0
    %6815 = vmatprep.subr.mxu0 0.0
    %6816 = vmatpush1.msra.mxu0 0.0
    %6817 = vmatprep.subr.mxu0 0.0
    %6818 = vmatpush1.msra.mxu0 0.0
    %6819 = vmatprep.subr.mxu0 0.0
    %6820 = vmatpush1.msra.mxu0 0.0
    %6821 = vmatprep.subr.mxu0 0.0
    %6822 = vmatpush1.msra.mxu0 0.0
    %6823 = vmatprep.subr.mxu0 0.0
    %6824 = vmatpush1.msra.mxu0 0.0
    %6825 = vmatprep.subr.mxu0 0.0
    %6826 = vmatpush1.msra.mxu0 0.0
    %6827 = vmatprep.subr.mxu0 0.0
    %6828 = vmatpush1.msra.mxu0 0.0
    %6829 = vmatprep.subr.mxu0 0.0
    %6830 = vmatpush1.msra.mxu0 0.0
    %6831 = vmatprep.subr.mxu0 0.0
    %6832 = vmatpush1.msra.mxu0 0.0
    %6833 = vmatprep.subr.mxu0 0.0
    %6834 = vmatpush1.msra.mxu0 0.0
    %6835 = vmatprep.subr.mxu0 0.0
    %6836 = vmatpush1.msra.mxu0 0.0
    %6837 = vmatprep.subr.mxu0 0.0
    %6838 = vmatpush1.msra.mxu0 0.0
    %6839 = vmatprep.subr.mxu0 0.0
    %6840 = vmatpush1.msra.mxu0 0.0
    %6841 = vmatprep.subr.mxu0 0.0
    %6842 = vmatpush1.msra.mxu0 0.0
    %6843 = vmatprep.subr.mxu0 0.0
    %6844 = vmatpush1.msra.mxu0 0.0
    %6845 = vmatprep.subr.mxu0 0.0
    %6846 = vmatpush1.msra.mxu0 0.0
    %6847 = vmatprep.subr.mxu0 0.0
    %6848 = vmatpush1.msra.mxu0 0.0
    %6849 = vmatprep.subr.mxu0 0.0
    %6850 = vmatpush1.msra.mxu0 0.0
    %6851 = vmatprep.subr.mxu0 0.0
    %6852 = vmatpush1.msra.mxu0 0.0
    %6853 = vmatprep.subr.mxu0 0.0
    %6854 = vmatpush1.msra.mxu0 0.0
    %6855 = vmatprep.subr.mxu0 0.0
    %6856 = vmatpush1.msra.mxu0 0.0
    %6857 = vmatprep.mubr.f32.mxu0 0.0
    %6858 = vmatmul.mubr.f32.gmra.mrb[0].mxu0 %v6746
    %v6859 = vpop.f32.mrb[0].mxu0
    %v6860 = vadd.f32 %v6743, %v6859
    %v6861 = vpop.f32.mrb[0].mxu0
    %6862 = vmatprep.mubr.f32.mxu0 0.0
    %6863 = vmatmul.mubr.f32.gmra.mrb[0].mxu0 %v6749
    %v6864 = vpop.f32.mrb[0].mxu0
    %v6865 = vadd.f32 %v6743, %v6864
    %v6866 = vpop.f32.mrb[0].mxu0
    %6867 = vmatprep.mubr.f32.mxu0 0.0
    %6868 = vmatmul.mubr.f32.gmra.mrb[0].mxu0 %v6752
    %v6869 = vpop.f32.mrb[0].mxu0
    %v6870 = vadd.f32 %v6743, %v6869
    %v6871 = vpop.f32.mrb[0].mxu0
    %6872 = vmatprep.mubr.f32.mxu0 0.0
    %6873 = vmatmul.mubr.f32.gmra.mrb[0].mxu0 %v6755
    %v6874 = vpop.f32.mrb[0].mxu0
    %v6875 = vadd.f32 %v6743, %v6874
    %v6876 = vpop.f32.mrb[0].mxu0
    %6877 = vmatprep.mubr.f32.mxu0 0.0
    %6878 = vmatmul.mubr.f32.gmra.mrb[0].mxu0 %v6758
    %v6879 = vpop.f32.mrb[0].mxu0
    %v6880 = vadd.f32 %v6743, %v6879
    %v6881 = vpop.f32.mrb[0].mxu0
    %6882 = vmatprep.mubr.f32.mxu0 0.0
    %6883 = vmatmul.mubr.f32.gmra.mrb[0].mxu0 %v6761
    %v6884 = vpop.f32.mrb[0].mxu0
    %v6885 = vadd.f32 %v6743, %v6884
    %v6886 = vpop.f32.mrb[0].mxu0
    %6887 = vmatprep.mubr.f32.mxu0 0.0
    %6888 = vmatmul.mubr.f32.gmra.mrb[0].mxu0 %v6764
    %v6889 = vpop.f32.mrb[0].mxu0
    %v6890 = vadd.f32 %v6743, %v6889
    %v6891 = vpop.f32.mrb[0].mxu0
    %6892 = vmatprep.mubr.f32.mxu0 0.0
    %6893 = vmatmul.mubr.f32.gmra.mrb[0].mxu0 %v6767
    %v6894 = vpop.f32.mrb[0].mxu0
    %v6895 = vadd.f32 %v6743, %v6894
    %v6896 = vpop.f32.mrb[0].mxu0
    %6897 = vmatprep.mubr.f32.mxu0 0.0
    %6898 = vmatmul.mubr.f32.gmra.mrb[0].mxu0 %v6770
    %v6899 = vpop.f32.mrb[0].mxu0
    %v6900 = vadd.f32 %v6743, %v6899
    %v6901 = vpop.f32.mrb[0].mxu0
    %6902 = vmatprep.mubr.f32.mxu0 0.0
    %6903 = vmatmul.mubr.f32.gmra.mrb[0].mxu0 %v6773
    %v6904 = vpop.f32.mrb[0].mxu0
    %v6905 = vadd.f32 %v6743, %v6904
    %v6906 = vpop.f32.mrb[0].mxu0
    %6907 = vmatprep.mubr.f32.mxu0 0.0
    %6908 = vmatmul.mubr.f32.gmra.mrb[0].mxu0 %v6776
    %v6909 = vpop.f32.mrb[0].mxu0
    %v6910 = vadd.f32 %v6743, %v6909
    %v6911 = vpop.f32.mrb[0].mxu0
    %6912 = vmatprep.mubr.f32.mxu0 0.0
    %6913 = vmatmul.mubr.f32.gmra.mrb[0].mxu0 %v6779
    %v6914 = vpop.f32.mrb[0].mxu0
    %v6915 = vadd.f32 %v6743, %v6914
    %v6916 = vpop.f32.mrb[0].mxu0
    %6917 = vmatprep.mubr.f32.mxu0 0.0
    %6918 = vmatmul.mubr.f32.gmra.mrb[0].mxu0 %v6782
    %v6919 = vpop.f32.mrb[0].mxu0
    %v6920 = vadd.f32 %v6743, %v6919
    %v6921 = vpop.f32.mrb[0].mxu0
    %6922 = vmatprep.mubr.f32.mxu0 0.0
    %6923 = vmatmul.mubr.f32.gmra.mrb[0].mxu0 %v6785
    %v6924 = vpop.f32.mrb[0].mxu0
    %v6925 = vadd.f32 %v6743, %v6924
    %v6926 = vpop.f32.mrb[0].mxu0
    %6927 = vmatprep.mubr.f32.mxu0 0.0
    %6928 = vmatmul.mubr.f32.gmra.mrb[0].mxu0 %v6788
    %v6929 = vpop.f32.mrb[0].mxu0
    %v6930 = vadd.f32 %v6743, %v6929
    %v6931 = vpop.f32.mrb[0].mxu0
    %6932 = vmatprep.mubr.f32.mxu0 0.0
    %6933 = vmatmul.mubr.f32.gmra.mrb[0].mxu0 %v6791
    %v6934 = vpop.f32.mrb[0].mxu0
    %v6935 = vadd.f32 %v6743, %v6934
    %v6936 = vpop.f32.mrb[0].mxu0
    %6937 = vdwg.mxu0
    %v6938 = vmax.f32 %v6860, 0.0
    %v6939 = vmax.f32 %v6865, 0.0
    %v6940 = vmax.f32 %v6870, 0.0
    %v6941 = vmax.f32 %v6875, 0.0
    %v6942 = vmax.f32 %v6880, 0.0
    %v6943 = vmax.f32 %v6885, 0.0
    %v6944 = vmax.f32 %v6890, 0.0
    %v6945 = vmax.f32 %v6895, 0.0
    %v6946 = vmax.f32 %v6900, 0.0
    %v6947 = vmax.f32 %v6905, 0.0
    %v6948 = vmax.f32 %v6910, 0.0
    %v6949 = vmax.f32 %v6915, 0.0
    %v6950 = vmax.f32 %v6920, 0.0
    %v6951 = vmax.f32 %v6925, 0.0
    %v6952 = vmax.f32 %v6930, 0.0
    %v6953 = vmax.f32 %v6935, 0.0
    %v6954 = vld [vmem:[%s9] sm:$0xff]
    %v6955 = vld [vmem:[%s9 + $0x8] sm:$0xff]
    %v6956 = vld [vmem:[%s9 + $0x10] sm:$0xff]
    %v6957 = vld [vmem:[%s9 + $0x18] sm:$0xff]
    %v6958 = vld [vmem:[%s9 + $0x20] sm:$0xff]
    %v6959 = vld [vmem:[%s9 + $0x28] sm:$0xff]
    %v6960 = vld [vmem:[%s9 + $0x30] sm:$0xff]
    %v6961 = vld [vmem:[%s9 + $0x38] sm:$0xff]
    %v6962 = vld [vmem:[%s9 + $0x40] sm:$0xff]
    %v6963 = vld [vmem:[%s9 + $0x48] sm:$0xff]
    %v6964 = vld [vmem:[%s9 + $0x50] sm:$0xff]
    %v6965 = vld [vmem:[%s9 + $0x58] sm:$0xff]
    %v6966 = vld [vmem:[%s9 + $0x60] sm:$0xff]
    %v6967 = vld [vmem:[%s9 + $0x68] sm:$0xff]
    %v6968 = vld [vmem:[%s9 + $0x70] sm:$0xff]
    %v6969 = vld [vmem:[%s9 + $0x78] sm:$0xff]
    %6971 = vset.pattern.permute.xlu0 0
    %6972 = vperm.xlu0 %6971, %v6938
    %v6973 = vpop.permute.xlu0 %6972
    %6976 = vset.pattern.permute.xlu0 0
    %6977 = vperm.xlu0 %6976, %v6939
    %v6978 = vpop.permute.xlu0 %6977
    %6981 = vset.pattern.permute.xlu0 0
    %6982 = vperm.xlu0 %6981, %v6940
    %v6983 = vpop.permute.xlu0 %6982
    %6986 = vset.pattern.permute.xlu0 0
    %6987 = vperm.xlu0 %6986, %v6941
    %v6988 = vpop.permute.xlu0 %6987
    %6991 = vset.pattern.permute.xlu0 0
    %6992 = vperm.xlu0 %6991, %v6942
    %v6993 = vpop.permute.xlu0 %6992
    %6996 = vset.pattern.permute.xlu0 0
    %6997 = vperm.xlu0 %6996, %v6943
    %v6998 = vpop.permute.xlu0 %6997
    %7001 = vset.pattern.permute.xlu0 0
    %7002 = vperm.xlu0 %7001, %v6944
    %v7003 = vpop.permute.xlu0 %7002
    %7006 = vset.pattern.permute.xlu0 0
    %7007 = vperm.xlu0 %7006, %v6945
    %v7008 = vpop.permute.xlu0 %7007
    %7011 = vset.pattern.permute.xlu0 0
    %7012 = vperm.xlu0 %7011, %v6946
    %v7013 = vpop.permute.xlu0 %7012
    %7016 = vset.pattern.permute.xlu0 0
    %7017 = vperm.xlu0 %7016, %v6947
    %v7018 = vpop.permute.xlu0 %7017
    %7021 = vset.pattern.permute.xlu0 0
    %7022 = vperm.xlu0 %7021, %v6948
    %v7023 = vpop.permute.xlu0 %7022
    %7026 = vset.pattern.permute.xlu0 0
    %7027 = vperm.xlu0 %7026, %v6949
    %v7028 = vpop.permute.xlu0 %7027
    %7031 = vset.pattern.permute.xlu0 0
    %7032 = vperm.xlu0 %7031, %v6950
    %v7033 = vpop.permute.xlu0 %7032
    %7036 = vset.pattern.permute.xlu0 0
    %7037 = vperm.xlu0 %7036, %v6951
    %v7038 = vpop.permute.xlu0 %7037
    %7041 = vset.pattern.permute.xlu0 0
    %7042 = vperm.xlu0 %7041, %v6952
    %v7043 = vpop.permute.xlu0 %7042
    %7046 = vset.pattern.permute.xlu0 0
    %7047 = vperm.xlu0 %7046, %v6953
    %v7048 = vpop.permute.xlu0 %7047
    %v7050 = vmul.f32 %v6973, %v6954
    %v7051 = vmul.f32 %v6978, %v6955
    %v7052 = vmul.f32 %v6983, %v6956
    %v7053 = vmul.f32 %v6988, %v6957
    %v7054 = vmul.f32 %v6993, %v6958
    %v7055 = vmul.f32 %v6998, %v6959
    %v7056 = vmul.f32 %v7003, %v6960
    %v7057 = vmul.f32 %v7008, %v6961
    %v7058 = vmul.f32 %v7013, %v6962
    %v7059 = vmul.f32 %v7018, %v6963
    %v7060 = vmul.f32 %v7023, %v6964
    %v7061 = vmul.f32 %v7028, %v6965
    %v7062 = vmul.f32 %v7033, %v6966
    %v7063 = vmul.f32 %v7038, %v6967
    %v7064 = vmul.f32 %v7043, %v6968
    %v7065 = vmul.f32 %v7048, %v6969
    %s7066 = scalar_lea.vmem %s9, 128
    %v7067 = vld [vmem:[%s7066] sm:$0xff]
    %v7068 = vld [vmem:[%s7066 + $0x8] sm:$0xff]
    %v7069 = vld [vmem:[%s7066 + $0x10] sm:$0xff]
    %v7070 = vld [vmem:[%s7066 + $0x18] sm:$0xff]
    %v7071 = vld [vmem:[%s7066 + $0x20] sm:$0xff]
    %v7072 = vld [vmem:[%s7066 + $0x28] sm:$0xff]
    %v7073 = vld [vmem:[%s7066 + $0x30] sm:$0xff]
    %v7074 = vld [vmem:[%s7066 + $0x38] sm:$0xff]
    %v7075 = vld [vmem:[%s7066 + $0x40] sm:$0xff]
    %v7076 = vld [vmem:[%s7066 + $0x48] sm:$0xff]
    %v7077 = vld [vmem:[%s7066 + $0x50] sm:$0xff]
    %v7078 = vld [vmem:[%s7066 + $0x58] sm:$0xff]
    %v7079 = vld [vmem:[%s7066 + $0x60] sm:$0xff]
    %v7080 = vld [vmem:[%s7066 + $0x68] sm:$0xff]
    %v7081 = vld [vmem:[%s7066 + $0x70] sm:$0xff]
    %v7082 = vld [vmem:[%s7066 + $0x78] sm:$0xff]
    %7083 = vset.pattern.permute.xlu0 1
    %7084 = vperm.xlu0 %7083, %v6938
    %v7085 = vpop.permute.xlu0 %7084
    %7087 = vset.pattern.permute.xlu0 1
    %7088 = vperm.xlu0 %7087, %v6939
    %v7089 = vpop.permute.xlu0 %7088
    %7091 = vset.pattern.permute.xlu0 1
    %7092 = vperm.xlu0 %7091, %v6940
    %v7093 = vpop.permute.xlu0 %7092
    %7095 = vset.pattern.permute.xlu0 1
    %7096 = vperm.xlu0 %7095, %v6941
    %v7097 = vpop.permute.xlu0 %7096
    %7099 = vset.pattern.permute.xlu0 1
    %7100 = vperm.xlu0 %7099, %v6942
    %v7101 = vpop.permute.xlu0 %7100
    %7103 = vset.pattern.permute.xlu0 1
    %7104 = vperm.xlu0 %7103, %v6943
    %v7105 = vpop.permute.xlu0 %7104
    %7107 = vset.pattern.permute.xlu0 1
    %7108 = vperm.xlu0 %7107, %v6944
    %v7109 = vpop.permute.xlu0 %7108
    %7111 = vset.pattern.permute.xlu0 1
    %7112 = vperm.xlu0 %7111, %v6945
    %v7113 = vpop.permute.xlu0 %7112
    %7115 = vset.pattern.permute.xlu0 1
    %7116 = vperm.xlu0 %7115, %v6946
    %v7117 = vpop.permute.xlu0 %7116
    %7119 = vset.pattern.permute.xlu0 1
    %7120 = vperm.xlu0 %7119, %v6947
    %v7121 = vpop.permute.xlu0 %7120
    %7123 = vset.pattern.permute.xlu0 1
    %7124 = vperm.xlu0 %7123, %v6948
    %v7125 = vpop.permute.xlu0 %7124
    %7127 = vset.pattern.permute.xlu0 1
    %7128 = vperm.xlu0 %7127, %v6949
    %v7129 = vpop.permute.xlu0 %7128
    %7131 = vset.pattern.permute.xlu0 1
    %7132 = vperm.xlu0 %7131, %v6950
    %v7133 = vpop.permute.xlu0 %7132
    %7135 = vset.pattern.permute.xlu0 1
    %7136 = vperm.xlu0 %7135, %v6951
    %v7137 = vpop.permute.xlu0 %7136
    %7139 = vset.pattern.permute.xlu0 1
    %7140 = vperm.xlu0 %7139, %v6952
    %v7141 = vpop.permute.xlu0 %7140
    %7143 = vset.pattern.permute.xlu0 1
    %7144 = vperm.xlu0 %7143, %v6953
    %v7145 = vpop.permute.xlu0 %7144
    %v7147 = vmul.f32 %v7085, %v7067
    %v7148 = vmul.f32 %v7089, %v7068
    %v7149 = vmul.f32 %v7093, %v7069
    %v7150 = vmul.f32 %v7097, %v7070
    %v7151 = vmul.f32 %v7101, %v7071
    %v7152 = vmul.f32 %v7105, %v7072
    %v7153 = vmul.f32 %v7109, %v7073
    %v7154 = vmul.f32 %v7113, %v7074
    %v7155 = vmul.f32 %v7117, %v7075
    %v7156 = vmul.f32 %v7121, %v7076
    %v7157 = vmul.f32 %v7125, %v7077
    %v7158 = vmul.f32 %v7129, %v7078
    %v7159 = vmul.f32 %v7133, %v7079
    %v7160 = vmul.f32 %v7137, %v7080
    %v7161 = vmul.f32 %v7141, %v7081
    %v7162 = vmul.f32 %v7145, %v7082
    %v7163 = vadd.f32 %v7050, %v7147
    %v7164 = vadd.f32 %v7051, %v7148
    %v7165 = vadd.f32 %v7052, %v7149
    %v7166 = vadd.f32 %v7053, %v7150
    %v7167 = vadd.f32 %v7054, %v7151
    %v7168 = vadd.f32 %v7055, %v7152
    %v7169 = vadd.f32 %v7056, %v7153
    %v7170 = vadd.f32 %v7057, %v7154
    %v7171 = vadd.f32 %v7058, %v7155
    %v7172 = vadd.f32 %v7059, %v7156
    %v7173 = vadd.f32 %v7060, %v7157
    %v7174 = vadd.f32 %v7061, %v7158
    %v7175 = vadd.f32 %v7062, %v7159
    %v7176 = vadd.f32 %v7063, %v7160
    %v7177 = vadd.f32 %v7064, %v7161
    %v7178 = vadd.f32 %v7065, %v7162
    %v7179 = vld [vmem:[%s2] sm:$0x3]
    %v7180 = vld [vmem:[%s10] sm:$0x1]
    %v7182 = vlaneseq
    %v7183 = vshrl.u32 %v7182, 7
    %v7184 = vsub.s32 0, %v7183
    %v7185 = vrot.slane %v7180, %v7184
    %7187 = vmatprep.subr.mxu0 0.0
    %7188 = vmatpush1.msra.mxu0 %v7163
    %7189 = vmatprep.subr.mxu0 0.0
    %7190 = vmatpush1.msra.mxu0 %v7164
    %7191 = vmatprep.subr.mxu0 0.0
    %7192 = vmatpush1.msra.mxu0 %v7165
    %7193 = vmatprep.subr.mxu0 0.0
    %7194 = vmatpush1.msra.mxu0 %v7166
    %7195 = vmatprep.subr.mxu0 0.0
    %7196 = vmatpush1.msra.mxu0 %v7167
    %7197 = vmatprep.subr.mxu0 0.0
    %7198 = vmatpush1.msra.mxu0 %v7168
    %7199 = vmatprep.subr.mxu0 0.0
    %7200 = vmatpush1.msra.mxu0 %v7169
    %7201 = vmatprep.subr.mxu0 0.0
    %7202 = vmatpush1.msra.mxu0 %v7170
    %7203 = vmatprep.subr.mxu0 0.0
    %7204 = vmatpush1.msra.mxu0 %v7171
    %7205 = vmatprep.subr.mxu0 0.0
    %7206 = vmatpush1.msra.mxu0 %v7172
    %7207 = vmatprep.subr.mxu0 0.0
    %7208 = vmatpush1.msra.mxu0 %v7173
    %7209 = vmatprep.subr.mxu0 0.0
    %7210 = vmatpush1.msra.mxu0 %v7174
    %7211 = vmatprep.subr.mxu0 0.0
    %7212 = vmatpush1.msra.mxu0 %v7175
    %7213 = vmatprep.subr.mxu0 0.0
    %7214 = vmatpush1.msra.mxu0 %v7176
    %7215 = vmatprep.subr.mxu0 0.0
    %7216 = vmatpush1.msra.mxu0 %v7177
    %7217 = vmatprep.subr.mxu0 0.0
    %7218 = vmatpush1.msra.mxu0 %v7178
    %7219 = vmatprep.subr.mxu0 0.0
    %7220 = vmatpush1.msra.mxu0 0.0
    %7221 = vmatprep.subr.mxu0 0.0
    %7222 = vmatpush1.msra.mxu0 0.0
    %7223 = vmatprep.subr.mxu0 0.0
    %7224 = vmatpush1.msra.mxu0 0.0
    %7225 = vmatprep.subr.mxu0 0.0
    %7226 = vmatpush1.msra.mxu0 0.0
    %7227 = vmatprep.subr.mxu0 0.0
    %7228 = vmatpush1.msra.mxu0 0.0
    %7229 = vmatprep.subr.mxu0 0.0
    %7230 = vmatpush1.msra.mxu0 0.0
    %7231 = vmatprep.subr.mxu0 0.0
    %7232 = vmatpush1.msra.mxu0 0.0
    %7233 = vmatprep.subr.mxu0 0.0
    %7234 = vmatpush1.msra.mxu0 0.0
    %7235 = vmatprep.subr.mxu0 0.0
    %7236 = vmatpush1.msra.mxu0 0.0
    %7237 = vmatprep.subr.mxu0 0.0
    %7238 = vmatpush1.msra.mxu0 0.0
    %7239 = vmatprep.subr.mxu0 0.0
    %7240 = vmatpush1.msra.mxu0 0.0
    %7241 = vmatprep.subr.mxu0 0.0
    %7242 = vmatpush1.msra.mxu0 0.0
    %7243 = vmatprep.subr.mxu0 0.0
    %7244 = vmatpush1.msra.mxu0 0.0
    %7245 = vmatprep.subr.mxu0 0.0
    %7246 = vmatpush1.msra.mxu0 0.0
    %7247 = vmatprep.subr.mxu0 0.0
    %7248 = vmatpush1.msra.mxu0 0.0
    %7249 = vmatprep.subr.mxu0 0.0
    %7250 = vmatpush1.msra.mxu0 0.0
    %7251 = vmatprep.mubr.f32.mxu0 0.0
    %7252 = vmatmul.mubr.f32.gmra.mrb[0].mxu0 %v7179
    %v7253 = vpop.f32.mrb[0].mxu0
    %v7254 = vadd.f32 %v7185, %v7253
    %v7255 = vpop.f32.mrb[0].mxu0
    %7256 = vdwg.mxu0
    %vm7257 = vcmask 517120
    %7258 = vst.msk [vmem:[#allocation7] sm:$0x3] %vm7257, %v7254
    %v7259 = vld [vmem:[%s11] sm:$0xff]
    %v7260 = vld [vmem:[%s11 + $0x8] sm:$0xff]
    %v7261 = vld [vmem:[%s11 + $0x10] sm:$0xff]
    %v7262 = vld [vmem:[%s11 + $0x18] sm:$0xff]
    %v7263 = vld [vmem:[%s11 + $0x20] sm:$0xff]
    %v7264 = vld [vmem:[%s11 + $0x28] sm:$0xff]
    %v7265 = vld [vmem:[%s11 + $0x30] sm:$0xff]
    %v7266 = vld [vmem:[%s11 + $0x38] sm:$0xff]
    %v7267 = vld [vmem:[#allocation2] sm:$0x1]
    %v7269 = vlaneseq
    %v7270 = vshrl.u32 %v7269, 7
    %v7271 = vsub.s32 0, %v7270
    %v7272 = vrot.slane %v7267, %v7271
    %7274 = vmatprep.subr.mxu0 0.0
    %7275 = vmatpush1.msra.mxu0 %v7259
    %7276 = vmatprep.subr.mxu0 0.0
    %7277 = vmatpush1.msra.mxu0 %v7260
    %7278 = vmatprep.subr.mxu0 0.0
    %7279 = vmatpush1.msra.mxu0 %v7261
    %7280 = vmatprep.subr.mxu0 0.0
    %7281 = vmatpush1.msra.mxu0 %v7262
    %7282 = vmatprep.subr.mxu0 0.0
    %7283 = vmatpush1.msra.mxu0 %v7263
    %7284 = vmatprep.subr.mxu0 0.0
    %7285 = vmatpush1.msra.mxu0 %v7264
    %7286 = vmatprep.subr.mxu0 0.0
    %7287 = vmatpush1.msra.mxu0 %v7265
    %7288 = vmatprep.subr.mxu0 0.0
    %7289 = vmatpush1.msra.mxu0 %v7266
    %7290 = vmatprep.subr.mxu0 0.0
    %7291 = vmatpush1.msra.mxu0 0.0
    %7292 = vmatprep.subr.mxu0 0.0
    %7293 = vmatpush1.msra.mxu0 0.0
    %7294 = vmatprep.subr.mxu0 0.0
    %7295 = vmatpush1.msra.mxu0 0.0
    %7296 = vmatprep.subr.mxu0 0.0
    %7297 = vmatpush1.msra.mxu0 0.0
    %7298 = vmatprep.subr.mxu0 0.0
    %7299 = vmatpush1.msra.mxu0 0.0
    %7300 = vmatprep.subr.mxu0 0.0
    %7301 = vmatpush1.msra.mxu0 0.0
    %7302 = vmatprep.subr.mxu0 0.0
    %7303 = vmatpush1.msra.mxu0 0.0
    %7304 = vmatprep.subr.mxu0 0.0
    %7305 = vmatpush1.msra.mxu0 0.0
    %7306 = vmatprep.subr.mxu0 0.0
    %7307 = vmatpush1.msra.mxu0 0.0
    %7308 = vmatprep.subr.mxu0 0.0
    %7309 = vmatpush1.msra.mxu0 0.0
    %7310 = vmatprep.subr.mxu0 0.0
    %7311 = vmatpush1.msra.mxu0 0.0
    %7312 = vmatprep.subr.mxu0 0.0
    %7313 = vmatpush1.msra.mxu0 0.0
    %7314 = vmatprep.subr.mxu0 0.0
    %7315 = vmatpush1.msra.mxu0 0.0
    %7316 = vmatprep.subr.mxu0 0.0
    %7317 = vmatpush1.msra.mxu0 0.0
    %7318 = vmatprep.subr.mxu0 0.0
    %7319 = vmatpush1.msra.mxu0 0.0
    %7320 = vmatprep.subr.mxu0 0.0
    %7321 = vmatpush1.msra.mxu0 0.0
    %7322 = vmatprep.subr.mxu0 0.0
    %7323 = vmatpush1.msra.mxu0 0.0
    %7324 = vmatprep.subr.mxu0 0.0
    %7325 = vmatpush1.msra.mxu0 0.0
    %7326 = vmatprep.subr.mxu0 0.0
    %7327 = vmatpush1.msra.mxu0 0.0
    %7328 = vmatprep.subr.mxu0 0.0
    %7329 = vmatpush1.msra.mxu0 0.0
    %7330 = vmatprep.subr.mxu0 0.0
    %7331 = vmatpush1.msra.mxu0 0.0
    %7332 = vmatprep.subr.mxu0 0.0
    %7333 = vmatpush1.msra.mxu0 0.0
    %7334 = vmatprep.subr.mxu0 0.0
    %7335 = vmatpush1.msra.mxu0 0.0
    %7336 = vmatprep.subr.mxu0 0.0
    %7337 = vmatpush1.msra.mxu0 0.0
    %7338 = vmatprep.mubr.f32.mxu0 0.0
    %7339 = vmatmul.mubr.f32.gmra.mrb[0].mxu0 %v6746
    %v7340 = vpop.f32.mrb[0].mxu0
    %v7341 = vadd.f32 %v7272, %v7340
    %v7342 = vpop.f32.mrb[0].mxu0
    %7343 = vmatprep.mubr.f32.mxu0 0.0
    %7344 = vmatmul.mubr.f32.gmra.mrb[0].mxu0 %v6749
    %v7345 = vpop.f32.mrb[0].mxu0
    %v7346 = vadd.f32 %v7272, %v7345
    %v7347 = vpop.f32.mrb[0].mxu0
    %7348 = vmatprep.mubr.f32.mxu0 0.0
    %7349 = vmatmul.mubr.f32.gmra.mrb[0].mxu0 %v6752
    %v7350 = vpop.f32.mrb[0].mxu0
    %v7351 = vadd.f32 %v7272, %v7350
    %v7352 = vpop.f32.mrb[0].mxu0
    %7353 = vmatprep.mubr.f32.mxu0 0.0
    %7354 = vmatmul.mubr.f32.gmra.mrb[0].mxu0 %v6755
    %v7355 = vpop.f32.mrb[0].mxu0
    %v7356 = vadd.f32 %v7272, %v7355
    %v7357 = vpop.f32.mrb[0].mxu0
    %7358 = vmatprep.mubr.f32.mxu0 0.0
    %7359 = vmatmul.mubr.f32.gmra.mrb[0].mxu0 %v6758
    %v7360 = vpop.f32.mrb[0].mxu0
    %v7361 = vadd.f32 %v7272, %v7360
    %v7362 = vpop.f32.mrb[0].mxu0
    %7363 = vmatprep.mubr.f32.mxu0 0.0
    %7364 = vmatmul.mubr.f32.gmra.mrb[0].mxu0 %v6761
    %v7365 = vpop.f32.mrb[0].mxu0
    %v7366 = vadd.f32 %v7272, %v7365
    %v7367 = vpop.f32.mrb[0].mxu0
    %7368 = vmatprep.mubr.f32.mxu0 0.0
    %7369 = vmatmul.mubr.f32.gmra.mrb[0].mxu0 %v6764
    %v7370 = vpop.f32.mrb[0].mxu0
    %v7371 = vadd.f32 %v7272, %v7370
    %v7372 = vpop.f32.mrb[0].mxu0
    %7373 = vmatprep.mubr.f32.mxu0 0.0
    %7374 = vmatmul.mubr.f32.gmra.mrb[0].mxu0 %v6767
    %v7375 = vpop.f32.mrb[0].mxu0
    %v7376 = vadd.f32 %v7272, %v7375
    %v7377 = vpop.f32.mrb[0].mxu0
    %7378 = vmatprep.mubr.f32.mxu0 0.0
    %7379 = vmatmul.mubr.f32.gmra.mrb[0].mxu0 %v6770
    %v7380 = vpop.f32.mrb[0].mxu0
    %v7381 = vadd.f32 %v7272, %v7380
    %v7382 = vpop.f32.mrb[0].mxu0
    %7383 = vmatprep.mubr.f32.mxu0 0.0
    %7384 = vmatmul.mubr.f32.gmra.mrb[0].mxu0 %v6773
    %v7385 = vpop.f32.mrb[0].mxu0
    %v7386 = vadd.f32 %v7272, %v7385
    %v7387 = vpop.f32.mrb[0].mxu0
    %7388 = vmatprep.mubr.f32.mxu0 0.0
    %7389 = vmatmul.mubr.f32.gmra.mrb[0].mxu0 %v6776
    %v7390 = vpop.f32.mrb[0].mxu0
    %v7391 = vadd.f32 %v7272, %v7390
    %v7392 = vpop.f32.mrb[0].mxu0
    %7393 = vmatprep.mubr.f32.mxu0 0.0
    %7394 = vmatmul.mubr.f32.gmra.mrb[0].mxu0 %v6779
    %v7395 = vpop.f32.mrb[0].mxu0
    %v7396 = vadd.f32 %v7272, %v7395
    %v7397 = vpop.f32.mrb[0].mxu0
    %7398 = vmatprep.mubr.f32.mxu0 0.0
    %7399 = vmatmul.mubr.f32.gmra.mrb[0].mxu0 %v6782
    %v7400 = vpop.f32.mrb[0].mxu0
    %v7401 = vadd.f32 %v7272, %v7400
    %v7402 = vpop.f32.mrb[0].mxu0
    %7403 = vmatprep.mubr.f32.mxu0 0.0
    %7404 = vmatmul.mubr.f32.gmra.mrb[0].mxu0 %v6785
    %v7405 = vpop.f32.mrb[0].mxu0
    %v7406 = vadd.f32 %v7272, %v7405
    %v7407 = vpop.f32.mrb[0].mxu0
    %7408 = vmatprep.mubr.f32.mxu0 0.0
    %7409 = vmatmul.mubr.f32.gmra.mrb[0].mxu0 %v6788
    %v7410 = vpop.f32.mrb[0].mxu0
    %v7411 = vadd.f32 %v7272, %v7410
    %v7412 = vpop.f32.mrb[0].mxu0
    %7413 = vmatprep.mubr.f32.mxu0 0.0
    %7414 = vmatmul.mubr.f32.gmra.mrb[0].mxu0 %v6791
    %v7415 = vpop.f32.mrb[0].mxu0
    %v7416 = vadd.f32 %v7272, %v7415
    %v7417 = vpop.f32.mrb[0].mxu0
    %7418 = vdwg.mxu0
    %v7419 = vmax.f32 %v7341, 0.0
    %v7420 = vmax.f32 %v7346, 0.0
    %v7421 = vmax.f32 %v7351, 0.0
    %v7422 = vmax.f32 %v7356, 0.0
    %v7423 = vmax.f32 %v7361, 0.0
    %v7424 = vmax.f32 %v7366, 0.0
    %v7425 = vmax.f32 %v7371, 0.0
    %v7426 = vmax.f32 %v7376, 0.0
    %v7427 = vmax.f32 %v7381, 0.0
    %v7428 = vmax.f32 %v7386, 0.0
    %v7429 = vmax.f32 %v7391, 0.0
    %v7430 = vmax.f32 %v7396, 0.0
    %v7431 = vmax.f32 %v7401, 0.0
    %v7432 = vmax.f32 %v7406, 0.0
    %v7433 = vmax.f32 %v7411, 0.0
    %v7434 = vmax.f32 %v7416, 0.0
    %v7435 = vld [vmem:[%s13] sm:$0xff]
    %v7436 = vld [vmem:[%s13 + $0x8] sm:$0xff]
    %v7437 = vld [vmem:[%s13 + $0x10] sm:$0xff]
    %v7438 = vld [vmem:[%s13 + $0x18] sm:$0xff]
    %v7439 = vld [vmem:[%s13 + $0x20] sm:$0xff]
    %v7440 = vld [vmem:[%s13 + $0x28] sm:$0xff]
    %v7441 = vld [vmem:[%s13 + $0x30] sm:$0xff]
    %v7442 = vld [vmem:[%s13 + $0x38] sm:$0xff]
    %v7443 = vld [vmem:[%s13 + $0x40] sm:$0xff]
    %v7444 = vld [vmem:[%s13 + $0x48] sm:$0xff]
    %v7445 = vld [vmem:[%s13 + $0x50] sm:$0xff]
    %v7446 = vld [vmem:[%s13 + $0x58] sm:$0xff]
    %v7447 = vld [vmem:[%s13 + $0x60] sm:$0xff]
    %v7448 = vld [vmem:[%s13 + $0x68] sm:$0xff]
    %v7449 = vld [vmem:[%s13 + $0x70] sm:$0xff]
    %v7450 = vld [vmem:[%s13 + $0x78] sm:$0xff]
    %7452 = vset.pattern.permute.xlu0 0
    %7453 = vperm.xlu0 %7452, %v7419
    %v7454 = vpop.permute.xlu0 %7453
    %7457 = vset.pattern.permute.xlu0 0
    %7458 = vperm.xlu0 %7457, %v7420
    %v7459 = vpop.permute.xlu0 %7458
    %7462 = vset.pattern.permute.xlu0 0
    %7463 = vperm.xlu0 %7462, %v7421
    %v7464 = vpop.permute.xlu0 %7463
    %7467 = vset.pattern.permute.xlu0 0
    %7468 = vperm.xlu0 %7467, %v7422
    %v7469 = vpop.permute.xlu0 %7468
    %7472 = vset.pattern.permute.xlu0 0
    %7473 = vperm.xlu0 %7472, %v7423
    %v7474 = vpop.permute.xlu0 %7473
    %7477 = vset.pattern.permute.xlu0 0
    %7478 = vperm.xlu0 %7477, %v7424
    %v7479 = vpop.permute.xlu0 %7478
    %7482 = vset.pattern.permute.xlu0 0
    %7483 = vperm.xlu0 %7482, %v7425
    %v7484 = vpop.permute.xlu0 %7483
    %7487 = vset.pattern.permute.xlu0 0
    %7488 = vperm.xlu0 %7487, %v7426
    %v7489 = vpop.permute.xlu0 %7488
    %7492 = vset.pattern.permute.xlu0 0
    %7493 = vperm.xlu0 %7492, %v7427
    %v7494 = vpop.permute.xlu0 %7493
    %7497 = vset.pattern.permute.xlu0 0
    %7498 = vperm.xlu0 %7497, %v7428
    %v7499 = vpop.permute.xlu0 %7498
    %7502 = vset.pattern.permute.xlu0 0
    %7503 = vperm.xlu0 %7502, %v7429
    %v7504 = vpop.permute.xlu0 %7503
    %7507 = vset.pattern.permute.xlu0 0
    %7508 = vperm.xlu0 %7507, %v7430
    %v7509 = vpop.permute.xlu0 %7508
    %7512 = vset.pattern.permute.xlu0 0
    %7513 = vperm.xlu0 %7512, %v7431
    %v7514 = vpop.permute.xlu0 %7513
    %7517 = vset.pattern.permute.xlu0 0
    %7518 = vperm.xlu0 %7517, %v7432
    %v7519 = vpop.permute.xlu0 %7518
    %7522 = vset.pattern.permute.xlu0 0
    %7523 = vperm.xlu0 %7522, %v7433
    %v7524 = vpop.permute.xlu0 %7523
    %7527 = vset.pattern.permute.xlu0 0
    %7528 = vperm.xlu0 %7527, %v7434
    %v7529 = vpop.permute.xlu0 %7528
    %v7531 = vmul.f32 %v7454, %v7435
    %v7532 = vmul.f32 %v7459, %v7436
    %v7533 = vmul.f32 %v7464, %v7437
    %v7534 = vmul.f32 %v7469, %v7438
    %v7535 = vmul.f32 %v7474, %v7439
    %v7536 = vmul.f32 %v7479, %v7440
    %v7537 = vmul.f32 %v7484, %v7441
    %v7538 = vmul.f32 %v7489, %v7442
    %v7539 = vmul.f32 %v7494, %v7443
    %v7540 = vmul.f32 %v7499, %v7444
    %v7541 = vmul.f32 %v7504, %v7445
    %v7542 = vmul.f32 %v7509, %v7446
    %v7543 = vmul.f32 %v7514, %v7447
    %v7544 = vmul.f32 %v7519, %v7448
    %v7545 = vmul.f32 %v7524, %v7449
    %v7546 = vmul.f32 %v7529, %v7450
    %v7547 = vld [vmem:[%s2] sm:$0x3]
    %v7548 = vld [vmem:[%s14] sm:$0x1]
    %v7550 = vlaneseq
    %v7551 = vshrl.u32 %v7550, 7
    %v7552 = vsub.s32 0, %v7551
    %v7553 = vrot.slane %v7548, %v7552
    %7555 = vmatprep.subr.mxu0 0.0
    %7556 = vmatpush1.msra.mxu0 %v7531
    %7557 = vmatprep.subr.mxu0 0.0
    %7558 = vmatpush1.msra.mxu0 %v7532
    %7559 = vmatprep.subr.mxu0 0.0
    %7560 = vmatpush1.msra.mxu0 %v7533
    %7561 = vmatprep.subr.mxu0 0.0
    %7562 = vmatpush1.msra.mxu0 %v7534
    %7563 = vmatprep.subr.mxu0 0.0
    %7564 = vmatpush1.msra.mxu0 %v7535
    %7565 = vmatprep.subr.mxu0 0.0
    %7566 = vmatpush1.msra.mxu0 %v7536
    %7567 = vmatprep.subr.mxu0 0.0
    %7568 = vmatpush1.msra.mxu0 %v7537
    %7569 = vmatprep.subr.mxu0 0.0
    %7570 = vmatpush1.msra.mxu0 %v7538
    %7571 = vmatprep.subr.mxu0 0.0
    %7572 = vmatpush1.msra.mxu0 %v7539
    %7573 = vmatprep.subr.mxu0 0.0
    %7574 = vmatpush1.msra.mxu0 %v7540
    %7575 = vmatprep.subr.mxu0 0.0
    %7576 = vmatpush1.msra.mxu0 %v7541
    %7577 = vmatprep.subr.mxu0 0.0
    %7578 = vmatpush1.msra.mxu0 %v7542
    %7579 = vmatprep.subr.mxu0 0.0
    %7580 = vmatpush1.msra.mxu0 %v7543
    %7581 = vmatprep.subr.mxu0 0.0
    %7582 = vmatpush1.msra.mxu0 %v7544
    %7583 = vmatprep.subr.mxu0 0.0
    %7584 = vmatpush1.msra.mxu0 %v7545
    %7585 = vmatprep.subr.mxu0 0.0
    %7586 = vmatpush1.msra.mxu0 %v7546
    %7587 = vmatprep.subr.mxu0 0.0
    %7588 = vmatpush1.msra.mxu0 0.0
    %7589 = vmatprep.subr.mxu0 0.0
    %7590 = vmatpush1.msra.mxu0 0.0
    %7591 = vmatprep.subr.mxu0 0.0
    %7592 = vmatpush1.msra.mxu0 0.0
    %7593 = vmatprep.subr.mxu0 0.0
    %7594 = vmatpush1.msra.mxu0 0.0
    %7595 = vmatprep.subr.mxu0 0.0
    %7596 = vmatpush1.msra.mxu0 0.0
    %7597 = vmatprep.subr.mxu0 0.0
    %7598 = vmatpush1.msra.mxu0 0.0
    %7599 = vmatprep.subr.mxu0 0.0
    %7600 = vmatpush1.msra.mxu0 0.0
    %7601 = vmatprep.subr.mxu0 0.0
    %7602 = vmatpush1.msra.mxu0 0.0
    %7603 = vmatprep.subr.mxu0 0.0
    %7604 = vmatpush1.msra.mxu0 0.0
    %7605 = vmatprep.subr.mxu0 0.0
    %7606 = vmatpush1.msra.mxu0 0.0
    %7607 = vmatprep.subr.mxu0 0.0
    %7608 = vmatpush1.msra.mxu0 0.0
    %7609 = vmatprep.subr.mxu0 0.0
    %7610 = vmatpush1.msra.mxu0 0.0
    %7611 = vmatprep.subr.mxu0 0.0
    %7612 = vmatpush1.msra.mxu0 0.0
    %7613 = vmatprep.subr.mxu0 0.0
    %7614 = vmatpush1.msra.mxu0 0.0
    %7615 = vmatprep.subr.mxu0 0.0
    %7616 = vmatpush1.msra.mxu0 0.0
    %7617 = vmatprep.subr.mxu0 0.0
    %7618 = vmatpush1.msra.mxu0 0.0
    %7619 = vmatprep.mubr.f32.mxu0 0.0
    %7620 = vmatmul.mubr.f32.gmra.mrb[0].mxu0 %v7547
    %v7621 = vpop.f32.mrb[0].mxu0
    %v7622 = vadd.f32 %v7553, %v7621
    %v7623 = vpop.f32.mrb[0].mxu0
    %7624 = vdwg.mxu0
    %v7625 = vmax.f32 %v7622, 0.0
    %v7626 = vld [vmem:[%s15] sm:$0xff]
    %v7627 = vld [vmem:[%s15 + $0x8] sm:$0xff]
    %v7628 = vld [vmem:[%s15 + $0x10] sm:$0xff]
    %v7629 = vld [vmem:[%s15 + $0x18] sm:$0xff]
    %v7630 = vld [vmem:[%s15 + $0x20] sm:$0xff]
    %v7631 = vld [vmem:[%s15 + $0x28] sm:$0xff]
    %v7632 = vld [vmem:[%s15 + $0x30] sm:$0xff]
    %v7633 = vld [vmem:[%s15 + $0x38] sm:$0xff]
    %v7634 = vld [vmem:[#allocation3] sm:$0x1]
    %v7636 = vlaneseq
    %v7637 = vshrl.u32 %v7636, 7
    %v7638 = vsub.s32 0, %v7637
    %v7639 = vrot.slane %v7634, %v7638
    %v7642 = vsel %vm3763, %v7625, 0
    %7644 = vmatprep.subr.mxu0 0.0
    %7645 = vmatpush1.msra.mxu0 %v7626
    %7646 = vmatprep.subr.mxu0 0.0
    %7647 = vmatpush1.msra.mxu0 %v7627
    %7648 = vmatprep.subr.mxu0 0.0
    %7649 = vmatpush1.msra.mxu0 %v7628
    %7650 = vmatprep.subr.mxu0 0.0
    %7651 = vmatpush1.msra.mxu0 %v7629
    %7652 = vmatprep.subr.mxu0 0.0
    %7653 = vmatpush1.msra.mxu0 %v7630
    %7654 = vmatprep.subr.mxu0 0.0
    %7655 = vmatpush1.msra.mxu0 %v7631
    %7656 = vmatprep.subr.mxu0 0.0
    %7657 = vmatpush1.msra.mxu0 %v7632
    %7658 = vmatprep.subr.mxu0 0.0
    %7659 = vmatpush1.msra.mxu0 %v7633
    %7660 = vmatprep.subr.mxu0 0.0
    %7661 = vmatpush1.msra.mxu0 0.0
    %7662 = vmatprep.subr.mxu0 0.0
    %7663 = vmatpush1.msra.mxu0 0.0
    %7664 = vmatprep.subr.mxu0 0.0
    %7665 = vmatpush1.msra.mxu0 0.0
    %7666 = vmatprep.subr.mxu0 0.0
    %7667 = vmatpush1.msra.mxu0 0.0
    %7668 = vmatprep.subr.mxu0 0.0
    %7669 = vmatpush1.msra.mxu0 0.0
    %7670 = vmatprep.subr.mxu0 0.0
    %7671 = vmatpush1.msra.mxu0 0.0
    %7672 = vmatprep.subr.mxu0 0.0
    %7673 = vmatpush1.msra.mxu0 0.0
    %7674 = vmatprep.subr.mxu0 0.0
    %7675 = vmatpush1.msra.mxu0 0.0
    %7676 = vmatprep.subr.mxu0 0.0
    %7677 = vmatpush1.msra.mxu0 0.0
    %7678 = vmatprep.subr.mxu0 0.0
    %7679 = vmatpush1.msra.mxu0 0.0
    %7680 = vmatprep.subr.mxu0 0.0
    %7681 = vmatpush1.msra.mxu0 0.0
    %7682 = vmatprep.subr.mxu0 0.0
    %7683 = vmatpush1.msra.mxu0 0.0
    %7684 = vmatprep.subr.mxu0 0.0
    %7685 = vmatpush1.msra.mxu0 0.0
    %7686 = vmatprep.subr.mxu0 0.0
    %7687 = vmatpush1.msra.mxu0 0.0
    %7688 = vmatprep.subr.mxu0 0.0
    %7689 = vmatpush1.msra.mxu0 0.0
    %7690 = vmatprep.subr.mxu0 0.0
    %7691 = vmatpush1.msra.mxu0 0.0
    %7692 = vmatprep.subr.mxu0 0.0
    %7693 = vmatpush1.msra.mxu0 0.0
    %7694 = vmatprep.subr.mxu0 0.0
    %7695 = vmatpush1.msra.mxu0 0.0
    %7696 = vmatprep.subr.mxu0 0.0
    %7697 = vmatpush1.msra.mxu0 0.0
    %7698 = vmatprep.subr.mxu0 0.0
    %7699 = vmatpush1.msra.mxu0 0.0
    %7700 = vmatprep.subr.mxu0 0.0
    %7701 = vmatpush1.msra.mxu0 0.0
    %7702 = vmatprep.subr.mxu0 0.0
    %7703 = vmatpush1.msra.mxu0 0.0
    %7704 = vmatprep.subr.mxu0 0.0
    %7705 = vmatpush1.msra.mxu0 0.0
    %7706 = vmatprep.subr.mxu0 0.0
    %7707 = vmatpush1.msra.mxu0 0.0
    %7708 = vmatprep.mubr.f32.mxu0 0.0
    %7709 = vmatmul.mubr.f32.gmra.mrb[0].mxu0 %v7642
    %v7710 = vpop.f32.mrb[0].mxu0
    %v7711 = vadd.f32 %v7639, %v7710
    %v7712 = vpop.f32.mrb[0].mxu0
    %7713 = vdwg.mxu0
    %v7714 = vtanh.pop %v7711
    %vm7715 = vcmask 1024
    %7716 = vst.msk [vmem:[%s18] sm:$0x3] %vm7715, %v7714
    // Predicated region
    $region74: #{neural_network_forward.1} parent=1 // pred_check
      _
    $region75: #{neural_network_forward.1} parent=1 // pred_check_branch
      %7718 = sbr.rel (0) target = $region77
    $region76: #{neural_network_forward.1} parent=1 // pred_region
      %s7720 = ssub.s32 32, 32
      %7721 = vsyncadd [#allocation6], %s7720
      %s7723 = sshll.u32 [#allocation7], 4
      %s7724 = int_to_ptr.vmem [resolvable:$true] %s7723
      %7726 = dma.vmem_to_hbm [thread:$0]  %s7724, 32, %s17, [#allocation6]
    $region77: #{neural_network_forward.1} parent=1 // pred_fallthru
      _
    // Predicated region
    $region78: #{neural_network_forward.1} parent=1 // pred_check
      _
    $region79: #{neural_network_forward.1} parent=1 // pred_check_branch
      %7728 = sbr.rel (0) target = $region81
    $region80: #{neural_network_forward.1} parent=1 // pred_region
      _
    $region81: #{neural_network_forward.1} parent=1 // pred_fallthru
      _
    // Predicated region
    $region82: #{neural_network_forward.1} parent=1 // pred_check
      _
    $region83: #{neural_network_forward.1} parent=1 // pred_check_branch
      %7730 = sbr.rel (0) target = $region85
    $region84: #{neural_network_forward.1} parent=1 // pred_region
      %7731 = dma.done [#allocation6], 32
    $region85: #{neural_network_forward.1} parent=1 // pred_fallthru
      _
    // Predicated region
    $region86: #{neural_network_forward.1} parent=1 // pred_check
      _
    $region87: #{neural_network_forward.1} parent=1 // pred_check_branch
      %7733 = sbr.rel (0) target = $region89
    $region88: #{neural_network_forward.1} parent=1 // pred_region
      _
    $region89: #{neural_network_forward.1} parent=1 // pred_fallthru
      _
    %7734 = vsyncpa [#allocation5], 1
    %7735 = vsyncpa [#allocation6], 1

</llo_original>
